<compile_context>
chip_gen: v7x
topology: tpu7x:2x2x1
jax: 0.10.0
libtpu: 0.0.40
codegen_flags: <defaults>
</compile_context>

<pallas_src>
import jax
import jax.numpy as jnp
from jax import lax
from jax.experimental import pallas as pl
from jax.experimental.pallas import tpu as pltpu

HIDDEN = 90        # hidden_size fixed inside the module
LANE = 128
SUB = 8
EDGE_TILE = 256    # edge tile (grid step) per fused-conv invocation


def _round_up(n, m):
    return ((n + m - 1) // m) * m


def _pad2(a, rows, cols):
    out = jnp.zeros((rows, cols), a.dtype)
    return out.at[: a.shape[0], : a.shape[1]].set(a)


# ----------------------------------------------------------------------------
# Kernel 1: fused NNConv layer (edge MLP + gather + message + scatter-add + root + ReLU)
# grid = (num_edge_tiles,)  -- reduction axis; accumulate directly into the resident o_ref.
# ----------------------------------------------------------------------------
def fused_nnconv_kernel(ea_ref, src_ref, dst_ref, x_ref, w1_ref, b1_ref,
                        w2r_ref, root_ref, bias_ref, o_ref):
    te = ea_ref.shape[0]
    n_pad = x_ref.shape[0]
    h_p = w1_ref.shape[1]
    cin_p = w2r_ref.shape[0] // h_p          # contraction Cin (padded to 8, not 128)

    step = pl.program_id(0)

    @pl.when(step == 0)
    def _init():
        o_ref[...] = jnp.zeros_like(o_ref)

    # --- edge weight-net hidden layer (MXU, bf16 operands, f32 accumulate) -------------
    # b1 carries a constant 1.0 in column HIDDEN (bias-fold column); w1's padded columns
    # are zero, so h[:, HIDDEN] == 1.0 exactly for every edge.
    h = jnp.dot(ea_ref[...], w1_ref[...], preferred_element_type=jnp.float32) + b1_ref[...]
    h = jnp.maximum(h, 0.0).astype(jnp.bfloat16)                                # (TE, H_p)

    # --- gather x[src] via in-kernel one-hot (exact in bf16) ---------------------------
    xc = x_ref[:, :cin_p].astype(jnp.bfloat16)                                  # (N_p, Cin_p)
    src = src_ref[...]                                                          # (TE, 1), -1 = padded edge
    onehot_src = (src == lax.broadcasted_iota(jnp.int32, (te, n_pad), 1))
    onehot_src = onehot_src.astype(jnp.float32).astype(jnp.bfloat16)            # i1 -> f32 -> bf16
    x_src = jnp.dot(onehot_src, xc,
                    preferred_element_type=jnp.float32).astype(jnp.bfloat16)    # (TE, Cin_p)

    # --- fused edge-NN output layer + per-edge matvec as ONE bf16 MXU matmul -----------
    #   msg[e] = (x_src[e] (x) h[e]) @ w2r           (H lane-dense inner factor;
    #                                                  b2 folded in via h[:,HIDDEN]==1)
    outer = (x_src[:, :, None] * h[:, None, :]).reshape(te, cin_p * h_p)
    msg = jnp.dot(outer, w2r_ref[...], preferred_element_type=jnp.float32)      # (TE, Cout_p)

    # --- scatter-add into the VMEM-resident output block -------------------------------
    dst = dst_ref[...]                                                          # (1, TE), -1 = padded edge
    scat = (lax.broadcasted_iota(jnp.int32, (n_pad, te), 0) == dst)
    scat = scat.astype(jnp.float32).astype(jnp.bfloat16)
    o_ref[...] += jnp.dot(scat, msg.astype(jnp.bfloat16),
                          preferred_element_type=jnp.float32)

    @pl.when(step == pl.num_programs(0) - 1)
    def _finalize():
        root_t = jnp.dot(xc, root_ref[...], preferred_element_type=jnp.float32)
        # NOTE: padded node rows end up as ReLU(bias) (non-zero) here; they are never
        # referenced by any edge src one-hot or by the batch pooling, so they stay inert.
        o_ref[...] = jnp.maximum(o_ref[...] + root_t + bias_ref[...], 0.0)


def nnconv_layer(ea_p, src_p, dst_p, x_p, w1, b1, w2r, root, bias):
    e_pad, ef_p = ea_p.shape
    n_pad, x_w = x_p.shape
    cout_p = root.shape[1]
    n_tiles = e_pad // EDGE_TILE

    grid_spec = pltpu.PrefetchScalarGridSpec(
        num_scalar_prefetch=0,
        grid=(n_tiles,),
        in_specs=[
            pl.BlockSpec((EDGE_TILE, ef_p), lambda e: (e, 0)),   # edge_attr (streamed, bf16)
            pl.BlockSpec((EDGE_TILE, 1), lambda e: (e, 0)),      # src ids   (streamed)
            pl.BlockSpec((1, EDGE_TILE), lambda e: (0, e)),      # dst ids   (streamed)
            pl.BlockSpec((n_pad, x_w), lambda e: (0, 0)),        # x         (resident)
            pl.BlockSpec(w1.shape, lambda e: (0, 0)),            # weights   (resident)
            pl.BlockSpec(b1.shape, lambda e: (0, 0)),
            pl.BlockSpec(w2r.shape, lambda e: (0, 0)),
            pl.BlockSpec(root.shape, lambda e: (0, 0)),
            pl.BlockSpec(bias.shape, lambda e: (0, 0)),
        ],
        out_specs=pl.BlockSpec((n_pad, cout_p), lambda e: (0, 0)),
    )
    return pl.pallas_call(
        fused_nnconv_kernel,
        out_shape=jax.ShapeDtypeStruct((n_pad, cout_p), jnp.float32),
        grid_spec=grid_spec,
        compiler_params=pltpu.CompilerParams(
            dimension_semantics=("arbitrary",),          # edge axis is a reduction (MUST stay)
            vmem_limit_bytes=40 * 1024 * 1024,           # headroom on v7x's 64 MiB VMEM
        ),
    )(ea_p, src_p, dst_p, x_p, w1, b1, w2r, root, bias)


# ----------------------------------------------------------------------------
# Kernel 2: readout head — global_add_pool (one-hot matmul) + fc_1 + ReLU + out (f32; tiny)
# ----------------------------------------------------------------------------
def head_kernel(batch_ref, x_ref, w1_ref, b1_ref, w2_ref, b2_ref, o_ref):
    b_pad = o_ref.shape[0]
    n_pad = x_ref.shape[0]
    gids = batch_ref[...]                                                      # (1, N_p), -1 = padded node
    pool = (lax.broadcasted_iota(jnp.int32, (b_pad, n_pad), 0) == gids).astype(jnp.float32)
    pooled = jnp.dot(pool, x_ref[...], preferred_element_type=jnp.float32)     # (B_p, C_p)
    hid = jnp.maximum(
        jnp.dot(pooled, w1_ref[...], preferred_element_type=jnp.float32) + b1_ref[...], 0.0)
    o_ref[...] = jnp.dot(hid, w2_ref[...], preferred_element_type=jnp.float32) + b2_ref[...]


def head(batch_p, x_p, fc1_w, fc1_b, out_w, out_b, b_pad):
    vmem = pl.BlockSpec(memory_space=pltpu.MemorySpace.VMEM)
    return pl.pallas_call(
        head_kernel,
        out_shape=jax.ShapeDtypeStruct((b_pad, out_w.shape[1]), jnp.float32),
        in_specs=[vmem] * 6,
        out_specs=vmem,
    )(batch_p, x_p, fc1_w, fc1_b, out_w, out_b)


# ----------------------------------------------------------------------------
# Parameter init (PyTorch-Linear-style uniform bounds) + one-time padding / repacking
# ----------------------------------------------------------------------------
def _linear_params(key, fan_in, fan_out):
    kw, kb = jax.random.split(key)
    bound = 1.0 / (fan_in ** 0.5)
    w = jax.random.uniform(kw, (fan_in, fan_out), jnp.float32, -bound, bound)
    b = jax.random.uniform(kb, (1, fan_out), jnp.float32, -bound, bound)
    return w, b


def init_params(key, node_f, edge_f):
    H = HIDDEN
    ks = jax.random.split(key, 11)
    p = {}
    p["c1_w1"], p["c1_b1"] = _linear_params(ks[0], edge_f, H)
    p["c1_w2"], p["c1_b2"] = _linear_params(ks[1], H, node_f * H)
    p["c2_w1"], p["c2_b1"] = _linear_params(ks[2], edge_f, H)
    p["c2_w2"], p["c2_b2"] = _linear_params(ks[3], H, H * H)
    p["c3_w1"], p["c3_b1"] = _linear_params(ks[4], edge_f, H)
    p["c3_w2"], p["c3_b2"] = _linear_params(ks[5], H, H * (H // 2))
    p["c1_root"], p["c1_bias"] = _linear_params(ks[6], node_f, H)
    p["c2_root"], p["c2_bias"] = _linear_params(ks[7], H, H)
    p["c3_root"], p["c3_bias"] = _linear_params(ks[8], H, H // 2)
    p["fc1_w"], p["fc1_b"] = _linear_params(ks[9], H // 2, H)
    p["out_w"], p["out_b"] = _linear_params(ks[10], H, 1)
    return p


def prepare_padded_params(params, node_f, edge_f):
    """Pad weights to lane/sublane-friendly shapes, pre-cast bf16 MXU operands, and repack
    the edge-NN output weight as (Cin_p*H_p, Cout_p) with H lane-dense and b2 folded in."""
    H = HIDDEN
    h_p = _round_up(H, LANE)
    ef_p = _round_up(edge_f, SUB)
    assert H < h_p, "bias-fold needs a spare hidden column"

    def conv_pack(w1, b1, w2, b2, root, bias, cin, cout):
        cin_p = _round_up(cin, SUB)            # contraction Cin padded to sublane only
        cout_p = _round_up(cout, LANE)         # lane-dense layer output
        # w2: (H, cin*cout) -> (cin, H, cout) so row index of w2r is k*h_p + j.
        w2_kjo = jnp.transpose(w2.reshape(H, cin, cout), (1, 0, 2))
        w2p = jnp.zeros((cin_p, h_p, cout_p), jnp.float32)
        w2p = w2p.at[:cin, :H, :cout].set(w2_kjo)
        # Fold the edge-NN output bias: hidden column H is forced to 1.0 via b1 below.
        w2p = w2p.at[:cin, H, :cout].set(b2.reshape(cin, cout))
        b1p = jnp.zeros((1, h_p), jnp.float32).at[0, :H].set(b1[0])
        b1p = b1p.at[0, H].set(1.0)            # constant-1 hidden unit carrying b2
        return dict(
            w1=_pad2(w1, ef_p, h_p).astype(jnp.bfloat16),
            b1=b1p,                                                   # f32 (added post-dot)
            w2r=w2p.reshape(cin_p * h_p, cout_p).astype(jnp.bfloat16),
            root=_pad2(root, cin_p, cout_p).astype(jnp.bfloat16),
            bias=_pad2(bias, 1, cout_p),                              # f32
        )

    pp = {}
    pp["conv1"] = conv_pack(params["c1_w1"], params["c1_b1"], params["c1_w2"], params["c1_b2"],
                            params["c1_root"], params["c1_bias"], node_f, H)
    pp["conv2"] = conv_pack(params["c2_w1"], params["c2_b1"], params["c2_w2"], params["c2_b2"],
                            params["c2_root"], params["c2_bias"], H, H)
    pp["conv3"] = conv_pack(params["c3_w1"], params["c3_b1"], params["c3_w2"], params["c3_b2"],
                            params["c3_root"], params["c3_bias"], H, H // 2)
    c3out_p = _round_up(H // 2, LANE)          # width of conv3's stored output (head input)
    pp["fc1_w"] = _pad2(params["fc1_w"], c3out_p, h_p)
    pp["fc1_b"] = _pad2(params["fc1_b"], 1, h_p)
    pp["out_w"] = _pad2(params["out_w"], h_p, LANE)
    pp["out_b"] = _pad2(params["out_b"], 1, LANE)
    return pp


# ----------------------------------------------------------------------------
# Forward pass (Pallas kernels for all hot paths; zero-padding is the only glue)
# ----------------------------------------------------------------------------
def nnconv_network_forward(pp, x_feat, pos, edge_src, edge_dst, edge_attr, batch, num_graphs):
    x = jnp.concatenate([x_feat, pos], axis=1)                       # (N, node_f)
    n_nodes, node_f = x.shape
    n_edges, edge_f = edge_attr.shape

    n_pad = _round_up(n_nodes, SUB)
    e_pad = _round_up(n_edges, EDGE_TILE)
    ef_p = _round_up(edge_f, SUB)
    b_pad = _round_up(num_graphs, SUB)
    cin1_p = _round_up(node_f, SUB)

    x_p = _pad2(x, n_pad, cin1_p)                                    # f32 node features
    ea_p = _pad2(edge_attr, e_pad, ef_p).astype(jnp.bfloat16)        # streamed in bf16
    src_p = jnp.full((e_pad, 1), -1, jnp.int32).at[:n_edges, 0].set(edge_src.astype(jnp.int32))
    dst_p = jnp.full((1, e_pad), -1, jnp.int32).at[0, :n_edges].set(edge_dst.astype(jnp.int32))
    batch_p = jnp.full((1, n_pad), -1, jnp.int32).at[0, :n_nodes].set(batch.astype(jnp.int32))

    h = x_p
    for name in ("conv1", "conv2", "conv3"):
        w = pp[name]
        h = nnconv_layer(ea_p, src_p, dst_p, h,
                         w["w1"], w["b1"], w["w2r"], w["root"], w["bias"])

    out_p = head(batch_p, h, pp["fc1_w"], pp["fc1_b"], pp["out_w"], pp["out_b"], b_pad)
    return out_p[:num_graphs, :1]


# ----------------------------------------------------------------------------
# Pure-JAX f32 reference (unpadded params) for the numerical sanity check
# ----------------------------------------------------------------------------
def reference_forward(params, x_feat, pos, edge_src, edge_dst, edge_attr, batch, num_graphs):
    H = HIDDEN
    x = jnp.concatenate([x_feat, pos], axis=1)
    n_nodes = x.shape[0]
    n_edges = edge_attr.shape[0]

    def conv(x, cin, cout, w1, b1, w2, b2, root, bias):
        h = jax.nn.relu(edge_attr @ w1 + b1)
        w_edge = (h @ w2 + b2).reshape(n_edges, cin, cout)
        msg = jnp.einsum("ek,eko->eo", x[edge_src], w_edge)
        agg = jax.ops.segment_sum(msg, edge_dst, num_segments=n_nodes)
        return jax.nn.relu(agg + x @ root + bias)

    node_f = x.shape[1]
    x = conv(x, node_f, H, params["c1_w1"], params["c1_b1"], params["c1_w2"],
             params["c1_b2"], params["c1_root"], params["c1_bias"])
    x = conv(x, H, H, params["c2_w1"], params["c2_b1"], params["c2_w2"],
             params["c2_b2"], params["c2_root"], params["c2_bias"])
    x = conv(x, H, H // 2, params["c3_w1"], params["c3_b1"], params["c3_w2"],
             params["c3_b2"], params["c3_root"], params["c3_bias"])
    pooled = jax.ops.segment_sum(x, batch, num_segments=num_graphs)
    h = jax.nn.relu(pooled @ params["fc1_w"] + params["fc1_b"])
    return h @ params["out_w"] + params["out_b"]


if __name__ == "__main__":
    key = jax.random.PRNGKey(0)

    # Small synthetic graph batch: 2 graphs x 6 nodes, bidirectional ring per graph.
    num_graphs = 2
    nodes_per_graph = 6
    n_nodes = num_graphs * nodes_per_graph
    raw_feat, pos_dim, edge_f = 5, 3, 4
    node_f = raw_feat + pos_dim  # conv1 in_channels after the concat in forward()

    k_x, k_pos, k_e, k_p = jax.random.split(key, 4)
    x_feat = jax.random.normal(k_x, (n_nodes, raw_feat), jnp.float32)
    pos = jax.random.normal(k_pos, (n_nodes, pos_dim), jnp.float32)

    src, dst = [], []
    for g in range(num_graphs):
        off = g * nodes_per_graph
        for i in range(nodes_per_graph):
            j = (i + 1) % nodes_per_graph
            src += [off + i, off + j]
            dst += [off + j, off + i]
    edge_src = jnp.array(src, dtype=jnp.int32)
    edge_dst = jnp.array(dst, dtype=jnp.int32)
    n_edges = edge_src.shape[0]  # 24
    edge_attr = jax.random.normal(k_e, (n_edges, edge_f), jnp.float32)
    batch = jnp.repeat(jnp.arange(num_graphs, dtype=jnp.int32), nodes_per_graph)

    params = init_params(k_p, node_f, edge_f)
    padded_params = prepare_padded_params(params, node_f, edge_f)

    out = nnconv_network_forward(padded_params, x_feat, pos, edge_src, edge_dst,
                                 edge_attr, batch, num_graphs)
    out = jax.block_until_ready(out)

    ref = reference_forward(params, x_feat, pos, edge_src, edge_dst,
                            edge_attr, batch, num_graphs)
    ref = jax.block_until_ready(ref)

    assert out.shape == (num_graphs, 1)
    # Tolerance sized for bf16 MXU operands compounding over three conv layers (~0.5-2%
    # relative on the O(10)-magnitude outputs), plus an absolute floor for the rare case
    # where the final 90-term dot nearly cancels.
    err = float(jnp.linalg.norm(out - ref))
    tol = float(0.05 * jnp.linalg.norm(ref) + 0.5)
    assert err <= tol, (err, tol, out, ref)
    print("KERNEL_OK")
</pallas_src>

<mosaic_0001>
module attributes {stable_mosaic.version = 11 : i64} {
  func.func @fused_nnconv_kernel(%arg0: i32, %arg1: memref<256x8xbf16, #tpu.memory_space<vmem>>, %arg2: memref<256x1xi32, #tpu.memory_space<vmem>>, %arg3: memref<1x256xi32, #tpu.memory_space<vmem>>, %arg4: memref<16x8xf32, #tpu.memory_space<vmem>>, %arg5: memref<8x128xbf16, #tpu.memory_space<vmem>>, %arg6: memref<1x128xf32, #tpu.memory_space<vmem>>, %arg7: memref<1024x128xbf16, #tpu.memory_space<vmem>>, %arg8: memref<8x128xbf16, #tpu.memory_space<vmem>>, %arg9: memref<1x128xf32, #tpu.memory_space<vmem>>, %arg10: memref<16x128xf32, #tpu.memory_space<vmem>>) attributes {dimension_semantics = [#tpu.dimension_semantics<arbitrary>], iteration_bounds = array<i64: 1>, scalar_prefetch = 0 : i64, scratch_operands = 0 : i64, tpu.core_type = #tpu.core_type<tc>, window_params = [{transform_indices = @transform_0, window_bounds = array<i64: 256, 8>}, {transform_indices = @transform_1, window_bounds = array<i64: 256, 1>}, {transform_indices = @transform_2, window_bounds = array<i64: 1, 256>}, {pipeline_mode = #tpu.pipeline_mode<synchronous>, transform_indices = @transform_3, window_bounds = array<i64: 16, 8>}, {pipeline_mode = #tpu.pipeline_mode<synchronous>, transform_indices = @transform_4, window_bounds = array<i64: 8, 128>}, {pipeline_mode = #tpu.pipeline_mode<synchronous>, transform_indices = @transform_5, window_bounds = array<i64: 1, 128>}, {pipeline_mode = #tpu.pipeline_mode<synchronous>, transform_indices = @transform_6, window_bounds = array<i64: 1024, 128>}, {pipeline_mode = #tpu.pipeline_mode<synchronous>, transform_indices = @transform_7, window_bounds = array<i64: 8, 128>}, {pipeline_mode = #tpu.pipeline_mode<synchronous>, transform_indices = @transform_8, window_bounds = array<i64: 1, 128>}, {pipeline_mode = #tpu.pipeline_mode<synchronous>, transform_indices = @transform_9, window_bounds = array<i64: 16, 128>}]} {
    %c0_i32 = arith.constant 0 : i32
    %0 = arith.cmpi eq, %arg0, %c0_i32 : i32
    %1 = arith.extui %0 : i1 to i32
    %c0_i32_0 = arith.constant 0 : i32
    %2 = arith.cmpi ne, %1, %c0_i32_0 : i32
    scf.if %2 {
      %cst_24 = arith.constant 0.000000e+00 : f32
      %46 = vector.broadcast %cst_24 : f32 to vector<16x128xf32>
      %c0_25 = arith.constant 0 : index
      %c0_26 = arith.constant 0 : index
      %47 = vector.load %arg10[%c0_25, %c0_26] : memref<16x128xf32, #tpu.memory_space<vmem>>, vector<16x128xf32>
      tpu.vector_store %arg10[%c0_25, %c0_26], %46 {strides = array<i32>} : memref<16x128xf32, #tpu.memory_space<vmem>>, vector<16x128xf32>,
    } else {
    }
    %c0 = arith.constant 0 : index
    %c0_1 = arith.constant 0 : index
    %3 = vector.load %arg1[%c0, %c0_1] : memref<256x8xbf16, #tpu.memory_space<vmem>>, vector<256x8xbf16>
    %c0_2 = arith.constant 0 : index
    %c0_3 = arith.constant 0 : index
    %4 = vector.load %arg5[%c0_2, %c0_3] : memref<8x128xbf16, #tpu.memory_space<vmem>>, vector<8x128xbf16>
    %cst = arith.constant dense<0.000000e+00> : vector<256x128xf32>
    %5 = tpu.matmul %3, %4, %cst {dimension_numbers = #tpu.dot_dimension_numbers<[1], [0], [0], [1], [0, 0, 1, 1], [], []>} : vector<256x8xbf16>, vector<8x128xbf16>, vector<256x128xf32> -> vector<256x128xf32>
    %c0_4 = arith.constant 0 : index
    %c0_5 = arith.constant 0 : index
    %6 = vector.load %arg6[%c0_4, %c0_5] : memref<1x128xf32, #tpu.memory_space<vmem>>, vector<1x128xf32>
    %7 = vector.broadcast %6 : vector<1x128xf32> to vector<256x128xf32>
    %8 = arith.addf %5, %7 : vector<256x128xf32>
    %cst_6 = arith.constant 0.000000e+00 : f32
    %9 = vector.broadcast %cst_6 : f32 to vector<256x128xf32>
    %10 = arith.maximumf %8, %9 : vector<256x128xf32>
    %11 = arith.truncf %10 : vector<256x128xf32> to vector<256x128xbf16>
    %c0_7 = arith.constant 0 : index
    %c0_8 = arith.constant 0 : index
    %12 = vector.load %arg4[%c0_7, %c0_8] : memref<16x8xf32, #tpu.memory_space<vmem>>, vector<16x8xf32>
    %13 = arith.truncf %12 : vector<16x8xf32> to vector<16x8xbf16>
    %c0_9 = arith.constant 0 : index
    %c0_10 = arith.constant 0 : index
    %14 = vector.load %arg2[%c0_9, %c0_10] : memref<256x1xi32, #tpu.memory_space<vmem>>, vector<256x1xi32>
    %15 = tpu.iota {dimensions = array<i32: 1>} : vector<256x16xi32>
    %16 = vector.broadcast %14 : vector<256x1xi32> to vector<256x16xi32>
    %17 = arith.cmpi eq, %16, %15 : vector<256x16xi32>
    %18 = arith.extui %17 : vector<256x16xi1> to vector<256x16xi32>
    %19 = arith.sitofp %18 : vector<256x16xi32> to vector<256x16xf32>
    %20 = arith.truncf %19 : vector<256x16xf32> to vector<256x16xbf16>
    %cst_11 = arith.constant dense<0.000000e+00> : vector<256x8xf32>
    %21 = tpu.matmul %20, %13, %cst_11 {dimension_numbers = #tpu.dot_dimension_numbers<[1], [0], [0], [1], [0, 0, 1, 1], [], []>} : vector<256x16xbf16>, vector<16x8xbf16>, vector<256x8xf32> -> vector<256x8xf32>
    %22 = arith.truncf %21 : vector<256x8xf32> to vector<256x8xbf16>
    %23 = vector.shape_cast %22 : vector<256x8xbf16> to vector<256x8x1xbf16>
    %24 = vector.shape_cast %11 : vector<256x128xbf16> to vector<256x1x128xbf16>
    %25 = vector.broadcast %23 : vector<256x8x1xbf16> to vector<256x8x128xbf16>
    %26 = vector.broadcast %24 : vector<256x1x128xbf16> to vector<256x8x128xbf16>
    %27 = arith.mulf %25, %26 : vector<256x8x128xbf16>
    %28 = vector.shape_cast %27 : vector<256x8x128xbf16> to vector<256x1024xbf16>
    %c0_12 = arith.constant 0 : index
    %c0_13 = arith.constant 0 : index
    %29 = vector.load %arg7[%c0_12, %c0_13] : memref<1024x128xbf16, #tpu.memory_space<vmem>>, vector<1024x128xbf16>
    %cst_14 = arith.constant dense<0.000000e+00> : vector<256x128xf32>
    %30 = tpu.matmul %28, %29, %cst_14 {dimension_numbers = #tpu.dot_dimension_numbers<[1], [0], [0], [1], [0, 0, 1, 1], [], []>} : vector<256x1024xbf16>, vector<1024x128xbf16>, vector<256x128xf32> -> vector<256x128xf32>
    %c0_15 = arith.constant 0 : index
    %c0_16 = arith.constant 0 : index
    %31 = vector.load %arg3[%c0_15, %c0_16] : memref<1x256xi32, #tpu.memory_space<vmem>>, vector<1x256xi32>
    %32 = tpu.iota {dimensions = array<i32: 0>} : vector<16x256xi32>
    %33 = vector.broadcast %31 : vector<1x256xi32> to vector<16x256xi32>
    %34 = arith.cmpi eq, %32, %33 : vector<16x256xi32>
    %35 = arith.extui %34 : vector<16x256xi1> to vector<16x256xi32>
    %36 = arith.sitofp %35 : vector<16x256xi32> to vector<16x256xf32>
    %37 = arith.truncf %36 : vector<16x256xf32> to vector<16x256xbf16>
    %c0_17 = arith.constant 0 : index
    %c0_18 = arith.constant 0 : index
    %38 = vector.load %arg10[%c0_17, %c0_18] : memref<16x128xf32, #tpu.memory_space<vmem>>, vector<16x128xf32>
    %39 = arith.truncf %30 : vector<256x128xf32> to vector<256x128xbf16>
    %cst_19 = arith.constant dense<0.000000e+00> : vector<16x128xf32>
    %40 = tpu.matmul %37, %39, %cst_19 {dimension_numbers = #tpu.dot_dimension_numbers<[1], [0], [0], [1], [0, 0, 1, 1], [], []>} : vector<16x256xbf16>, vector<256x128xbf16>, vector<16x128xf32> -> vector<16x128xf32>
    %41 = arith.addf %38, %40 : vector<16x128xf32>
    %c0_20 = arith.constant 0 : index
    %c0_21 = arith.constant 0 : index
    %42 = vector.load %arg10[%c0_20, %c0_21] : memref<16x128xf32, #tpu.memory_space<vmem>>, vector<16x128xf32>
    tpu.vector_store %arg10[%c0_20, %c0_21], %41 {strides = array<i32>} : memref<16x128xf32, #tpu.memory_space<vmem>>, vector<16x128xf32>,
    %c0_i32_22 = arith.constant 0 : i32
    %43 = arith.cmpi eq, %arg0, %c0_i32_22 : i32
    %44 = arith.extui %43 : i1 to i32
    %c0_i32_23 = arith.constant 0 : i32
    %45 = arith.cmpi ne, %44, %c0_i32_23 : i32
    scf.if %45 {
      %c0_24 = arith.constant 0 : index
      %c0_25 = arith.constant 0 : index
      %46 = vector.load %arg8[%c0_24, %c0_25] : memref<8x128xbf16, #tpu.memory_space<vmem>>, vector<8x128xbf16>
      %cst_26 = arith.constant dense<0.000000e+00> : vector<16x128xf32>
      %47 = tpu.matmul %13, %46, %cst_26 {dimension_numbers = #tpu.dot_dimension_numbers<[1], [0], [0], [1], [0, 0, 1, 1], [], []>} : vector<16x8xbf16>, vector<8x128xbf16>, vector<16x128xf32> -> vector<16x128xf32>
      %c0_27 = arith.constant 0 : index
      %c0_28 = arith.constant 0 : index
      %48 = vector.load %arg10[%c0_27, %c0_28] : memref<16x128xf32, #tpu.memory_space<vmem>>, vector<16x128xf32>
      %49 = arith.addf %48, %47 : vector<16x128xf32>
      %c0_29 = arith.constant 0 : index
      %c0_30 = arith.constant 0 : index
      %50 = vector.load %arg9[%c0_29, %c0_30] : memref<1x128xf32, #tpu.memory_space<vmem>>, vector<1x128xf32>
      %51 = vector.broadcast %50 : vector<1x128xf32> to vector<16x128xf32>
      %52 = arith.addf %49, %51 : vector<16x128xf32>
      %cst_31 = arith.constant 0.000000e+00 : f32
      %53 = vector.broadcast %cst_31 : f32 to vector<16x128xf32>
      %54 = arith.maximumf %52, %53 : vector<16x128xf32>
      %c0_32 = arith.constant 0 : index
      %c0_33 = arith.constant 0 : index
      %55 = vector.load %arg10[%c0_32, %c0_33] : memref<16x128xf32, #tpu.memory_space<vmem>>, vector<16x128xf32>
      tpu.vector_store %arg10[%c0_32, %c0_33], %54 {strides = array<i32>} : memref<16x128xf32, #tpu.memory_space<vmem>>, vector<16x128xf32>,
    } else {
    }
    return
  }
  func.func @transform_0(%arg0: i32) -> (i32, i32) {
    %c0_i32 = arith.constant 0 : i32
    %c0_i32_0 = arith.constant 0 : i32
    return %arg0, %c0_i32 : i32, i32
  }
  func.func @transform_1(%arg0: i32) -> (i32, i32) {
    %c0_i32 = arith.constant 0 : i32
    %c0_i32_0 = arith.constant 0 : i32
    return %arg0, %c0_i32 : i32, i32
  }
  func.func @transform_2(%arg0: i32) -> (i32, i32) {
    %c0_i32 = arith.constant 0 : i32
    %c0_i32_0 = arith.constant 0 : i32
    return %c0_i32, %arg0 : i32, i32
  }
  func.func @transform_3(%arg0: i32) -> (i32, i32) {
    %c0_i32 = arith.constant 0 : i32
    %c0_i32_0 = arith.constant 0 : i32
    %c0_i32_1 = arith.constant 0 : i32
    return %c0_i32, %c0_i32_0 : i32, i32
  }
  func.func @transform_4(%arg0: i32) -> (i32, i32) {
    %c0_i32 = arith.constant 0 : i32
    %c0_i32_0 = arith.constant 0 : i32
    %c0_i32_1 = arith.constant 0 : i32
    return %c0_i32, %c0_i32_0 : i32, i32
  }
  func.func @transform_5(%arg0: i32) -> (i32, i32) {
    %c0_i32 = arith.constant 0 : i32
    %c0_i32_0 = arith.constant 0 : i32
    %c0_i32_1 = arith.constant 0 : i32
    return %c0_i32, %c0_i32_0 : i32, i32
  }
  func.func @transform_6(%arg0: i32) -> (i32, i32) {
    %c0_i32 = arith.constant 0 : i32
    %c0_i32_0 = arith.constant 0 : i32
    %c0_i32_1 = arith.constant 0 : i32
    return %c0_i32, %c0_i32_0 : i32, i32
  }
  func.func @transform_7(%arg0: i32) -> (i32, i32) {
    %c0_i32 = arith.constant 0 : i32
    %c0_i32_0 = arith.constant 0 : i32
    %c0_i32_1 = arith.constant 0 : i32
    return %c0_i32, %c0_i32_0 : i32, i32
  }
  func.func @transform_8(%arg0: i32) -> (i32, i32) {
    %c0_i32 = arith.constant 0 : i32
    %c0_i32_0 = arith.constant 0 : i32
    %c0_i32_1 = arith.constant 0 : i32
    return %c0_i32, %c0_i32_0 : i32, i32
  }
  func.func @transform_9(%arg0: i32) -> (i32, i32) {
    %c0_i32 = arith.constant 0 : i32
    %c0_i32_0 = arith.constant 0 : i32
    %c0_i32_1 = arith.constant 0 : i32
    return %c0_i32, %c0_i32_0 : i32, i32
  }
}

</mosaic_0001>

<llo_original>
// kernel: tpu_custom_call.1
$region0: #{tpu_custom_call.1}
  #allocation0 [shape = 'u32[]', space=smem, size = 0x4, offset = 0x4, fixed_abs, tag = 'smem constant byte address 0x4 - core index']
  #allocation1 [shape = 'u32[144,128]{1,0:T(1,128)}', space=vmem, size = 0x12000, scoped, tag = 'internal scratch']
  %s0 = inlined_call_operand.vmem [shape: bf16[256,8], index: 0, kind: input, shape index: {}]
  %s1 = inlined_call_operand.vmem [shape: s32[256,1], index: 1, kind: input, shape index: {}]
  %s2 = inlined_call_operand.vmem [shape: s32[1,256], index: 2, kind: input, shape index: {}]
  %s3 = inlined_call_operand.vmem [shape: f32[16,8], index: 3, kind: input, shape index: {}]
  %s4 = inlined_call_operand.vmem [shape: bf16[8,128], index: 4, kind: input, shape index: {}]
  %s5 = inlined_call_operand.vmem [shape: f32[1,128], index: 5, kind: input, shape index: {}]
  %s6 = inlined_call_operand.hbm [shape: bf16[1024,128], index: 6, kind: input, shape index: {}]
  %s7 = inlined_call_operand.vmem [shape: bf16[8,128], index: 7, kind: input, shape index: {}]
  %s8 = inlined_call_operand.vmem [shape: f32[1,128], index: 8, kind: input, shape index: {}]
  %s9 = inlined_call_operand.hbm [shape: f32[16,128], index: 9, kind: output, shape index: {}]
  %s10 = sld [smem:[#allocation0]]
  $region58: #{tpu_custom_call.1} parent=0
    _
  %s12 = ssub.s32 1, %s10
  %s13 = scalar_select 0, %s12, %s10
  $region1: #{tpu_custom_call.1} parent=0
    #allocation2 [shape = 'u8[262144]{0}', space=vmem, size = 0x40000, scoped, tag = 'input window, operand 6, single buffered']
    #allocation3 [shape = 's32[1]{0}', space=sflag, size = 0x4, scoped, tag = 'scoped memory for tpu_custom_call.1']
    #allocation4 [shape = 's32[1]{0}', space=sflag, size = 0x4, scoped, tag = 'scoped memory for tpu_custom_call.1']
    #allocation5 [shape = 'u8[8192]{0}', space=vmem, size = 0x2000, scoped, tag = 'output window, operand 0, single buffered']
    %14 = vsyncpa [#allocation3], 0
    %15 = vsyncpa [#allocation4], 0
    // Predicated region
    $region2: #{tpu_custom_call.1} parent=1 // pred_check
      _
    $region3: #{tpu_custom_call.1} parent=1 // pred_check_branch
      %17 = sbr.rel (0) target = $region5
    $region4: #{tpu_custom_call.1} parent=1 // pred_region
      _
    $region5: #{tpu_custom_call.1} parent=1 // pred_fallthru
      _
    // Predicated region
    $region6: #{tpu_custom_call.1} parent=1 // pred_check
      _
    $region7: #{tpu_custom_call.1} parent=1 // pred_check_branch
      %19 = sbr.rel (0) target = $region9
    $region8: #{tpu_custom_call.1} parent=1 // pred_region
      _
    $region9: #{tpu_custom_call.1} parent=1 // pred_fallthru
      _
    // Predicated region
    $region10: #{tpu_custom_call.1} parent=1 // pred_check
      _
    $region11: #{tpu_custom_call.1} parent=1 // pred_check_branch
      %21 = sbr.rel (0) target = $region13
    $region12: #{tpu_custom_call.1} parent=1 // pred_region
      _
    $region13: #{tpu_custom_call.1} parent=1 // pred_fallthru
      _
    // Predicated region
    $region14: #{tpu_custom_call.1} parent=1 // pred_check
      _
    $region15: #{tpu_custom_call.1} parent=1 // pred_check_branch
      %23 = sbr.rel (0) target = $region17
    $region16: #{tpu_custom_call.1} parent=1 // pred_region
      _
    $region17: #{tpu_custom_call.1} parent=1 // pred_fallthru
      _
    // Predicated region
    $region18: #{tpu_custom_call.1} parent=1 // pred_check
      _
    $region19: #{tpu_custom_call.1} parent=1 // pred_check_branch
      %25 = sbr.rel (0) target = $region21
    $region20: #{tpu_custom_call.1} parent=1 // pred_region
      _
    $region21: #{tpu_custom_call.1} parent=1 // pred_fallthru
      _
    // Predicated region
    $region22: #{tpu_custom_call.1} parent=1 // pred_check
      _
    $region23: #{tpu_custom_call.1} parent=1 // pred_check_branch
      %27 = sbr.rel (0) target = $region25
    $region24: #{tpu_custom_call.1} parent=1 // pred_region
      _
    $region25: #{tpu_custom_call.1} parent=1 // pred_fallthru
      _
    // Predicated region
    $region26: #{tpu_custom_call.1} parent=1 // pred_check
      _
    $region27: #{tpu_custom_call.1} parent=1 // pred_check_branch
      %29 = sbr.rel (0) target = $region29
    $region28: #{tpu_custom_call.1} parent=1 // pred_region
      %s31 = ssub.s32 8192, 8192
      %32 = vsyncadd [#allocation3], %s31
      %s33 = sshll.u32 [#allocation2], 4
      %s34 = int_to_ptr.vmem [resolvable:$true] %s33
      %39 = dma.hbm_to_vmem [thread:$0]  %s6, 8192, %s34, [#allocation3], 64, 64, 4
    $region29: #{tpu_custom_call.1} parent=1 // pred_fallthru
      _
    // Predicated region
    $region30: #{tpu_custom_call.1} parent=1 // pred_check
      _
    $region31: #{tpu_custom_call.1} parent=1 // pred_check_branch
      %41 = sbr.rel (0) target = $region33
    $region32: #{tpu_custom_call.1} parent=1 // pred_region
      _
    $region33: #{tpu_custom_call.1} parent=1 // pred_fallthru
      _
    // Predicated region
    $region34: #{tpu_custom_call.1} parent=1 // pred_check
      _
    $region35: #{tpu_custom_call.1} parent=1 // pred_check_branch
      %43 = sbr.rel (0) target = $region37
    $region36: #{tpu_custom_call.1} parent=1 // pred_region
      _
    $region37: #{tpu_custom_call.1} parent=1 // pred_fallthru
      _
    // Predicated region
    $region38: #{tpu_custom_call.1} parent=1 // pred_check
      _
    $region39: #{tpu_custom_call.1} parent=1 // pred_check_branch
      %45 = sbr.rel (0) target = $region41
    $region40: #{tpu_custom_call.1} parent=1 // pred_region
      %46 = dma.done [#allocation3], 8192
    $region41: #{tpu_custom_call.1} parent=1 // pred_fallthru
      _
    %p48 = scmp.eq.s32.totalorder 0, 0
    // Predicated region
    $region42: #{tpu_custom_call.1} parent=1 // pred_check
      %p49 = pneg %p48
    $region43: #{tpu_custom_call.1} parent=1 // pred_check_branch
      %51 = sbr.rel (%p49) target = $region45
    $region44: #{tpu_custom_call.1} parent=1 // pred_region
      %52 = vst [vmem:[#allocation5] sm:$0xff] 0.0
      %53 = vst [vmem:[#allocation5 + $0x8] sm:$0xff] 0.0
    $region45: #{tpu_custom_call.1} parent=1 // pred_fallthru
      _
    %v54 = vld [vmem:[%s0] sm:$0xf]
    %v55 = vld [vmem:[%s0 + $0x4] sm:$0xf]
    %v56 = vld [vmem:[%s0 + $0x8] sm:$0xf]
    %v57 = vld [vmem:[%s0 + $0xc] sm:$0xf]
    %v58 = vld [vmem:[%s0 + $0x10] sm:$0xf]
    %v59 = vld [vmem:[%s0 + $0x14] sm:$0xf]
    %v60 = vld [vmem:[%s0 + $0x18] sm:$0xf]
    %v61 = vld [vmem:[%s0 + $0x1c] sm:$0xf]
    %v62 = vld [vmem:[%s0 + $0x20] sm:$0xf]
    %v63 = vld [vmem:[%s0 + $0x24] sm:$0xf]
    %v64 = vld [vmem:[%s0 + $0x28] sm:$0xf]
    %v65 = vld [vmem:[%s0 + $0x2c] sm:$0xf]
    %v66 = vld [vmem:[%s0 + $0x30] sm:$0xf]
    %v67 = vld [vmem:[%s0 + $0x34] sm:$0xf]
    %v68 = vld [vmem:[%s0 + $0x38] sm:$0xf]
    %v69 = vld [vmem:[%s0 + $0x3c] sm:$0xf]
    %v70 = vld [vmem:[%s0 + $0x40] sm:$0xf]
    %v71 = vld [vmem:[%s0 + $0x44] sm:$0xf]
    %v72 = vld [vmem:[%s0 + $0x48] sm:$0xf]
    %v73 = vld [vmem:[%s0 + $0x4c] sm:$0xf]
    %v74 = vld [vmem:[%s0 + $0x50] sm:$0xf]
    %v75 = vld [vmem:[%s0 + $0x54] sm:$0xf]
    %v76 = vld [vmem:[%s0 + $0x58] sm:$0xf]
    %v77 = vld [vmem:[%s0 + $0x5c] sm:$0xf]
    %v78 = vld [vmem:[%s0 + $0x60] sm:$0xf]
    %v79 = vld [vmem:[%s0 + $0x64] sm:$0xf]
    %v80 = vld [vmem:[%s0 + $0x68] sm:$0xf]
    %v81 = vld [vmem:[%s0 + $0x6c] sm:$0xf]
    %v82 = vld [vmem:[%s0 + $0x70] sm:$0xf]
    %v83 = vld [vmem:[%s0 + $0x74] sm:$0xf]
    %v84 = vld [vmem:[%s0 + $0x78] sm:$0xf]
    %v85 = vld [vmem:[%s0 + $0x7c] sm:$0xf]
    %v86 = vld [vmem:[%s4] sm:$0xf]
    %v87 = vld [vmem:[%s5] sm:$0x1]
    %v89 = vlaneseq
    %v90 = vshrl.u32 %v89, 7
    %v91 = vsub.s32 0, %v90
    %v92 = vrot.slane %v87, %v91
    %v126 = vunpack.c.l.b16 %v54
    %v127 = vunpack.c.l.b16 %v55
    %v128 = vunpack.c.l.b16 %v56
    %v129 = vunpack.c.l.b16 %v57
    %v130 = vunpack.c.l.b16 %v58
    %v131 = vunpack.c.l.b16 %v59
    %v132 = vunpack.c.l.b16 %v60
    %v133 = vunpack.c.l.b16 %v61
    %v134 = vunpack.c.l.b16 %v62
    %v135 = vunpack.c.l.b16 %v63
    %v136 = vunpack.c.l.b16 %v64
    %v137 = vunpack.c.l.b16 %v65
    %v138 = vunpack.c.l.b16 %v66
    %v139 = vunpack.c.l.b16 %v67
    %v140 = vunpack.c.l.b16 %v68
    %v141 = vunpack.c.l.b16 %v69
    %v142 = vunpack.c.l.b16 %v70
    %v143 = vunpack.c.l.b16 %v71
    %v144 = vunpack.c.l.b16 %v72
    %v145 = vunpack.c.l.b16 %v73
    %v146 = vunpack.c.l.b16 %v74
    %v147 = vunpack.c.l.b16 %v75
    %v148 = vunpack.c.l.b16 %v76
    %v149 = vunpack.c.l.b16 %v77
    %v150 = vunpack.c.l.b16 %v78
    %v151 = vunpack.c.l.b16 %v79
    %v152 = vunpack.c.l.b16 %v80
    %v153 = vunpack.c.l.b16 %v81
    %v154 = vunpack.c.l.b16 %v82
    %v155 = vunpack.c.l.b16 %v83
    %v156 = vunpack.c.l.b16 %v84
    %v157 = vunpack.c.l.b16 %v85
    %v158 = vpack.c.b16 %v127, %v126
    %v159 = vpack.c.b16 %v129, %v128
    %v160 = vpack.c.b16 %v131, %v130
    %v161 = vpack.c.b16 %v133, %v132
    %v162 = vpack.c.b16 %v135, %v134
    %v163 = vpack.c.b16 %v137, %v136
    %v164 = vpack.c.b16 %v139, %v138
    %v165 = vpack.c.b16 %v141, %v140
    %v166 = vpack.c.b16 %v143, %v142
    %v167 = vpack.c.b16 %v145, %v144
    %v168 = vpack.c.b16 %v147, %v146
    %v169 = vpack.c.b16 %v149, %v148
    %v170 = vpack.c.b16 %v151, %v150
    %v171 = vpack.c.b16 %v153, %v152
    %v172 = vpack.c.b16 %v155, %v154
    %v173 = vpack.c.b16 %v157, %v156
    %vm174 = vcmask 64512
    %v176 = vsel %vm174, %v158, 0
    %v179 = vsel %vm174, %v159, 0
    %v182 = vsel %vm174, %v160, 0
    %v185 = vsel %vm174, %v161, 0
    %v188 = vsel %vm174, %v162, 0
    %v191 = vsel %vm174, %v163, 0
    %v194 = vsel %vm174, %v164, 0
    %v197 = vsel %vm174, %v165, 0
    %v200 = vsel %vm174, %v166, 0
    %v203 = vsel %vm174, %v167, 0
    %v206 = vsel %vm174, %v168, 0
    %v209 = vsel %vm174, %v169, 0
    %v212 = vsel %vm174, %v170, 0
    %v215 = vsel %vm174, %v171, 0
    %v218 = vsel %vm174, %v172, 0
    %v221 = vsel %vm174, %v173, 0
    %vm223 = vcmask 1043456
    %v225 = vsel %vm223, %v86, 0
    %227 = vmatprep.subr.bf16.mxu0 0
    %228 = vmatpush1.bf16.msra.mxu0 %v225
    %229 = vmatprep.subr.bf16.mxu0 0
    %230 = vmatpush1.bf16.msra.mxu0 0
    %231 = vmatprep.subr.bf16.mxu0 0
    %232 = vmatpush1.bf16.msra.mxu0 0
    %233 = vmatprep.subr.bf16.mxu0 0
    %234 = vmatpush1.bf16.msra.mxu0 0
    %235 = vmatprep.subr.bf16.mxu0 0
    %236 = vmatpush1.bf16.msra.mxu0 0
    %237 = vmatprep.subr.bf16.mxu0 0
    %238 = vmatpush1.bf16.msra.mxu0 0
    %239 = vmatprep.subr.bf16.mxu0 0
    %240 = vmatpush1.bf16.msra.mxu0 0
    %241 = vmatprep.subr.bf16.mxu0 0
    %242 = vmatpush1.bf16.msra.mxu0 0
    %243 = vmatprep.subr.bf16.mxu0 0
    %244 = vmatpush1.bf16.msra.mxu0 0
    %245 = vmatprep.subr.bf16.mxu0 0
    %246 = vmatpush1.bf16.msra.mxu0 0
    %247 = vmatprep.subr.bf16.mxu0 0
    %248 = vmatpush1.bf16.msra.mxu0 0
    %249 = vmatprep.subr.bf16.mxu0 0
    %250 = vmatpush1.bf16.msra.mxu0 0
    %251 = vmatprep.subr.bf16.mxu0 0
    %252 = vmatpush1.bf16.msra.mxu0 0
    %253 = vmatprep.subr.bf16.mxu0 0
    %254 = vmatpush1.bf16.msra.mxu0 0
    %255 = vmatprep.subr.bf16.mxu0 0
    %256 = vmatpush1.bf16.msra.mxu0 0
    %257 = vmatprep.subr.bf16.mxu0 0
    %258 = vmatpush1.bf16.msra.mxu0 0
    %259 = vmatprep.mubr.bf16.mxu0 0
    %260 = vmatmul.mubr.bf16.gmra.mrb[0].mxu0 %v176
    %v261 = vpop.f32.mrb[0].mxu0
    %v262 = vadd.f32 %v92, %v261
    %v263 = vpop.f32.mrb[0].mxu0
    %v264 = vpop.f32.mrb[0].mxu0
    %v265 = vadd.f32 %v92, %v264
    %v266 = vpop.f32.mrb[0].mxu0
    %267 = vmatprep.mubr.bf16.mxu0 0
    %268 = vmatmul.mubr.bf16.gmra.mrb[0].mxu0 %v179
    %v269 = vpop.f32.mrb[0].mxu0
    %v270 = vadd.f32 %v92, %v269
    %v271 = vpop.f32.mrb[0].mxu0
    %v272 = vpop.f32.mrb[0].mxu0
    %v273 = vadd.f32 %v92, %v272
    %v274 = vpop.f32.mrb[0].mxu0
    %275 = vmatprep.mubr.bf16.mxu0 0
    %276 = vmatmul.mubr.bf16.gmra.mrb[0].mxu0 %v182
    %v277 = vpop.f32.mrb[0].mxu0
    %v278 = vadd.f32 %v92, %v277
    %v279 = vpop.f32.mrb[0].mxu0
    %v280 = vpop.f32.mrb[0].mxu0
    %v281 = vadd.f32 %v92, %v280
    %v282 = vpop.f32.mrb[0].mxu0
    %283 = vmatprep.mubr.bf16.mxu0 0
    %284 = vmatmul.mubr.bf16.gmra.mrb[0].mxu0 %v185
    %v285 = vpop.f32.mrb[0].mxu0
    %v286 = vadd.f32 %v92, %v285
    %v287 = vpop.f32.mrb[0].mxu0
    %v288 = vpop.f32.mrb[0].mxu0
    %v289 = vadd.f32 %v92, %v288
    %v290 = vpop.f32.mrb[0].mxu0
    %291 = vmatprep.mubr.bf16.mxu0 0
    %292 = vmatmul.mubr.bf16.gmra.mrb[0].mxu0 %v188
    %v293 = vpop.f32.mrb[0].mxu0
    %v294 = vadd.f32 %v92, %v293
    %v295 = vpop.f32.mrb[0].mxu0
    %v296 = vpop.f32.mrb[0].mxu0
    %v297 = vadd.f32 %v92, %v296
    %v298 = vpop.f32.mrb[0].mxu0
    %299 = vmatprep.mubr.bf16.mxu0 0
    %300 = vmatmul.mubr.bf16.gmra.mrb[0].mxu0 %v191
    %v301 = vpop.f32.mrb[0].mxu0
    %v302 = vadd.f32 %v92, %v301
    %v303 = vpop.f32.mrb[0].mxu0
    %v304 = vpop.f32.mrb[0].mxu0
    %v305 = vadd.f32 %v92, %v304
    %v306 = vpop.f32.mrb[0].mxu0
    %307 = vmatprep.mubr.bf16.mxu0 0
    %308 = vmatmul.mubr.bf16.gmra.mrb[0].mxu0 %v194
    %v309 = vpop.f32.mrb[0].mxu0
    %v310 = vadd.f32 %v92, %v309
    %v311 = vpop.f32.mrb[0].mxu0
    %v312 = vpop.f32.mrb[0].mxu0
    %v313 = vadd.f32 %v92, %v312
    %v314 = vpop.f32.mrb[0].mxu0
    %315 = vmatprep.mubr.bf16.mxu0 0
    %316 = vmatmul.mubr.bf16.gmra.mrb[0].mxu0 %v197
    %v317 = vpop.f32.mrb[0].mxu0
    %v318 = vadd.f32 %v92, %v317
    %v319 = vpop.f32.mrb[0].mxu0
    %v320 = vpop.f32.mrb[0].mxu0
    %v321 = vadd.f32 %v92, %v320
    %v322 = vpop.f32.mrb[0].mxu0
    %323 = vmatprep.mubr.bf16.mxu0 0
    %324 = vmatmul.mubr.bf16.gmra.mrb[0].mxu0 %v200
    %v325 = vpop.f32.mrb[0].mxu0
    %v326 = vadd.f32 %v92, %v325
    %v327 = vpop.f32.mrb[0].mxu0
    %v328 = vpop.f32.mrb[0].mxu0
    %v329 = vadd.f32 %v92, %v328
    %v330 = vpop.f32.mrb[0].mxu0
    %331 = vmatprep.mubr.bf16.mxu0 0
    %332 = vmatmul.mubr.bf16.gmra.mrb[0].mxu0 %v203
    %v333 = vpop.f32.mrb[0].mxu0
    %v334 = vadd.f32 %v92, %v333
    %v335 = vpop.f32.mrb[0].mxu0
    %v336 = vpop.f32.mrb[0].mxu0
    %v337 = vadd.f32 %v92, %v336
    %v338 = vpop.f32.mrb[0].mxu0
    %339 = vmatprep.mubr.bf16.mxu0 0
    %340 = vmatmul.mubr.bf16.gmra.mrb[0].mxu0 %v206
    %v341 = vpop.f32.mrb[0].mxu0
    %v342 = vadd.f32 %v92, %v341
    %v343 = vpop.f32.mrb[0].mxu0
    %v344 = vpop.f32.mrb[0].mxu0
    %v345 = vadd.f32 %v92, %v344
    %v346 = vpop.f32.mrb[0].mxu0
    %347 = vmatprep.mubr.bf16.mxu0 0
    %348 = vmatmul.mubr.bf16.gmra.mrb[0].mxu0 %v209
    %v349 = vpop.f32.mrb[0].mxu0
    %v350 = vadd.f32 %v92, %v349
    %v351 = vpop.f32.mrb[0].mxu0
    %v352 = vpop.f32.mrb[0].mxu0
    %v353 = vadd.f32 %v92, %v352
    %v354 = vpop.f32.mrb[0].mxu0
    %355 = vmatprep.mubr.bf16.mxu0 0
    %356 = vmatmul.mubr.bf16.gmra.mrb[0].mxu0 %v212
    %v357 = vpop.f32.mrb[0].mxu0
    %v358 = vadd.f32 %v92, %v357
    %v359 = vpop.f32.mrb[0].mxu0
    %v360 = vpop.f32.mrb[0].mxu0
    %v361 = vadd.f32 %v92, %v360
    %v362 = vpop.f32.mrb[0].mxu0
    %363 = vmatprep.mubr.bf16.mxu0 0
    %364 = vmatmul.mubr.bf16.gmra.mrb[0].mxu0 %v215
    %v365 = vpop.f32.mrb[0].mxu0
    %v366 = vadd.f32 %v92, %v365
    %v367 = vpop.f32.mrb[0].mxu0
    %v368 = vpop.f32.mrb[0].mxu0
    %v369 = vadd.f32 %v92, %v368
    %v370 = vpop.f32.mrb[0].mxu0
    %371 = vmatprep.mubr.bf16.mxu0 0
    %372 = vmatmul.mubr.bf16.gmra.mrb[0].mxu0 %v218
    %v373 = vpop.f32.mrb[0].mxu0
    %v374 = vadd.f32 %v92, %v373
    %v375 = vpop.f32.mrb[0].mxu0
    %v376 = vpop.f32.mrb[0].mxu0
    %v377 = vadd.f32 %v92, %v376
    %v378 = vpop.f32.mrb[0].mxu0
    %379 = vmatprep.mubr.bf16.mxu0 0
    %380 = vmatmul.mubr.bf16.gmra.mrb[0].mxu0 %v221
    %v381 = vpop.f32.mrb[0].mxu0
    %v382 = vadd.f32 %v92, %v381
    %v383 = vpop.f32.mrb[0].mxu0
    %v384 = vpop.f32.mrb[0].mxu0
    %v385 = vadd.f32 %v92, %v384
    %v386 = vpop.f32.mrb[0].mxu0
    %387 = vdwg.mxu0
    %v388 = vmax.f32 %v262, 0.0
    %v389 = vmax.f32 %v265, 0.0
    %v390 = vmax.f32 %v270, 0.0
    %v391 = vmax.f32 %v273, 0.0
    %v392 = vmax.f32 %v278, 0.0
    %v393 = vmax.f32 %v281, 0.0
    %v394 = vmax.f32 %v286, 0.0
    %v395 = vmax.f32 %v289, 0.0
    %v396 = vmax.f32 %v294, 0.0
    %v397 = vmax.f32 %v297, 0.0
    %v398 = vmax.f32 %v302, 0.0
    %v399 = vmax.f32 %v305, 0.0
    %v400 = vmax.f32 %v310, 0.0
    %v401 = vmax.f32 %v313, 0.0
    %v402 = vmax.f32 %v318, 0.0
    %v403 = vmax.f32 %v321, 0.0
    %v404 = vmax.f32 %v326, 0.0
    %v405 = vmax.f32 %v329, 0.0
    %v406 = vmax.f32 %v334, 0.0
    %v407 = vmax.f32 %v337, 0.0
    %v408 = vmax.f32 %v342, 0.0
    %v409 = vmax.f32 %v345, 0.0
    %v410 = vmax.f32 %v350, 0.0
    %v411 = vmax.f32 %v353, 0.0
    %v412 = vmax.f32 %v358, 0.0
    %v413 = vmax.f32 %v361, 0.0
    %v414 = vmax.f32 %v366, 0.0
    %v415 = vmax.f32 %v369, 0.0
    %v416 = vmax.f32 %v374, 0.0
    %v417 = vmax.f32 %v377, 0.0
    %v418 = vmax.f32 %v382, 0.0
    %v419 = vmax.f32 %v385, 0.0
    %v420 = vpack.c.bf16 %v389, %v388
    %v421 = vpack.c.bf16 %v391, %v390
    %v422 = vpack.c.bf16 %v393, %v392
    %v423 = vpack.c.bf16 %v395, %v394
    %v424 = vpack.c.bf16 %v397, %v396
    %v425 = vpack.c.bf16 %v399, %v398
    %v426 = vpack.c.bf16 %v401, %v400
    %v427 = vpack.c.bf16 %v403, %v402
    %v428 = vpack.c.bf16 %v405, %v404
    %v429 = vpack.c.bf16 %v407, %v406
    %v430 = vpack.c.bf16 %v409, %v408
    %v431 = vpack.c.bf16 %v411, %v410
    %v432 = vpack.c.bf16 %v413, %v412
    %v433 = vpack.c.bf16 %v415, %v414
    %v434 = vpack.c.bf16 %v417, %v416
    %v435 = vpack.c.bf16 %v419, %v418
    %v436 = vld [vmem:[%s3] sm:$0xff]
    %v437 = vld [vmem:[%s3 + $0x8] sm:$0xff]
    %v438 = vpack.c.bf16 %v437, %v436
    %v439 = vld [vmem:[%s1] sm:$0xff]
    %v440 = vld [vmem:[%s1 + $0x8] sm:$0xff]
    %v441 = vld [vmem:[%s1 + $0x10] sm:$0xff]
    %v442 = vld [vmem:[%s1 + $0x18] sm:$0xff]
    %v443 = vld [vmem:[%s1 + $0x20] sm:$0xff]
    %v444 = vld [vmem:[%s1 + $0x28] sm:$0xff]
    %v445 = vld [vmem:[%s1 + $0x30] sm:$0xff]
    %v446 = vld [vmem:[%s1 + $0x38] sm:$0xff]
    %v447 = vld [vmem:[%s1 + $0x40] sm:$0xff]
    %v448 = vld [vmem:[%s1 + $0x48] sm:$0xff]
    %v449 = vld [vmem:[%s1 + $0x50] sm:$0xff]
    %v450 = vld [vmem:[%s1 + $0x58] sm:$0xff]
    %v451 = vld [vmem:[%s1 + $0x60] sm:$0xff]
    %v452 = vld [vmem:[%s1 + $0x68] sm:$0xff]
    %v453 = vld [vmem:[%s1 + $0x70] sm:$0xff]
    %v454 = vld [vmem:[%s1 + $0x78] sm:$0xff]
    %v455 = vld [vmem:[%s1 + $0x80] sm:$0xff]
    %v456 = vld [vmem:[%s1 + $0x88] sm:$0xff]
    %v457 = vld [vmem:[%s1 + $0x90] sm:$0xff]
    %v458 = vld [vmem:[%s1 + $0x98] sm:$0xff]
    %v459 = vld [vmem:[%s1 + $0xa0] sm:$0xff]
    %v460 = vld [vmem:[%s1 + $0xa8] sm:$0xff]
    %v461 = vld [vmem:[%s1 + $0xb0] sm:$0xff]
    %v462 = vld [vmem:[%s1 + $0xb8] sm:$0xff]
    %v463 = vld [vmem:[%s1 + $0xc0] sm:$0xff]
    %v464 = vld [vmem:[%s1 + $0xc8] sm:$0xff]
    %v465 = vld [vmem:[%s1 + $0xd0] sm:$0xff]
    %v466 = vld [vmem:[%s1 + $0xd8] sm:$0xff]
    %v467 = vld [vmem:[%s1 + $0xe0] sm:$0xff]
    %v468 = vld [vmem:[%s1 + $0xe8] sm:$0xff]
    %v469 = vld [vmem:[%s1 + $0xf0] sm:$0xff]
    %v470 = vld [vmem:[%s1 + $0xf8] sm:$0xff]
    %v471 = vlaneseq
    %v472 = vand.u32 %v471, 127
    %473 = vset.pattern.permute.xlu0 0
    %474 = vperm.xlu0 %473, %v439
    %v475 = vpop.permute.xlu0 %474
    %476 = vset.pattern.permute.xlu0 0
    %477 = vperm.xlu0 %476, %v440
    %v478 = vpop.permute.xlu0 %477
    %479 = vset.pattern.permute.xlu0 0
    %480 = vperm.xlu0 %479, %v441
    %v481 = vpop.permute.xlu0 %480
    %482 = vset.pattern.permute.xlu0 0
    %483 = vperm.xlu0 %482, %v442
    %v484 = vpop.permute.xlu0 %483
    %485 = vset.pattern.permute.xlu0 0
    %486 = vperm.xlu0 %485, %v443
    %v487 = vpop.permute.xlu0 %486
    %488 = vset.pattern.permute.xlu0 0
    %489 = vperm.xlu0 %488, %v444
    %v490 = vpop.permute.xlu0 %489
    %491 = vset.pattern.permute.xlu0 0
    %492 = vperm.xlu0 %491, %v445
    %v493 = vpop.permute.xlu0 %492
    %494 = vset.pattern.permute.xlu0 0
    %495 = vperm.xlu0 %494, %v446
    %v496 = vpop.permute.xlu0 %495
    %497 = vset.pattern.permute.xlu0 0
    %498 = vperm.xlu0 %497, %v447
    %v499 = vpop.permute.xlu0 %498
    %500 = vset.pattern.permute.xlu0 0
    %501 = vperm.xlu0 %500, %v448
    %v502 = vpop.permute.xlu0 %501
    %503 = vset.pattern.permute.xlu0 0
    %504 = vperm.xlu0 %503, %v449
    %v505 = vpop.permute.xlu0 %504
    %506 = vset.pattern.permute.xlu0 0
    %507 = vperm.xlu0 %506, %v450
    %v508 = vpop.permute.xlu0 %507
    %509 = vset.pattern.permute.xlu0 0
    %510 = vperm.xlu0 %509, %v451
    %v511 = vpop.permute.xlu0 %510
    %512 = vset.pattern.permute.xlu0 0
    %513 = vperm.xlu0 %512, %v452
    %v514 = vpop.permute.xlu0 %513
    %515 = vset.pattern.permute.xlu0 0
    %516 = vperm.xlu0 %515, %v453
    %v517 = vpop.permute.xlu0 %516
    %518 = vset.pattern.permute.xlu0 0
    %519 = vperm.xlu0 %518, %v454
    %v520 = vpop.permute.xlu0 %519
    %521 = vset.pattern.permute.xlu0 0
    %522 = vperm.xlu0 %521, %v455
    %v523 = vpop.permute.xlu0 %522
    %524 = vset.pattern.permute.xlu0 0
    %525 = vperm.xlu0 %524, %v456
    %v526 = vpop.permute.xlu0 %525
    %527 = vset.pattern.permute.xlu0 0
    %528 = vperm.xlu0 %527, %v457
    %v529 = vpop.permute.xlu0 %528
    %530 = vset.pattern.permute.xlu0 0
    %531 = vperm.xlu0 %530, %v458
    %v532 = vpop.permute.xlu0 %531
    %533 = vset.pattern.permute.xlu0 0
    %534 = vperm.xlu0 %533, %v459
    %v535 = vpop.permute.xlu0 %534
    %536 = vset.pattern.permute.xlu0 0
    %537 = vperm.xlu0 %536, %v460
    %v538 = vpop.permute.xlu0 %537
    %539 = vset.pattern.permute.xlu0 0
    %540 = vperm.xlu0 %539, %v461
    %v541 = vpop.permute.xlu0 %540
    %542 = vset.pattern.permute.xlu0 0
    %543 = vperm.xlu0 %542, %v462
    %v544 = vpop.permute.xlu0 %543
    %545 = vset.pattern.permute.xlu0 0
    %546 = vperm.xlu0 %545, %v463
    %v547 = vpop.permute.xlu0 %546
    %548 = vset.pattern.permute.xlu0 0
    %549 = vperm.xlu0 %548, %v464
    %v550 = vpop.permute.xlu0 %549
    %551 = vset.pattern.permute.xlu0 0
    %552 = vperm.xlu0 %551, %v465
    %v553 = vpop.permute.xlu0 %552
    %554 = vset.pattern.permute.xlu0 0
    %555 = vperm.xlu0 %554, %v466
    %v556 = vpop.permute.xlu0 %555
    %557 = vset.pattern.permute.xlu0 0
    %558 = vperm.xlu0 %557, %v467
    %v559 = vpop.permute.xlu0 %558
    %560 = vset.pattern.permute.xlu0 0
    %561 = vperm.xlu0 %560, %v468
    %v562 = vpop.permute.xlu0 %561
    %563 = vset.pattern.permute.xlu0 0
    %564 = vperm.xlu0 %563, %v469
    %v565 = vpop.permute.xlu0 %564
    %566 = vset.pattern.permute.xlu0 0
    %567 = vperm.xlu0 %566, %v470
    %v568 = vpop.permute.xlu0 %567
    %vm569 = vcmp.eq.s32.totalorder %v475, %v472
    %vm570 = vcmp.eq.s32.totalorder %v478, %v472
    %vm571 = vcmp.eq.s32.totalorder %v481, %v472
    %vm572 = vcmp.eq.s32.totalorder %v484, %v472
    %vm573 = vcmp.eq.s32.totalorder %v487, %v472
    %vm574 = vcmp.eq.s32.totalorder %v490, %v472
    %vm575 = vcmp.eq.s32.totalorder %v493, %v472
    %vm576 = vcmp.eq.s32.totalorder %v496, %v472
    %vm577 = vcmp.eq.s32.totalorder %v499, %v472
    %vm578 = vcmp.eq.s32.totalorder %v502, %v472
    %vm579 = vcmp.eq.s32.totalorder %v505, %v472
    %vm580 = vcmp.eq.s32.totalorder %v508, %v472
    %vm581 = vcmp.eq.s32.totalorder %v511, %v472
    %vm582 = vcmp.eq.s32.totalorder %v514, %v472
    %vm583 = vcmp.eq.s32.totalorder %v517, %v472
    %vm584 = vcmp.eq.s32.totalorder %v520, %v472
    %vm585 = vcmp.eq.s32.totalorder %v523, %v472
    %vm586 = vcmp.eq.s32.totalorder %v526, %v472
    %vm587 = vcmp.eq.s32.totalorder %v529, %v472
    %vm588 = vcmp.eq.s32.totalorder %v532, %v472
    %vm589 = vcmp.eq.s32.totalorder %v535, %v472
    %vm590 = vcmp.eq.s32.totalorder %v538, %v472
    %vm591 = vcmp.eq.s32.totalorder %v541, %v472
    %vm592 = vcmp.eq.s32.totalorder %v544, %v472
    %vm593 = vcmp.eq.s32.totalorder %v547, %v472
    %vm594 = vcmp.eq.s32.totalorder %v550, %v472
    %vm595 = vcmp.eq.s32.totalorder %v553, %v472
    %vm596 = vcmp.eq.s32.totalorder %v556, %v472
    %vm597 = vcmp.eq.s32.totalorder %v559, %v472
    %vm598 = vcmp.eq.s32.totalorder %v562, %v472
    %vm599 = vcmp.eq.s32.totalorder %v565, %v472
    %vm600 = vcmp.eq.s32.totalorder %v568, %v472
    %v601 = vsel %vm569, 1, 0
    %v602 = vsel %vm570, 1, 0
    %v603 = vsel %vm571, 1, 0
    %v604 = vsel %vm572, 1, 0
    %v605 = vsel %vm573, 1, 0
    %v606 = vsel %vm574, 1, 0
    %v607 = vsel %vm575, 1, 0
    %v608 = vsel %vm576, 1, 0
    %v609 = vsel %vm577, 1, 0
    %v610 = vsel %vm578, 1, 0
    %v611 = vsel %vm579, 1, 0
    %v612 = vsel %vm580, 1, 0
    %v613 = vsel %vm581, 1, 0
    %v614 = vsel %vm582, 1, 0
    %v615 = vsel %vm583, 1, 0
    %v616 = vsel %vm584, 1, 0
    %v617 = vsel %vm585, 1, 0
    %v618 = vsel %vm586, 1, 0
    %v619 = vsel %vm587, 1, 0
    %v620 = vsel %vm588, 1, 0
    %v621 = vsel %vm589, 1, 0
    %v622 = vsel %vm590, 1, 0
    %v623 = vsel %vm591, 1, 0
    %v624 = vsel %vm592, 1, 0
    %v625 = vsel %vm593, 1, 0
    %v626 = vsel %vm594, 1, 0
    %v627 = vsel %vm595, 1, 0
    %v628 = vsel %vm596, 1, 0
    %v629 = vsel %vm597, 1, 0
    %v630 = vsel %vm598, 1, 0
    %v631 = vsel %vm599, 1, 0
    %v632 = vsel %vm600, 1, 0
    %v633 = vcvt.s32.f32 %v601
    %v634 = vcvt.s32.f32 %v602
    %v635 = vcvt.s32.f32 %v603
    %v636 = vcvt.s32.f32 %v604
    %v637 = vcvt.s32.f32 %v605
    %v638 = vcvt.s32.f32 %v606
    %v639 = vcvt.s32.f32 %v607
    %v640 = vcvt.s32.f32 %v608
    %v641 = vcvt.s32.f32 %v609
    %v642 = vcvt.s32.f32 %v610
    %v643 = vcvt.s32.f32 %v611
    %v644 = vcvt.s32.f32 %v612
    %v645 = vcvt.s32.f32 %v613
    %v646 = vcvt.s32.f32 %v614
    %v647 = vcvt.s32.f32 %v615
    %v648 = vcvt.s32.f32 %v616
    %v649 = vcvt.s32.f32 %v617
    %v650 = vcvt.s32.f32 %v618
    %v651 = vcvt.s32.f32 %v619
    %v652 = vcvt.s32.f32 %v620
    %v653 = vcvt.s32.f32 %v621
    %v654 = vcvt.s32.f32 %v622
    %v655 = vcvt.s32.f32 %v623
    %v656 = vcvt.s32.f32 %v624
    %v657 = vcvt.s32.f32 %v625
    %v658 = vcvt.s32.f32 %v626
    %v659 = vcvt.s32.f32 %v627
    %v660 = vcvt.s32.f32 %v628
    %v661 = vcvt.s32.f32 %v629
    %v662 = vcvt.s32.f32 %v630
    %v663 = vcvt.s32.f32 %v631
    %v664 = vcvt.s32.f32 %v632
    %v665 = vpack.c.bf16 %v634, %v633
    %v666 = vpack.c.bf16 %v636, %v635
    %v667 = vpack.c.bf16 %v638, %v637
    %v668 = vpack.c.bf16 %v640, %v639
    %v669 = vpack.c.bf16 %v642, %v641
    %v670 = vpack.c.bf16 %v644, %v643
    %v671 = vpack.c.bf16 %v646, %v645
    %v672 = vpack.c.bf16 %v648, %v647
    %v673 = vpack.c.bf16 %v650, %v649
    %v674 = vpack.c.bf16 %v652, %v651
    %v675 = vpack.c.bf16 %v654, %v653
    %v676 = vpack.c.bf16 %v656, %v655
    %v677 = vpack.c.bf16 %v658, %v657
    %v678 = vpack.c.bf16 %v660, %v659
    %v679 = vpack.c.bf16 %v662, %v661
    %v680 = vpack.c.bf16 %v664, %v663
    %vm681 = vcmask 130048
    %v683 = vsel %vm681, %v665, 0
    %v686 = vsel %vm681, %v666, 0
    %v689 = vsel %vm681, %v667, 0
    %v692 = vsel %vm681, %v668, 0
    %v695 = vsel %vm681, %v669, 0
    %v698 = vsel %vm681, %v670, 0
    %v701 = vsel %vm681, %v671, 0
    %v704 = vsel %vm681, %v672, 0
    %v707 = vsel %vm681, %v673, 0
    %v710 = vsel %vm681, %v674, 0
    %v713 = vsel %vm681, %v675, 0
    %v716 = vsel %vm681, %v676, 0
    %v719 = vsel %vm681, %v677, 0
    %v722 = vsel %vm681, %v678, 0
    %v725 = vsel %vm681, %v679, 0
    %v728 = vsel %vm681, %v680, 0
    %730 = vmatprep.subr.bf16.mxu0 0
    %731 = vmatpush1.bf16.msra.mxu0 %v438
    %732 = vmatprep.subr.bf16.mxu0 0
    %733 = vmatpush1.bf16.msra.mxu0 0
    %734 = vmatprep.subr.bf16.mxu0 0
    %735 = vmatpush1.bf16.msra.mxu0 0
    %736 = vmatprep.subr.bf16.mxu0 0
    %737 = vmatpush1.bf16.msra.mxu0 0
    %738 = vmatprep.subr.bf16.mxu0 0
    %739 = vmatpush1.bf16.msra.mxu0 0
    %740 = vmatprep.subr.bf16.mxu0 0
    %741 = vmatpush1.bf16.msra.mxu0 0
    %742 = vmatprep.subr.bf16.mxu0 0
    %743 = vmatpush1.bf16.msra.mxu0 0
    %744 = vmatprep.subr.bf16.mxu0 0
    %745 = vmatpush1.bf16.msra.mxu0 0
    %746 = vmatprep.subr.bf16.mxu0 0
    %747 = vmatpush1.bf16.msra.mxu0 0
    %748 = vmatprep.subr.bf16.mxu0 0
    %749 = vmatpush1.bf16.msra.mxu0 0
    %750 = vmatprep.subr.bf16.mxu0 0
    %751 = vmatpush1.bf16.msra.mxu0 0
    %752 = vmatprep.subr.bf16.mxu0 0
    %753 = vmatpush1.bf16.msra.mxu0 0
    %754 = vmatprep.subr.bf16.mxu0 0
    %755 = vmatpush1.bf16.msra.mxu0 0
    %756 = vmatprep.subr.bf16.mxu0 0
    %757 = vmatpush1.bf16.msra.mxu0 0
    %758 = vmatprep.subr.bf16.mxu0 0
    %759 = vmatpush1.bf16.msra.mxu0 0
    %760 = vmatprep.subr.bf16.mxu0 0
    %761 = vmatpush1.bf16.msra.mxu0 0
    %762 = vmatprep.mubr.bf16.mxu0 0
    %763 = vmatmul.mubr.bf16.gmra.mrb[0].mxu0 %v683
    %v764 = vpop.f32.mrb[0].mxu0
    %v765 = vadd.f32 0.0, %v764
    %v766 = vpop.f32.mrb[0].mxu0
    %v767 = vpop.f32.mrb[0].mxu0
    %v768 = vadd.f32 0.0, %v767
    %v769 = vpop.f32.mrb[0].mxu0
    %770 = vmatprep.mubr.bf16.mxu0 0
    %771 = vmatmul.mubr.bf16.gmra.mrb[0].mxu0 %v686
    %v772 = vpop.f32.mrb[0].mxu0
    %v773 = vadd.f32 0.0, %v772
    %v774 = vpop.f32.mrb[0].mxu0
    %v775 = vpop.f32.mrb[0].mxu0
    %v776 = vadd.f32 0.0, %v775
    %v777 = vpop.f32.mrb[0].mxu0
    %778 = vmatprep.mubr.bf16.mxu0 0
    %779 = vmatmul.mubr.bf16.gmra.mrb[0].mxu0 %v689
    %v780 = vpop.f32.mrb[0].mxu0
    %v781 = vadd.f32 0.0, %v780
    %v782 = vpop.f32.mrb[0].mxu0
    %v783 = vpop.f32.mrb[0].mxu0
    %v784 = vadd.f32 0.0, %v783
    %v785 = vpop.f32.mrb[0].mxu0
    %786 = vmatprep.mubr.bf16.mxu0 0
    %787 = vmatmul.mubr.bf16.gmra.mrb[0].mxu0 %v692
    %v788 = vpop.f32.mrb[0].mxu0
    %v789 = vadd.f32 0.0, %v788
    %v790 = vpop.f32.mrb[0].mxu0
    %v791 = vpop.f32.mrb[0].mxu0
    %v792 = vadd.f32 0.0, %v791
    %v793 = vpop.f32.mrb[0].mxu0
    %794 = vmatprep.mubr.bf16.mxu0 0
    %795 = vmatmul.mubr.bf16.gmra.mrb[0].mxu0 %v695
    %v796 = vpop.f32.mrb[0].mxu0
    %v797 = vadd.f32 0.0, %v796
    %v798 = vpop.f32.mrb[0].mxu0
    %v799 = vpop.f32.mrb[0].mxu0
    %v800 = vadd.f32 0.0, %v799
    %v801 = vpop.f32.mrb[0].mxu0
    %802 = vmatprep.mubr.bf16.mxu0 0
    %803 = vmatmul.mubr.bf16.gmra.mrb[0].mxu0 %v698
    %v804 = vpop.f32.mrb[0].mxu0
    %v805 = vadd.f32 0.0, %v804
    %v806 = vpop.f32.mrb[0].mxu0
    %v807 = vpop.f32.mrb[0].mxu0
    %v808 = vadd.f32 0.0, %v807
    %v809 = vpop.f32.mrb[0].mxu0
    %810 = vmatprep.mubr.bf16.mxu0 0
    %811 = vmatmul.mubr.bf16.gmra.mrb[0].mxu0 %v701
    %v812 = vpop.f32.mrb[0].mxu0
    %v813 = vadd.f32 0.0, %v812
    %v814 = vpop.f32.mrb[0].mxu0
    %v815 = vpop.f32.mrb[0].mxu0
    %v816 = vadd.f32 0.0, %v815
    %v817 = vpop.f32.mrb[0].mxu0
    %818 = vmatprep.mubr.bf16.mxu0 0
    %819 = vmatmul.mubr.bf16.gmra.mrb[0].mxu0 %v704
    %v820 = vpop.f32.mrb[0].mxu0
    %v821 = vadd.f32 0.0, %v820
    %v822 = vpop.f32.mrb[0].mxu0
    %v823 = vpop.f32.mrb[0].mxu0
    %v824 = vadd.f32 0.0, %v823
    %v825 = vpop.f32.mrb[0].mxu0
    %826 = vmatprep.mubr.bf16.mxu0 0
    %827 = vmatmul.mubr.bf16.gmra.mrb[0].mxu0 %v707
    %v828 = vpop.f32.mrb[0].mxu0
    %v829 = vadd.f32 0.0, %v828
    %v830 = vpop.f32.mrb[0].mxu0
    %v831 = vpop.f32.mrb[0].mxu0
    %v832 = vadd.f32 0.0, %v831
    %v833 = vpop.f32.mrb[0].mxu0
    %834 = vmatprep.mubr.bf16.mxu0 0
    %835 = vmatmul.mubr.bf16.gmra.mrb[0].mxu0 %v710
    %v836 = vpop.f32.mrb[0].mxu0
    %v837 = vadd.f32 0.0, %v836
    %v838 = vpop.f32.mrb[0].mxu0
    %v839 = vpop.f32.mrb[0].mxu0
    %v840 = vadd.f32 0.0, %v839
    %v841 = vpop.f32.mrb[0].mxu0
    %842 = vmatprep.mubr.bf16.mxu0 0
    %843 = vmatmul.mubr.bf16.gmra.mrb[0].mxu0 %v713
    %v844 = vpop.f32.mrb[0].mxu0
    %v845 = vadd.f32 0.0, %v844
    %v846 = vpop.f32.mrb[0].mxu0
    %v847 = vpop.f32.mrb[0].mxu0
    %v848 = vadd.f32 0.0, %v847
    %v849 = vpop.f32.mrb[0].mxu0
    %850 = vmatprep.mubr.bf16.mxu0 0
    %851 = vmatmul.mubr.bf16.gmra.mrb[0].mxu0 %v716
    %v852 = vpop.f32.mrb[0].mxu0
    %v853 = vadd.f32 0.0, %v852
    %v854 = vpop.f32.mrb[0].mxu0
    %v855 = vpop.f32.mrb[0].mxu0
    %v856 = vadd.f32 0.0, %v855
    %v857 = vpop.f32.mrb[0].mxu0
    %858 = vmatprep.mubr.bf16.mxu0 0
    %859 = vmatmul.mubr.bf16.gmra.mrb[0].mxu0 %v719
    %v860 = vpop.f32.mrb[0].mxu0
    %v861 = vadd.f32 0.0, %v860
    %v862 = vpop.f32.mrb[0].mxu0
    %v863 = vpop.f32.mrb[0].mxu0
    %v864 = vadd.f32 0.0, %v863
    %v865 = vpop.f32.mrb[0].mxu0
    %866 = vmatprep.mubr.bf16.mxu0 0
    %867 = vmatmul.mubr.bf16.gmra.mrb[0].mxu0 %v722
    %v868 = vpop.f32.mrb[0].mxu0
    %v869 = vadd.f32 0.0, %v868
    %v870 = vpop.f32.mrb[0].mxu0
    %v871 = vpop.f32.mrb[0].mxu0
    %v872 = vadd.f32 0.0, %v871
    %v873 = vpop.f32.mrb[0].mxu0
    %874 = vmatprep.mubr.bf16.mxu0 0
    %875 = vmatmul.mubr.bf16.gmra.mrb[0].mxu0 %v725
    %v876 = vpop.f32.mrb[0].mxu0
    %v877 = vadd.f32 0.0, %v876
    %v878 = vpop.f32.mrb[0].mxu0
    %v879 = vpop.f32.mrb[0].mxu0
    %v880 = vadd.f32 0.0, %v879
    %v881 = vpop.f32.mrb[0].mxu0
    %882 = vmatprep.mubr.bf16.mxu0 0
    %883 = vmatmul.mubr.bf16.gmra.mrb[0].mxu0 %v728
    %v884 = vpop.f32.mrb[0].mxu0
    %v885 = vadd.f32 0.0, %v884
    %v886 = vpop.f32.mrb[0].mxu0
    %v887 = vpop.f32.mrb[0].mxu0
    %v888 = vadd.f32 0.0, %v887
    %v889 = vpop.f32.mrb[0].mxu0
    %890 = vdwg.mxu0
    %v891 = vpack.c.bf16 %v768, %v765
    %v892 = vpack.c.bf16 %v776, %v773
    %v893 = vpack.c.bf16 %v784, %v781
    %v894 = vpack.c.bf16 %v792, %v789
    %v895 = vpack.c.bf16 %v800, %v797
    %v896 = vpack.c.bf16 %v808, %v805
    %v897 = vpack.c.bf16 %v816, %v813
    %v898 = vpack.c.bf16 %v824, %v821
    %v899 = vpack.c.bf16 %v832, %v829
    %v900 = vpack.c.bf16 %v840, %v837
    %v901 = vpack.c.bf16 %v848, %v845
    %v902 = vpack.c.bf16 %v856, %v853
    %v903 = vpack.c.bf16 %v864, %v861
    %v904 = vpack.c.bf16 %v872, %v869
    %v905 = vpack.c.bf16 %v880, %v877
    %v906 = vpack.c.bf16 %v888, %v885
    %v908 = vpack.i.b16 %v891, %v891
    %v910 = vlaneseq
    %v911 = vshrl.u32 %v910, 7
    %v912 = vsub.s32 0, %v911
    %v913 = vrot.slane %v908, %v912
    %915 = vbcast.lane.c.b16.xlu0 %v913, 256
    %v916 = vpop.permute.xlu0 %915
    %v917 = vshrl.u32 %v891, 16
    %v918 = vpack.i.b16 %v917, %v917
    %v920 = vlaneseq
    %v921 = vshrl.u32 %v920, 7
    %v922 = vsub.s32 0, %v921
    %v923 = vrot.slane %v918, %v922
    %925 = vbcast.lane.c.b16.xlu0 %v923, 256
    %v926 = vpop.permute.xlu0 %925
    %v927 = vlaneseq
    %v928 = vshrl.u32 %v927, 7
    %v929 = vsub.s32 1, %v928
    %v930 = vrot.slane %v908, %v929
    %932 = vbcast.lane.c.b16.xlu0 %v930, 256
    %v933 = vpop.permute.xlu0 %932
    %v934 = vlaneseq
    %v935 = vshrl.u32 %v934, 7
    %v936 = vsub.s32 1, %v935
    %v937 = vrot.slane %v918, %v936
    %939 = vbcast.lane.c.b16.xlu0 %v937, 256
    %v940 = vpop.permute.xlu0 %939
    %v941 = vlaneseq
    %v942 = vshrl.u32 %v941, 7
    %v943 = vsub.s32 2, %v942
    %v944 = vrot.slane %v908, %v943
    %946 = vbcast.lane.c.b16.xlu0 %v944, 256
    %v947 = vpop.permute.xlu0 %946
    %v948 = vlaneseq
    %v949 = vshrl.u32 %v948, 7
    %v950 = vsub.s32 2, %v949
    %v951 = vrot.slane %v918, %v950
    %953 = vbcast.lane.c.b16.xlu0 %v951, 256
    %v954 = vpop.permute.xlu0 %953
    %v955 = vlaneseq
    %v956 = vshrl.u32 %v955, 7
    %v957 = vsub.s32 3, %v956
    %v958 = vrot.slane %v908, %v957
    %960 = vbcast.lane.c.b16.xlu0 %v958, 256
    %v961 = vpop.permute.xlu0 %960
    %v962 = vlaneseq
    %v963 = vshrl.u32 %v962, 7
    %v964 = vsub.s32 3, %v963
    %v965 = vrot.slane %v918, %v964
    %967 = vbcast.lane.c.b16.xlu0 %v965, 256
    %v968 = vpop.permute.xlu0 %967
    %v969 = vlaneseq
    %v970 = vshrl.u32 %v969, 7
    %v971 = vsub.s32 4, %v970
    %v972 = vrot.slane %v908, %v971
    %974 = vbcast.lane.c.b16.xlu0 %v972, 256
    %v975 = vpop.permute.xlu0 %974
    %v976 = vlaneseq
    %v977 = vshrl.u32 %v976, 7
    %v978 = vsub.s32 4, %v977
    %v979 = vrot.slane %v918, %v978
    %981 = vbcast.lane.c.b16.xlu0 %v979, 256
    %v982 = vpop.permute.xlu0 %981
    %v983 = vlaneseq
    %v984 = vshrl.u32 %v983, 7
    %v985 = vsub.s32 5, %v984
    %v986 = vrot.slane %v908, %v985
    %988 = vbcast.lane.c.b16.xlu0 %v986, 256
    %v989 = vpop.permute.xlu0 %988
    %v990 = vlaneseq
    %v991 = vshrl.u32 %v990, 7
    %v992 = vsub.s32 5, %v991
    %v993 = vrot.slane %v918, %v992
    %995 = vbcast.lane.c.b16.xlu0 %v993, 256
    %v996 = vpop.permute.xlu0 %995
    %v997 = vlaneseq
    %v998 = vshrl.u32 %v997, 7
    %v999 = vsub.s32 6, %v998
    %v1000 = vrot.slane %v908, %v999
    %1002 = vbcast.lane.c.b16.xlu0 %v1000, 256
    %v1003 = vpop.permute.xlu0 %1002
    %v1004 = vlaneseq
    %v1005 = vshrl.u32 %v1004, 7
    %v1006 = vsub.s32 6, %v1005
    %v1007 = vrot.slane %v918, %v1006
    %1009 = vbcast.lane.c.b16.xlu0 %v1007, 256
    %v1010 = vpop.permute.xlu0 %1009
    %v1011 = vlaneseq
    %v1012 = vshrl.u32 %v1011, 7
    %v1013 = vsub.s32 7, %v1012
    %v1014 = vrot.slane %v908, %v1013
    %1016 = vbcast.lane.c.b16.xlu0 %v1014, 256
    %v1017 = vpop.permute.xlu0 %1016
    %v1018 = vlaneseq
    %v1019 = vshrl.u32 %v1018, 7
    %v1020 = vsub.s32 7, %v1019
    %v1021 = vrot.slane %v918, %v1020
    %1023 = vbcast.lane.c.b16.xlu0 %v1021, 256
    %v1024 = vpop.permute.xlu0 %1023
    %v1026 = vpack.i.b16 %v892, %v892
    %v1028 = vlaneseq
    %v1029 = vshrl.u32 %v1028, 7
    %v1030 = vsub.s32 0, %v1029
    %v1031 = vrot.slane %v1026, %v1030
    %1033 = vbcast.lane.c.b16.xlu0 %v1031, 256
    %v1034 = vpop.permute.xlu0 %1033
    %v1035 = vshrl.u32 %v892, 16
    %v1036 = vpack.i.b16 %v1035, %v1035
    %v1038 = vlaneseq
    %v1039 = vshrl.u32 %v1038, 7
    %v1040 = vsub.s32 0, %v1039
    %v1041 = vrot.slane %v1036, %v1040
    %1043 = vbcast.lane.c.b16.xlu0 %v1041, 256
    %v1044 = vpop.permute.xlu0 %1043
    %v1045 = vlaneseq
    %v1046 = vshrl.u32 %v1045, 7
    %v1047 = vsub.s32 1, %v1046
    %v1048 = vrot.slane %v1026, %v1047
    %1050 = vbcast.lane.c.b16.xlu0 %v1048, 256
    %v1051 = vpop.permute.xlu0 %1050
    %v1052 = vlaneseq
    %v1053 = vshrl.u32 %v1052, 7
    %v1054 = vsub.s32 1, %v1053
    %v1055 = vrot.slane %v1036, %v1054
    %1057 = vbcast.lane.c.b16.xlu0 %v1055, 256
    %v1058 = vpop.permute.xlu0 %1057
    %v1059 = vlaneseq
    %v1060 = vshrl.u32 %v1059, 7
    %v1061 = vsub.s32 2, %v1060
    %v1062 = vrot.slane %v1026, %v1061
    %1064 = vbcast.lane.c.b16.xlu0 %v1062, 256
    %v1065 = vpop.permute.xlu0 %1064
    %v1066 = vlaneseq
    %v1067 = vshrl.u32 %v1066, 7
    %v1068 = vsub.s32 2, %v1067
    %v1069 = vrot.slane %v1036, %v1068
    %1071 = vbcast.lane.c.b16.xlu0 %v1069, 256
    %v1072 = vpop.permute.xlu0 %1071
    %v1073 = vlaneseq
    %v1074 = vshrl.u32 %v1073, 7
    %v1075 = vsub.s32 3, %v1074
    %v1076 = vrot.slane %v1026, %v1075
    %1078 = vbcast.lane.c.b16.xlu0 %v1076, 256
    %v1079 = vpop.permute.xlu0 %1078
    %v1080 = vlaneseq
    %v1081 = vshrl.u32 %v1080, 7
    %v1082 = vsub.s32 3, %v1081
    %v1083 = vrot.slane %v1036, %v1082
    %1085 = vbcast.lane.c.b16.xlu0 %v1083, 256
    %v1086 = vpop.permute.xlu0 %1085
    %v1087 = vlaneseq
    %v1088 = vshrl.u32 %v1087, 7
    %v1089 = vsub.s32 4, %v1088
    %v1090 = vrot.slane %v1026, %v1089
    %1092 = vbcast.lane.c.b16.xlu0 %v1090, 256
    %v1093 = vpop.permute.xlu0 %1092
    %v1094 = vlaneseq
    %v1095 = vshrl.u32 %v1094, 7
    %v1096 = vsub.s32 4, %v1095
    %v1097 = vrot.slane %v1036, %v1096
    %1099 = vbcast.lane.c.b16.xlu0 %v1097, 256
    %v1100 = vpop.permute.xlu0 %1099
    %v1101 = vlaneseq
    %v1102 = vshrl.u32 %v1101, 7
    %v1103 = vsub.s32 5, %v1102
    %v1104 = vrot.slane %v1026, %v1103
    %1106 = vbcast.lane.c.b16.xlu0 %v1104, 256
    %v1107 = vpop.permute.xlu0 %1106
    %v1108 = vlaneseq
    %v1109 = vshrl.u32 %v1108, 7
    %v1110 = vsub.s32 5, %v1109
    %v1111 = vrot.slane %v1036, %v1110
    %1113 = vbcast.lane.c.b16.xlu0 %v1111, 256
    %v1114 = vpop.permute.xlu0 %1113
    %v1115 = vlaneseq
    %v1116 = vshrl.u32 %v1115, 7
    %v1117 = vsub.s32 6, %v1116
    %v1118 = vrot.slane %v1026, %v1117
    %1120 = vbcast.lane.c.b16.xlu0 %v1118, 256
    %v1121 = vpop.permute.xlu0 %1120
    %v1122 = vlaneseq
    %v1123 = vshrl.u32 %v1122, 7
    %v1124 = vsub.s32 6, %v1123
    %v1125 = vrot.slane %v1036, %v1124
    %1127 = vbcast.lane.c.b16.xlu0 %v1125, 256
    %v1128 = vpop.permute.xlu0 %1127
    %v1129 = vlaneseq
    %v1130 = vshrl.u32 %v1129, 7
    %v1131 = vsub.s32 7, %v1130
    %v1132 = vrot.slane %v1026, %v1131
    %1134 = vbcast.lane.c.b16.xlu0 %v1132, 256
    %v1135 = vpop.permute.xlu0 %1134
    %v1136 = vlaneseq
    %v1137 = vshrl.u32 %v1136, 7
    %v1138 = vsub.s32 7, %v1137
    %v1139 = vrot.slane %v1036, %v1138
    %1141 = vbcast.lane.c.b16.xlu0 %v1139, 256
    %v1142 = vpop.permute.xlu0 %1141
    %v1144 = vpack.i.b16 %v893, %v893
    %v1146 = vlaneseq
    %v1147 = vshrl.u32 %v1146, 7
    %v1148 = vsub.s32 0, %v1147
    %v1149 = vrot.slane %v1144, %v1148
    %1151 = vbcast.lane.c.b16.xlu0 %v1149, 256
    %v1152 = vpop.permute.xlu0 %1151
    %v1153 = vshrl.u32 %v893, 16
    %v1154 = vpack.i.b16 %v1153, %v1153
    %v1156 = vlaneseq
    %v1157 = vshrl.u32 %v1156, 7
    %v1158 = vsub.s32 0, %v1157
    %v1159 = vrot.slane %v1154, %v1158
    %1161 = vbcast.lane.c.b16.xlu0 %v1159, 256
    %v1162 = vpop.permute.xlu0 %1161
    %v1163 = vlaneseq
    %v1164 = vshrl.u32 %v1163, 7
    %v1165 = vsub.s32 1, %v1164
    %v1166 = vrot.slane %v1144, %v1165
    %1168 = vbcast.lane.c.b16.xlu0 %v1166, 256
    %v1169 = vpop.permute.xlu0 %1168
    %v1170 = vlaneseq
    %v1171 = vshrl.u32 %v1170, 7
    %v1172 = vsub.s32 1, %v1171
    %v1173 = vrot.slane %v1154, %v1172
    %1175 = vbcast.lane.c.b16.xlu0 %v1173, 256
    %v1176 = vpop.permute.xlu0 %1175
    %v1177 = vlaneseq
    %v1178 = vshrl.u32 %v1177, 7
    %v1179 = vsub.s32 2, %v1178
    %v1180 = vrot.slane %v1144, %v1179
    %1182 = vbcast.lane.c.b16.xlu0 %v1180, 256
    %v1183 = vpop.permute.xlu0 %1182
    %v1184 = vlaneseq
    %v1185 = vshrl.u32 %v1184, 7
    %v1186 = vsub.s32 2, %v1185
    %v1187 = vrot.slane %v1154, %v1186
    %1189 = vbcast.lane.c.b16.xlu0 %v1187, 256
    %v1190 = vpop.permute.xlu0 %1189
    %v1191 = vlaneseq
    %v1192 = vshrl.u32 %v1191, 7
    %v1193 = vsub.s32 3, %v1192
    %v1194 = vrot.slane %v1144, %v1193
    %1196 = vbcast.lane.c.b16.xlu0 %v1194, 256
    %v1197 = vpop.permute.xlu0 %1196
    %v1198 = vlaneseq
    %v1199 = vshrl.u32 %v1198, 7
    %v1200 = vsub.s32 3, %v1199
    %v1201 = vrot.slane %v1154, %v1200
    %1203 = vbcast.lane.c.b16.xlu0 %v1201, 256
    %v1204 = vpop.permute.xlu0 %1203
    %v1205 = vlaneseq
    %v1206 = vshrl.u32 %v1205, 7
    %v1207 = vsub.s32 4, %v1206
    %v1208 = vrot.slane %v1144, %v1207
    %1210 = vbcast.lane.c.b16.xlu0 %v1208, 256
    %v1211 = vpop.permute.xlu0 %1210
    %v1212 = vlaneseq
    %v1213 = vshrl.u32 %v1212, 7
    %v1214 = vsub.s32 4, %v1213
    %v1215 = vrot.slane %v1154, %v1214
    %1217 = vbcast.lane.c.b16.xlu0 %v1215, 256
    %v1218 = vpop.permute.xlu0 %1217
    %v1219 = vlaneseq
    %v1220 = vshrl.u32 %v1219, 7
    %v1221 = vsub.s32 5, %v1220
    %v1222 = vrot.slane %v1144, %v1221
    %1224 = vbcast.lane.c.b16.xlu0 %v1222, 256
    %v1225 = vpop.permute.xlu0 %1224
    %v1226 = vlaneseq
    %v1227 = vshrl.u32 %v1226, 7
    %v1228 = vsub.s32 5, %v1227
    %v1229 = vrot.slane %v1154, %v1228
    %1231 = vbcast.lane.c.b16.xlu0 %v1229, 256
    %v1232 = vpop.permute.xlu0 %1231
    %v1233 = vlaneseq
    %v1234 = vshrl.u32 %v1233, 7
    %v1235 = vsub.s32 6, %v1234
    %v1236 = vrot.slane %v1144, %v1235
    %1238 = vbcast.lane.c.b16.xlu0 %v1236, 256
    %v1239 = vpop.permute.xlu0 %1238
    %v1240 = vlaneseq
    %v1241 = vshrl.u32 %v1240, 7
    %v1242 = vsub.s32 6, %v1241
    %v1243 = vrot.slane %v1154, %v1242
    %1245 = vbcast.lane.c.b16.xlu0 %v1243, 256
    %v1246 = vpop.permute.xlu0 %1245
    %v1247 = vlaneseq
    %v1248 = vshrl.u32 %v1247, 7
    %v1249 = vsub.s32 7, %v1248
    %v1250 = vrot.slane %v1144, %v1249
    %1252 = vbcast.lane.c.b16.xlu0 %v1250, 256
    %v1253 = vpop.permute.xlu0 %1252
    %v1254 = vlaneseq
    %v1255 = vshrl.u32 %v1254, 7
    %v1256 = vsub.s32 7, %v1255
    %v1257 = vrot.slane %v1154, %v1256
    %1259 = vbcast.lane.c.b16.xlu0 %v1257, 256
    %v1260 = vpop.permute.xlu0 %1259
    %v1262 = vpack.i.b16 %v894, %v894
    %v1264 = vlaneseq
    %v1265 = vshrl.u32 %v1264, 7
    %v1266 = vsub.s32 0, %v1265
    %v1267 = vrot.slane %v1262, %v1266
    %1269 = vbcast.lane.c.b16.xlu0 %v1267, 256
    %v1270 = vpop.permute.xlu0 %1269
    %v1271 = vshrl.u32 %v894, 16
    %v1272 = vpack.i.b16 %v1271, %v1271
    %v1274 = vlaneseq
    %v1275 = vshrl.u32 %v1274, 7
    %v1276 = vsub.s32 0, %v1275
    %v1277 = vrot.slane %v1272, %v1276
    %1279 = vbcast.lane.c.b16.xlu0 %v1277, 256
    %v1280 = vpop.permute.xlu0 %1279
    %v1281 = vlaneseq
    %v1282 = vshrl.u32 %v1281, 7
    %v1283 = vsub.s32 1, %v1282
    %v1284 = vrot.slane %v1262, %v1283
    %1286 = vbcast.lane.c.b16.xlu0 %v1284, 256
    %v1287 = vpop.permute.xlu0 %1286
    %v1288 = vlaneseq
    %v1289 = vshrl.u32 %v1288, 7
    %v1290 = vsub.s32 1, %v1289
    %v1291 = vrot.slane %v1272, %v1290
    %1293 = vbcast.lane.c.b16.xlu0 %v1291, 256
    %v1294 = vpop.permute.xlu0 %1293
    %v1295 = vlaneseq
    %v1296 = vshrl.u32 %v1295, 7
    %v1297 = vsub.s32 2, %v1296
    %v1298 = vrot.slane %v1262, %v1297
    %1300 = vbcast.lane.c.b16.xlu0 %v1298, 256
    %v1301 = vpop.permute.xlu0 %1300
    %v1302 = vlaneseq
    %v1303 = vshrl.u32 %v1302, 7
    %v1304 = vsub.s32 2, %v1303
    %v1305 = vrot.slane %v1272, %v1304
    %1307 = vbcast.lane.c.b16.xlu0 %v1305, 256
    %v1308 = vpop.permute.xlu0 %1307
    %v1309 = vlaneseq
    %v1310 = vshrl.u32 %v1309, 7
    %v1311 = vsub.s32 3, %v1310
    %v1312 = vrot.slane %v1262, %v1311
    %1314 = vbcast.lane.c.b16.xlu0 %v1312, 256
    %v1315 = vpop.permute.xlu0 %1314
    %v1316 = vlaneseq
    %v1317 = vshrl.u32 %v1316, 7
    %v1318 = vsub.s32 3, %v1317
    %v1319 = vrot.slane %v1272, %v1318
    %1321 = vbcast.lane.c.b16.xlu0 %v1319, 256
    %v1322 = vpop.permute.xlu0 %1321
    %v1323 = vlaneseq
    %v1324 = vshrl.u32 %v1323, 7
    %v1325 = vsub.s32 4, %v1324
    %v1326 = vrot.slane %v1262, %v1325
    %1328 = vbcast.lane.c.b16.xlu0 %v1326, 256
    %v1329 = vpop.permute.xlu0 %1328
    %v1330 = vlaneseq
    %v1331 = vshrl.u32 %v1330, 7
    %v1332 = vsub.s32 4, %v1331
    %v1333 = vrot.slane %v1272, %v1332
    %1335 = vbcast.lane.c.b16.xlu0 %v1333, 256
    %v1336 = vpop.permute.xlu0 %1335
    %v1337 = vlaneseq
    %v1338 = vshrl.u32 %v1337, 7
    %v1339 = vsub.s32 5, %v1338
    %v1340 = vrot.slane %v1262, %v1339
    %1342 = vbcast.lane.c.b16.xlu0 %v1340, 256
    %v1343 = vpop.permute.xlu0 %1342
    %v1344 = vlaneseq
    %v1345 = vshrl.u32 %v1344, 7
    %v1346 = vsub.s32 5, %v1345
    %v1347 = vrot.slane %v1272, %v1346
    %1349 = vbcast.lane.c.b16.xlu0 %v1347, 256
    %v1350 = vpop.permute.xlu0 %1349
    %v1351 = vlaneseq
    %v1352 = vshrl.u32 %v1351, 7
    %v1353 = vsub.s32 6, %v1352
    %v1354 = vrot.slane %v1262, %v1353
    %1356 = vbcast.lane.c.b16.xlu0 %v1354, 256
    %v1357 = vpop.permute.xlu0 %1356
    %v1358 = vlaneseq
    %v1359 = vshrl.u32 %v1358, 7
    %v1360 = vsub.s32 6, %v1359
    %v1361 = vrot.slane %v1272, %v1360
    %1363 = vbcast.lane.c.b16.xlu0 %v1361, 256
    %v1364 = vpop.permute.xlu0 %1363
    %v1365 = vlaneseq
    %v1366 = vshrl.u32 %v1365, 7
    %v1367 = vsub.s32 7, %v1366
    %v1368 = vrot.slane %v1262, %v1367
    %1370 = vbcast.lane.c.b16.xlu0 %v1368, 256
    %v1371 = vpop.permute.xlu0 %1370
    %v1372 = vlaneseq
    %v1373 = vshrl.u32 %v1372, 7
    %v1374 = vsub.s32 7, %v1373
    %v1375 = vrot.slane %v1272, %v1374
    %1377 = vbcast.lane.c.b16.xlu0 %v1375, 256
    %v1378 = vpop.permute.xlu0 %1377
    %v1380 = vpack.i.b16 %v895, %v895
    %v1382 = vlaneseq
    %v1383 = vshrl.u32 %v1382, 7
    %v1384 = vsub.s32 0, %v1383
    %v1385 = vrot.slane %v1380, %v1384
    %1387 = vbcast.lane.c.b16.xlu0 %v1385, 256
    %v1388 = vpop.permute.xlu0 %1387
    %v1389 = vshrl.u32 %v895, 16
    %v1390 = vpack.i.b16 %v1389, %v1389
    %v1392 = vlaneseq
    %v1393 = vshrl.u32 %v1392, 7
    %v1394 = vsub.s32 0, %v1393
    %v1395 = vrot.slane %v1390, %v1394
    %1397 = vbcast.lane.c.b16.xlu0 %v1395, 256
    %v1398 = vpop.permute.xlu0 %1397
    %v1399 = vlaneseq
    %v1400 = vshrl.u32 %v1399, 7
    %v1401 = vsub.s32 1, %v1400
    %v1402 = vrot.slane %v1380, %v1401
    %1404 = vbcast.lane.c.b16.xlu0 %v1402, 256
    %v1405 = vpop.permute.xlu0 %1404
    %v1406 = vlaneseq
    %v1407 = vshrl.u32 %v1406, 7
    %v1408 = vsub.s32 1, %v1407
    %v1409 = vrot.slane %v1390, %v1408
    %1411 = vbcast.lane.c.b16.xlu0 %v1409, 256
    %v1412 = vpop.permute.xlu0 %1411
    %v1413 = vlaneseq
    %v1414 = vshrl.u32 %v1413, 7
    %v1415 = vsub.s32 2, %v1414
    %v1416 = vrot.slane %v1380, %v1415
    %1418 = vbcast.lane.c.b16.xlu0 %v1416, 256
    %v1419 = vpop.permute.xlu0 %1418
    %v1420 = vlaneseq
    %v1421 = vshrl.u32 %v1420, 7
    %v1422 = vsub.s32 2, %v1421
    %v1423 = vrot.slane %v1390, %v1422
    %1425 = vbcast.lane.c.b16.xlu0 %v1423, 256
    %v1426 = vpop.permute.xlu0 %1425
    %v1427 = vlaneseq
    %v1428 = vshrl.u32 %v1427, 7
    %v1429 = vsub.s32 3, %v1428
    %v1430 = vrot.slane %v1380, %v1429
    %1432 = vbcast.lane.c.b16.xlu0 %v1430, 256
    %v1433 = vpop.permute.xlu0 %1432
    %v1434 = vlaneseq
    %v1435 = vshrl.u32 %v1434, 7
    %v1436 = vsub.s32 3, %v1435
    %v1437 = vrot.slane %v1390, %v1436
    %1439 = vbcast.lane.c.b16.xlu0 %v1437, 256
    %v1440 = vpop.permute.xlu0 %1439
    %v1441 = vlaneseq
    %v1442 = vshrl.u32 %v1441, 7
    %v1443 = vsub.s32 4, %v1442
    %v1444 = vrot.slane %v1380, %v1443
    %1446 = vbcast.lane.c.b16.xlu0 %v1444, 256
    %v1447 = vpop.permute.xlu0 %1446
    %v1448 = vlaneseq
    %v1449 = vshrl.u32 %v1448, 7
    %v1450 = vsub.s32 4, %v1449
    %v1451 = vrot.slane %v1390, %v1450
    %1453 = vbcast.lane.c.b16.xlu0 %v1451, 256
    %v1454 = vpop.permute.xlu0 %1453
    %v1455 = vlaneseq
    %v1456 = vshrl.u32 %v1455, 7
    %v1457 = vsub.s32 5, %v1456
    %v1458 = vrot.slane %v1380, %v1457
    %1460 = vbcast.lane.c.b16.xlu0 %v1458, 256
    %v1461 = vpop.permute.xlu0 %1460
    %v1462 = vlaneseq
    %v1463 = vshrl.u32 %v1462, 7
    %v1464 = vsub.s32 5, %v1463
    %v1465 = vrot.slane %v1390, %v1464
    %1467 = vbcast.lane.c.b16.xlu0 %v1465, 256
    %v1468 = vpop.permute.xlu0 %1467
    %v1469 = vlaneseq
    %v1470 = vshrl.u32 %v1469, 7
    %v1471 = vsub.s32 6, %v1470
    %v1472 = vrot.slane %v1380, %v1471
    %1474 = vbcast.lane.c.b16.xlu0 %v1472, 256
    %v1475 = vpop.permute.xlu0 %1474
    %v1476 = vlaneseq
    %v1477 = vshrl.u32 %v1476, 7
    %v1478 = vsub.s32 6, %v1477
    %v1479 = vrot.slane %v1390, %v1478
    %1481 = vbcast.lane.c.b16.xlu0 %v1479, 256
    %v1482 = vpop.permute.xlu0 %1481
    %v1483 = vlaneseq
    %v1484 = vshrl.u32 %v1483, 7
    %v1485 = vsub.s32 7, %v1484
    %v1486 = vrot.slane %v1380, %v1485
    %1488 = vbcast.lane.c.b16.xlu0 %v1486, 256
    %v1489 = vpop.permute.xlu0 %1488
    %v1490 = vlaneseq
    %v1491 = vshrl.u32 %v1490, 7
    %v1492 = vsub.s32 7, %v1491
    %v1493 = vrot.slane %v1390, %v1492
    %1495 = vbcast.lane.c.b16.xlu0 %v1493, 256
    %v1496 = vpop.permute.xlu0 %1495
    %v1498 = vpack.i.b16 %v896, %v896
    %v1500 = vlaneseq
    %v1501 = vshrl.u32 %v1500, 7
    %v1502 = vsub.s32 0, %v1501
    %v1503 = vrot.slane %v1498, %v1502
    %1505 = vbcast.lane.c.b16.xlu0 %v1503, 256
    %v1506 = vpop.permute.xlu0 %1505
    %v1507 = vshrl.u32 %v896, 16
    %v1508 = vpack.i.b16 %v1507, %v1507
    %v1510 = vlaneseq
    %v1511 = vshrl.u32 %v1510, 7
    %v1512 = vsub.s32 0, %v1511
    %v1513 = vrot.slane %v1508, %v1512
    %1515 = vbcast.lane.c.b16.xlu0 %v1513, 256
    %v1516 = vpop.permute.xlu0 %1515
    %v1517 = vlaneseq
    %v1518 = vshrl.u32 %v1517, 7
    %v1519 = vsub.s32 1, %v1518
    %v1520 = vrot.slane %v1498, %v1519
    %1522 = vbcast.lane.c.b16.xlu0 %v1520, 256
    %v1523 = vpop.permute.xlu0 %1522
    %v1524 = vlaneseq
    %v1525 = vshrl.u32 %v1524, 7
    %v1526 = vsub.s32 1, %v1525
    %v1527 = vrot.slane %v1508, %v1526
    %1529 = vbcast.lane.c.b16.xlu0 %v1527, 256
    %v1530 = vpop.permute.xlu0 %1529
    %v1531 = vlaneseq
    %v1532 = vshrl.u32 %v1531, 7
    %v1533 = vsub.s32 2, %v1532
    %v1534 = vrot.slane %v1498, %v1533
    %1536 = vbcast.lane.c.b16.xlu0 %v1534, 256
    %v1537 = vpop.permute.xlu0 %1536
    %v1538 = vlaneseq
    %v1539 = vshrl.u32 %v1538, 7
    %v1540 = vsub.s32 2, %v1539
    %v1541 = vrot.slane %v1508, %v1540
    %1543 = vbcast.lane.c.b16.xlu0 %v1541, 256
    %v1544 = vpop.permute.xlu0 %1543
    %v1545 = vlaneseq
    %v1546 = vshrl.u32 %v1545, 7
    %v1547 = vsub.s32 3, %v1546
    %v1548 = vrot.slane %v1498, %v1547
    %1550 = vbcast.lane.c.b16.xlu0 %v1548, 256
    %v1551 = vpop.permute.xlu0 %1550
    %v1552 = vlaneseq
    %v1553 = vshrl.u32 %v1552, 7
    %v1554 = vsub.s32 3, %v1553
    %v1555 = vrot.slane %v1508, %v1554
    %1557 = vbcast.lane.c.b16.xlu0 %v1555, 256
    %v1558 = vpop.permute.xlu0 %1557
    %v1559 = vlaneseq
    %v1560 = vshrl.u32 %v1559, 7
    %v1561 = vsub.s32 4, %v1560
    %v1562 = vrot.slane %v1498, %v1561
    %1564 = vbcast.lane.c.b16.xlu0 %v1562, 256
    %v1565 = vpop.permute.xlu0 %1564
    %v1566 = vlaneseq
    %v1567 = vshrl.u32 %v1566, 7
    %v1568 = vsub.s32 4, %v1567
    %v1569 = vrot.slane %v1508, %v1568
    %1571 = vbcast.lane.c.b16.xlu0 %v1569, 256
    %v1572 = vpop.permute.xlu0 %1571
    %v1573 = vlaneseq
    %v1574 = vshrl.u32 %v1573, 7
    %v1575 = vsub.s32 5, %v1574
    %v1576 = vrot.slane %v1498, %v1575
    %1578 = vbcast.lane.c.b16.xlu0 %v1576, 256
    %v1579 = vpop.permute.xlu0 %1578
    %v1580 = vlaneseq
    %v1581 = vshrl.u32 %v1580, 7
    %v1582 = vsub.s32 5, %v1581
    %v1583 = vrot.slane %v1508, %v1582
    %1585 = vbcast.lane.c.b16.xlu0 %v1583, 256
    %v1586 = vpop.permute.xlu0 %1585
    %v1587 = vlaneseq
    %v1588 = vshrl.u32 %v1587, 7
    %v1589 = vsub.s32 6, %v1588
    %v1590 = vrot.slane %v1498, %v1589
    %1592 = vbcast.lane.c.b16.xlu0 %v1590, 256
    %v1593 = vpop.permute.xlu0 %1592
    %v1594 = vlaneseq
    %v1595 = vshrl.u32 %v1594, 7
    %v1596 = vsub.s32 6, %v1595
    %v1597 = vrot.slane %v1508, %v1596
    %1599 = vbcast.lane.c.b16.xlu0 %v1597, 256
    %v1600 = vpop.permute.xlu0 %1599
    %v1601 = vlaneseq
    %v1602 = vshrl.u32 %v1601, 7
    %v1603 = vsub.s32 7, %v1602
    %v1604 = vrot.slane %v1498, %v1603
    %1606 = vbcast.lane.c.b16.xlu0 %v1604, 256
    %v1607 = vpop.permute.xlu0 %1606
    %v1608 = vlaneseq
    %v1609 = vshrl.u32 %v1608, 7
    %v1610 = vsub.s32 7, %v1609
    %v1611 = vrot.slane %v1508, %v1610
    %1613 = vbcast.lane.c.b16.xlu0 %v1611, 256
    %v1614 = vpop.permute.xlu0 %1613
    %v1616 = vpack.i.b16 %v897, %v897
    %v1618 = vlaneseq
    %v1619 = vshrl.u32 %v1618, 7
    %v1620 = vsub.s32 0, %v1619
    %v1621 = vrot.slane %v1616, %v1620
    %1623 = vbcast.lane.c.b16.xlu0 %v1621, 256
    %v1624 = vpop.permute.xlu0 %1623
    %v1625 = vshrl.u32 %v897, 16
    %v1626 = vpack.i.b16 %v1625, %v1625
    %v1628 = vlaneseq
    %v1629 = vshrl.u32 %v1628, 7
    %v1630 = vsub.s32 0, %v1629
    %v1631 = vrot.slane %v1626, %v1630
    %1633 = vbcast.lane.c.b16.xlu0 %v1631, 256
    %v1634 = vpop.permute.xlu0 %1633
    %v1635 = vlaneseq
    %v1636 = vshrl.u32 %v1635, 7
    %v1637 = vsub.s32 1, %v1636
    %v1638 = vrot.slane %v1616, %v1637
    %1640 = vbcast.lane.c.b16.xlu0 %v1638, 256
    %v1641 = vpop.permute.xlu0 %1640
    %v1642 = vlaneseq
    %v1643 = vshrl.u32 %v1642, 7
    %v1644 = vsub.s32 1, %v1643
    %v1645 = vrot.slane %v1626, %v1644
    %1647 = vbcast.lane.c.b16.xlu0 %v1645, 256
    %v1648 = vpop.permute.xlu0 %1647
    %v1649 = vlaneseq
    %v1650 = vshrl.u32 %v1649, 7
    %v1651 = vsub.s32 2, %v1650
    %v1652 = vrot.slane %v1616, %v1651
    %1654 = vbcast.lane.c.b16.xlu0 %v1652, 256
    %v1655 = vpop.permute.xlu0 %1654
    %v1656 = vlaneseq
    %v1657 = vshrl.u32 %v1656, 7
    %v1658 = vsub.s32 2, %v1657
    %v1659 = vrot.slane %v1626, %v1658
    %1661 = vbcast.lane.c.b16.xlu0 %v1659, 256
    %v1662 = vpop.permute.xlu0 %1661
    %v1663 = vlaneseq
    %v1664 = vshrl.u32 %v1663, 7
    %v1665 = vsub.s32 3, %v1664
    %v1666 = vrot.slane %v1616, %v1665
    %1668 = vbcast.lane.c.b16.xlu0 %v1666, 256
    %v1669 = vpop.permute.xlu0 %1668
    %v1670 = vlaneseq
    %v1671 = vshrl.u32 %v1670, 7
    %v1672 = vsub.s32 3, %v1671
    %v1673 = vrot.slane %v1626, %v1672
    %1675 = vbcast.lane.c.b16.xlu0 %v1673, 256
    %v1676 = vpop.permute.xlu0 %1675
    %v1677 = vlaneseq
    %v1678 = vshrl.u32 %v1677, 7
    %v1679 = vsub.s32 4, %v1678
    %v1680 = vrot.slane %v1616, %v1679
    %1682 = vbcast.lane.c.b16.xlu0 %v1680, 256
    %v1683 = vpop.permute.xlu0 %1682
    %v1684 = vlaneseq
    %v1685 = vshrl.u32 %v1684, 7
    %v1686 = vsub.s32 4, %v1685
    %v1687 = vrot.slane %v1626, %v1686
    %1689 = vbcast.lane.c.b16.xlu0 %v1687, 256
    %v1690 = vpop.permute.xlu0 %1689
    %v1691 = vlaneseq
    %v1692 = vshrl.u32 %v1691, 7
    %v1693 = vsub.s32 5, %v1692
    %v1694 = vrot.slane %v1616, %v1693
    %1696 = vbcast.lane.c.b16.xlu0 %v1694, 256
    %v1697 = vpop.permute.xlu0 %1696
    %v1698 = vlaneseq
    %v1699 = vshrl.u32 %v1698, 7
    %v1700 = vsub.s32 5, %v1699
    %v1701 = vrot.slane %v1626, %v1700
    %1703 = vbcast.lane.c.b16.xlu0 %v1701, 256
    %v1704 = vpop.permute.xlu0 %1703
    %v1705 = vlaneseq
    %v1706 = vshrl.u32 %v1705, 7
    %v1707 = vsub.s32 6, %v1706
    %v1708 = vrot.slane %v1616, %v1707
    %1710 = vbcast.lane.c.b16.xlu0 %v1708, 256
    %v1711 = vpop.permute.xlu0 %1710
    %v1712 = vlaneseq
    %v1713 = vshrl.u32 %v1712, 7
    %v1714 = vsub.s32 6, %v1713
    %v1715 = vrot.slane %v1626, %v1714
    %1717 = vbcast.lane.c.b16.xlu0 %v1715, 256
    %v1718 = vpop.permute.xlu0 %1717
    %v1719 = vlaneseq
    %v1720 = vshrl.u32 %v1719, 7
    %v1721 = vsub.s32 7, %v1720
    %v1722 = vrot.slane %v1616, %v1721
    %1724 = vbcast.lane.c.b16.xlu0 %v1722, 256
    %v1725 = vpop.permute.xlu0 %1724
    %v1726 = vlaneseq
    %v1727 = vshrl.u32 %v1726, 7
    %v1728 = vsub.s32 7, %v1727
    %v1729 = vrot.slane %v1626, %v1728
    %1731 = vbcast.lane.c.b16.xlu0 %v1729, 256
    %v1732 = vpop.permute.xlu0 %1731
    %v1734 = vpack.i.b16 %v898, %v898
    %v1736 = vlaneseq
    %v1737 = vshrl.u32 %v1736, 7
    %v1738 = vsub.s32 0, %v1737
    %v1739 = vrot.slane %v1734, %v1738
    %1741 = vbcast.lane.c.b16.xlu0 %v1739, 256
    %v1742 = vpop.permute.xlu0 %1741
    %v1743 = vshrl.u32 %v898, 16
    %v1744 = vpack.i.b16 %v1743, %v1743
    %v1746 = vlaneseq
    %v1747 = vshrl.u32 %v1746, 7
    %v1748 = vsub.s32 0, %v1747
    %v1749 = vrot.slane %v1744, %v1748
    %1751 = vbcast.lane.c.b16.xlu0 %v1749, 256
    %v1752 = vpop.permute.xlu0 %1751
    %v1753 = vlaneseq
    %v1754 = vshrl.u32 %v1753, 7
    %v1755 = vsub.s32 1, %v1754
    %v1756 = vrot.slane %v1734, %v1755
    %1758 = vbcast.lane.c.b16.xlu0 %v1756, 256
    %v1759 = vpop.permute.xlu0 %1758
    %v1760 = vlaneseq
    %v1761 = vshrl.u32 %v1760, 7
    %v1762 = vsub.s32 1, %v1761
    %v1763 = vrot.slane %v1744, %v1762
    %1765 = vbcast.lane.c.b16.xlu0 %v1763, 256
    %v1766 = vpop.permute.xlu0 %1765
    %v1767 = vlaneseq
    %v1768 = vshrl.u32 %v1767, 7
    %v1769 = vsub.s32 2, %v1768
    %v1770 = vrot.slane %v1734, %v1769
    %1772 = vbcast.lane.c.b16.xlu0 %v1770, 256
    %v1773 = vpop.permute.xlu0 %1772
    %v1774 = vlaneseq
    %v1775 = vshrl.u32 %v1774, 7
    %v1776 = vsub.s32 2, %v1775
    %v1777 = vrot.slane %v1744, %v1776
    %1779 = vbcast.lane.c.b16.xlu0 %v1777, 256
    %v1780 = vpop.permute.xlu0 %1779
    %v1781 = vlaneseq
    %v1782 = vshrl.u32 %v1781, 7
    %v1783 = vsub.s32 3, %v1782
    %v1784 = vrot.slane %v1734, %v1783
    %1786 = vbcast.lane.c.b16.xlu0 %v1784, 256
    %v1787 = vpop.permute.xlu0 %1786
    %v1788 = vlaneseq
    %v1789 = vshrl.u32 %v1788, 7
    %v1790 = vsub.s32 3, %v1789
    %v1791 = vrot.slane %v1744, %v1790
    %1793 = vbcast.lane.c.b16.xlu0 %v1791, 256
    %v1794 = vpop.permute.xlu0 %1793
    %v1795 = vlaneseq
    %v1796 = vshrl.u32 %v1795, 7
    %v1797 = vsub.s32 4, %v1796
    %v1798 = vrot.slane %v1734, %v1797
    %1800 = vbcast.lane.c.b16.xlu0 %v1798, 256
    %v1801 = vpop.permute.xlu0 %1800
    %v1802 = vlaneseq
    %v1803 = vshrl.u32 %v1802, 7
    %v1804 = vsub.s32 4, %v1803
    %v1805 = vrot.slane %v1744, %v1804
    %1807 = vbcast.lane.c.b16.xlu0 %v1805, 256
    %v1808 = vpop.permute.xlu0 %1807
    %v1809 = vlaneseq
    %v1810 = vshrl.u32 %v1809, 7
    %v1811 = vsub.s32 5, %v1810
    %v1812 = vrot.slane %v1734, %v1811
    %1814 = vbcast.lane.c.b16.xlu0 %v1812, 256
    %v1815 = vpop.permute.xlu0 %1814
    %v1816 = vlaneseq
    %v1817 = vshrl.u32 %v1816, 7
    %v1818 = vsub.s32 5, %v1817
    %v1819 = vrot.slane %v1744, %v1818
    %1821 = vbcast.lane.c.b16.xlu0 %v1819, 256
    %v1822 = vpop.permute.xlu0 %1821
    %v1823 = vlaneseq
    %v1824 = vshrl.u32 %v1823, 7
    %v1825 = vsub.s32 6, %v1824
    %v1826 = vrot.slane %v1734, %v1825
    %1828 = vbcast.lane.c.b16.xlu0 %v1826, 256
    %v1829 = vpop.permute.xlu0 %1828
    %v1830 = vlaneseq
    %v1831 = vshrl.u32 %v1830, 7
    %v1832 = vsub.s32 6, %v1831
    %v1833 = vrot.slane %v1744, %v1832
    %1835 = vbcast.lane.c.b16.xlu0 %v1833, 256
    %v1836 = vpop.permute.xlu0 %1835
    %v1837 = vlaneseq
    %v1838 = vshrl.u32 %v1837, 7
    %v1839 = vsub.s32 7, %v1838
    %v1840 = vrot.slane %v1734, %v1839
    %1842 = vbcast.lane.c.b16.xlu0 %v1840, 256
    %v1843 = vpop.permute.xlu0 %1842
    %v1844 = vlaneseq
    %v1845 = vshrl.u32 %v1844, 7
    %v1846 = vsub.s32 7, %v1845
    %v1847 = vrot.slane %v1744, %v1846
    %1849 = vbcast.lane.c.b16.xlu0 %v1847, 256
    %v1850 = vpop.permute.xlu0 %1849
    %v1852 = vpack.i.b16 %v899, %v899
    %v1854 = vlaneseq
    %v1855 = vshrl.u32 %v1854, 7
    %v1856 = vsub.s32 0, %v1855
    %v1857 = vrot.slane %v1852, %v1856
    %1859 = vbcast.lane.c.b16.xlu0 %v1857, 256
    %v1860 = vpop.permute.xlu0 %1859
    %v1861 = vshrl.u32 %v899, 16
    %v1862 = vpack.i.b16 %v1861, %v1861
    %v1864 = vlaneseq
    %v1865 = vshrl.u32 %v1864, 7
    %v1866 = vsub.s32 0, %v1865
    %v1867 = vrot.slane %v1862, %v1866
    %1869 = vbcast.lane.c.b16.xlu0 %v1867, 256
    %v1870 = vpop.permute.xlu0 %1869
    %v1871 = vlaneseq
    %v1872 = vshrl.u32 %v1871, 7
    %v1873 = vsub.s32 1, %v1872
    %v1874 = vrot.slane %v1852, %v1873
    %1876 = vbcast.lane.c.b16.xlu0 %v1874, 256
    %v1877 = vpop.permute.xlu0 %1876
    %v1878 = vlaneseq
    %v1879 = vshrl.u32 %v1878, 7
    %v1880 = vsub.s32 1, %v1879
    %v1881 = vrot.slane %v1862, %v1880
    %1883 = vbcast.lane.c.b16.xlu0 %v1881, 256
    %v1884 = vpop.permute.xlu0 %1883
    %v1885 = vlaneseq
    %v1886 = vshrl.u32 %v1885, 7
    %v1887 = vsub.s32 2, %v1886
    %v1888 = vrot.slane %v1852, %v1887
    %1890 = vbcast.lane.c.b16.xlu0 %v1888, 256
    %v1891 = vpop.permute.xlu0 %1890
    %v1892 = vlaneseq
    %v1893 = vshrl.u32 %v1892, 7
    %v1894 = vsub.s32 2, %v1893
    %v1895 = vrot.slane %v1862, %v1894
    %1897 = vbcast.lane.c.b16.xlu0 %v1895, 256
    %v1898 = vpop.permute.xlu0 %1897
    %v1899 = vlaneseq
    %v1900 = vshrl.u32 %v1899, 7
    %v1901 = vsub.s32 3, %v1900
    %v1902 = vrot.slane %v1852, %v1901
    %1904 = vbcast.lane.c.b16.xlu0 %v1902, 256
    %v1905 = vpop.permute.xlu0 %1904
    %v1906 = vlaneseq
    %v1907 = vshrl.u32 %v1906, 7
    %v1908 = vsub.s32 3, %v1907
    %v1909 = vrot.slane %v1862, %v1908
    %1911 = vbcast.lane.c.b16.xlu0 %v1909, 256
    %v1912 = vpop.permute.xlu0 %1911
    %v1913 = vlaneseq
    %v1914 = vshrl.u32 %v1913, 7
    %v1915 = vsub.s32 4, %v1914
    %v1916 = vrot.slane %v1852, %v1915
    %1918 = vbcast.lane.c.b16.xlu0 %v1916, 256
    %v1919 = vpop.permute.xlu0 %1918
    %v1920 = vlaneseq
    %v1921 = vshrl.u32 %v1920, 7
    %v1922 = vsub.s32 4, %v1921
    %v1923 = vrot.slane %v1862, %v1922
    %1925 = vbcast.lane.c.b16.xlu0 %v1923, 256
    %v1926 = vpop.permute.xlu0 %1925
    %v1927 = vlaneseq
    %v1928 = vshrl.u32 %v1927, 7
    %v1929 = vsub.s32 5, %v1928
    %v1930 = vrot.slane %v1852, %v1929
    %1932 = vbcast.lane.c.b16.xlu0 %v1930, 256
    %v1933 = vpop.permute.xlu0 %1932
    %v1934 = vlaneseq
    %v1935 = vshrl.u32 %v1934, 7
    %v1936 = vsub.s32 5, %v1935
    %v1937 = vrot.slane %v1862, %v1936
    %1939 = vbcast.lane.c.b16.xlu0 %v1937, 256
    %v1940 = vpop.permute.xlu0 %1939
    %v1941 = vlaneseq
    %v1942 = vshrl.u32 %v1941, 7
    %v1943 = vsub.s32 6, %v1942
    %v1944 = vrot.slane %v1852, %v1943
    %1946 = vbcast.lane.c.b16.xlu0 %v1944, 256
    %v1947 = vpop.permute.xlu0 %1946
    %v1948 = vlaneseq
    %v1949 = vshrl.u32 %v1948, 7
    %v1950 = vsub.s32 6, %v1949
    %v1951 = vrot.slane %v1862, %v1950
    %1953 = vbcast.lane.c.b16.xlu0 %v1951, 256
    %v1954 = vpop.permute.xlu0 %1953
    %v1955 = vlaneseq
    %v1956 = vshrl.u32 %v1955, 7
    %v1957 = vsub.s32 7, %v1956
    %v1958 = vrot.slane %v1852, %v1957
    %1960 = vbcast.lane.c.b16.xlu0 %v1958, 256
    %v1961 = vpop.permute.xlu0 %1960
    %v1962 = vlaneseq
    %v1963 = vshrl.u32 %v1962, 7
    %v1964 = vsub.s32 7, %v1963
    %v1965 = vrot.slane %v1862, %v1964
    %1967 = vbcast.lane.c.b16.xlu0 %v1965, 256
    %v1968 = vpop.permute.xlu0 %1967
    %v1970 = vpack.i.b16 %v900, %v900
    %v1972 = vlaneseq
    %v1973 = vshrl.u32 %v1972, 7
    %v1974 = vsub.s32 0, %v1973
    %v1975 = vrot.slane %v1970, %v1974
    %1977 = vbcast.lane.c.b16.xlu0 %v1975, 256
    %v1978 = vpop.permute.xlu0 %1977
    %v1979 = vshrl.u32 %v900, 16
    %v1980 = vpack.i.b16 %v1979, %v1979
    %v1982 = vlaneseq
    %v1983 = vshrl.u32 %v1982, 7
    %v1984 = vsub.s32 0, %v1983
    %v1985 = vrot.slane %v1980, %v1984
    %1987 = vbcast.lane.c.b16.xlu0 %v1985, 256
    %v1988 = vpop.permute.xlu0 %1987
    %v1989 = vlaneseq
    %v1990 = vshrl.u32 %v1989, 7
    %v1991 = vsub.s32 1, %v1990
    %v1992 = vrot.slane %v1970, %v1991
    %1994 = vbcast.lane.c.b16.xlu0 %v1992, 256
    %v1995 = vpop.permute.xlu0 %1994
    %v1996 = vlaneseq
    %v1997 = vshrl.u32 %v1996, 7
    %v1998 = vsub.s32 1, %v1997
    %v1999 = vrot.slane %v1980, %v1998
    %2001 = vbcast.lane.c.b16.xlu0 %v1999, 256
    %v2002 = vpop.permute.xlu0 %2001
    %v2003 = vlaneseq
    %v2004 = vshrl.u32 %v2003, 7
    %v2005 = vsub.s32 2, %v2004
    %v2006 = vrot.slane %v1970, %v2005
    %2008 = vbcast.lane.c.b16.xlu0 %v2006, 256
    %v2009 = vpop.permute.xlu0 %2008
    %v2010 = vlaneseq
    %v2011 = vshrl.u32 %v2010, 7
    %v2012 = vsub.s32 2, %v2011
    %v2013 = vrot.slane %v1980, %v2012
    %2015 = vbcast.lane.c.b16.xlu0 %v2013, 256
    %v2016 = vpop.permute.xlu0 %2015
    %v2017 = vlaneseq
    %v2018 = vshrl.u32 %v2017, 7
    %v2019 = vsub.s32 3, %v2018
    %v2020 = vrot.slane %v1970, %v2019
    %2022 = vbcast.lane.c.b16.xlu0 %v2020, 256
    %v2023 = vpop.permute.xlu0 %2022
    %v2024 = vlaneseq
    %v2025 = vshrl.u32 %v2024, 7
    %v2026 = vsub.s32 3, %v2025
    %v2027 = vrot.slane %v1980, %v2026
    %2029 = vbcast.lane.c.b16.xlu0 %v2027, 256
    %v2030 = vpop.permute.xlu0 %2029
    %v2031 = vlaneseq
    %v2032 = vshrl.u32 %v2031, 7
    %v2033 = vsub.s32 4, %v2032
    %v2034 = vrot.slane %v1970, %v2033
    %2036 = vbcast.lane.c.b16.xlu0 %v2034, 256
    %v2037 = vpop.permute.xlu0 %2036
    %v2038 = vlaneseq
    %v2039 = vshrl.u32 %v2038, 7
    %v2040 = vsub.s32 4, %v2039
    %v2041 = vrot.slane %v1980, %v2040
    %2043 = vbcast.lane.c.b16.xlu0 %v2041, 256
    %v2044 = vpop.permute.xlu0 %2043
    %v2045 = vlaneseq
    %v2046 = vshrl.u32 %v2045, 7
    %v2047 = vsub.s32 5, %v2046
    %v2048 = vrot.slane %v1970, %v2047
    %2050 = vbcast.lane.c.b16.xlu0 %v2048, 256
    %v2051 = vpop.permute.xlu0 %2050
    %v2052 = vlaneseq
    %v2053 = vshrl.u32 %v2052, 7
    %v2054 = vsub.s32 5, %v2053
    %v2055 = vrot.slane %v1980, %v2054
    %2057 = vbcast.lane.c.b16.xlu0 %v2055, 256
    %v2058 = vpop.permute.xlu0 %2057
    %v2059 = vlaneseq
    %v2060 = vshrl.u32 %v2059, 7
    %v2061 = vsub.s32 6, %v2060
    %v2062 = vrot.slane %v1970, %v2061
    %2064 = vbcast.lane.c.b16.xlu0 %v2062, 256
    %v2065 = vpop.permute.xlu0 %2064
    %v2066 = vlaneseq
    %v2067 = vshrl.u32 %v2066, 7
    %v2068 = vsub.s32 6, %v2067
    %v2069 = vrot.slane %v1980, %v2068
    %2071 = vbcast.lane.c.b16.xlu0 %v2069, 256
    %v2072 = vpop.permute.xlu0 %2071
    %v2073 = vlaneseq
    %v2074 = vshrl.u32 %v2073, 7
    %v2075 = vsub.s32 7, %v2074
    %v2076 = vrot.slane %v1970, %v2075
    %2078 = vbcast.lane.c.b16.xlu0 %v2076, 256
    %v2079 = vpop.permute.xlu0 %2078
    %v2080 = vlaneseq
    %v2081 = vshrl.u32 %v2080, 7
    %v2082 = vsub.s32 7, %v2081
    %v2083 = vrot.slane %v1980, %v2082
    %2085 = vbcast.lane.c.b16.xlu0 %v2083, 256
    %v2086 = vpop.permute.xlu0 %2085
    %v2088 = vpack.i.b16 %v901, %v901
    %v2090 = vlaneseq
    %v2091 = vshrl.u32 %v2090, 7
    %v2092 = vsub.s32 0, %v2091
    %v2093 = vrot.slane %v2088, %v2092
    %2095 = vbcast.lane.c.b16.xlu0 %v2093, 256
    %v2096 = vpop.permute.xlu0 %2095
    %v2097 = vshrl.u32 %v901, 16
    %v2098 = vpack.i.b16 %v2097, %v2097
    %v2100 = vlaneseq
    %v2101 = vshrl.u32 %v2100, 7
    %v2102 = vsub.s32 0, %v2101
    %v2103 = vrot.slane %v2098, %v2102
    %2105 = vbcast.lane.c.b16.xlu0 %v2103, 256
    %v2106 = vpop.permute.xlu0 %2105
    %v2107 = vlaneseq
    %v2108 = vshrl.u32 %v2107, 7
    %v2109 = vsub.s32 1, %v2108
    %v2110 = vrot.slane %v2088, %v2109
    %2112 = vbcast.lane.c.b16.xlu0 %v2110, 256
    %v2113 = vpop.permute.xlu0 %2112
    %v2114 = vlaneseq
    %v2115 = vshrl.u32 %v2114, 7
    %v2116 = vsub.s32 1, %v2115
    %v2117 = vrot.slane %v2098, %v2116
    %2119 = vbcast.lane.c.b16.xlu0 %v2117, 256
    %v2120 = vpop.permute.xlu0 %2119
    %v2121 = vlaneseq
    %v2122 = vshrl.u32 %v2121, 7
    %v2123 = vsub.s32 2, %v2122
    %v2124 = vrot.slane %v2088, %v2123
    %2126 = vbcast.lane.c.b16.xlu0 %v2124, 256
    %v2127 = vpop.permute.xlu0 %2126
    %v2128 = vlaneseq
    %v2129 = vshrl.u32 %v2128, 7
    %v2130 = vsub.s32 2, %v2129
    %v2131 = vrot.slane %v2098, %v2130
    %2133 = vbcast.lane.c.b16.xlu0 %v2131, 256
    %v2134 = vpop.permute.xlu0 %2133
    %v2135 = vlaneseq
    %v2136 = vshrl.u32 %v2135, 7
    %v2137 = vsub.s32 3, %v2136
    %v2138 = vrot.slane %v2088, %v2137
    %2140 = vbcast.lane.c.b16.xlu0 %v2138, 256
    %v2141 = vpop.permute.xlu0 %2140
    %v2142 = vlaneseq
    %v2143 = vshrl.u32 %v2142, 7
    %v2144 = vsub.s32 3, %v2143
    %v2145 = vrot.slane %v2098, %v2144
    %2147 = vbcast.lane.c.b16.xlu0 %v2145, 256
    %v2148 = vpop.permute.xlu0 %2147
    %v2149 = vlaneseq
    %v2150 = vshrl.u32 %v2149, 7
    %v2151 = vsub.s32 4, %v2150
    %v2152 = vrot.slane %v2088, %v2151
    %2154 = vbcast.lane.c.b16.xlu0 %v2152, 256
    %v2155 = vpop.permute.xlu0 %2154
    %v2156 = vlaneseq
    %v2157 = vshrl.u32 %v2156, 7
    %v2158 = vsub.s32 4, %v2157
    %v2159 = vrot.slane %v2098, %v2158
    %2161 = vbcast.lane.c.b16.xlu0 %v2159, 256
    %v2162 = vpop.permute.xlu0 %2161
    %v2163 = vlaneseq
    %v2164 = vshrl.u32 %v2163, 7
    %v2165 = vsub.s32 5, %v2164
    %v2166 = vrot.slane %v2088, %v2165
    %2168 = vbcast.lane.c.b16.xlu0 %v2166, 256
    %v2169 = vpop.permute.xlu0 %2168
    %v2170 = vlaneseq
    %v2171 = vshrl.u32 %v2170, 7
    %v2172 = vsub.s32 5, %v2171
    %v2173 = vrot.slane %v2098, %v2172
    %2175 = vbcast.lane.c.b16.xlu0 %v2173, 256
    %v2176 = vpop.permute.xlu0 %2175
    %v2177 = vlaneseq
    %v2178 = vshrl.u32 %v2177, 7
    %v2179 = vsub.s32 6, %v2178
    %v2180 = vrot.slane %v2088, %v2179
    %2182 = vbcast.lane.c.b16.xlu0 %v2180, 256
    %v2183 = vpop.permute.xlu0 %2182
    %v2184 = vlaneseq
    %v2185 = vshrl.u32 %v2184, 7
    %v2186 = vsub.s32 6, %v2185
    %v2187 = vrot.slane %v2098, %v2186
    %2189 = vbcast.lane.c.b16.xlu0 %v2187, 256
    %v2190 = vpop.permute.xlu0 %2189
    %v2191 = vlaneseq
    %v2192 = vshrl.u32 %v2191, 7
    %v2193 = vsub.s32 7, %v2192
    %v2194 = vrot.slane %v2088, %v2193
    %2196 = vbcast.lane.c.b16.xlu0 %v2194, 256
    %v2197 = vpop.permute.xlu0 %2196
    %v2198 = vlaneseq
    %v2199 = vshrl.u32 %v2198, 7
    %v2200 = vsub.s32 7, %v2199
    %v2201 = vrot.slane %v2098, %v2200
    %2203 = vbcast.lane.c.b16.xlu0 %v2201, 256
    %v2204 = vpop.permute.xlu0 %2203
    %v2206 = vpack.i.b16 %v902, %v902
    %v2208 = vlaneseq
    %v2209 = vshrl.u32 %v2208, 7
    %v2210 = vsub.s32 0, %v2209
    %v2211 = vrot.slane %v2206, %v2210
    %2213 = vbcast.lane.c.b16.xlu0 %v2211, 256
    %v2214 = vpop.permute.xlu0 %2213
    %v2215 = vshrl.u32 %v902, 16
    %v2216 = vpack.i.b16 %v2215, %v2215
    %v2218 = vlaneseq
    %v2219 = vshrl.u32 %v2218, 7
    %v2220 = vsub.s32 0, %v2219
    %v2221 = vrot.slane %v2216, %v2220
    %2223 = vbcast.lane.c.b16.xlu0 %v2221, 256
    %v2224 = vpop.permute.xlu0 %2223
    %v2225 = vlaneseq
    %v2226 = vshrl.u32 %v2225, 7
    %v2227 = vsub.s32 1, %v2226
    %v2228 = vrot.slane %v2206, %v2227
    %2230 = vbcast.lane.c.b16.xlu0 %v2228, 256
    %v2231 = vpop.permute.xlu0 %2230
    %v2232 = vlaneseq
    %v2233 = vshrl.u32 %v2232, 7
    %v2234 = vsub.s32 1, %v2233
    %v2235 = vrot.slane %v2216, %v2234
    %2237 = vbcast.lane.c.b16.xlu0 %v2235, 256
    %v2238 = vpop.permute.xlu0 %2237
    %v2239 = vlaneseq
    %v2240 = vshrl.u32 %v2239, 7
    %v2241 = vsub.s32 2, %v2240
    %v2242 = vrot.slane %v2206, %v2241
    %2244 = vbcast.lane.c.b16.xlu0 %v2242, 256
    %v2245 = vpop.permute.xlu0 %2244
    %v2246 = vlaneseq
    %v2247 = vshrl.u32 %v2246, 7
    %v2248 = vsub.s32 2, %v2247
    %v2249 = vrot.slane %v2216, %v2248
    %2251 = vbcast.lane.c.b16.xlu0 %v2249, 256
    %v2252 = vpop.permute.xlu0 %2251
    %v2253 = vlaneseq
    %v2254 = vshrl.u32 %v2253, 7
    %v2255 = vsub.s32 3, %v2254
    %v2256 = vrot.slane %v2206, %v2255
    %2258 = vbcast.lane.c.b16.xlu0 %v2256, 256
    %v2259 = vpop.permute.xlu0 %2258
    %v2260 = vlaneseq
    %v2261 = vshrl.u32 %v2260, 7
    %v2262 = vsub.s32 3, %v2261
    %v2263 = vrot.slane %v2216, %v2262
    %2265 = vbcast.lane.c.b16.xlu0 %v2263, 256
    %v2266 = vpop.permute.xlu0 %2265
    %v2267 = vlaneseq
    %v2268 = vshrl.u32 %v2267, 7
    %v2269 = vsub.s32 4, %v2268
    %v2270 = vrot.slane %v2206, %v2269
    %2272 = vbcast.lane.c.b16.xlu0 %v2270, 256
    %v2273 = vpop.permute.xlu0 %2272
    %v2274 = vlaneseq
    %v2275 = vshrl.u32 %v2274, 7
    %v2276 = vsub.s32 4, %v2275
    %v2277 = vrot.slane %v2216, %v2276
    %2279 = vbcast.lane.c.b16.xlu0 %v2277, 256
    %v2280 = vpop.permute.xlu0 %2279
    %v2281 = vlaneseq
    %v2282 = vshrl.u32 %v2281, 7
    %v2283 = vsub.s32 5, %v2282
    %v2284 = vrot.slane %v2206, %v2283
    %2286 = vbcast.lane.c.b16.xlu0 %v2284, 256
    %v2287 = vpop.permute.xlu0 %2286
    %v2288 = vlaneseq
    %v2289 = vshrl.u32 %v2288, 7
    %v2290 = vsub.s32 5, %v2289
    %v2291 = vrot.slane %v2216, %v2290
    %2293 = vbcast.lane.c.b16.xlu0 %v2291, 256
    %v2294 = vpop.permute.xlu0 %2293
    %v2295 = vlaneseq
    %v2296 = vshrl.u32 %v2295, 7
    %v2297 = vsub.s32 6, %v2296
    %v2298 = vrot.slane %v2206, %v2297
    %2300 = vbcast.lane.c.b16.xlu0 %v2298, 256
    %v2301 = vpop.permute.xlu0 %2300
    %v2302 = vlaneseq
    %v2303 = vshrl.u32 %v2302, 7
    %v2304 = vsub.s32 6, %v2303
    %v2305 = vrot.slane %v2216, %v2304
    %2307 = vbcast.lane.c.b16.xlu0 %v2305, 256
    %v2308 = vpop.permute.xlu0 %2307
    %v2309 = vlaneseq
    %v2310 = vshrl.u32 %v2309, 7
    %v2311 = vsub.s32 7, %v2310
    %v2312 = vrot.slane %v2206, %v2311
    %2314 = vbcast.lane.c.b16.xlu0 %v2312, 256
    %v2315 = vpop.permute.xlu0 %2314
    %v2316 = vlaneseq
    %v2317 = vshrl.u32 %v2316, 7
    %v2318 = vsub.s32 7, %v2317
    %v2319 = vrot.slane %v2216, %v2318
    %2321 = vbcast.lane.c.b16.xlu0 %v2319, 256
    %v2322 = vpop.permute.xlu0 %2321
    %v2324 = vpack.i.b16 %v903, %v903
    %v2326 = vlaneseq
    %v2327 = vshrl.u32 %v2326, 7
    %v2328 = vsub.s32 0, %v2327
    %v2329 = vrot.slane %v2324, %v2328
    %2331 = vbcast.lane.c.b16.xlu0 %v2329, 256
    %v2332 = vpop.permute.xlu0 %2331
    %v2333 = vshrl.u32 %v903, 16
    %v2334 = vpack.i.b16 %v2333, %v2333
    %v2336 = vlaneseq
    %v2337 = vshrl.u32 %v2336, 7
    %v2338 = vsub.s32 0, %v2337
    %v2339 = vrot.slane %v2334, %v2338
    %2341 = vbcast.lane.c.b16.xlu0 %v2339, 256
    %v2342 = vpop.permute.xlu0 %2341
    %v2343 = vlaneseq
    %v2344 = vshrl.u32 %v2343, 7
    %v2345 = vsub.s32 1, %v2344
    %v2346 = vrot.slane %v2324, %v2345
    %2348 = vbcast.lane.c.b16.xlu0 %v2346, 256
    %v2349 = vpop.permute.xlu0 %2348
    %v2350 = vlaneseq
    %v2351 = vshrl.u32 %v2350, 7
    %v2352 = vsub.s32 1, %v2351
    %v2353 = vrot.slane %v2334, %v2352
    %2355 = vbcast.lane.c.b16.xlu0 %v2353, 256
    %v2356 = vpop.permute.xlu0 %2355
    %v2357 = vlaneseq
    %v2358 = vshrl.u32 %v2357, 7
    %v2359 = vsub.s32 2, %v2358
    %v2360 = vrot.slane %v2324, %v2359
    %2362 = vbcast.lane.c.b16.xlu0 %v2360, 256
    %v2363 = vpop.permute.xlu0 %2362
    %v2364 = vlaneseq
    %v2365 = vshrl.u32 %v2364, 7
    %v2366 = vsub.s32 2, %v2365
    %v2367 = vrot.slane %v2334, %v2366
    %2369 = vbcast.lane.c.b16.xlu0 %v2367, 256
    %v2370 = vpop.permute.xlu0 %2369
    %v2371 = vlaneseq
    %v2372 = vshrl.u32 %v2371, 7
    %v2373 = vsub.s32 3, %v2372
    %v2374 = vrot.slane %v2324, %v2373
    %2376 = vbcast.lane.c.b16.xlu0 %v2374, 256
    %v2377 = vpop.permute.xlu0 %2376
    %v2378 = vlaneseq
    %v2379 = vshrl.u32 %v2378, 7
    %v2380 = vsub.s32 3, %v2379
    %v2381 = vrot.slane %v2334, %v2380
    %2383 = vbcast.lane.c.b16.xlu0 %v2381, 256
    %v2384 = vpop.permute.xlu0 %2383
    %v2385 = vlaneseq
    %v2386 = vshrl.u32 %v2385, 7
    %v2387 = vsub.s32 4, %v2386
    %v2388 = vrot.slane %v2324, %v2387
    %2390 = vbcast.lane.c.b16.xlu0 %v2388, 256
    %v2391 = vpop.permute.xlu0 %2390
    %v2392 = vlaneseq
    %v2393 = vshrl.u32 %v2392, 7
    %v2394 = vsub.s32 4, %v2393
    %v2395 = vrot.slane %v2334, %v2394
    %2397 = vbcast.lane.c.b16.xlu0 %v2395, 256
    %v2398 = vpop.permute.xlu0 %2397
    %v2399 = vlaneseq
    %v2400 = vshrl.u32 %v2399, 7
    %v2401 = vsub.s32 5, %v2400
    %v2402 = vrot.slane %v2324, %v2401
    %2404 = vbcast.lane.c.b16.xlu0 %v2402, 256
    %v2405 = vpop.permute.xlu0 %2404
    %v2406 = vlaneseq
    %v2407 = vshrl.u32 %v2406, 7
    %v2408 = vsub.s32 5, %v2407
    %v2409 = vrot.slane %v2334, %v2408
    %2411 = vbcast.lane.c.b16.xlu0 %v2409, 256
    %v2412 = vpop.permute.xlu0 %2411
    %v2413 = vlaneseq
    %v2414 = vshrl.u32 %v2413, 7
    %v2415 = vsub.s32 6, %v2414
    %v2416 = vrot.slane %v2324, %v2415
    %2418 = vbcast.lane.c.b16.xlu0 %v2416, 256
    %v2419 = vpop.permute.xlu0 %2418
    %v2420 = vlaneseq
    %v2421 = vshrl.u32 %v2420, 7
    %v2422 = vsub.s32 6, %v2421
    %v2423 = vrot.slane %v2334, %v2422
    %2425 = vbcast.lane.c.b16.xlu0 %v2423, 256
    %v2426 = vpop.permute.xlu0 %2425
    %v2427 = vlaneseq
    %v2428 = vshrl.u32 %v2427, 7
    %v2429 = vsub.s32 7, %v2428
    %v2430 = vrot.slane %v2324, %v2429
    %2432 = vbcast.lane.c.b16.xlu0 %v2430, 256
    %v2433 = vpop.permute.xlu0 %2432
    %v2434 = vlaneseq
    %v2435 = vshrl.u32 %v2434, 7
    %v2436 = vsub.s32 7, %v2435
    %v2437 = vrot.slane %v2334, %v2436
    %2439 = vbcast.lane.c.b16.xlu0 %v2437, 256
    %v2440 = vpop.permute.xlu0 %2439
    %v2442 = vpack.i.b16 %v904, %v904
    %v2444 = vlaneseq
    %v2445 = vshrl.u32 %v2444, 7
    %v2446 = vsub.s32 0, %v2445
    %v2447 = vrot.slane %v2442, %v2446
    %2449 = vbcast.lane.c.b16.xlu0 %v2447, 256
    %v2450 = vpop.permute.xlu0 %2449
    %v2451 = vshrl.u32 %v904, 16
    %v2452 = vpack.i.b16 %v2451, %v2451
    %v2454 = vlaneseq
    %v2455 = vshrl.u32 %v2454, 7
    %v2456 = vsub.s32 0, %v2455
    %v2457 = vrot.slane %v2452, %v2456
    %2459 = vbcast.lane.c.b16.xlu0 %v2457, 256
    %v2460 = vpop.permute.xlu0 %2459
    %v2461 = vlaneseq
    %v2462 = vshrl.u32 %v2461, 7
    %v2463 = vsub.s32 1, %v2462
    %v2464 = vrot.slane %v2442, %v2463
    %2466 = vbcast.lane.c.b16.xlu0 %v2464, 256
    %v2467 = vpop.permute.xlu0 %2466
    %v2468 = vlaneseq
    %v2469 = vshrl.u32 %v2468, 7
    %v2470 = vsub.s32 1, %v2469
    %v2471 = vrot.slane %v2452, %v2470
    %2473 = vbcast.lane.c.b16.xlu0 %v2471, 256
    %v2474 = vpop.permute.xlu0 %2473
    %v2475 = vlaneseq
    %v2476 = vshrl.u32 %v2475, 7
    %v2477 = vsub.s32 2, %v2476
    %v2478 = vrot.slane %v2442, %v2477
    %2480 = vbcast.lane.c.b16.xlu0 %v2478, 256
    %v2481 = vpop.permute.xlu0 %2480
    %v2482 = vlaneseq
    %v2483 = vshrl.u32 %v2482, 7
    %v2484 = vsub.s32 2, %v2483
    %v2485 = vrot.slane %v2452, %v2484
    %2487 = vbcast.lane.c.b16.xlu0 %v2485, 256
    %v2488 = vpop.permute.xlu0 %2487
    %v2489 = vlaneseq
    %v2490 = vshrl.u32 %v2489, 7
    %v2491 = vsub.s32 3, %v2490
    %v2492 = vrot.slane %v2442, %v2491
    %2494 = vbcast.lane.c.b16.xlu0 %v2492, 256
    %v2495 = vpop.permute.xlu0 %2494
    %v2496 = vlaneseq
    %v2497 = vshrl.u32 %v2496, 7
    %v2498 = vsub.s32 3, %v2497
    %v2499 = vrot.slane %v2452, %v2498
    %2501 = vbcast.lane.c.b16.xlu0 %v2499, 256
    %v2502 = vpop.permute.xlu0 %2501
    %v2503 = vlaneseq
    %v2504 = vshrl.u32 %v2503, 7
    %v2505 = vsub.s32 4, %v2504
    %v2506 = vrot.slane %v2442, %v2505
    %2508 = vbcast.lane.c.b16.xlu0 %v2506, 256
    %v2509 = vpop.permute.xlu0 %2508
    %v2510 = vlaneseq
    %v2511 = vshrl.u32 %v2510, 7
    %v2512 = vsub.s32 4, %v2511
    %v2513 = vrot.slane %v2452, %v2512
    %2515 = vbcast.lane.c.b16.xlu0 %v2513, 256
    %v2516 = vpop.permute.xlu0 %2515
    %v2517 = vlaneseq
    %v2518 = vshrl.u32 %v2517, 7
    %v2519 = vsub.s32 5, %v2518
    %v2520 = vrot.slane %v2442, %v2519
    %2522 = vbcast.lane.c.b16.xlu0 %v2520, 256
    %v2523 = vpop.permute.xlu0 %2522
    %v2524 = vlaneseq
    %v2525 = vshrl.u32 %v2524, 7
    %v2526 = vsub.s32 5, %v2525
    %v2527 = vrot.slane %v2452, %v2526
    %2529 = vbcast.lane.c.b16.xlu0 %v2527, 256
    %v2530 = vpop.permute.xlu0 %2529
    %v2531 = vlaneseq
    %v2532 = vshrl.u32 %v2531, 7
    %v2533 = vsub.s32 6, %v2532
    %v2534 = vrot.slane %v2442, %v2533
    %2536 = vbcast.lane.c.b16.xlu0 %v2534, 256
    %v2537 = vpop.permute.xlu0 %2536
    %v2538 = vlaneseq
    %v2539 = vshrl.u32 %v2538, 7
    %v2540 = vsub.s32 6, %v2539
    %v2541 = vrot.slane %v2452, %v2540
    %2543 = vbcast.lane.c.b16.xlu0 %v2541, 256
    %v2544 = vpop.permute.xlu0 %2543
    %v2545 = vlaneseq
    %v2546 = vshrl.u32 %v2545, 7
    %v2547 = vsub.s32 7, %v2546
    %v2548 = vrot.slane %v2442, %v2547
    %2550 = vbcast.lane.c.b16.xlu0 %v2548, 256
    %v2551 = vpop.permute.xlu0 %2550
    %v2552 = vlaneseq
    %v2553 = vshrl.u32 %v2552, 7
    %v2554 = vsub.s32 7, %v2553
    %v2555 = vrot.slane %v2452, %v2554
    %2557 = vbcast.lane.c.b16.xlu0 %v2555, 256
    %v2558 = vpop.permute.xlu0 %2557
    %v2560 = vpack.i.b16 %v905, %v905
    %v2562 = vlaneseq
    %v2563 = vshrl.u32 %v2562, 7
    %v2564 = vsub.s32 0, %v2563
    %v2565 = vrot.slane %v2560, %v2564
    %2567 = vbcast.lane.c.b16.xlu0 %v2565, 256
    %v2568 = vpop.permute.xlu0 %2567
    %v2569 = vshrl.u32 %v905, 16
    %v2570 = vpack.i.b16 %v2569, %v2569
    %v2572 = vlaneseq
    %v2573 = vshrl.u32 %v2572, 7
    %v2574 = vsub.s32 0, %v2573
    %v2575 = vrot.slane %v2570, %v2574
    %2577 = vbcast.lane.c.b16.xlu0 %v2575, 256
    %v2578 = vpop.permute.xlu0 %2577
    %v2579 = vlaneseq
    %v2580 = vshrl.u32 %v2579, 7
    %v2581 = vsub.s32 1, %v2580
    %v2582 = vrot.slane %v2560, %v2581
    %2584 = vbcast.lane.c.b16.xlu0 %v2582, 256
    %v2585 = vpop.permute.xlu0 %2584
    %v2586 = vlaneseq
    %v2587 = vshrl.u32 %v2586, 7
    %v2588 = vsub.s32 1, %v2587
    %v2589 = vrot.slane %v2570, %v2588
    %2591 = vbcast.lane.c.b16.xlu0 %v2589, 256
    %v2592 = vpop.permute.xlu0 %2591
    %v2593 = vlaneseq
    %v2594 = vshrl.u32 %v2593, 7
    %v2595 = vsub.s32 2, %v2594
    %v2596 = vrot.slane %v2560, %v2595
    %2598 = vbcast.lane.c.b16.xlu0 %v2596, 256
    %v2599 = vpop.permute.xlu0 %2598
    %v2600 = vlaneseq
    %v2601 = vshrl.u32 %v2600, 7
    %v2602 = vsub.s32 2, %v2601
    %v2603 = vrot.slane %v2570, %v2602
    %2605 = vbcast.lane.c.b16.xlu0 %v2603, 256
    %v2606 = vpop.permute.xlu0 %2605
    %v2607 = vlaneseq
    %v2608 = vshrl.u32 %v2607, 7
    %v2609 = vsub.s32 3, %v2608
    %v2610 = vrot.slane %v2560, %v2609
    %2612 = vbcast.lane.c.b16.xlu0 %v2610, 256
    %v2613 = vpop.permute.xlu0 %2612
    %v2614 = vlaneseq
    %v2615 = vshrl.u32 %v2614, 7
    %v2616 = vsub.s32 3, %v2615
    %v2617 = vrot.slane %v2570, %v2616
    %2619 = vbcast.lane.c.b16.xlu0 %v2617, 256
    %v2620 = vpop.permute.xlu0 %2619
    %v2621 = vlaneseq
    %v2622 = vshrl.u32 %v2621, 7
    %v2623 = vsub.s32 4, %v2622
    %v2624 = vrot.slane %v2560, %v2623
    %2626 = vbcast.lane.c.b16.xlu0 %v2624, 256
    %v2627 = vpop.permute.xlu0 %2626
    %v2628 = vlaneseq
    %v2629 = vshrl.u32 %v2628, 7
    %v2630 = vsub.s32 4, %v2629
    %v2631 = vrot.slane %v2570, %v2630
    %2633 = vbcast.lane.c.b16.xlu0 %v2631, 256
    %v2634 = vpop.permute.xlu0 %2633
    %v2635 = vlaneseq
    %v2636 = vshrl.u32 %v2635, 7
    %v2637 = vsub.s32 5, %v2636
    %v2638 = vrot.slane %v2560, %v2637
    %2640 = vbcast.lane.c.b16.xlu0 %v2638, 256
    %v2641 = vpop.permute.xlu0 %2640
    %v2642 = vlaneseq
    %v2643 = vshrl.u32 %v2642, 7
    %v2644 = vsub.s32 5, %v2643
    %v2645 = vrot.slane %v2570, %v2644
    %2647 = vbcast.lane.c.b16.xlu0 %v2645, 256
    %v2648 = vpop.permute.xlu0 %2647
    %v2649 = vlaneseq
    %v2650 = vshrl.u32 %v2649, 7
    %v2651 = vsub.s32 6, %v2650
    %v2652 = vrot.slane %v2560, %v2651
    %2654 = vbcast.lane.c.b16.xlu0 %v2652, 256
    %v2655 = vpop.permute.xlu0 %2654
    %v2656 = vlaneseq
    %v2657 = vshrl.u32 %v2656, 7
    %v2658 = vsub.s32 6, %v2657
    %v2659 = vrot.slane %v2570, %v2658
    %2661 = vbcast.lane.c.b16.xlu0 %v2659, 256
    %v2662 = vpop.permute.xlu0 %2661
    %v2663 = vlaneseq
    %v2664 = vshrl.u32 %v2663, 7
    %v2665 = vsub.s32 7, %v2664
    %v2666 = vrot.slane %v2560, %v2665
    %2668 = vbcast.lane.c.b16.xlu0 %v2666, 256
    %v2669 = vpop.permute.xlu0 %2668
    %v2670 = vlaneseq
    %v2671 = vshrl.u32 %v2670, 7
    %v2672 = vsub.s32 7, %v2671
    %v2673 = vrot.slane %v2570, %v2672
    %2675 = vbcast.lane.c.b16.xlu0 %v2673, 256
    %v2676 = vpop.permute.xlu0 %2675
    %v2678 = vpack.i.b16 %v906, %v906
    %v2680 = vlaneseq
    %v2681 = vshrl.u32 %v2680, 7
    %v2682 = vsub.s32 0, %v2681
    %v2683 = vrot.slane %v2678, %v2682
    %2685 = vbcast.lane.c.b16.xlu0 %v2683, 256
    %v2686 = vpop.permute.xlu0 %2685
    %v2687 = vshrl.u32 %v906, 16
    %v2688 = vpack.i.b16 %v2687, %v2687
    %v2690 = vlaneseq
    %v2691 = vshrl.u32 %v2690, 7
    %v2692 = vsub.s32 0, %v2691
    %v2693 = vrot.slane %v2688, %v2692
    %2695 = vbcast.lane.c.b16.xlu0 %v2693, 256
    %v2696 = vpop.permute.xlu0 %2695
    %v2697 = vlaneseq
    %v2698 = vshrl.u32 %v2697, 7
    %v2699 = vsub.s32 1, %v2698
    %v2700 = vrot.slane %v2678, %v2699
    %2702 = vbcast.lane.c.b16.xlu0 %v2700, 256
    %v2703 = vpop.permute.xlu0 %2702
    %v2704 = vlaneseq
    %v2705 = vshrl.u32 %v2704, 7
    %v2706 = vsub.s32 1, %v2705
    %v2707 = vrot.slane %v2688, %v2706
    %2709 = vbcast.lane.c.b16.xlu0 %v2707, 256
    %v2710 = vpop.permute.xlu0 %2709
    %v2711 = vlaneseq
    %v2712 = vshrl.u32 %v2711, 7
    %v2713 = vsub.s32 2, %v2712
    %v2714 = vrot.slane %v2678, %v2713
    %2716 = vbcast.lane.c.b16.xlu0 %v2714, 256
    %v2717 = vpop.permute.xlu0 %2716
    %v2718 = vlaneseq
    %v2719 = vshrl.u32 %v2718, 7
    %v2720 = vsub.s32 2, %v2719
    %v2721 = vrot.slane %v2688, %v2720
    %2723 = vbcast.lane.c.b16.xlu0 %v2721, 256
    %v2724 = vpop.permute.xlu0 %2723
    %v2725 = vlaneseq
    %v2726 = vshrl.u32 %v2725, 7
    %v2727 = vsub.s32 3, %v2726
    %v2728 = vrot.slane %v2678, %v2727
    %2730 = vbcast.lane.c.b16.xlu0 %v2728, 256
    %v2731 = vpop.permute.xlu0 %2730
    %v2732 = vlaneseq
    %v2733 = vshrl.u32 %v2732, 7
    %v2734 = vsub.s32 3, %v2733
    %v2735 = vrot.slane %v2688, %v2734
    %2737 = vbcast.lane.c.b16.xlu0 %v2735, 256
    %v2738 = vpop.permute.xlu0 %2737
    %v2739 = vlaneseq
    %v2740 = vshrl.u32 %v2739, 7
    %v2741 = vsub.s32 4, %v2740
    %v2742 = vrot.slane %v2678, %v2741
    %2744 = vbcast.lane.c.b16.xlu0 %v2742, 256
    %v2745 = vpop.permute.xlu0 %2744
    %v2746 = vlaneseq
    %v2747 = vshrl.u32 %v2746, 7
    %v2748 = vsub.s32 4, %v2747
    %v2749 = vrot.slane %v2688, %v2748
    %2751 = vbcast.lane.c.b16.xlu0 %v2749, 256
    %v2752 = vpop.permute.xlu0 %2751
    %v2753 = vlaneseq
    %v2754 = vshrl.u32 %v2753, 7
    %v2755 = vsub.s32 5, %v2754
    %v2756 = vrot.slane %v2678, %v2755
    %2758 = vbcast.lane.c.b16.xlu0 %v2756, 256
    %v2759 = vpop.permute.xlu0 %2758
    %v2760 = vlaneseq
    %v2761 = vshrl.u32 %v2760, 7
    %v2762 = vsub.s32 5, %v2761
    %v2763 = vrot.slane %v2688, %v2762
    %2765 = vbcast.lane.c.b16.xlu0 %v2763, 256
    %v2766 = vpop.permute.xlu0 %2765
    %v2767 = vlaneseq
    %v2768 = vshrl.u32 %v2767, 7
    %v2769 = vsub.s32 6, %v2768
    %v2770 = vrot.slane %v2678, %v2769
    %2772 = vbcast.lane.c.b16.xlu0 %v2770, 256
    %v2773 = vpop.permute.xlu0 %2772
    %v2774 = vlaneseq
    %v2775 = vshrl.u32 %v2774, 7
    %v2776 = vsub.s32 6, %v2775
    %v2777 = vrot.slane %v2688, %v2776
    %2779 = vbcast.lane.c.b16.xlu0 %v2777, 256
    %v2780 = vpop.permute.xlu0 %2779
    %v2781 = vlaneseq
    %v2782 = vshrl.u32 %v2781, 7
    %v2783 = vsub.s32 7, %v2782
    %v2784 = vrot.slane %v2678, %v2783
    %2786 = vbcast.lane.c.b16.xlu0 %v2784, 256
    %v2787 = vpop.permute.xlu0 %2786
    %v2788 = vlaneseq
    %v2789 = vshrl.u32 %v2788, 7
    %v2790 = vsub.s32 7, %v2789
    %v2791 = vrot.slane %v2688, %v2790
    %2793 = vbcast.lane.c.b16.xlu0 %v2791, 256
    %v2794 = vpop.permute.xlu0 %2793
    %v2811 = vcombine.high %v420, %v420
    %v2813 = vunpack.c.l.s4 1966171168
    %v2814 = vunpack.c.0.s8 %v2813
    %v2815 = vlaneseq
    %v2816 = vshrl.u32 %v2815, 7
    %v2817 = vsub.s32 %v2814, %v2816
    %v2818 = vrot.slane %v420, %v2817
    %v2820 = vunpack.c.l.s4 1966171168
    %v2821 = vunpack.c.0.s8 %v2820
    %v2822 = vlaneseq
    %v2823 = vshrl.u32 %v2822, 7
    %v2824 = vsub.s32 %v2821, %v2823
    %v2825 = vrot.slane %v2811, %v2824
    %v2826 = vcombine.high %v2818, %v2818
    %v2827 = vcombine.high %v2825, %v2825
    %v2829 = vunpack.c.l.s4 1966171168
    %v2830 = vunpack.c.0.s8 %v2829
    %v2831 = vlaneseq
    %v2832 = vshrl.u32 %v2831, 7
    %v2833 = vsub.s32 %v2830, %v2832
    %v2834 = vrot.slane %v2818, %v2833
    %v2836 = vunpack.c.l.s4 1966171168
    %v2837 = vunpack.c.0.s8 %v2836
    %v2838 = vlaneseq
    %v2839 = vshrl.u32 %v2838, 7
    %v2840 = vsub.s32 %v2837, %v2839
    %v2841 = vrot.slane %v2825, %v2840
    %v2843 = vunpack.c.l.s4 1966171168
    %v2844 = vunpack.c.0.s8 %v2843
    %v2845 = vlaneseq
    %v2846 = vshrl.u32 %v2845, 7
    %v2847 = vsub.s32 %v2844, %v2846
    %v2848 = vrot.slane %v2826, %v2847
    %v2850 = vunpack.c.l.s4 1966171168
    %v2851 = vunpack.c.0.s8 %v2850
    %v2852 = vlaneseq
    %v2853 = vshrl.u32 %v2852, 7
    %v2854 = vsub.s32 %v2851, %v2853
    %v2855 = vrot.slane %v2827, %v2854
    %v2856 = vcombine.high %v2834, %v2834
    %v2857 = vcombine.high %v2841, %v2841
    %v2858 = vcombine.high %v2848, %v2848
    %v2859 = vcombine.high %v2855, %v2855
    %v2860 = vcombine.high %v421, %v421
    %v2862 = vunpack.c.l.s4 1966171168
    %v2863 = vunpack.c.0.s8 %v2862
    %v2864 = vlaneseq
    %v2865 = vshrl.u32 %v2864, 7
    %v2866 = vsub.s32 %v2863, %v2865
    %v2867 = vrot.slane %v421, %v2866
    %v2869 = vunpack.c.l.s4 1966171168
    %v2870 = vunpack.c.0.s8 %v2869
    %v2871 = vlaneseq
    %v2872 = vshrl.u32 %v2871, 7
    %v2873 = vsub.s32 %v2870, %v2872
    %v2874 = vrot.slane %v2860, %v2873
    %v2875 = vcombine.high %v2867, %v2867
    %v2876 = vcombine.high %v2874, %v2874
    %v2878 = vunpack.c.l.s4 1966171168
    %v2879 = vunpack.c.0.s8 %v2878
    %v2880 = vlaneseq
    %v2881 = vshrl.u32 %v2880, 7
    %v2882 = vsub.s32 %v2879, %v2881
    %v2883 = vrot.slane %v2867, %v2882
    %v2885 = vunpack.c.l.s4 1966171168
    %v2886 = vunpack.c.0.s8 %v2885
    %v2887 = vlaneseq
    %v2888 = vshrl.u32 %v2887, 7
    %v2889 = vsub.s32 %v2886, %v2888
    %v2890 = vrot.slane %v2874, %v2889
    %v2892 = vunpack.c.l.s4 1966171168
    %v2893 = vunpack.c.0.s8 %v2892
    %v2894 = vlaneseq
    %v2895 = vshrl.u32 %v2894, 7
    %v2896 = vsub.s32 %v2893, %v2895
    %v2897 = vrot.slane %v2875, %v2896
    %v2899 = vunpack.c.l.s4 1966171168
    %v2900 = vunpack.c.0.s8 %v2899
    %v2901 = vlaneseq
    %v2902 = vshrl.u32 %v2901, 7
    %v2903 = vsub.s32 %v2900, %v2902
    %v2904 = vrot.slane %v2876, %v2903
    %v2905 = vcombine.high %v2883, %v2883
    %v2906 = vcombine.high %v2890, %v2890
    %v2907 = vcombine.high %v2897, %v2897
    %v2908 = vcombine.high %v2904, %v2904
    %v2909 = vcombine.high %v422, %v422
    %v2911 = vunpack.c.l.s4 1966171168
    %v2912 = vunpack.c.0.s8 %v2911
    %v2913 = vlaneseq
    %v2914 = vshrl.u32 %v2913, 7
    %v2915 = vsub.s32 %v2912, %v2914
    %v2916 = vrot.slane %v422, %v2915
    %v2918 = vunpack.c.l.s4 1966171168
    %v2919 = vunpack.c.0.s8 %v2918
    %v2920 = vlaneseq
    %v2921 = vshrl.u32 %v2920, 7
    %v2922 = vsub.s32 %v2919, %v2921
    %v2923 = vrot.slane %v2909, %v2922
    %v2924 = vcombine.high %v2916, %v2916
    %v2925 = vcombine.high %v2923, %v2923
    %v2927 = vunpack.c.l.s4 1966171168
    %v2928 = vunpack.c.0.s8 %v2927
    %v2929 = vlaneseq
    %v2930 = vshrl.u32 %v2929, 7
    %v2931 = vsub.s32 %v2928, %v2930
    %v2932 = vrot.slane %v2916, %v2931
    %v2934 = vunpack.c.l.s4 1966171168
    %v2935 = vunpack.c.0.s8 %v2934
    %v2936 = vlaneseq
    %v2937 = vshrl.u32 %v2936, 7
    %v2938 = vsub.s32 %v2935, %v2937
    %v2939 = vrot.slane %v2923, %v2938
    %v2941 = vunpack.c.l.s4 1966171168
    %v2942 = vunpack.c.0.s8 %v2941
    %v2943 = vlaneseq
    %v2944 = vshrl.u32 %v2943, 7
    %v2945 = vsub.s32 %v2942, %v2944
    %v2946 = vrot.slane %v2924, %v2945
    %v2948 = vunpack.c.l.s4 1966171168
    %v2949 = vunpack.c.0.s8 %v2948
    %v2950 = vlaneseq
    %v2951 = vshrl.u32 %v2950, 7
    %v2952 = vsub.s32 %v2949, %v2951
    %v2953 = vrot.slane %v2925, %v2952
    %v2954 = vcombine.high %v2932, %v2932
    %v2955 = vcombine.high %v2939, %v2939
    %v2956 = vcombine.high %v2946, %v2946
    %v2957 = vcombine.high %v2953, %v2953
    %v2958 = vcombine.high %v423, %v423
    %v2960 = vunpack.c.l.s4 1966171168
    %v2961 = vunpack.c.0.s8 %v2960
    %v2962 = vlaneseq
    %v2963 = vshrl.u32 %v2962, 7
    %v2964 = vsub.s32 %v2961, %v2963
    %v2965 = vrot.slane %v423, %v2964
    %v2967 = vunpack.c.l.s4 1966171168
    %v2968 = vunpack.c.0.s8 %v2967
    %v2969 = vlaneseq
    %v2970 = vshrl.u32 %v2969, 7
    %v2971 = vsub.s32 %v2968, %v2970
    %v2972 = vrot.slane %v2958, %v2971
    %v2973 = vcombine.high %v2965, %v2965
    %v2974 = vcombine.high %v2972, %v2972
    %v2976 = vunpack.c.l.s4 1966171168
    %v2977 = vunpack.c.0.s8 %v2976
    %v2978 = vlaneseq
    %v2979 = vshrl.u32 %v2978, 7
    %v2980 = vsub.s32 %v2977, %v2979
    %v2981 = vrot.slane %v2965, %v2980
    %v2983 = vunpack.c.l.s4 1966171168
    %v2984 = vunpack.c.0.s8 %v2983
    %v2985 = vlaneseq
    %v2986 = vshrl.u32 %v2985, 7
    %v2987 = vsub.s32 %v2984, %v2986
    %v2988 = vrot.slane %v2972, %v2987
    %v2990 = vunpack.c.l.s4 1966171168
    %v2991 = vunpack.c.0.s8 %v2990
    %v2992 = vlaneseq
    %v2993 = vshrl.u32 %v2992, 7
    %v2994 = vsub.s32 %v2991, %v2993
    %v2995 = vrot.slane %v2973, %v2994
    %v2997 = vunpack.c.l.s4 1966171168
    %v2998 = vunpack.c.0.s8 %v2997
    %v2999 = vlaneseq
    %v3000 = vshrl.u32 %v2999, 7
    %v3001 = vsub.s32 %v2998, %v3000
    %v3002 = vrot.slane %v2974, %v3001
    %v3003 = vcombine.high %v2981, %v2981
    %v3004 = vcombine.high %v2988, %v2988
    %v3005 = vcombine.high %v2995, %v2995
    %v3006 = vcombine.high %v3002, %v3002
    %v3007 = vcombine.high %v424, %v424
    %v3009 = vunpack.c.l.s4 1966171168
    %v3010 = vunpack.c.0.s8 %v3009
    %v3011 = vlaneseq
    %v3012 = vshrl.u32 %v3011, 7
    %v3013 = vsub.s32 %v3010, %v3012
    %v3014 = vrot.slane %v424, %v3013
    %v3016 = vunpack.c.l.s4 1966171168
    %v3017 = vunpack.c.0.s8 %v3016
    %v3018 = vlaneseq
    %v3019 = vshrl.u32 %v3018, 7
    %v3020 = vsub.s32 %v3017, %v3019
    %v3021 = vrot.slane %v3007, %v3020
    %v3022 = vcombine.high %v3014, %v3014
    %v3023 = vcombine.high %v3021, %v3021
    %v3025 = vunpack.c.l.s4 1966171168
    %v3026 = vunpack.c.0.s8 %v3025
    %v3027 = vlaneseq
    %v3028 = vshrl.u32 %v3027, 7
    %v3029 = vsub.s32 %v3026, %v3028
    %v3030 = vrot.slane %v3014, %v3029
    %v3032 = vunpack.c.l.s4 1966171168
    %v3033 = vunpack.c.0.s8 %v3032
    %v3034 = vlaneseq
    %v3035 = vshrl.u32 %v3034, 7
    %v3036 = vsub.s32 %v3033, %v3035
    %v3037 = vrot.slane %v3021, %v3036
    %v3039 = vunpack.c.l.s4 1966171168
    %v3040 = vunpack.c.0.s8 %v3039
    %v3041 = vlaneseq
    %v3042 = vshrl.u32 %v3041, 7
    %v3043 = vsub.s32 %v3040, %v3042
    %v3044 = vrot.slane %v3022, %v3043
    %v3046 = vunpack.c.l.s4 1966171168
    %v3047 = vunpack.c.0.s8 %v3046
    %v3048 = vlaneseq
    %v3049 = vshrl.u32 %v3048, 7
    %v3050 = vsub.s32 %v3047, %v3049
    %v3051 = vrot.slane %v3023, %v3050
    %v3052 = vcombine.high %v3030, %v3030
    %v3053 = vcombine.high %v3037, %v3037
    %v3054 = vcombine.high %v3044, %v3044
    %v3055 = vcombine.high %v3051, %v3051
    %v3056 = vcombine.high %v425, %v425
    %v3058 = vunpack.c.l.s4 1966171168
    %v3059 = vunpack.c.0.s8 %v3058
    %v3060 = vlaneseq
    %v3061 = vshrl.u32 %v3060, 7
    %v3062 = vsub.s32 %v3059, %v3061
    %v3063 = vrot.slane %v425, %v3062
    %v3065 = vunpack.c.l.s4 1966171168
    %v3066 = vunpack.c.0.s8 %v3065
    %v3067 = vlaneseq
    %v3068 = vshrl.u32 %v3067, 7
    %v3069 = vsub.s32 %v3066, %v3068
    %v3070 = vrot.slane %v3056, %v3069
    %v3071 = vcombine.high %v3063, %v3063
    %v3072 = vcombine.high %v3070, %v3070
    %v3074 = vunpack.c.l.s4 1966171168
    %v3075 = vunpack.c.0.s8 %v3074
    %v3076 = vlaneseq
    %v3077 = vshrl.u32 %v3076, 7
    %v3078 = vsub.s32 %v3075, %v3077
    %v3079 = vrot.slane %v3063, %v3078
    %v3081 = vunpack.c.l.s4 1966171168
    %v3082 = vunpack.c.0.s8 %v3081
    %v3083 = vlaneseq
    %v3084 = vshrl.u32 %v3083, 7
    %v3085 = vsub.s32 %v3082, %v3084
    %v3086 = vrot.slane %v3070, %v3085
    %v3088 = vunpack.c.l.s4 1966171168
    %v3089 = vunpack.c.0.s8 %v3088
    %v3090 = vlaneseq
    %v3091 = vshrl.u32 %v3090, 7
    %v3092 = vsub.s32 %v3089, %v3091
    %v3093 = vrot.slane %v3071, %v3092
    %v3095 = vunpack.c.l.s4 1966171168
    %v3096 = vunpack.c.0.s8 %v3095
    %v3097 = vlaneseq
    %v3098 = vshrl.u32 %v3097, 7
    %v3099 = vsub.s32 %v3096, %v3098
    %v3100 = vrot.slane %v3072, %v3099
    %v3101 = vcombine.high %v3079, %v3079
    %v3102 = vcombine.high %v3086, %v3086
    %v3103 = vcombine.high %v3093, %v3093
    %v3104 = vcombine.high %v3100, %v3100
    %v3105 = vcombine.high %v426, %v426
    %v3107 = vunpack.c.l.s4 1966171168
    %v3108 = vunpack.c.0.s8 %v3107
    %v3109 = vlaneseq
    %v3110 = vshrl.u32 %v3109, 7
    %v3111 = vsub.s32 %v3108, %v3110
    %v3112 = vrot.slane %v426, %v3111
    %v3114 = vunpack.c.l.s4 1966171168
    %v3115 = vunpack.c.0.s8 %v3114
    %v3116 = vlaneseq
    %v3117 = vshrl.u32 %v3116, 7
    %v3118 = vsub.s32 %v3115, %v3117
    %v3119 = vrot.slane %v3105, %v3118
    %v3120 = vcombine.high %v3112, %v3112
    %v3121 = vcombine.high %v3119, %v3119
    %v3123 = vunpack.c.l.s4 1966171168
    %v3124 = vunpack.c.0.s8 %v3123
    %v3125 = vlaneseq
    %v3126 = vshrl.u32 %v3125, 7
    %v3127 = vsub.s32 %v3124, %v3126
    %v3128 = vrot.slane %v3112, %v3127
    %v3130 = vunpack.c.l.s4 1966171168
    %v3131 = vunpack.c.0.s8 %v3130
    %v3132 = vlaneseq
    %v3133 = vshrl.u32 %v3132, 7
    %v3134 = vsub.s32 %v3131, %v3133
    %v3135 = vrot.slane %v3119, %v3134
    %v3137 = vunpack.c.l.s4 1966171168
    %v3138 = vunpack.c.0.s8 %v3137
    %v3139 = vlaneseq
    %v3140 = vshrl.u32 %v3139, 7
    %v3141 = vsub.s32 %v3138, %v3140
    %v3142 = vrot.slane %v3120, %v3141
    %v3144 = vunpack.c.l.s4 1966171168
    %v3145 = vunpack.c.0.s8 %v3144
    %v3146 = vlaneseq
    %v3147 = vshrl.u32 %v3146, 7
    %v3148 = vsub.s32 %v3145, %v3147
    %v3149 = vrot.slane %v3121, %v3148
    %v3150 = vcombine.high %v3128, %v3128
    %v3151 = vcombine.high %v3135, %v3135
    %v3152 = vcombine.high %v3142, %v3142
    %v3153 = vcombine.high %v3149, %v3149
    %v3154 = vcombine.high %v427, %v427
    %v3156 = vunpack.c.l.s4 1966171168
    %v3157 = vunpack.c.0.s8 %v3156
    %v3158 = vlaneseq
    %v3159 = vshrl.u32 %v3158, 7
    %v3160 = vsub.s32 %v3157, %v3159
    %v3161 = vrot.slane %v427, %v3160
    %v3163 = vunpack.c.l.s4 1966171168
    %v3164 = vunpack.c.0.s8 %v3163
    %v3165 = vlaneseq
    %v3166 = vshrl.u32 %v3165, 7
    %v3167 = vsub.s32 %v3164, %v3166
    %v3168 = vrot.slane %v3154, %v3167
    %v3169 = vcombine.high %v3161, %v3161
    %v3170 = vcombine.high %v3168, %v3168
    %v3172 = vunpack.c.l.s4 1966171168
    %v3173 = vunpack.c.0.s8 %v3172
    %v3174 = vlaneseq
    %v3175 = vshrl.u32 %v3174, 7
    %v3176 = vsub.s32 %v3173, %v3175
    %v3177 = vrot.slane %v3161, %v3176
    %v3179 = vunpack.c.l.s4 1966171168
    %v3180 = vunpack.c.0.s8 %v3179
    %v3181 = vlaneseq
    %v3182 = vshrl.u32 %v3181, 7
    %v3183 = vsub.s32 %v3180, %v3182
    %v3184 = vrot.slane %v3168, %v3183
    %v3186 = vunpack.c.l.s4 1966171168
    %v3187 = vunpack.c.0.s8 %v3186
    %v3188 = vlaneseq
    %v3189 = vshrl.u32 %v3188, 7
    %v3190 = vsub.s32 %v3187, %v3189
    %v3191 = vrot.slane %v3169, %v3190
    %v3193 = vunpack.c.l.s4 1966171168
    %v3194 = vunpack.c.0.s8 %v3193
    %v3195 = vlaneseq
    %v3196 = vshrl.u32 %v3195, 7
    %v3197 = vsub.s32 %v3194, %v3196
    %v3198 = vrot.slane %v3170, %v3197
    %v3199 = vcombine.high %v3177, %v3177
    %v3200 = vcombine.high %v3184, %v3184
    %v3201 = vcombine.high %v3191, %v3191
    %v3202 = vcombine.high %v3198, %v3198
    %v3203 = vcombine.high %v428, %v428
    %v3205 = vunpack.c.l.s4 1966171168
    %v3206 = vunpack.c.0.s8 %v3205
    %v3207 = vlaneseq
    %v3208 = vshrl.u32 %v3207, 7
    %v3209 = vsub.s32 %v3206, %v3208
    %v3210 = vrot.slane %v428, %v3209
    %v3212 = vunpack.c.l.s4 1966171168
    %v3213 = vunpack.c.0.s8 %v3212
    %v3214 = vlaneseq
    %v3215 = vshrl.u32 %v3214, 7
    %v3216 = vsub.s32 %v3213, %v3215
    %v3217 = vrot.slane %v3203, %v3216
    %v3218 = vcombine.high %v3210, %v3210
    %v3219 = vcombine.high %v3217, %v3217
    %v3221 = vunpack.c.l.s4 1966171168
    %v3222 = vunpack.c.0.s8 %v3221
    %v3223 = vlaneseq
    %v3224 = vshrl.u32 %v3223, 7
    %v3225 = vsub.s32 %v3222, %v3224
    %v3226 = vrot.slane %v3210, %v3225
    %v3228 = vunpack.c.l.s4 1966171168
    %v3229 = vunpack.c.0.s8 %v3228
    %v3230 = vlaneseq
    %v3231 = vshrl.u32 %v3230, 7
    %v3232 = vsub.s32 %v3229, %v3231
    %v3233 = vrot.slane %v3217, %v3232
    %v3235 = vunpack.c.l.s4 1966171168
    %v3236 = vunpack.c.0.s8 %v3235
    %v3237 = vlaneseq
    %v3238 = vshrl.u32 %v3237, 7
    %v3239 = vsub.s32 %v3236, %v3238
    %v3240 = vrot.slane %v3218, %v3239
    %v3242 = vunpack.c.l.s4 1966171168
    %v3243 = vunpack.c.0.s8 %v3242
    %v3244 = vlaneseq
    %v3245 = vshrl.u32 %v3244, 7
    %v3246 = vsub.s32 %v3243, %v3245
    %v3247 = vrot.slane %v3219, %v3246
    %v3248 = vcombine.high %v3226, %v3226
    %v3249 = vcombine.high %v3233, %v3233
    %v3250 = vcombine.high %v3240, %v3240
    %v3251 = vcombine.high %v3247, %v3247
    %v3252 = vcombine.high %v429, %v429
    %v3254 = vunpack.c.l.s4 1966171168
    %v3255 = vunpack.c.0.s8 %v3254
    %v3256 = vlaneseq
    %v3257 = vshrl.u32 %v3256, 7
    %v3258 = vsub.s32 %v3255, %v3257
    %v3259 = vrot.slane %v429, %v3258
    %v3261 = vunpack.c.l.s4 1966171168
    %v3262 = vunpack.c.0.s8 %v3261
    %v3263 = vlaneseq
    %v3264 = vshrl.u32 %v3263, 7
    %v3265 = vsub.s32 %v3262, %v3264
    %v3266 = vrot.slane %v3252, %v3265
    %v3267 = vcombine.high %v3259, %v3259
    %v3268 = vcombine.high %v3266, %v3266
    %v3270 = vunpack.c.l.s4 1966171168
    %v3271 = vunpack.c.0.s8 %v3270
    %v3272 = vlaneseq
    %v3273 = vshrl.u32 %v3272, 7
    %v3274 = vsub.s32 %v3271, %v3273
    %v3275 = vrot.slane %v3259, %v3274
    %v3277 = vunpack.c.l.s4 1966171168
    %v3278 = vunpack.c.0.s8 %v3277
    %v3279 = vlaneseq
    %v3280 = vshrl.u32 %v3279, 7
    %v3281 = vsub.s32 %v3278, %v3280
    %v3282 = vrot.slane %v3266, %v3281
    %v3284 = vunpack.c.l.s4 1966171168
    %v3285 = vunpack.c.0.s8 %v3284
    %v3286 = vlaneseq
    %v3287 = vshrl.u32 %v3286, 7
    %v3288 = vsub.s32 %v3285, %v3287
    %v3289 = vrot.slane %v3267, %v3288
    %v3291 = vunpack.c.l.s4 1966171168
    %v3292 = vunpack.c.0.s8 %v3291
    %v3293 = vlaneseq
    %v3294 = vshrl.u32 %v3293, 7
    %v3295 = vsub.s32 %v3292, %v3294
    %v3296 = vrot.slane %v3268, %v3295
    %v3297 = vcombine.high %v3275, %v3275
    %v3298 = vcombine.high %v3282, %v3282
    %v3299 = vcombine.high %v3289, %v3289
    %v3300 = vcombine.high %v3296, %v3296
    %v3301 = vcombine.high %v430, %v430
    %v3303 = vunpack.c.l.s4 1966171168
    %v3304 = vunpack.c.0.s8 %v3303
    %v3305 = vlaneseq
    %v3306 = vshrl.u32 %v3305, 7
    %v3307 = vsub.s32 %v3304, %v3306
    %v3308 = vrot.slane %v430, %v3307
    %v3310 = vunpack.c.l.s4 1966171168
    %v3311 = vunpack.c.0.s8 %v3310
    %v3312 = vlaneseq
    %v3313 = vshrl.u32 %v3312, 7
    %v3314 = vsub.s32 %v3311, %v3313
    %v3315 = vrot.slane %v3301, %v3314
    %v3316 = vcombine.high %v3308, %v3308
    %v3317 = vcombine.high %v3315, %v3315
    %v3319 = vunpack.c.l.s4 1966171168
    %v3320 = vunpack.c.0.s8 %v3319
    %v3321 = vlaneseq
    %v3322 = vshrl.u32 %v3321, 7
    %v3323 = vsub.s32 %v3320, %v3322
    %v3324 = vrot.slane %v3308, %v3323
    %v3326 = vunpack.c.l.s4 1966171168
    %v3327 = vunpack.c.0.s8 %v3326
    %v3328 = vlaneseq
    %v3329 = vshrl.u32 %v3328, 7
    %v3330 = vsub.s32 %v3327, %v3329
    %v3331 = vrot.slane %v3315, %v3330
    %v3333 = vunpack.c.l.s4 1966171168
    %v3334 = vunpack.c.0.s8 %v3333
    %v3335 = vlaneseq
    %v3336 = vshrl.u32 %v3335, 7
    %v3337 = vsub.s32 %v3334, %v3336
    %v3338 = vrot.slane %v3316, %v3337
    %v3340 = vunpack.c.l.s4 1966171168
    %v3341 = vunpack.c.0.s8 %v3340
    %v3342 = vlaneseq
    %v3343 = vshrl.u32 %v3342, 7
    %v3344 = vsub.s32 %v3341, %v3343
    %v3345 = vrot.slane %v3317, %v3344
    %v3346 = vcombine.high %v3324, %v3324
    %v3347 = vcombine.high %v3331, %v3331
    %v3348 = vcombine.high %v3338, %v3338
    %v3349 = vcombine.high %v3345, %v3345
    %v3350 = vcombine.high %v431, %v431
    %v3352 = vunpack.c.l.s4 1966171168
    %v3353 = vunpack.c.0.s8 %v3352
    %v3354 = vlaneseq
    %v3355 = vshrl.u32 %v3354, 7
    %v3356 = vsub.s32 %v3353, %v3355
    %v3357 = vrot.slane %v431, %v3356
    %v3359 = vunpack.c.l.s4 1966171168
    %v3360 = vunpack.c.0.s8 %v3359
    %v3361 = vlaneseq
    %v3362 = vshrl.u32 %v3361, 7
    %v3363 = vsub.s32 %v3360, %v3362
    %v3364 = vrot.slane %v3350, %v3363
    %v3365 = vcombine.high %v3357, %v3357
    %v3366 = vcombine.high %v3364, %v3364
    %v3368 = vunpack.c.l.s4 1966171168
    %v3369 = vunpack.c.0.s8 %v3368
    %v3370 = vlaneseq
    %v3371 = vshrl.u32 %v3370, 7
    %v3372 = vsub.s32 %v3369, %v3371
    %v3373 = vrot.slane %v3357, %v3372
    %v3375 = vunpack.c.l.s4 1966171168
    %v3376 = vunpack.c.0.s8 %v3375
    %v3377 = vlaneseq
    %v3378 = vshrl.u32 %v3377, 7
    %v3379 = vsub.s32 %v3376, %v3378
    %v3380 = vrot.slane %v3364, %v3379
    %v3382 = vunpack.c.l.s4 1966171168
    %v3383 = vunpack.c.0.s8 %v3382
    %v3384 = vlaneseq
    %v3385 = vshrl.u32 %v3384, 7
    %v3386 = vsub.s32 %v3383, %v3385
    %v3387 = vrot.slane %v3365, %v3386
    %v3389 = vunpack.c.l.s4 1966171168
    %v3390 = vunpack.c.0.s8 %v3389
    %v3391 = vlaneseq
    %v3392 = vshrl.u32 %v3391, 7
    %v3393 = vsub.s32 %v3390, %v3392
    %v3394 = vrot.slane %v3366, %v3393
    %v3395 = vcombine.high %v3373, %v3373
    %v3396 = vcombine.high %v3380, %v3380
    %v3397 = vcombine.high %v3387, %v3387
    %v3398 = vcombine.high %v3394, %v3394
    %v3399 = vcombine.high %v432, %v432
    %v3401 = vunpack.c.l.s4 1966171168
    %v3402 = vunpack.c.0.s8 %v3401
    %v3403 = vlaneseq
    %v3404 = vshrl.u32 %v3403, 7
    %v3405 = vsub.s32 %v3402, %v3404
    %v3406 = vrot.slane %v432, %v3405
    %v3408 = vunpack.c.l.s4 1966171168
    %v3409 = vunpack.c.0.s8 %v3408
    %v3410 = vlaneseq
    %v3411 = vshrl.u32 %v3410, 7
    %v3412 = vsub.s32 %v3409, %v3411
    %v3413 = vrot.slane %v3399, %v3412
    %v3414 = vcombine.high %v3406, %v3406
    %v3415 = vcombine.high %v3413, %v3413
    %v3417 = vunpack.c.l.s4 1966171168
    %v3418 = vunpack.c.0.s8 %v3417
    %v3419 = vlaneseq
    %v3420 = vshrl.u32 %v3419, 7
    %v3421 = vsub.s32 %v3418, %v3420
    %v3422 = vrot.slane %v3406, %v3421
    %v3424 = vunpack.c.l.s4 1966171168
    %v3425 = vunpack.c.0.s8 %v3424
    %v3426 = vlaneseq
    %v3427 = vshrl.u32 %v3426, 7
    %v3428 = vsub.s32 %v3425, %v3427
    %v3429 = vrot.slane %v3413, %v3428
    %v3431 = vunpack.c.l.s4 1966171168
    %v3432 = vunpack.c.0.s8 %v3431
    %v3433 = vlaneseq
    %v3434 = vshrl.u32 %v3433, 7
    %v3435 = vsub.s32 %v3432, %v3434
    %v3436 = vrot.slane %v3414, %v3435
    %v3438 = vunpack.c.l.s4 1966171168
    %v3439 = vunpack.c.0.s8 %v3438
    %v3440 = vlaneseq
    %v3441 = vshrl.u32 %v3440, 7
    %v3442 = vsub.s32 %v3439, %v3441
    %v3443 = vrot.slane %v3415, %v3442
    %v3444 = vcombine.high %v3422, %v3422
    %v3445 = vcombine.high %v3429, %v3429
    %v3446 = vcombine.high %v3436, %v3436
    %v3447 = vcombine.high %v3443, %v3443
    %v3448 = vcombine.high %v433, %v433
    %v3450 = vunpack.c.l.s4 1966171168
    %v3451 = vunpack.c.0.s8 %v3450
    %v3452 = vlaneseq
    %v3453 = vshrl.u32 %v3452, 7
    %v3454 = vsub.s32 %v3451, %v3453
    %v3455 = vrot.slane %v433, %v3454
    %v3457 = vunpack.c.l.s4 1966171168
    %v3458 = vunpack.c.0.s8 %v3457
    %v3459 = vlaneseq
    %v3460 = vshrl.u32 %v3459, 7
    %v3461 = vsub.s32 %v3458, %v3460
    %v3462 = vrot.slane %v3448, %v3461
    %v3463 = vcombine.high %v3455, %v3455
    %v3464 = vcombine.high %v3462, %v3462
    %v3466 = vunpack.c.l.s4 1966171168
    %v3467 = vunpack.c.0.s8 %v3466
    %v3468 = vlaneseq
    %v3469 = vshrl.u32 %v3468, 7
    %v3470 = vsub.s32 %v3467, %v3469
    %v3471 = vrot.slane %v3455, %v3470
    %v3473 = vunpack.c.l.s4 1966171168
    %v3474 = vunpack.c.0.s8 %v3473
    %v3475 = vlaneseq
    %v3476 = vshrl.u32 %v3475, 7
    %v3477 = vsub.s32 %v3474, %v3476
    %v3478 = vrot.slane %v3462, %v3477
    %v3480 = vunpack.c.l.s4 1966171168
    %v3481 = vunpack.c.0.s8 %v3480
    %v3482 = vlaneseq
    %v3483 = vshrl.u32 %v3482, 7
    %v3484 = vsub.s32 %v3481, %v3483
    %v3485 = vrot.slane %v3463, %v3484
    %v3487 = vunpack.c.l.s4 1966171168
    %v3488 = vunpack.c.0.s8 %v3487
    %v3489 = vlaneseq
    %v3490 = vshrl.u32 %v3489, 7
    %v3491 = vsub.s32 %v3488, %v3490
    %v3492 = vrot.slane %v3464, %v3491
    %v3493 = vcombine.high %v3471, %v3471
    %v3494 = vcombine.high %v3478, %v3478
    %v3495 = vcombine.high %v3485, %v3485
    %v3496 = vcombine.high %v3492, %v3492
    %v3497 = vcombine.high %v434, %v434
    %v3499 = vunpack.c.l.s4 1966171168
    %v3500 = vunpack.c.0.s8 %v3499
    %v3501 = vlaneseq
    %v3502 = vshrl.u32 %v3501, 7
    %v3503 = vsub.s32 %v3500, %v3502
    %v3504 = vrot.slane %v434, %v3503
    %v3506 = vunpack.c.l.s4 1966171168
    %v3507 = vunpack.c.0.s8 %v3506
    %v3508 = vlaneseq
    %v3509 = vshrl.u32 %v3508, 7
    %v3510 = vsub.s32 %v3507, %v3509
    %v3511 = vrot.slane %v3497, %v3510
    %v3512 = vcombine.high %v3504, %v3504
    %v3513 = vcombine.high %v3511, %v3511
    %v3515 = vunpack.c.l.s4 1966171168
    %v3516 = vunpack.c.0.s8 %v3515
    %v3517 = vlaneseq
    %v3518 = vshrl.u32 %v3517, 7
    %v3519 = vsub.s32 %v3516, %v3518
    %v3520 = vrot.slane %v3504, %v3519
    %v3522 = vunpack.c.l.s4 1966171168
    %v3523 = vunpack.c.0.s8 %v3522
    %v3524 = vlaneseq
    %v3525 = vshrl.u32 %v3524, 7
    %v3526 = vsub.s32 %v3523, %v3525
    %v3527 = vrot.slane %v3511, %v3526
    %v3529 = vunpack.c.l.s4 1966171168
    %v3530 = vunpack.c.0.s8 %v3529
    %v3531 = vlaneseq
    %v3532 = vshrl.u32 %v3531, 7
    %v3533 = vsub.s32 %v3530, %v3532
    %v3534 = vrot.slane %v3512, %v3533
    %v3536 = vunpack.c.l.s4 1966171168
    %v3537 = vunpack.c.0.s8 %v3536
    %v3538 = vlaneseq
    %v3539 = vshrl.u32 %v3538, 7
    %v3540 = vsub.s32 %v3537, %v3539
    %v3541 = vrot.slane %v3513, %v3540
    %v3542 = vcombine.high %v3520, %v3520
    %v3543 = vcombine.high %v3527, %v3527
    %v3544 = vcombine.high %v3534, %v3534
    %v3545 = vcombine.high %v3541, %v3541
    %v3546 = vcombine.high %v435, %v435
    %v3548 = vunpack.c.l.s4 1966171168
    %v3549 = vunpack.c.0.s8 %v3548
    %v3550 = vlaneseq
    %v3551 = vshrl.u32 %v3550, 7
    %v3552 = vsub.s32 %v3549, %v3551
    %v3553 = vrot.slane %v435, %v3552
    %v3555 = vunpack.c.l.s4 1966171168
    %v3556 = vunpack.c.0.s8 %v3555
    %v3557 = vlaneseq
    %v3558 = vshrl.u32 %v3557, 7
    %v3559 = vsub.s32 %v3556, %v3558
    %v3560 = vrot.slane %v3546, %v3559
    %v3561 = vcombine.high %v3553, %v3553
    %v3562 = vcombine.high %v3560, %v3560
    %v3564 = vunpack.c.l.s4 1966171168
    %v3565 = vunpack.c.0.s8 %v3564
    %v3566 = vlaneseq
    %v3567 = vshrl.u32 %v3566, 7
    %v3568 = vsub.s32 %v3565, %v3567
    %v3569 = vrot.slane %v3553, %v3568
    %v3571 = vunpack.c.l.s4 1966171168
    %v3572 = vunpack.c.0.s8 %v3571
    %v3573 = vlaneseq
    %v3574 = vshrl.u32 %v3573, 7
    %v3575 = vsub.s32 %v3572, %v3574
    %v3576 = vrot.slane %v3560, %v3575
    %v3578 = vunpack.c.l.s4 1966171168
    %v3579 = vunpack.c.0.s8 %v3578
    %v3580 = vlaneseq
    %v3581 = vshrl.u32 %v3580, 7
    %v3582 = vsub.s32 %v3579, %v3581
    %v3583 = vrot.slane %v3561, %v3582
    %v3585 = vunpack.c.l.s4 1966171168
    %v3586 = vunpack.c.0.s8 %v3585
    %v3587 = vlaneseq
    %v3588 = vshrl.u32 %v3587, 7
    %v3589 = vsub.s32 %v3586, %v3588
    %v3590 = vrot.slane %v3562, %v3589
    %v3591 = vcombine.high %v3569, %v3569
    %v3592 = vcombine.high %v3576, %v3576
    %v3593 = vcombine.high %v3583, %v3583
    %v3594 = vcombine.high %v3590, %v3590
    %v3595 = vunpack.i.l.s16 %v2834
    %v3596 = vunpack.i.h.s16 %v2834
    %v3597 = vunpack.i.l.s16 %v2848
    %v3598 = vunpack.i.h.s16 %v2848
    %v3599 = vunpack.i.l.s16 %v2856
    %v3600 = vunpack.i.h.s16 %v2856
    %v3601 = vunpack.i.l.s16 %v2858
    %v3602 = vunpack.i.h.s16 %v2858
    %v3603 = vunpack.i.l.s16 %v2841
    %v3604 = vunpack.i.h.s16 %v2841
    %v3605 = vunpack.i.l.s16 %v2855
    %v3606 = vunpack.i.h.s16 %v2855
    %v3607 = vunpack.i.l.s16 %v2857
    %v3608 = vunpack.i.h.s16 %v2857
    %v3609 = vunpack.i.l.s16 %v2859
    %v3610 = vunpack.i.h.s16 %v2859
    %v3611 = vunpack.i.l.s16 %v2883
    %v3612 = vunpack.i.h.s16 %v2883
    %v3613 = vunpack.i.l.s16 %v2897
    %v3614 = vunpack.i.h.s16 %v2897
    %v3615 = vunpack.i.l.s16 %v2905
    %v3616 = vunpack.i.h.s16 %v2905
    %v3617 = vunpack.i.l.s16 %v2907
    %v3618 = vunpack.i.h.s16 %v2907
    %v3619 = vunpack.i.l.s16 %v2890
    %v3620 = vunpack.i.h.s16 %v2890
    %v3621 = vunpack.i.l.s16 %v2904
    %v3622 = vunpack.i.h.s16 %v2904
    %v3623 = vunpack.i.l.s16 %v2906
    %v3624 = vunpack.i.h.s16 %v2906
    %v3625 = vunpack.i.l.s16 %v2908
    %v3626 = vunpack.i.h.s16 %v2908
    %v3627 = vunpack.i.l.s16 %v2932
    %v3628 = vunpack.i.h.s16 %v2932
    %v3629 = vunpack.i.l.s16 %v2946
    %v3630 = vunpack.i.h.s16 %v2946
    %v3631 = vunpack.i.l.s16 %v2954
    %v3632 = vunpack.i.h.s16 %v2954
    %v3633 = vunpack.i.l.s16 %v2956
    %v3634 = vunpack.i.h.s16 %v2956
    %v3635 = vunpack.i.l.s16 %v2939
    %v3636 = vunpack.i.h.s16 %v2939
    %v3637 = vunpack.i.l.s16 %v2953
    %v3638 = vunpack.i.h.s16 %v2953
    %v3639 = vunpack.i.l.s16 %v2955
    %v3640 = vunpack.i.h.s16 %v2955
    %v3641 = vunpack.i.l.s16 %v2957
    %v3642 = vunpack.i.h.s16 %v2957
    %v3643 = vunpack.i.l.s16 %v2981
    %v3644 = vunpack.i.h.s16 %v2981
    %v3645 = vunpack.i.l.s16 %v2995
    %v3646 = vunpack.i.h.s16 %v2995
    %v3647 = vunpack.i.l.s16 %v3003
    %v3648 = vunpack.i.h.s16 %v3003
    %v3649 = vunpack.i.l.s16 %v3005
    %v3650 = vunpack.i.h.s16 %v3005
    %v3651 = vunpack.i.l.s16 %v2988
    %v3652 = vunpack.i.h.s16 %v2988
    %v3653 = vunpack.i.l.s16 %v3002
    %v3654 = vunpack.i.h.s16 %v3002
    %v3655 = vunpack.i.l.s16 %v3004
    %v3656 = vunpack.i.h.s16 %v3004
    %v3657 = vunpack.i.l.s16 %v3006
    %v3658 = vunpack.i.h.s16 %v3006
    %v3659 = vunpack.i.l.s16 %v3030
    %v3660 = vunpack.i.h.s16 %v3030
    %v3661 = vunpack.i.l.s16 %v3044
    %v3662 = vunpack.i.h.s16 %v3044
    %v3663 = vunpack.i.l.s16 %v3052
    %v3664 = vunpack.i.h.s16 %v3052
    %v3665 = vunpack.i.l.s16 %v3054
    %v3666 = vunpack.i.h.s16 %v3054
    %v3667 = vunpack.i.l.s16 %v3037
    %v3668 = vunpack.i.h.s16 %v3037
    %v3669 = vunpack.i.l.s16 %v3051
    %v3670 = vunpack.i.h.s16 %v3051
    %v3671 = vunpack.i.l.s16 %v3053
    %v3672 = vunpack.i.h.s16 %v3053
    %v3673 = vunpack.i.l.s16 %v3055
    %v3674 = vunpack.i.h.s16 %v3055
    %v3675 = vunpack.i.l.s16 %v3079
    %v3676 = vunpack.i.h.s16 %v3079
    %v3677 = vunpack.i.l.s16 %v3093
    %v3678 = vunpack.i.h.s16 %v3093
    %v3679 = vunpack.i.l.s16 %v3101
    %v3680 = vunpack.i.h.s16 %v3101
    %v3681 = vunpack.i.l.s16 %v3103
    %v3682 = vunpack.i.h.s16 %v3103
    %v3683 = vunpack.i.l.s16 %v3086
    %v3684 = vunpack.i.h.s16 %v3086
    %v3685 = vunpack.i.l.s16 %v3100
    %v3686 = vunpack.i.h.s16 %v3100
    %v3687 = vunpack.i.l.s16 %v3102
    %v3688 = vunpack.i.h.s16 %v3102
    %v3689 = vunpack.i.l.s16 %v3104
    %v3690 = vunpack.i.h.s16 %v3104
    %v3691 = vunpack.i.l.s16 %v3128
    %v3692 = vunpack.i.h.s16 %v3128
    %v3693 = vunpack.i.l.s16 %v3142
    %v3694 = vunpack.i.h.s16 %v3142
    %v3695 = vunpack.i.l.s16 %v3150
    %v3696 = vunpack.i.h.s16 %v3150
    %v3697 = vunpack.i.l.s16 %v3152
    %v3698 = vunpack.i.h.s16 %v3152
    %v3699 = vunpack.i.l.s16 %v3135
    %v3700 = vunpack.i.h.s16 %v3135
    %v3701 = vunpack.i.l.s16 %v3149
    %v3702 = vunpack.i.h.s16 %v3149
    %v3703 = vunpack.i.l.s16 %v3151
    %v3704 = vunpack.i.h.s16 %v3151
    %v3705 = vunpack.i.l.s16 %v3153
    %v3706 = vunpack.i.h.s16 %v3153
    %v3707 = vunpack.i.l.s16 %v3177
    %v3708 = vunpack.i.h.s16 %v3177
    %v3709 = vunpack.i.l.s16 %v3191
    %v3710 = vunpack.i.h.s16 %v3191
    %v3711 = vunpack.i.l.s16 %v3199
    %v3712 = vunpack.i.h.s16 %v3199
    %v3713 = vunpack.i.l.s16 %v3201
    %v3714 = vunpack.i.h.s16 %v3201
    %v3715 = vunpack.i.l.s16 %v3184
    %v3716 = vunpack.i.h.s16 %v3184
    %v3717 = vunpack.i.l.s16 %v3198
    %v3718 = vunpack.i.h.s16 %v3198
    %v3719 = vunpack.i.l.s16 %v3200
    %v3720 = vunpack.i.h.s16 %v3200
    %v3721 = vunpack.i.l.s16 %v3202
    %v3722 = vunpack.i.h.s16 %v3202
    %v3723 = vunpack.i.l.s16 %v3226
    %v3724 = vunpack.i.h.s16 %v3226
    %v3725 = vunpack.i.l.s16 %v3240
    %v3726 = vunpack.i.h.s16 %v3240
    %v3727 = vunpack.i.l.s16 %v3248
    %v3728 = vunpack.i.h.s16 %v3248
    %v3729 = vunpack.i.l.s16 %v3250
    %v3730 = vunpack.i.h.s16 %v3250
    %v3731 = vunpack.i.l.s16 %v3233
    %v3732 = vunpack.i.h.s16 %v3233
    %v3733 = vunpack.i.l.s16 %v3247
    %v3734 = vunpack.i.h.s16 %v3247
    %v3735 = vunpack.i.l.s16 %v3249
    %v3736 = vunpack.i.h.s16 %v3249
    %v3737 = vunpack.i.l.s16 %v3251
    %v3738 = vunpack.i.h.s16 %v3251
    %v3739 = vunpack.i.l.s16 %v3275
    %v3740 = vunpack.i.h.s16 %v3275
    %v3741 = vunpack.i.l.s16 %v3289
    %v3742 = vunpack.i.h.s16 %v3289
    %v3743 = vunpack.i.l.s16 %v3297
    %v3744 = vunpack.i.h.s16 %v3297
    %v3745 = vunpack.i.l.s16 %v3299
    %v3746 = vunpack.i.h.s16 %v3299
    %v3747 = vunpack.i.l.s16 %v3282
    %v3748 = vunpack.i.h.s16 %v3282
    %v3749 = vunpack.i.l.s16 %v3296
    %v3750 = vunpack.i.h.s16 %v3296
    %v3751 = vunpack.i.l.s16 %v3298
    %v3752 = vunpack.i.h.s16 %v3298
    %v3753 = vunpack.i.l.s16 %v3300
    %v3754 = vunpack.i.h.s16 %v3300
    %v3755 = vunpack.i.l.s16 %v3324
    %v3756 = vunpack.i.h.s16 %v3324
    %v3757 = vunpack.i.l.s16 %v3338
    %v3758 = vunpack.i.h.s16 %v3338
    %v3759 = vunpack.i.l.s16 %v3346
    %v3760 = vunpack.i.h.s16 %v3346
    %v3761 = vunpack.i.l.s16 %v3348
    %v3762 = vunpack.i.h.s16 %v3348
    %v3763 = vunpack.i.l.s16 %v3331
    %v3764 = vunpack.i.h.s16 %v3331
    %v3765 = vunpack.i.l.s16 %v3345
    %v3766 = vunpack.i.h.s16 %v3345
    %v3767 = vunpack.i.l.s16 %v3347
    %v3768 = vunpack.i.h.s16 %v3347
    %v3769 = vunpack.i.l.s16 %v3349
    %v3770 = vunpack.i.h.s16 %v3349
    %v3771 = vunpack.i.l.s16 %v3373
    %v3772 = vunpack.i.h.s16 %v3373
    %v3773 = vunpack.i.l.s16 %v3387
    %v3774 = vunpack.i.h.s16 %v3387
    %v3775 = vunpack.i.l.s16 %v3395
    %v3776 = vunpack.i.h.s16 %v3395
    %v3777 = vunpack.i.l.s16 %v3397
    %v3778 = vunpack.i.h.s16 %v3397
    %v3779 = vunpack.i.l.s16 %v3380
    %v3780 = vunpack.i.h.s16 %v3380
    %v3781 = vunpack.i.l.s16 %v3394
    %v3782 = vunpack.i.h.s16 %v3394
    %v3783 = vunpack.i.l.s16 %v3396
    %v3784 = vunpack.i.h.s16 %v3396
    %v3785 = vunpack.i.l.s16 %v3398
    %v3786 = vunpack.i.h.s16 %v3398
    %v3787 = vunpack.i.l.s16 %v3422
    %v3788 = vunpack.i.h.s16 %v3422
    %v3789 = vunpack.i.l.s16 %v3436
    %v3790 = vunpack.i.h.s16 %v3436
    %v3791 = vunpack.i.l.s16 %v3444
    %v3792 = vunpack.i.h.s16 %v3444
    %v3793 = vunpack.i.l.s16 %v3446
    %v3794 = vunpack.i.h.s16 %v3446
    %v3795 = vunpack.i.l.s16 %v3429
    %v3796 = vunpack.i.h.s16 %v3429
    %v3797 = vunpack.i.l.s16 %v3443
    %v3798 = vunpack.i.h.s16 %v3443
    %v3799 = vunpack.i.l.s16 %v3445
    %v3800 = vunpack.i.h.s16 %v3445
    %v3801 = vunpack.i.l.s16 %v3447
    %v3802 = vunpack.i.h.s16 %v3447
    %v3803 = vunpack.i.l.s16 %v3471
    %v3804 = vunpack.i.h.s16 %v3471
    %v3805 = vunpack.i.l.s16 %v3485
    %v3806 = vunpack.i.h.s16 %v3485
    %v3807 = vunpack.i.l.s16 %v3493
    %v3808 = vunpack.i.h.s16 %v3493
    %v3809 = vunpack.i.l.s16 %v3495
    %v3810 = vunpack.i.h.s16 %v3495
    %v3811 = vunpack.i.l.s16 %v3478
    %v3812 = vunpack.i.h.s16 %v3478
    %v3813 = vunpack.i.l.s16 %v3492
    %v3814 = vunpack.i.h.s16 %v3492
    %v3815 = vunpack.i.l.s16 %v3494
    %v3816 = vunpack.i.h.s16 %v3494
    %v3817 = vunpack.i.l.s16 %v3496
    %v3818 = vunpack.i.h.s16 %v3496
    %v3819 = vunpack.i.l.s16 %v3520
    %v3820 = vunpack.i.h.s16 %v3520
    %v3821 = vunpack.i.l.s16 %v3534
    %v3822 = vunpack.i.h.s16 %v3534
    %v3823 = vunpack.i.l.s16 %v3542
    %v3824 = vunpack.i.h.s16 %v3542
    %v3825 = vunpack.i.l.s16 %v3544
    %v3826 = vunpack.i.h.s16 %v3544
    %v3827 = vunpack.i.l.s16 %v3527
    %v3828 = vunpack.i.h.s16 %v3527
    %v3829 = vunpack.i.l.s16 %v3541
    %v3830 = vunpack.i.h.s16 %v3541
    %v3831 = vunpack.i.l.s16 %v3543
    %v3832 = vunpack.i.h.s16 %v3543
    %v3833 = vunpack.i.l.s16 %v3545
    %v3834 = vunpack.i.h.s16 %v3545
    %v3835 = vunpack.i.l.s16 %v3569
    %v3836 = vunpack.i.h.s16 %v3569
    %v3837 = vunpack.i.l.s16 %v3583
    %v3838 = vunpack.i.h.s16 %v3583
    %v3839 = vunpack.i.l.s16 %v3591
    %v3840 = vunpack.i.h.s16 %v3591
    %v3841 = vunpack.i.l.s16 %v3593
    %v3842 = vunpack.i.h.s16 %v3593
    %v3843 = vunpack.i.l.s16 %v3576
    %v3844 = vunpack.i.h.s16 %v3576
    %v3845 = vunpack.i.l.s16 %v3590
    %v3846 = vunpack.i.h.s16 %v3590
    %v3847 = vunpack.i.l.s16 %v3592
    %v3848 = vunpack.i.h.s16 %v3592
    %v3849 = vunpack.i.l.s16 %v3594
    %v3850 = vunpack.i.h.s16 %v3594
    %v3851 = vpack.i.b16 %v3595, %v3595
    %v3852 = vpack.i.b16 %v3596, %v3596
    %v3853 = vpack.i.b16 %v3597, %v3597
    %v3854 = vpack.i.b16 %v3598, %v3598
    %v3855 = vpack.i.b16 %v3599, %v3599
    %v3856 = vpack.i.b16 %v3600, %v3600
    %v3857 = vpack.i.b16 %v3601, %v3601
    %v3858 = vpack.i.b16 %v3602, %v3602
    %v3859 = vpack.i.b16 %v3603, %v3603
    %v3860 = vpack.i.b16 %v3604, %v3604
    %v3861 = vpack.i.b16 %v3605, %v3605
    %v3862 = vpack.i.b16 %v3606, %v3606
    %v3863 = vpack.i.b16 %v3607, %v3607
    %v3864 = vpack.i.b16 %v3608, %v3608
    %v3865 = vpack.i.b16 %v3609, %v3609
    %v3866 = vpack.i.b16 %v3610, %v3610
    %v3867 = vpack.i.b16 %v3611, %v3611
    %v3868 = vpack.i.b16 %v3612, %v3612
    %v3869 = vpack.i.b16 %v3613, %v3613
    %v3870 = vpack.i.b16 %v3614, %v3614
    %v3871 = vpack.i.b16 %v3615, %v3615
    %v3872 = vpack.i.b16 %v3616, %v3616
    %v3873 = vpack.i.b16 %v3617, %v3617
    %v3874 = vpack.i.b16 %v3618, %v3618
    %v3875 = vpack.i.b16 %v3619, %v3619
    %v3876 = vpack.i.b16 %v3620, %v3620
    %v3877 = vpack.i.b16 %v3621, %v3621
    %v3878 = vpack.i.b16 %v3622, %v3622
    %v3879 = vpack.i.b16 %v3623, %v3623
    %v3880 = vpack.i.b16 %v3624, %v3624
    %v3881 = vpack.i.b16 %v3625, %v3625
    %v3882 = vpack.i.b16 %v3626, %v3626
    %v3883 = vpack.i.b16 %v3627, %v3627
    %v3884 = vpack.i.b16 %v3628, %v3628
    %v3885 = vpack.i.b16 %v3629, %v3629
    %v3886 = vpack.i.b16 %v3630, %v3630
    %v3887 = vpack.i.b16 %v3631, %v3631
    %v3888 = vpack.i.b16 %v3632, %v3632
    %v3889 = vpack.i.b16 %v3633, %v3633
    %v3890 = vpack.i.b16 %v3634, %v3634
    %v3891 = vpack.i.b16 %v3635, %v3635
    %v3892 = vpack.i.b16 %v3636, %v3636
    %v3893 = vpack.i.b16 %v3637, %v3637
    %v3894 = vpack.i.b16 %v3638, %v3638
    %v3895 = vpack.i.b16 %v3639, %v3639
    %v3896 = vpack.i.b16 %v3640, %v3640
    %v3897 = vpack.i.b16 %v3641, %v3641
    %v3898 = vpack.i.b16 %v3642, %v3642
    %v3899 = vpack.i.b16 %v3643, %v3643
    %v3900 = vpack.i.b16 %v3644, %v3644
    %v3901 = vpack.i.b16 %v3645, %v3645
    %v3902 = vpack.i.b16 %v3646, %v3646
    %v3903 = vpack.i.b16 %v3647, %v3647
    %v3904 = vpack.i.b16 %v3648, %v3648
    %v3905 = vpack.i.b16 %v3649, %v3649
    %v3906 = vpack.i.b16 %v3650, %v3650
    %v3907 = vpack.i.b16 %v3651, %v3651
    %v3908 = vpack.i.b16 %v3652, %v3652
    %v3909 = vpack.i.b16 %v3653, %v3653
    %v3910 = vpack.i.b16 %v3654, %v3654
    %v3911 = vpack.i.b16 %v3655, %v3655
    %v3912 = vpack.i.b16 %v3656, %v3656
    %v3913 = vpack.i.b16 %v3657, %v3657
    %v3914 = vpack.i.b16 %v3658, %v3658
    %v3915 = vpack.i.b16 %v3659, %v3659
    %v3916 = vpack.i.b16 %v3660, %v3660
    %v3917 = vpack.i.b16 %v3661, %v3661
    %v3918 = vpack.i.b16 %v3662, %v3662
    %v3919 = vpack.i.b16 %v3663, %v3663
    %v3920 = vpack.i.b16 %v3664, %v3664
    %v3921 = vpack.i.b16 %v3665, %v3665
    %v3922 = vpack.i.b16 %v3666, %v3666
    %v3923 = vpack.i.b16 %v3667, %v3667
    %v3924 = vpack.i.b16 %v3668, %v3668
    %v3925 = vpack.i.b16 %v3669, %v3669
    %v3926 = vpack.i.b16 %v3670, %v3670
    %v3927 = vpack.i.b16 %v3671, %v3671
    %v3928 = vpack.i.b16 %v3672, %v3672
    %v3929 = vpack.i.b16 %v3673, %v3673
    %v3930 = vpack.i.b16 %v3674, %v3674
    %v3931 = vpack.i.b16 %v3675, %v3675
    %v3932 = vpack.i.b16 %v3676, %v3676
    %v3933 = vpack.i.b16 %v3677, %v3677
    %v3934 = vpack.i.b16 %v3678, %v3678
    %v3935 = vpack.i.b16 %v3679, %v3679
    %v3936 = vpack.i.b16 %v3680, %v3680
    %v3937 = vpack.i.b16 %v3681, %v3681
    %v3938 = vpack.i.b16 %v3682, %v3682
    %v3939 = vpack.i.b16 %v3683, %v3683
    %v3940 = vpack.i.b16 %v3684, %v3684
    %v3941 = vpack.i.b16 %v3685, %v3685
    %v3942 = vpack.i.b16 %v3686, %v3686
    %v3943 = vpack.i.b16 %v3687, %v3687
    %v3944 = vpack.i.b16 %v3688, %v3688
    %v3945 = vpack.i.b16 %v3689, %v3689
    %v3946 = vpack.i.b16 %v3690, %v3690
    %v3947 = vpack.i.b16 %v3691, %v3691
    %v3948 = vpack.i.b16 %v3692, %v3692
    %v3949 = vpack.i.b16 %v3693, %v3693
    %v3950 = vpack.i.b16 %v3694, %v3694
    %v3951 = vpack.i.b16 %v3695, %v3695
    %v3952 = vpack.i.b16 %v3696, %v3696
    %v3953 = vpack.i.b16 %v3697, %v3697
    %v3954 = vpack.i.b16 %v3698, %v3698
    %v3955 = vpack.i.b16 %v3699, %v3699
    %v3956 = vpack.i.b16 %v3700, %v3700
    %v3957 = vpack.i.b16 %v3701, %v3701
    %v3958 = vpack.i.b16 %v3702, %v3702
    %v3959 = vpack.i.b16 %v3703, %v3703
    %v3960 = vpack.i.b16 %v3704, %v3704
    %v3961 = vpack.i.b16 %v3705, %v3705
    %v3962 = vpack.i.b16 %v3706, %v3706
    %v3963 = vpack.i.b16 %v3707, %v3707
    %v3964 = vpack.i.b16 %v3708, %v3708
    %v3965 = vpack.i.b16 %v3709, %v3709
    %v3966 = vpack.i.b16 %v3710, %v3710
    %v3967 = vpack.i.b16 %v3711, %v3711
    %v3968 = vpack.i.b16 %v3712, %v3712
    %v3969 = vpack.i.b16 %v3713, %v3713
    %v3970 = vpack.i.b16 %v3714, %v3714
    %v3971 = vpack.i.b16 %v3715, %v3715
    %v3972 = vpack.i.b16 %v3716, %v3716
    %v3973 = vpack.i.b16 %v3717, %v3717
    %v3974 = vpack.i.b16 %v3718, %v3718
    %v3975 = vpack.i.b16 %v3719, %v3719
    %v3976 = vpack.i.b16 %v3720, %v3720
    %v3977 = vpack.i.b16 %v3721, %v3721
    %v3978 = vpack.i.b16 %v3722, %v3722
    %v3979 = vpack.i.b16 %v3723, %v3723
    %v3980 = vpack.i.b16 %v3724, %v3724
    %v3981 = vpack.i.b16 %v3725, %v3725
    %v3982 = vpack.i.b16 %v3726, %v3726
    %v3983 = vpack.i.b16 %v3727, %v3727
    %v3984 = vpack.i.b16 %v3728, %v3728
    %v3985 = vpack.i.b16 %v3729, %v3729
    %v3986 = vpack.i.b16 %v3730, %v3730
    %v3987 = vpack.i.b16 %v3731, %v3731
    %v3988 = vpack.i.b16 %v3732, %v3732
    %v3989 = vpack.i.b16 %v3733, %v3733
    %v3990 = vpack.i.b16 %v3734, %v3734
    %v3991 = vpack.i.b16 %v3735, %v3735
    %v3992 = vpack.i.b16 %v3736, %v3736
    %v3993 = vpack.i.b16 %v3737, %v3737
    %v3994 = vpack.i.b16 %v3738, %v3738
    %v3995 = vpack.i.b16 %v3739, %v3739
    %v3996 = vpack.i.b16 %v3740, %v3740
    %v3997 = vpack.i.b16 %v3741, %v3741
    %v3998 = vpack.i.b16 %v3742, %v3742
    %v3999 = vpack.i.b16 %v3743, %v3743
    %v4000 = vpack.i.b16 %v3744, %v3744
    %v4001 = vpack.i.b16 %v3745, %v3745
    %v4002 = vpack.i.b16 %v3746, %v3746
    %v4003 = vpack.i.b16 %v3747, %v3747
    %v4004 = vpack.i.b16 %v3748, %v3748
    %v4005 = vpack.i.b16 %v3749, %v3749
    %v4006 = vpack.i.b16 %v3750, %v3750
    %v4007 = vpack.i.b16 %v3751, %v3751
    %v4008 = vpack.i.b16 %v3752, %v3752
    %v4009 = vpack.i.b16 %v3753, %v3753
    %v4010 = vpack.i.b16 %v3754, %v3754
    %v4011 = vpack.i.b16 %v3755, %v3755
    %v4012 = vpack.i.b16 %v3756, %v3756
    %v4013 = vpack.i.b16 %v3757, %v3757
    %v4014 = vpack.i.b16 %v3758, %v3758
    %v4015 = vpack.i.b16 %v3759, %v3759
    %v4016 = vpack.i.b16 %v3760, %v3760
    %v4017 = vpack.i.b16 %v3761, %v3761
    %v4018 = vpack.i.b16 %v3762, %v3762
    %v4019 = vpack.i.b16 %v3763, %v3763
    %v4020 = vpack.i.b16 %v3764, %v3764
    %v4021 = vpack.i.b16 %v3765, %v3765
    %v4022 = vpack.i.b16 %v3766, %v3766
    %v4023 = vpack.i.b16 %v3767, %v3767
    %v4024 = vpack.i.b16 %v3768, %v3768
    %v4025 = vpack.i.b16 %v3769, %v3769
    %v4026 = vpack.i.b16 %v3770, %v3770
    %v4027 = vpack.i.b16 %v3771, %v3771
    %v4028 = vpack.i.b16 %v3772, %v3772
    %v4029 = vpack.i.b16 %v3773, %v3773
    %v4030 = vpack.i.b16 %v3774, %v3774
    %v4031 = vpack.i.b16 %v3775, %v3775
    %v4032 = vpack.i.b16 %v3776, %v3776
    %v4033 = vpack.i.b16 %v3777, %v3777
    %v4034 = vpack.i.b16 %v3778, %v3778
    %v4035 = vpack.i.b16 %v3779, %v3779
    %v4036 = vpack.i.b16 %v3780, %v3780
    %v4037 = vpack.i.b16 %v3781, %v3781
    %v4038 = vpack.i.b16 %v3782, %v3782
    %v4039 = vpack.i.b16 %v3783, %v3783
    %v4040 = vpack.i.b16 %v3784, %v3784
    %v4041 = vpack.i.b16 %v3785, %v3785
    %v4042 = vpack.i.b16 %v3786, %v3786
    %v4043 = vpack.i.b16 %v3787, %v3787
    %v4044 = vpack.i.b16 %v3788, %v3788
    %v4045 = vpack.i.b16 %v3789, %v3789
    %v4046 = vpack.i.b16 %v3790, %v3790
    %v4047 = vpack.i.b16 %v3791, %v3791
    %v4048 = vpack.i.b16 %v3792, %v3792
    %v4049 = vpack.i.b16 %v3793, %v3793
    %v4050 = vpack.i.b16 %v3794, %v3794
    %v4051 = vpack.i.b16 %v3795, %v3795
    %v4052 = vpack.i.b16 %v3796, %v3796
    %v4053 = vpack.i.b16 %v3797, %v3797
    %v4054 = vpack.i.b16 %v3798, %v3798
    %v4055 = vpack.i.b16 %v3799, %v3799
    %v4056 = vpack.i.b16 %v3800, %v3800
    %v4057 = vpack.i.b16 %v3801, %v3801
    %v4058 = vpack.i.b16 %v3802, %v3802
    %v4059 = vpack.i.b16 %v3803, %v3803
    %v4060 = vpack.i.b16 %v3804, %v3804
    %v4061 = vpack.i.b16 %v3805, %v3805
    %v4062 = vpack.i.b16 %v3806, %v3806
    %v4063 = vpack.i.b16 %v3807, %v3807
    %v4064 = vpack.i.b16 %v3808, %v3808
    %v4065 = vpack.i.b16 %v3809, %v3809
    %v4066 = vpack.i.b16 %v3810, %v3810
    %v4067 = vpack.i.b16 %v3811, %v3811
    %v4068 = vpack.i.b16 %v3812, %v3812
    %v4069 = vpack.i.b16 %v3813, %v3813
    %v4070 = vpack.i.b16 %v3814, %v3814
    %v4071 = vpack.i.b16 %v3815, %v3815
    %v4072 = vpack.i.b16 %v3816, %v3816
    %v4073 = vpack.i.b16 %v3817, %v3817
    %v4074 = vpack.i.b16 %v3818, %v3818
    %v4075 = vpack.i.b16 %v3819, %v3819
    %v4076 = vpack.i.b16 %v3820, %v3820
    %v4077 = vpack.i.b16 %v3821, %v3821
    %v4078 = vpack.i.b16 %v3822, %v3822
    %v4079 = vpack.i.b16 %v3823, %v3823
    %v4080 = vpack.i.b16 %v3824, %v3824
    %v4081 = vpack.i.b16 %v3825, %v3825
    %v4082 = vpack.i.b16 %v3826, %v3826
    %v4083 = vpack.i.b16 %v3827, %v3827
    %v4084 = vpack.i.b16 %v3828, %v3828
    %v4085 = vpack.i.b16 %v3829, %v3829
    %v4086 = vpack.i.b16 %v3830, %v3830
    %v4087 = vpack.i.b16 %v3831, %v3831
    %v4088 = vpack.i.b16 %v3832, %v3832
    %v4089 = vpack.i.b16 %v3833, %v3833
    %v4090 = vpack.i.b16 %v3834, %v3834
    %v4091 = vpack.i.b16 %v3835, %v3835
    %v4092 = vpack.i.b16 %v3836, %v3836
    %v4093 = vpack.i.b16 %v3837, %v3837
    %v4094 = vpack.i.b16 %v3838, %v3838
    %v4095 = vpack.i.b16 %v3839, %v3839
    %v4096 = vpack.i.b16 %v3840, %v3840
    %v4097 = vpack.i.b16 %v3841, %v3841
    %v4098 = vpack.i.b16 %v3842, %v3842
    %v4099 = vpack.i.b16 %v3843, %v3843
    %v4100 = vpack.i.b16 %v3844, %v3844
    %v4101 = vpack.i.b16 %v3845, %v3845
    %v4102 = vpack.i.b16 %v3846, %v3846
    %v4103 = vpack.i.b16 %v3847, %v3847
    %v4104 = vpack.i.b16 %v3848, %v3848
    %v4105 = vpack.i.b16 %v3849, %v3849
    %v4106 = vpack.i.b16 %v3850, %v3850
    %v4107 = vlaneseq
    %v4108 = vshrl.u32 %v4107, 7
    %v4109 = vsub.s32 0, %v4108
    %v4110 = vrot.slane %v3851, %v4109
    %v4111 = vlaneseq
    %v4112 = vshrl.u32 %v4111, 7
    %v4113 = vsub.s32 0, %v4112
    %v4114 = vrot.slane %v3852, %v4113
    %v4115 = vlaneseq
    %v4116 = vshrl.u32 %v4115, 7
    %v4117 = vsub.s32 0, %v4116
    %v4118 = vrot.slane %v3853, %v4117
    %v4119 = vlaneseq
    %v4120 = vshrl.u32 %v4119, 7
    %v4121 = vsub.s32 0, %v4120
    %v4122 = vrot.slane %v3854, %v4121
    %v4123 = vlaneseq
    %v4124 = vshrl.u32 %v4123, 7
    %v4125 = vsub.s32 0, %v4124
    %v4126 = vrot.slane %v3855, %v4125
    %v4127 = vlaneseq
    %v4128 = vshrl.u32 %v4127, 7
    %v4129 = vsub.s32 0, %v4128
    %v4130 = vrot.slane %v3856, %v4129
    %v4131 = vlaneseq
    %v4132 = vshrl.u32 %v4131, 7
    %v4133 = vsub.s32 0, %v4132
    %v4134 = vrot.slane %v3857, %v4133
    %v4135 = vlaneseq
    %v4136 = vshrl.u32 %v4135, 7
    %v4137 = vsub.s32 0, %v4136
    %v4138 = vrot.slane %v3858, %v4137
    %v4139 = vlaneseq
    %v4140 = vshrl.u32 %v4139, 7
    %v4141 = vsub.s32 0, %v4140
    %v4142 = vrot.slane %v3859, %v4141
    %v4143 = vlaneseq
    %v4144 = vshrl.u32 %v4143, 7
    %v4145 = vsub.s32 0, %v4144
    %v4146 = vrot.slane %v3860, %v4145
    %v4147 = vlaneseq
    %v4148 = vshrl.u32 %v4147, 7
    %v4149 = vsub.s32 0, %v4148
    %v4150 = vrot.slane %v3861, %v4149
    %v4151 = vlaneseq
    %v4152 = vshrl.u32 %v4151, 7
    %v4153 = vsub.s32 0, %v4152
    %v4154 = vrot.slane %v3862, %v4153
    %v4155 = vlaneseq
    %v4156 = vshrl.u32 %v4155, 7
    %v4157 = vsub.s32 0, %v4156
    %v4158 = vrot.slane %v3863, %v4157
    %v4159 = vlaneseq
    %v4160 = vshrl.u32 %v4159, 7
    %v4161 = vsub.s32 0, %v4160
    %v4162 = vrot.slane %v3864, %v4161
    %v4163 = vlaneseq
    %v4164 = vshrl.u32 %v4163, 7
    %v4165 = vsub.s32 0, %v4164
    %v4166 = vrot.slane %v3865, %v4165
    %v4167 = vlaneseq
    %v4168 = vshrl.u32 %v4167, 7
    %v4169 = vsub.s32 0, %v4168
    %v4170 = vrot.slane %v3866, %v4169
    %v4171 = vlaneseq
    %v4172 = vshrl.u32 %v4171, 7
    %v4173 = vsub.s32 0, %v4172
    %v4174 = vrot.slane %v3867, %v4173
    %v4175 = vlaneseq
    %v4176 = vshrl.u32 %v4175, 7
    %v4177 = vsub.s32 0, %v4176
    %v4178 = vrot.slane %v3868, %v4177
    %v4179 = vlaneseq
    %v4180 = vshrl.u32 %v4179, 7
    %v4181 = vsub.s32 0, %v4180
    %v4182 = vrot.slane %v3869, %v4181
    %v4183 = vlaneseq
    %v4184 = vshrl.u32 %v4183, 7
    %v4185 = vsub.s32 0, %v4184
    %v4186 = vrot.slane %v3870, %v4185
    %v4187 = vlaneseq
    %v4188 = vshrl.u32 %v4187, 7
    %v4189 = vsub.s32 0, %v4188
    %v4190 = vrot.slane %v3871, %v4189
    %v4191 = vlaneseq
    %v4192 = vshrl.u32 %v4191, 7
    %v4193 = vsub.s32 0, %v4192
    %v4194 = vrot.slane %v3872, %v4193
    %v4195 = vlaneseq
    %v4196 = vshrl.u32 %v4195, 7
    %v4197 = vsub.s32 0, %v4196
    %v4198 = vrot.slane %v3873, %v4197
    %v4199 = vlaneseq
    %v4200 = vshrl.u32 %v4199, 7
    %v4201 = vsub.s32 0, %v4200
    %v4202 = vrot.slane %v3874, %v4201
    %v4203 = vlaneseq
    %v4204 = vshrl.u32 %v4203, 7
    %v4205 = vsub.s32 0, %v4204
    %v4206 = vrot.slane %v3875, %v4205
    %v4207 = vlaneseq
    %v4208 = vshrl.u32 %v4207, 7
    %v4209 = vsub.s32 0, %v4208
    %v4210 = vrot.slane %v3876, %v4209
    %v4211 = vlaneseq
    %v4212 = vshrl.u32 %v4211, 7
    %v4213 = vsub.s32 0, %v4212
    %v4214 = vrot.slane %v3877, %v4213
    %v4215 = vlaneseq
    %v4216 = vshrl.u32 %v4215, 7
    %v4217 = vsub.s32 0, %v4216
    %v4218 = vrot.slane %v3878, %v4217
    %v4219 = vlaneseq
    %v4220 = vshrl.u32 %v4219, 7
    %v4221 = vsub.s32 0, %v4220
    %v4222 = vrot.slane %v3879, %v4221
    %v4223 = vlaneseq
    %v4224 = vshrl.u32 %v4223, 7
    %v4225 = vsub.s32 0, %v4224
    %v4226 = vrot.slane %v3880, %v4225
    %v4227 = vlaneseq
    %v4228 = vshrl.u32 %v4227, 7
    %v4229 = vsub.s32 0, %v4228
    %v4230 = vrot.slane %v3881, %v4229
    %v4231 = vlaneseq
    %v4232 = vshrl.u32 %v4231, 7
    %v4233 = vsub.s32 0, %v4232
    %v4234 = vrot.slane %v3882, %v4233
    %v4235 = vlaneseq
    %v4236 = vshrl.u32 %v4235, 7
    %v4237 = vsub.s32 0, %v4236
    %v4238 = vrot.slane %v3883, %v4237
    %v4239 = vlaneseq
    %v4240 = vshrl.u32 %v4239, 7
    %v4241 = vsub.s32 0, %v4240
    %v4242 = vrot.slane %v3884, %v4241
    %v4243 = vlaneseq
    %v4244 = vshrl.u32 %v4243, 7
    %v4245 = vsub.s32 0, %v4244
    %v4246 = vrot.slane %v3885, %v4245
    %v4247 = vlaneseq
    %v4248 = vshrl.u32 %v4247, 7
    %v4249 = vsub.s32 0, %v4248
    %v4250 = vrot.slane %v3886, %v4249
    %v4251 = vlaneseq
    %v4252 = vshrl.u32 %v4251, 7
    %v4253 = vsub.s32 0, %v4252
    %v4254 = vrot.slane %v3887, %v4253
    %v4255 = vlaneseq
    %v4256 = vshrl.u32 %v4255, 7
    %v4257 = vsub.s32 0, %v4256
    %v4258 = vrot.slane %v3888, %v4257
    %v4259 = vlaneseq
    %v4260 = vshrl.u32 %v4259, 7
    %v4261 = vsub.s32 0, %v4260
    %v4262 = vrot.slane %v3889, %v4261
    %v4263 = vlaneseq
    %v4264 = vshrl.u32 %v4263, 7
    %v4265 = vsub.s32 0, %v4264
    %v4266 = vrot.slane %v3890, %v4265
    %v4267 = vlaneseq
    %v4268 = vshrl.u32 %v4267, 7
    %v4269 = vsub.s32 0, %v4268
    %v4270 = vrot.slane %v3891, %v4269
    %v4271 = vlaneseq
    %v4272 = vshrl.u32 %v4271, 7
    %v4273 = vsub.s32 0, %v4272
    %v4274 = vrot.slane %v3892, %v4273
    %v4275 = vlaneseq
    %v4276 = vshrl.u32 %v4275, 7
    %v4277 = vsub.s32 0, %v4276
    %v4278 = vrot.slane %v3893, %v4277
    %v4279 = vlaneseq
    %v4280 = vshrl.u32 %v4279, 7
    %v4281 = vsub.s32 0, %v4280
    %v4282 = vrot.slane %v3894, %v4281
    %v4283 = vlaneseq
    %v4284 = vshrl.u32 %v4283, 7
    %v4285 = vsub.s32 0, %v4284
    %v4286 = vrot.slane %v3895, %v4285
    %v4287 = vlaneseq
    %v4288 = vshrl.u32 %v4287, 7
    %v4289 = vsub.s32 0, %v4288
    %v4290 = vrot.slane %v3896, %v4289
    %v4291 = vlaneseq
    %v4292 = vshrl.u32 %v4291, 7
    %v4293 = vsub.s32 0, %v4292
    %v4294 = vrot.slane %v3897, %v4293
    %v4295 = vlaneseq
    %v4296 = vshrl.u32 %v4295, 7
    %v4297 = vsub.s32 0, %v4296
    %v4298 = vrot.slane %v3898, %v4297
    %v4299 = vlaneseq
    %v4300 = vshrl.u32 %v4299, 7
    %v4301 = vsub.s32 0, %v4300
    %v4302 = vrot.slane %v3899, %v4301
    %v4303 = vlaneseq
    %v4304 = vshrl.u32 %v4303, 7
    %v4305 = vsub.s32 0, %v4304
    %v4306 = vrot.slane %v3900, %v4305
    %v4307 = vlaneseq
    %v4308 = vshrl.u32 %v4307, 7
    %v4309 = vsub.s32 0, %v4308
    %v4310 = vrot.slane %v3901, %v4309
    %v4311 = vlaneseq
    %v4312 = vshrl.u32 %v4311, 7
    %v4313 = vsub.s32 0, %v4312
    %v4314 = vrot.slane %v3902, %v4313
    %v4315 = vlaneseq
    %v4316 = vshrl.u32 %v4315, 7
    %v4317 = vsub.s32 0, %v4316
    %v4318 = vrot.slane %v3903, %v4317
    %v4319 = vlaneseq
    %v4320 = vshrl.u32 %v4319, 7
    %v4321 = vsub.s32 0, %v4320
    %v4322 = vrot.slane %v3904, %v4321
    %v4323 = vlaneseq
    %v4324 = vshrl.u32 %v4323, 7
    %v4325 = vsub.s32 0, %v4324
    %v4326 = vrot.slane %v3905, %v4325
    %v4327 = vlaneseq
    %v4328 = vshrl.u32 %v4327, 7
    %v4329 = vsub.s32 0, %v4328
    %v4330 = vrot.slane %v3906, %v4329
    %v4331 = vlaneseq
    %v4332 = vshrl.u32 %v4331, 7
    %v4333 = vsub.s32 0, %v4332
    %v4334 = vrot.slane %v3907, %v4333
    %v4335 = vlaneseq
    %v4336 = vshrl.u32 %v4335, 7
    %v4337 = vsub.s32 0, %v4336
    %v4338 = vrot.slane %v3908, %v4337
    %v4339 = vlaneseq
    %v4340 = vshrl.u32 %v4339, 7
    %v4341 = vsub.s32 0, %v4340
    %v4342 = vrot.slane %v3909, %v4341
    %v4343 = vlaneseq
    %v4344 = vshrl.u32 %v4343, 7
    %v4345 = vsub.s32 0, %v4344
    %v4346 = vrot.slane %v3910, %v4345
    %v4347 = vlaneseq
    %v4348 = vshrl.u32 %v4347, 7
    %v4349 = vsub.s32 0, %v4348
    %v4350 = vrot.slane %v3911, %v4349
    %v4351 = vlaneseq
    %v4352 = vshrl.u32 %v4351, 7
    %v4353 = vsub.s32 0, %v4352
    %v4354 = vrot.slane %v3912, %v4353
    %v4355 = vlaneseq
    %v4356 = vshrl.u32 %v4355, 7
    %v4357 = vsub.s32 0, %v4356
    %v4358 = vrot.slane %v3913, %v4357
    %v4359 = vlaneseq
    %v4360 = vshrl.u32 %v4359, 7
    %v4361 = vsub.s32 0, %v4360
    %v4362 = vrot.slane %v3914, %v4361
    %v4363 = vlaneseq
    %v4364 = vshrl.u32 %v4363, 7
    %v4365 = vsub.s32 0, %v4364
    %v4366 = vrot.slane %v3915, %v4365
    %v4367 = vlaneseq
    %v4368 = vshrl.u32 %v4367, 7
    %v4369 = vsub.s32 0, %v4368
    %v4370 = vrot.slane %v3916, %v4369
    %v4371 = vlaneseq
    %v4372 = vshrl.u32 %v4371, 7
    %v4373 = vsub.s32 0, %v4372
    %v4374 = vrot.slane %v3917, %v4373
    %v4375 = vlaneseq
    %v4376 = vshrl.u32 %v4375, 7
    %v4377 = vsub.s32 0, %v4376
    %v4378 = vrot.slane %v3918, %v4377
    %v4379 = vlaneseq
    %v4380 = vshrl.u32 %v4379, 7
    %v4381 = vsub.s32 0, %v4380
    %v4382 = vrot.slane %v3919, %v4381
    %v4383 = vlaneseq
    %v4384 = vshrl.u32 %v4383, 7
    %v4385 = vsub.s32 0, %v4384
    %v4386 = vrot.slane %v3920, %v4385
    %v4387 = vlaneseq
    %v4388 = vshrl.u32 %v4387, 7
    %v4389 = vsub.s32 0, %v4388
    %v4390 = vrot.slane %v3921, %v4389
    %v4391 = vlaneseq
    %v4392 = vshrl.u32 %v4391, 7
    %v4393 = vsub.s32 0, %v4392
    %v4394 = vrot.slane %v3922, %v4393
    %v4395 = vlaneseq
    %v4396 = vshrl.u32 %v4395, 7
    %v4397 = vsub.s32 0, %v4396
    %v4398 = vrot.slane %v3923, %v4397
    %v4399 = vlaneseq
    %v4400 = vshrl.u32 %v4399, 7
    %v4401 = vsub.s32 0, %v4400
    %v4402 = vrot.slane %v3924, %v4401
    %v4403 = vlaneseq
    %v4404 = vshrl.u32 %v4403, 7
    %v4405 = vsub.s32 0, %v4404
    %v4406 = vrot.slane %v3925, %v4405
    %v4407 = vlaneseq
    %v4408 = vshrl.u32 %v4407, 7
    %v4409 = vsub.s32 0, %v4408
    %v4410 = vrot.slane %v3926, %v4409
    %v4411 = vlaneseq
    %v4412 = vshrl.u32 %v4411, 7
    %v4413 = vsub.s32 0, %v4412
    %v4414 = vrot.slane %v3927, %v4413
    %v4415 = vlaneseq
    %v4416 = vshrl.u32 %v4415, 7
    %v4417 = vsub.s32 0, %v4416
    %v4418 = vrot.slane %v3928, %v4417
    %v4419 = vlaneseq
    %v4420 = vshrl.u32 %v4419, 7
    %v4421 = vsub.s32 0, %v4420
    %v4422 = vrot.slane %v3929, %v4421
    %v4423 = vlaneseq
    %v4424 = vshrl.u32 %v4423, 7
    %v4425 = vsub.s32 0, %v4424
    %v4426 = vrot.slane %v3930, %v4425
    %v4427 = vlaneseq
    %v4428 = vshrl.u32 %v4427, 7
    %v4429 = vsub.s32 0, %v4428
    %v4430 = vrot.slane %v3931, %v4429
    %v4431 = vlaneseq
    %v4432 = vshrl.u32 %v4431, 7
    %v4433 = vsub.s32 0, %v4432
    %v4434 = vrot.slane %v3932, %v4433
    %v4435 = vlaneseq
    %v4436 = vshrl.u32 %v4435, 7
    %v4437 = vsub.s32 0, %v4436
    %v4438 = vrot.slane %v3933, %v4437
    %v4439 = vlaneseq
    %v4440 = vshrl.u32 %v4439, 7
    %v4441 = vsub.s32 0, %v4440
    %v4442 = vrot.slane %v3934, %v4441
    %v4443 = vlaneseq
    %v4444 = vshrl.u32 %v4443, 7
    %v4445 = vsub.s32 0, %v4444
    %v4446 = vrot.slane %v3935, %v4445
    %v4447 = vlaneseq
    %v4448 = vshrl.u32 %v4447, 7
    %v4449 = vsub.s32 0, %v4448
    %v4450 = vrot.slane %v3936, %v4449
    %v4451 = vlaneseq
    %v4452 = vshrl.u32 %v4451, 7
    %v4453 = vsub.s32 0, %v4452
    %v4454 = vrot.slane %v3937, %v4453
    %v4455 = vlaneseq
    %v4456 = vshrl.u32 %v4455, 7
    %v4457 = vsub.s32 0, %v4456
    %v4458 = vrot.slane %v3938, %v4457
    %v4459 = vlaneseq
    %v4460 = vshrl.u32 %v4459, 7
    %v4461 = vsub.s32 0, %v4460
    %v4462 = vrot.slane %v3939, %v4461
    %v4463 = vlaneseq
    %v4464 = vshrl.u32 %v4463, 7
    %v4465 = vsub.s32 0, %v4464
    %v4466 = vrot.slane %v3940, %v4465
    %v4467 = vlaneseq
    %v4468 = vshrl.u32 %v4467, 7
    %v4469 = vsub.s32 0, %v4468
    %v4470 = vrot.slane %v3941, %v4469
    %v4471 = vlaneseq
    %v4472 = vshrl.u32 %v4471, 7
    %v4473 = vsub.s32 0, %v4472
    %v4474 = vrot.slane %v3942, %v4473
    %v4475 = vlaneseq
    %v4476 = vshrl.u32 %v4475, 7
    %v4477 = vsub.s32 0, %v4476
    %v4478 = vrot.slane %v3943, %v4477
    %v4479 = vlaneseq
    %v4480 = vshrl.u32 %v4479, 7
    %v4481 = vsub.s32 0, %v4480
    %v4482 = vrot.slane %v3944, %v4481
    %v4483 = vlaneseq
    %v4484 = vshrl.u32 %v4483, 7
    %v4485 = vsub.s32 0, %v4484
    %v4486 = vrot.slane %v3945, %v4485
    %v4487 = vlaneseq
    %v4488 = vshrl.u32 %v4487, 7
    %v4489 = vsub.s32 0, %v4488
    %v4490 = vrot.slane %v3946, %v4489
    %v4491 = vlaneseq
    %v4492 = vshrl.u32 %v4491, 7
    %v4493 = vsub.s32 0, %v4492
    %v4494 = vrot.slane %v3947, %v4493
    %v4495 = vlaneseq
    %v4496 = vshrl.u32 %v4495, 7
    %v4497 = vsub.s32 0, %v4496
    %v4498 = vrot.slane %v3948, %v4497
    %v4499 = vlaneseq
    %v4500 = vshrl.u32 %v4499, 7
    %v4501 = vsub.s32 0, %v4500
    %v4502 = vrot.slane %v3949, %v4501
    %v4503 = vlaneseq
    %v4504 = vshrl.u32 %v4503, 7
    %v4505 = vsub.s32 0, %v4504
    %v4506 = vrot.slane %v3950, %v4505
    %v4507 = vlaneseq
    %v4508 = vshrl.u32 %v4507, 7
    %v4509 = vsub.s32 0, %v4508
    %v4510 = vrot.slane %v3951, %v4509
    %v4511 = vlaneseq
    %v4512 = vshrl.u32 %v4511, 7
    %v4513 = vsub.s32 0, %v4512
    %v4514 = vrot.slane %v3952, %v4513
    %v4515 = vlaneseq
    %v4516 = vshrl.u32 %v4515, 7
    %v4517 = vsub.s32 0, %v4516
    %v4518 = vrot.slane %v3953, %v4517
    %v4519 = vlaneseq
    %v4520 = vshrl.u32 %v4519, 7
    %v4521 = vsub.s32 0, %v4520
    %v4522 = vrot.slane %v3954, %v4521
    %v4523 = vlaneseq
    %v4524 = vshrl.u32 %v4523, 7
    %v4525 = vsub.s32 0, %v4524
    %v4526 = vrot.slane %v3955, %v4525
    %v4527 = vlaneseq
    %v4528 = vshrl.u32 %v4527, 7
    %v4529 = vsub.s32 0, %v4528
    %v4530 = vrot.slane %v3956, %v4529
    %v4531 = vlaneseq
    %v4532 = vshrl.u32 %v4531, 7
    %v4533 = vsub.s32 0, %v4532
    %v4534 = vrot.slane %v3957, %v4533
    %v4535 = vlaneseq
    %v4536 = vshrl.u32 %v4535, 7
    %v4537 = vsub.s32 0, %v4536
    %v4538 = vrot.slane %v3958, %v4537
    %v4539 = vlaneseq
    %v4540 = vshrl.u32 %v4539, 7
    %v4541 = vsub.s32 0, %v4540
    %v4542 = vrot.slane %v3959, %v4541
    %v4543 = vlaneseq
    %v4544 = vshrl.u32 %v4543, 7
    %v4545 = vsub.s32 0, %v4544
    %v4546 = vrot.slane %v3960, %v4545
    %v4547 = vlaneseq
    %v4548 = vshrl.u32 %v4547, 7
    %v4549 = vsub.s32 0, %v4548
    %v4550 = vrot.slane %v3961, %v4549
    %v4551 = vlaneseq
    %v4552 = vshrl.u32 %v4551, 7
    %v4553 = vsub.s32 0, %v4552
    %v4554 = vrot.slane %v3962, %v4553
    %v4555 = vlaneseq
    %v4556 = vshrl.u32 %v4555, 7
    %v4557 = vsub.s32 0, %v4556
    %v4558 = vrot.slane %v3963, %v4557
    %v4559 = vlaneseq
    %v4560 = vshrl.u32 %v4559, 7
    %v4561 = vsub.s32 0, %v4560
    %v4562 = vrot.slane %v3964, %v4561
    %v4563 = vlaneseq
    %v4564 = vshrl.u32 %v4563, 7
    %v4565 = vsub.s32 0, %v4564
    %v4566 = vrot.slane %v3965, %v4565
    %v4567 = vlaneseq
    %v4568 = vshrl.u32 %v4567, 7
    %v4569 = vsub.s32 0, %v4568
    %v4570 = vrot.slane %v3966, %v4569
    %v4571 = vlaneseq
    %v4572 = vshrl.u32 %v4571, 7
    %v4573 = vsub.s32 0, %v4572
    %v4574 = vrot.slane %v3967, %v4573
    %v4575 = vlaneseq
    %v4576 = vshrl.u32 %v4575, 7
    %v4577 = vsub.s32 0, %v4576
    %v4578 = vrot.slane %v3968, %v4577
    %v4579 = vlaneseq
    %v4580 = vshrl.u32 %v4579, 7
    %v4581 = vsub.s32 0, %v4580
    %v4582 = vrot.slane %v3969, %v4581
    %v4583 = vlaneseq
    %v4584 = vshrl.u32 %v4583, 7
    %v4585 = vsub.s32 0, %v4584
    %v4586 = vrot.slane %v3970, %v4585
    %v4587 = vlaneseq
    %v4588 = vshrl.u32 %v4587, 7
    %v4589 = vsub.s32 0, %v4588
    %v4590 = vrot.slane %v3971, %v4589
    %v4591 = vlaneseq
    %v4592 = vshrl.u32 %v4591, 7
    %v4593 = vsub.s32 0, %v4592
    %v4594 = vrot.slane %v3972, %v4593
    %v4595 = vlaneseq
    %v4596 = vshrl.u32 %v4595, 7
    %v4597 = vsub.s32 0, %v4596
    %v4598 = vrot.slane %v3973, %v4597
    %v4599 = vlaneseq
    %v4600 = vshrl.u32 %v4599, 7
    %v4601 = vsub.s32 0, %v4600
    %v4602 = vrot.slane %v3974, %v4601
    %v4603 = vlaneseq
    %v4604 = vshrl.u32 %v4603, 7
    %v4605 = vsub.s32 0, %v4604
    %v4606 = vrot.slane %v3975, %v4605
    %v4607 = vlaneseq
    %v4608 = vshrl.u32 %v4607, 7
    %v4609 = vsub.s32 0, %v4608
    %v4610 = vrot.slane %v3976, %v4609
    %v4611 = vlaneseq
    %v4612 = vshrl.u32 %v4611, 7
    %v4613 = vsub.s32 0, %v4612
    %v4614 = vrot.slane %v3977, %v4613
    %v4615 = vlaneseq
    %v4616 = vshrl.u32 %v4615, 7
    %v4617 = vsub.s32 0, %v4616
    %v4618 = vrot.slane %v3978, %v4617
    %v4619 = vlaneseq
    %v4620 = vshrl.u32 %v4619, 7
    %v4621 = vsub.s32 0, %v4620
    %v4622 = vrot.slane %v3979, %v4621
    %v4623 = vlaneseq
    %v4624 = vshrl.u32 %v4623, 7
    %v4625 = vsub.s32 0, %v4624
    %v4626 = vrot.slane %v3980, %v4625
    %v4627 = vlaneseq
    %v4628 = vshrl.u32 %v4627, 7
    %v4629 = vsub.s32 0, %v4628
    %v4630 = vrot.slane %v3981, %v4629
    %v4631 = vlaneseq
    %v4632 = vshrl.u32 %v4631, 7
    %v4633 = vsub.s32 0, %v4632
    %v4634 = vrot.slane %v3982, %v4633
    %v4635 = vlaneseq
    %v4636 = vshrl.u32 %v4635, 7
    %v4637 = vsub.s32 0, %v4636
    %v4638 = vrot.slane %v3983, %v4637
    %v4639 = vlaneseq
    %v4640 = vshrl.u32 %v4639, 7
    %v4641 = vsub.s32 0, %v4640
    %v4642 = vrot.slane %v3984, %v4641
    %v4643 = vlaneseq
    %v4644 = vshrl.u32 %v4643, 7
    %v4645 = vsub.s32 0, %v4644
    %v4646 = vrot.slane %v3985, %v4645
    %v4647 = vlaneseq
    %v4648 = vshrl.u32 %v4647, 7
    %v4649 = vsub.s32 0, %v4648
    %v4650 = vrot.slane %v3986, %v4649
    %v4651 = vlaneseq
    %v4652 = vshrl.u32 %v4651, 7
    %v4653 = vsub.s32 0, %v4652
    %v4654 = vrot.slane %v3987, %v4653
    %v4655 = vlaneseq
    %v4656 = vshrl.u32 %v4655, 7
    %v4657 = vsub.s32 0, %v4656
    %v4658 = vrot.slane %v3988, %v4657
    %v4659 = vlaneseq
    %v4660 = vshrl.u32 %v4659, 7
    %v4661 = vsub.s32 0, %v4660
    %v4662 = vrot.slane %v3989, %v4661
    %v4663 = vlaneseq
    %v4664 = vshrl.u32 %v4663, 7
    %v4665 = vsub.s32 0, %v4664
    %v4666 = vrot.slane %v3990, %v4665
    %v4667 = vlaneseq
    %v4668 = vshrl.u32 %v4667, 7
    %v4669 = vsub.s32 0, %v4668
    %v4670 = vrot.slane %v3991, %v4669
    %v4671 = vlaneseq
    %v4672 = vshrl.u32 %v4671, 7
    %v4673 = vsub.s32 0, %v4672
    %v4674 = vrot.slane %v3992, %v4673
    %v4675 = vlaneseq
    %v4676 = vshrl.u32 %v4675, 7
    %v4677 = vsub.s32 0, %v4676
    %v4678 = vrot.slane %v3993, %v4677
    %v4679 = vlaneseq
    %v4680 = vshrl.u32 %v4679, 7
    %v4681 = vsub.s32 0, %v4680
    %v4682 = vrot.slane %v3994, %v4681
    %v4683 = vlaneseq
    %v4684 = vshrl.u32 %v4683, 7
    %v4685 = vsub.s32 0, %v4684
    %v4686 = vrot.slane %v3995, %v4685
    %v4687 = vlaneseq
    %v4688 = vshrl.u32 %v4687, 7
    %v4689 = vsub.s32 0, %v4688
    %v4690 = vrot.slane %v3996, %v4689
    %v4691 = vlaneseq
    %v4692 = vshrl.u32 %v4691, 7
    %v4693 = vsub.s32 0, %v4692
    %v4694 = vrot.slane %v3997, %v4693
    %v4695 = vlaneseq
    %v4696 = vshrl.u32 %v4695, 7
    %v4697 = vsub.s32 0, %v4696
    %v4698 = vrot.slane %v3998, %v4697
    %v4699 = vlaneseq
    %v4700 = vshrl.u32 %v4699, 7
    %v4701 = vsub.s32 0, %v4700
    %v4702 = vrot.slane %v3999, %v4701
    %v4703 = vlaneseq
    %v4704 = vshrl.u32 %v4703, 7
    %v4705 = vsub.s32 0, %v4704
    %v4706 = vrot.slane %v4000, %v4705
    %v4707 = vlaneseq
    %v4708 = vshrl.u32 %v4707, 7
    %v4709 = vsub.s32 0, %v4708
    %v4710 = vrot.slane %v4001, %v4709
    %v4711 = vlaneseq
    %v4712 = vshrl.u32 %v4711, 7
    %v4713 = vsub.s32 0, %v4712
    %v4714 = vrot.slane %v4002, %v4713
    %v4715 = vlaneseq
    %v4716 = vshrl.u32 %v4715, 7
    %v4717 = vsub.s32 0, %v4716
    %v4718 = vrot.slane %v4003, %v4717
    %v4719 = vlaneseq
    %v4720 = vshrl.u32 %v4719, 7
    %v4721 = vsub.s32 0, %v4720
    %v4722 = vrot.slane %v4004, %v4721
    %v4723 = vlaneseq
    %v4724 = vshrl.u32 %v4723, 7
    %v4725 = vsub.s32 0, %v4724
    %v4726 = vrot.slane %v4005, %v4725
    %v4727 = vlaneseq
    %v4728 = vshrl.u32 %v4727, 7
    %v4729 = vsub.s32 0, %v4728
    %v4730 = vrot.slane %v4006, %v4729
    %v4731 = vlaneseq
    %v4732 = vshrl.u32 %v4731, 7
    %v4733 = vsub.s32 0, %v4732
    %v4734 = vrot.slane %v4007, %v4733
    %v4735 = vlaneseq
    %v4736 = vshrl.u32 %v4735, 7
    %v4737 = vsub.s32 0, %v4736
    %v4738 = vrot.slane %v4008, %v4737
    %v4739 = vlaneseq
    %v4740 = vshrl.u32 %v4739, 7
    %v4741 = vsub.s32 0, %v4740
    %v4742 = vrot.slane %v4009, %v4741
    %v4743 = vlaneseq
    %v4744 = vshrl.u32 %v4743, 7
    %v4745 = vsub.s32 0, %v4744
    %v4746 = vrot.slane %v4010, %v4745
    %v4747 = vlaneseq
    %v4748 = vshrl.u32 %v4747, 7
    %v4749 = vsub.s32 0, %v4748
    %v4750 = vrot.slane %v4011, %v4749
    %v4751 = vlaneseq
    %v4752 = vshrl.u32 %v4751, 7
    %v4753 = vsub.s32 0, %v4752
    %v4754 = vrot.slane %v4012, %v4753
    %v4755 = vlaneseq
    %v4756 = vshrl.u32 %v4755, 7
    %v4757 = vsub.s32 0, %v4756
    %v4758 = vrot.slane %v4013, %v4757
    %v4759 = vlaneseq
    %v4760 = vshrl.u32 %v4759, 7
    %v4761 = vsub.s32 0, %v4760
    %v4762 = vrot.slane %v4014, %v4761
    %v4763 = vlaneseq
    %v4764 = vshrl.u32 %v4763, 7
    %v4765 = vsub.s32 0, %v4764
    %v4766 = vrot.slane %v4015, %v4765
    %v4767 = vlaneseq
    %v4768 = vshrl.u32 %v4767, 7
    %v4769 = vsub.s32 0, %v4768
    %v4770 = vrot.slane %v4016, %v4769
    %v4771 = vlaneseq
    %v4772 = vshrl.u32 %v4771, 7
    %v4773 = vsub.s32 0, %v4772
    %v4774 = vrot.slane %v4017, %v4773
    %v4775 = vlaneseq
    %v4776 = vshrl.u32 %v4775, 7
    %v4777 = vsub.s32 0, %v4776
    %v4778 = vrot.slane %v4018, %v4777
    %v4779 = vlaneseq
    %v4780 = vshrl.u32 %v4779, 7
    %v4781 = vsub.s32 0, %v4780
    %v4782 = vrot.slane %v4019, %v4781
    %v4783 = vlaneseq
    %v4784 = vshrl.u32 %v4783, 7
    %v4785 = vsub.s32 0, %v4784
    %v4786 = vrot.slane %v4020, %v4785
    %v4787 = vlaneseq
    %v4788 = vshrl.u32 %v4787, 7
    %v4789 = vsub.s32 0, %v4788
    %v4790 = vrot.slane %v4021, %v4789
    %v4791 = vlaneseq
    %v4792 = vshrl.u32 %v4791, 7
    %v4793 = vsub.s32 0, %v4792
    %v4794 = vrot.slane %v4022, %v4793
    %v4795 = vlaneseq
    %v4796 = vshrl.u32 %v4795, 7
    %v4797 = vsub.s32 0, %v4796
    %v4798 = vrot.slane %v4023, %v4797
    %v4799 = vlaneseq
    %v4800 = vshrl.u32 %v4799, 7
    %v4801 = vsub.s32 0, %v4800
    %v4802 = vrot.slane %v4024, %v4801
    %v4803 = vlaneseq
    %v4804 = vshrl.u32 %v4803, 7
    %v4805 = vsub.s32 0, %v4804
    %v4806 = vrot.slane %v4025, %v4805
    %v4807 = vlaneseq
    %v4808 = vshrl.u32 %v4807, 7
    %v4809 = vsub.s32 0, %v4808
    %v4810 = vrot.slane %v4026, %v4809
    %v4811 = vlaneseq
    %v4812 = vshrl.u32 %v4811, 7
    %v4813 = vsub.s32 0, %v4812
    %v4814 = vrot.slane %v4027, %v4813
    %v4815 = vlaneseq
    %v4816 = vshrl.u32 %v4815, 7
    %v4817 = vsub.s32 0, %v4816
    %v4818 = vrot.slane %v4028, %v4817
    %v4819 = vlaneseq
    %v4820 = vshrl.u32 %v4819, 7
    %v4821 = vsub.s32 0, %v4820
    %v4822 = vrot.slane %v4029, %v4821
    %v4823 = vlaneseq
    %v4824 = vshrl.u32 %v4823, 7
    %v4825 = vsub.s32 0, %v4824
    %v4826 = vrot.slane %v4030, %v4825
    %v4827 = vlaneseq
    %v4828 = vshrl.u32 %v4827, 7
    %v4829 = vsub.s32 0, %v4828
    %v4830 = vrot.slane %v4031, %v4829
    %v4831 = vlaneseq
    %v4832 = vshrl.u32 %v4831, 7
    %v4833 = vsub.s32 0, %v4832
    %v4834 = vrot.slane %v4032, %v4833
    %v4835 = vlaneseq
    %v4836 = vshrl.u32 %v4835, 7
    %v4837 = vsub.s32 0, %v4836
    %v4838 = vrot.slane %v4033, %v4837
    %v4839 = vlaneseq
    %v4840 = vshrl.u32 %v4839, 7
    %v4841 = vsub.s32 0, %v4840
    %v4842 = vrot.slane %v4034, %v4841
    %v4843 = vlaneseq
    %v4844 = vshrl.u32 %v4843, 7
    %v4845 = vsub.s32 0, %v4844
    %v4846 = vrot.slane %v4035, %v4845
    %v4847 = vlaneseq
    %v4848 = vshrl.u32 %v4847, 7
    %v4849 = vsub.s32 0, %v4848
    %v4850 = vrot.slane %v4036, %v4849
    %v4851 = vlaneseq
    %v4852 = vshrl.u32 %v4851, 7
    %v4853 = vsub.s32 0, %v4852
    %v4854 = vrot.slane %v4037, %v4853
    %v4855 = vlaneseq
    %v4856 = vshrl.u32 %v4855, 7
    %v4857 = vsub.s32 0, %v4856
    %v4858 = vrot.slane %v4038, %v4857
    %v4859 = vlaneseq
    %v4860 = vshrl.u32 %v4859, 7
    %v4861 = vsub.s32 0, %v4860
    %v4862 = vrot.slane %v4039, %v4861
    %v4863 = vlaneseq
    %v4864 = vshrl.u32 %v4863, 7
    %v4865 = vsub.s32 0, %v4864
    %v4866 = vrot.slane %v4040, %v4865
    %v4867 = vlaneseq
    %v4868 = vshrl.u32 %v4867, 7
    %v4869 = vsub.s32 0, %v4868
    %v4870 = vrot.slane %v4041, %v4869
    %v4871 = vlaneseq
    %v4872 = vshrl.u32 %v4871, 7
    %v4873 = vsub.s32 0, %v4872
    %v4874 = vrot.slane %v4042, %v4873
    %v4875 = vlaneseq
    %v4876 = vshrl.u32 %v4875, 7
    %v4877 = vsub.s32 0, %v4876
    %v4878 = vrot.slane %v4043, %v4877
    %v4879 = vlaneseq
    %v4880 = vshrl.u32 %v4879, 7
    %v4881 = vsub.s32 0, %v4880
    %v4882 = vrot.slane %v4044, %v4881
    %v4883 = vlaneseq
    %v4884 = vshrl.u32 %v4883, 7
    %v4885 = vsub.s32 0, %v4884
    %v4886 = vrot.slane %v4045, %v4885
    %v4887 = vlaneseq
    %v4888 = vshrl.u32 %v4887, 7
    %v4889 = vsub.s32 0, %v4888
    %v4890 = vrot.slane %v4046, %v4889
    %v4891 = vlaneseq
    %v4892 = vshrl.u32 %v4891, 7
    %v4893 = vsub.s32 0, %v4892
    %v4894 = vrot.slane %v4047, %v4893
    %v4895 = vlaneseq
    %v4896 = vshrl.u32 %v4895, 7
    %v4897 = vsub.s32 0, %v4896
    %v4898 = vrot.slane %v4048, %v4897
    %v4899 = vlaneseq
    %v4900 = vshrl.u32 %v4899, 7
    %v4901 = vsub.s32 0, %v4900
    %v4902 = vrot.slane %v4049, %v4901
    %v4903 = vlaneseq
    %v4904 = vshrl.u32 %v4903, 7
    %v4905 = vsub.s32 0, %v4904
    %v4906 = vrot.slane %v4050, %v4905
    %v4907 = vlaneseq
    %v4908 = vshrl.u32 %v4907, 7
    %v4909 = vsub.s32 0, %v4908
    %v4910 = vrot.slane %v4051, %v4909
    %v4911 = vlaneseq
    %v4912 = vshrl.u32 %v4911, 7
    %v4913 = vsub.s32 0, %v4912
    %v4914 = vrot.slane %v4052, %v4913
    %v4915 = vlaneseq
    %v4916 = vshrl.u32 %v4915, 7
    %v4917 = vsub.s32 0, %v4916
    %v4918 = vrot.slane %v4053, %v4917
    %v4919 = vlaneseq
    %v4920 = vshrl.u32 %v4919, 7
    %v4921 = vsub.s32 0, %v4920
    %v4922 = vrot.slane %v4054, %v4921
    %v4923 = vlaneseq
    %v4924 = vshrl.u32 %v4923, 7
    %v4925 = vsub.s32 0, %v4924
    %v4926 = vrot.slane %v4055, %v4925
    %v4927 = vlaneseq
    %v4928 = vshrl.u32 %v4927, 7
    %v4929 = vsub.s32 0, %v4928
    %v4930 = vrot.slane %v4056, %v4929
    %v4931 = vlaneseq
    %v4932 = vshrl.u32 %v4931, 7
    %v4933 = vsub.s32 0, %v4932
    %v4934 = vrot.slane %v4057, %v4933
    %v4935 = vlaneseq
    %v4936 = vshrl.u32 %v4935, 7
    %v4937 = vsub.s32 0, %v4936
    %v4938 = vrot.slane %v4058, %v4937
    %v4939 = vlaneseq
    %v4940 = vshrl.u32 %v4939, 7
    %v4941 = vsub.s32 0, %v4940
    %v4942 = vrot.slane %v4059, %v4941
    %v4943 = vlaneseq
    %v4944 = vshrl.u32 %v4943, 7
    %v4945 = vsub.s32 0, %v4944
    %v4946 = vrot.slane %v4060, %v4945
    %v4947 = vlaneseq
    %v4948 = vshrl.u32 %v4947, 7
    %v4949 = vsub.s32 0, %v4948
    %v4950 = vrot.slane %v4061, %v4949
    %v4951 = vlaneseq
    %v4952 = vshrl.u32 %v4951, 7
    %v4953 = vsub.s32 0, %v4952
    %v4954 = vrot.slane %v4062, %v4953
    %v4955 = vlaneseq
    %v4956 = vshrl.u32 %v4955, 7
    %v4957 = vsub.s32 0, %v4956
    %v4958 = vrot.slane %v4063, %v4957
    %v4959 = vlaneseq
    %v4960 = vshrl.u32 %v4959, 7
    %v4961 = vsub.s32 0, %v4960
    %v4962 = vrot.slane %v4064, %v4961
    %v4963 = vlaneseq
    %v4964 = vshrl.u32 %v4963, 7
    %v4965 = vsub.s32 0, %v4964
    %v4966 = vrot.slane %v4065, %v4965
    %v4967 = vlaneseq
    %v4968 = vshrl.u32 %v4967, 7
    %v4969 = vsub.s32 0, %v4968
    %v4970 = vrot.slane %v4066, %v4969
    %v4971 = vlaneseq
    %v4972 = vshrl.u32 %v4971, 7
    %v4973 = vsub.s32 0, %v4972
    %v4974 = vrot.slane %v4067, %v4973
    %v4975 = vlaneseq
    %v4976 = vshrl.u32 %v4975, 7
    %v4977 = vsub.s32 0, %v4976
    %v4978 = vrot.slane %v4068, %v4977
    %v4979 = vlaneseq
    %v4980 = vshrl.u32 %v4979, 7
    %v4981 = vsub.s32 0, %v4980
    %v4982 = vrot.slane %v4069, %v4981
    %v4983 = vlaneseq
    %v4984 = vshrl.u32 %v4983, 7
    %v4985 = vsub.s32 0, %v4984
    %v4986 = vrot.slane %v4070, %v4985
    %v4987 = vlaneseq
    %v4988 = vshrl.u32 %v4987, 7
    %v4989 = vsub.s32 0, %v4988
    %v4990 = vrot.slane %v4071, %v4989
    %v4991 = vlaneseq
    %v4992 = vshrl.u32 %v4991, 7
    %v4993 = vsub.s32 0, %v4992
    %v4994 = vrot.slane %v4072, %v4993
    %v4995 = vlaneseq
    %v4996 = vshrl.u32 %v4995, 7
    %v4997 = vsub.s32 0, %v4996
    %v4998 = vrot.slane %v4073, %v4997
    %v4999 = vlaneseq
    %v5000 = vshrl.u32 %v4999, 7
    %v5001 = vsub.s32 0, %v5000
    %v5002 = vrot.slane %v4074, %v5001
    %v5003 = vlaneseq
    %v5004 = vshrl.u32 %v5003, 7
    %v5005 = vsub.s32 0, %v5004
    %v5006 = vrot.slane %v4075, %v5005
    %v5007 = vlaneseq
    %v5008 = vshrl.u32 %v5007, 7
    %v5009 = vsub.s32 0, %v5008
    %v5010 = vrot.slane %v4076, %v5009
    %v5011 = vlaneseq
    %v5012 = vshrl.u32 %v5011, 7
    %v5013 = vsub.s32 0, %v5012
    %v5014 = vrot.slane %v4077, %v5013
    %v5015 = vlaneseq
    %v5016 = vshrl.u32 %v5015, 7
    %v5017 = vsub.s32 0, %v5016
    %v5018 = vrot.slane %v4078, %v5017
    %v5019 = vlaneseq
    %v5020 = vshrl.u32 %v5019, 7
    %v5021 = vsub.s32 0, %v5020
    %v5022 = vrot.slane %v4079, %v5021
    %v5023 = vlaneseq
    %v5024 = vshrl.u32 %v5023, 7
    %v5025 = vsub.s32 0, %v5024
    %v5026 = vrot.slane %v4080, %v5025
    %v5027 = vlaneseq
    %v5028 = vshrl.u32 %v5027, 7
    %v5029 = vsub.s32 0, %v5028
    %v5030 = vrot.slane %v4081, %v5029
    %v5031 = vlaneseq
    %v5032 = vshrl.u32 %v5031, 7
    %v5033 = vsub.s32 0, %v5032
    %v5034 = vrot.slane %v4082, %v5033
    %v5035 = vlaneseq
    %v5036 = vshrl.u32 %v5035, 7
    %v5037 = vsub.s32 0, %v5036
    %v5038 = vrot.slane %v4083, %v5037
    %v5039 = vlaneseq
    %v5040 = vshrl.u32 %v5039, 7
    %v5041 = vsub.s32 0, %v5040
    %v5042 = vrot.slane %v4084, %v5041
    %v5043 = vlaneseq
    %v5044 = vshrl.u32 %v5043, 7
    %v5045 = vsub.s32 0, %v5044
    %v5046 = vrot.slane %v4085, %v5045
    %v5047 = vlaneseq
    %v5048 = vshrl.u32 %v5047, 7
    %v5049 = vsub.s32 0, %v5048
    %v5050 = vrot.slane %v4086, %v5049
    %v5051 = vlaneseq
    %v5052 = vshrl.u32 %v5051, 7
    %v5053 = vsub.s32 0, %v5052
    %v5054 = vrot.slane %v4087, %v5053
    %v5055 = vlaneseq
    %v5056 = vshrl.u32 %v5055, 7
    %v5057 = vsub.s32 0, %v5056
    %v5058 = vrot.slane %v4088, %v5057
    %v5059 = vlaneseq
    %v5060 = vshrl.u32 %v5059, 7
    %v5061 = vsub.s32 0, %v5060
    %v5062 = vrot.slane %v4089, %v5061
    %v5063 = vlaneseq
    %v5064 = vshrl.u32 %v5063, 7
    %v5065 = vsub.s32 0, %v5064
    %v5066 = vrot.slane %v4090, %v5065
    %v5067 = vlaneseq
    %v5068 = vshrl.u32 %v5067, 7
    %v5069 = vsub.s32 0, %v5068
    %v5070 = vrot.slane %v4091, %v5069
    %v5071 = vlaneseq
    %v5072 = vshrl.u32 %v5071, 7
    %v5073 = vsub.s32 0, %v5072
    %v5074 = vrot.slane %v4092, %v5073
    %v5075 = vlaneseq
    %v5076 = vshrl.u32 %v5075, 7
    %v5077 = vsub.s32 0, %v5076
    %v5078 = vrot.slane %v4093, %v5077
    %v5079 = vlaneseq
    %v5080 = vshrl.u32 %v5079, 7
    %v5081 = vsub.s32 0, %v5080
    %v5082 = vrot.slane %v4094, %v5081
    %v5083 = vlaneseq
    %v5084 = vshrl.u32 %v5083, 7
    %v5085 = vsub.s32 0, %v5084
    %v5086 = vrot.slane %v4095, %v5085
    %v5087 = vlaneseq
    %v5088 = vshrl.u32 %v5087, 7
    %v5089 = vsub.s32 0, %v5088
    %v5090 = vrot.slane %v4096, %v5089
    %v5091 = vlaneseq
    %v5092 = vshrl.u32 %v5091, 7
    %v5093 = vsub.s32 0, %v5092
    %v5094 = vrot.slane %v4097, %v5093
    %v5095 = vlaneseq
    %v5096 = vshrl.u32 %v5095, 7
    %v5097 = vsub.s32 0, %v5096
    %v5098 = vrot.slane %v4098, %v5097
    %v5099 = vlaneseq
    %v5100 = vshrl.u32 %v5099, 7
    %v5101 = vsub.s32 0, %v5100
    %v5102 = vrot.slane %v4099, %v5101
    %v5103 = vlaneseq
    %v5104 = vshrl.u32 %v5103, 7
    %v5105 = vsub.s32 0, %v5104
    %v5106 = vrot.slane %v4100, %v5105
    %v5107 = vlaneseq
    %v5108 = vshrl.u32 %v5107, 7
    %v5109 = vsub.s32 0, %v5108
    %v5110 = vrot.slane %v4101, %v5109
    %v5111 = vlaneseq
    %v5112 = vshrl.u32 %v5111, 7
    %v5113 = vsub.s32 0, %v5112
    %v5114 = vrot.slane %v4102, %v5113
    %v5115 = vlaneseq
    %v5116 = vshrl.u32 %v5115, 7
    %v5117 = vsub.s32 0, %v5116
    %v5118 = vrot.slane %v4103, %v5117
    %v5119 = vlaneseq
    %v5120 = vshrl.u32 %v5119, 7
    %v5121 = vsub.s32 0, %v5120
    %v5122 = vrot.slane %v4104, %v5121
    %v5123 = vlaneseq
    %v5124 = vshrl.u32 %v5123, 7
    %v5125 = vsub.s32 0, %v5124
    %v5126 = vrot.slane %v4105, %v5125
    %v5127 = vlaneseq
    %v5128 = vshrl.u32 %v5127, 7
    %v5129 = vsub.s32 0, %v5128
    %v5130 = vrot.slane %v4106, %v5129
    %v5132 = vpack.i.b16 %v4110, %v4110
    %v5134 = vlaneseq
    %v5135 = vshrl.u32 %v5134, 7
    %v5136 = vsub.s32 0, %v5135
    %v5137 = vrot.slane %v5132, %v5136
    %v5139 = vpack.i.b16 %v4114, %v4114
    %v5141 = vlaneseq
    %v5142 = vshrl.u32 %v5141, 7
    %v5143 = vsub.s32 0, %v5142
    %v5144 = vrot.slane %v5139, %v5143
    %v5146 = vpack.i.b16 %v4118, %v4118
    %v5148 = vlaneseq
    %v5149 = vshrl.u32 %v5148, 7
    %v5150 = vsub.s32 0, %v5149
    %v5151 = vrot.slane %v5146, %v5150
    %v5153 = vpack.i.b16 %v4122, %v4122
    %v5155 = vlaneseq
    %v5156 = vshrl.u32 %v5155, 7
    %v5157 = vsub.s32 0, %v5156
    %v5158 = vrot.slane %v5153, %v5157
    %v5160 = vpack.i.b16 %v4126, %v4126
    %v5162 = vlaneseq
    %v5163 = vshrl.u32 %v5162, 7
    %v5164 = vsub.s32 0, %v5163
    %v5165 = vrot.slane %v5160, %v5164
    %v5167 = vpack.i.b16 %v4130, %v4130
    %v5169 = vlaneseq
    %v5170 = vshrl.u32 %v5169, 7
    %v5171 = vsub.s32 0, %v5170
    %v5172 = vrot.slane %v5167, %v5171
    %v5174 = vpack.i.b16 %v4134, %v4134
    %v5176 = vlaneseq
    %v5177 = vshrl.u32 %v5176, 7
    %v5178 = vsub.s32 0, %v5177
    %v5179 = vrot.slane %v5174, %v5178
    %v5181 = vpack.i.b16 %v4138, %v4138
    %v5183 = vlaneseq
    %v5184 = vshrl.u32 %v5183, 7
    %v5185 = vsub.s32 0, %v5184
    %v5186 = vrot.slane %v5181, %v5185
    %v5188 = vpack.i.b16 %v4142, %v4142
    %v5190 = vlaneseq
    %v5191 = vshrl.u32 %v5190, 7
    %v5192 = vsub.s32 0, %v5191
    %v5193 = vrot.slane %v5188, %v5192
    %v5195 = vpack.i.b16 %v4146, %v4146
    %v5197 = vlaneseq
    %v5198 = vshrl.u32 %v5197, 7
    %v5199 = vsub.s32 0, %v5198
    %v5200 = vrot.slane %v5195, %v5199
    %v5202 = vpack.i.b16 %v4150, %v4150
    %v5204 = vlaneseq
    %v5205 = vshrl.u32 %v5204, 7
    %v5206 = vsub.s32 0, %v5205
    %v5207 = vrot.slane %v5202, %v5206
    %v5209 = vpack.i.b16 %v4154, %v4154
    %v5211 = vlaneseq
    %v5212 = vshrl.u32 %v5211, 7
    %v5213 = vsub.s32 0, %v5212
    %v5214 = vrot.slane %v5209, %v5213
    %v5216 = vpack.i.b16 %v4158, %v4158
    %v5218 = vlaneseq
    %v5219 = vshrl.u32 %v5218, 7
    %v5220 = vsub.s32 0, %v5219
    %v5221 = vrot.slane %v5216, %v5220
    %v5223 = vpack.i.b16 %v4162, %v4162
    %v5225 = vlaneseq
    %v5226 = vshrl.u32 %v5225, 7
    %v5227 = vsub.s32 0, %v5226
    %v5228 = vrot.slane %v5223, %v5227
    %v5230 = vpack.i.b16 %v4166, %v4166
    %v5232 = vlaneseq
    %v5233 = vshrl.u32 %v5232, 7
    %v5234 = vsub.s32 0, %v5233
    %v5235 = vrot.slane %v5230, %v5234
    %v5237 = vpack.i.b16 %v4170, %v4170
    %v5239 = vlaneseq
    %v5240 = vshrl.u32 %v5239, 7
    %v5241 = vsub.s32 0, %v5240
    %v5242 = vrot.slane %v5237, %v5241
    %v5244 = vpack.i.b16 %v4174, %v4174
    %v5246 = vlaneseq
    %v5247 = vshrl.u32 %v5246, 7
    %v5248 = vsub.s32 0, %v5247
    %v5249 = vrot.slane %v5244, %v5248
    %v5251 = vpack.i.b16 %v4178, %v4178
    %v5253 = vlaneseq
    %v5254 = vshrl.u32 %v5253, 7
    %v5255 = vsub.s32 0, %v5254
    %v5256 = vrot.slane %v5251, %v5255
    %v5258 = vpack.i.b16 %v4182, %v4182
    %v5260 = vlaneseq
    %v5261 = vshrl.u32 %v5260, 7
    %v5262 = vsub.s32 0, %v5261
    %v5263 = vrot.slane %v5258, %v5262
    %v5265 = vpack.i.b16 %v4186, %v4186
    %v5267 = vlaneseq
    %v5268 = vshrl.u32 %v5267, 7
    %v5269 = vsub.s32 0, %v5268
    %v5270 = vrot.slane %v5265, %v5269
    %v5272 = vpack.i.b16 %v4190, %v4190
    %v5274 = vlaneseq
    %v5275 = vshrl.u32 %v5274, 7
    %v5276 = vsub.s32 0, %v5275
    %v5277 = vrot.slane %v5272, %v5276
    %v5279 = vpack.i.b16 %v4194, %v4194
    %v5281 = vlaneseq
    %v5282 = vshrl.u32 %v5281, 7
    %v5283 = vsub.s32 0, %v5282
    %v5284 = vrot.slane %v5279, %v5283
    %v5286 = vpack.i.b16 %v4198, %v4198
    %v5288 = vlaneseq
    %v5289 = vshrl.u32 %v5288, 7
    %v5290 = vsub.s32 0, %v5289
    %v5291 = vrot.slane %v5286, %v5290
    %v5293 = vpack.i.b16 %v4202, %v4202
    %v5295 = vlaneseq
    %v5296 = vshrl.u32 %v5295, 7
    %v5297 = vsub.s32 0, %v5296
    %v5298 = vrot.slane %v5293, %v5297
    %v5300 = vpack.i.b16 %v4206, %v4206
    %v5302 = vlaneseq
    %v5303 = vshrl.u32 %v5302, 7
    %v5304 = vsub.s32 0, %v5303
    %v5305 = vrot.slane %v5300, %v5304
    %v5307 = vpack.i.b16 %v4210, %v4210
    %v5309 = vlaneseq
    %v5310 = vshrl.u32 %v5309, 7
    %v5311 = vsub.s32 0, %v5310
    %v5312 = vrot.slane %v5307, %v5311
    %v5314 = vpack.i.b16 %v4214, %v4214
    %v5316 = vlaneseq
    %v5317 = vshrl.u32 %v5316, 7
    %v5318 = vsub.s32 0, %v5317
    %v5319 = vrot.slane %v5314, %v5318
    %v5321 = vpack.i.b16 %v4218, %v4218
    %v5323 = vlaneseq
    %v5324 = vshrl.u32 %v5323, 7
    %v5325 = vsub.s32 0, %v5324
    %v5326 = vrot.slane %v5321, %v5325
    %v5328 = vpack.i.b16 %v4222, %v4222
    %v5330 = vlaneseq
    %v5331 = vshrl.u32 %v5330, 7
    %v5332 = vsub.s32 0, %v5331
    %v5333 = vrot.slane %v5328, %v5332
    %v5335 = vpack.i.b16 %v4226, %v4226
    %v5337 = vlaneseq
    %v5338 = vshrl.u32 %v5337, 7
    %v5339 = vsub.s32 0, %v5338
    %v5340 = vrot.slane %v5335, %v5339
    %v5342 = vpack.i.b16 %v4230, %v4230
    %v5344 = vlaneseq
    %v5345 = vshrl.u32 %v5344, 7
    %v5346 = vsub.s32 0, %v5345
    %v5347 = vrot.slane %v5342, %v5346
    %v5349 = vpack.i.b16 %v4234, %v4234
    %v5351 = vlaneseq
    %v5352 = vshrl.u32 %v5351, 7
    %v5353 = vsub.s32 0, %v5352
    %v5354 = vrot.slane %v5349, %v5353
    %v5356 = vpack.i.b16 %v4238, %v4238
    %v5358 = vlaneseq
    %v5359 = vshrl.u32 %v5358, 7
    %v5360 = vsub.s32 0, %v5359
    %v5361 = vrot.slane %v5356, %v5360
    %v5363 = vpack.i.b16 %v4242, %v4242
    %v5365 = vlaneseq
    %v5366 = vshrl.u32 %v5365, 7
    %v5367 = vsub.s32 0, %v5366
    %v5368 = vrot.slane %v5363, %v5367
    %v5370 = vpack.i.b16 %v4246, %v4246
    %v5372 = vlaneseq
    %v5373 = vshrl.u32 %v5372, 7
    %v5374 = vsub.s32 0, %v5373
    %v5375 = vrot.slane %v5370, %v5374
    %v5377 = vpack.i.b16 %v4250, %v4250
    %v5379 = vlaneseq
    %v5380 = vshrl.u32 %v5379, 7
    %v5381 = vsub.s32 0, %v5380
    %v5382 = vrot.slane %v5377, %v5381
    %v5384 = vpack.i.b16 %v4254, %v4254
    %v5386 = vlaneseq
    %v5387 = vshrl.u32 %v5386, 7
    %v5388 = vsub.s32 0, %v5387
    %v5389 = vrot.slane %v5384, %v5388
    %v5391 = vpack.i.b16 %v4258, %v4258
    %v5393 = vlaneseq
    %v5394 = vshrl.u32 %v5393, 7
    %v5395 = vsub.s32 0, %v5394
    %v5396 = vrot.slane %v5391, %v5395
    %v5398 = vpack.i.b16 %v4262, %v4262
    %v5400 = vlaneseq
    %v5401 = vshrl.u32 %v5400, 7
    %v5402 = vsub.s32 0, %v5401
    %v5403 = vrot.slane %v5398, %v5402
    %v5405 = vpack.i.b16 %v4266, %v4266
    %v5407 = vlaneseq
    %v5408 = vshrl.u32 %v5407, 7
    %v5409 = vsub.s32 0, %v5408
    %v5410 = vrot.slane %v5405, %v5409
    %v5412 = vpack.i.b16 %v4270, %v4270
    %v5414 = vlaneseq
    %v5415 = vshrl.u32 %v5414, 7
    %v5416 = vsub.s32 0, %v5415
    %v5417 = vrot.slane %v5412, %v5416
    %v5419 = vpack.i.b16 %v4274, %v4274
    %v5421 = vlaneseq
    %v5422 = vshrl.u32 %v5421, 7
    %v5423 = vsub.s32 0, %v5422
    %v5424 = vrot.slane %v5419, %v5423
    %v5426 = vpack.i.b16 %v4278, %v4278
    %v5428 = vlaneseq
    %v5429 = vshrl.u32 %v5428, 7
    %v5430 = vsub.s32 0, %v5429
    %v5431 = vrot.slane %v5426, %v5430
    %v5433 = vpack.i.b16 %v4282, %v4282
    %v5435 = vlaneseq
    %v5436 = vshrl.u32 %v5435, 7
    %v5437 = vsub.s32 0, %v5436
    %v5438 = vrot.slane %v5433, %v5437
    %v5440 = vpack.i.b16 %v4286, %v4286
    %v5442 = vlaneseq
    %v5443 = vshrl.u32 %v5442, 7
    %v5444 = vsub.s32 0, %v5443
    %v5445 = vrot.slane %v5440, %v5444
    %v5447 = vpack.i.b16 %v4290, %v4290
    %v5449 = vlaneseq
    %v5450 = vshrl.u32 %v5449, 7
    %v5451 = vsub.s32 0, %v5450
    %v5452 = vrot.slane %v5447, %v5451
    %v5454 = vpack.i.b16 %v4294, %v4294
    %v5456 = vlaneseq
    %v5457 = vshrl.u32 %v5456, 7
    %v5458 = vsub.s32 0, %v5457
    %v5459 = vrot.slane %v5454, %v5458
    %v5461 = vpack.i.b16 %v4298, %v4298
    %v5463 = vlaneseq
    %v5464 = vshrl.u32 %v5463, 7
    %v5465 = vsub.s32 0, %v5464
    %v5466 = vrot.slane %v5461, %v5465
    %v5468 = vpack.i.b16 %v4302, %v4302
    %v5470 = vlaneseq
    %v5471 = vshrl.u32 %v5470, 7
    %v5472 = vsub.s32 0, %v5471
    %v5473 = vrot.slane %v5468, %v5472
    %v5475 = vpack.i.b16 %v4306, %v4306
    %v5477 = vlaneseq
    %v5478 = vshrl.u32 %v5477, 7
    %v5479 = vsub.s32 0, %v5478
    %v5480 = vrot.slane %v5475, %v5479
    %v5482 = vpack.i.b16 %v4310, %v4310
    %v5484 = vlaneseq
    %v5485 = vshrl.u32 %v5484, 7
    %v5486 = vsub.s32 0, %v5485
    %v5487 = vrot.slane %v5482, %v5486
    %v5489 = vpack.i.b16 %v4314, %v4314
    %v5491 = vlaneseq
    %v5492 = vshrl.u32 %v5491, 7
    %v5493 = vsub.s32 0, %v5492
    %v5494 = vrot.slane %v5489, %v5493
    %v5496 = vpack.i.b16 %v4318, %v4318
    %v5498 = vlaneseq
    %v5499 = vshrl.u32 %v5498, 7
    %v5500 = vsub.s32 0, %v5499
    %v5501 = vrot.slane %v5496, %v5500
    %v5503 = vpack.i.b16 %v4322, %v4322
    %v5505 = vlaneseq
    %v5506 = vshrl.u32 %v5505, 7
    %v5507 = vsub.s32 0, %v5506
    %v5508 = vrot.slane %v5503, %v5507
    %v5510 = vpack.i.b16 %v4326, %v4326
    %v5512 = vlaneseq
    %v5513 = vshrl.u32 %v5512, 7
    %v5514 = vsub.s32 0, %v5513
    %v5515 = vrot.slane %v5510, %v5514
    %v5517 = vpack.i.b16 %v4330, %v4330
    %v5519 = vlaneseq
    %v5520 = vshrl.u32 %v5519, 7
    %v5521 = vsub.s32 0, %v5520
    %v5522 = vrot.slane %v5517, %v5521
    %v5524 = vpack.i.b16 %v4334, %v4334
    %v5526 = vlaneseq
    %v5527 = vshrl.u32 %v5526, 7
    %v5528 = vsub.s32 0, %v5527
    %v5529 = vrot.slane %v5524, %v5528
    %v5531 = vpack.i.b16 %v4338, %v4338
    %v5533 = vlaneseq
    %v5534 = vshrl.u32 %v5533, 7
    %v5535 = vsub.s32 0, %v5534
    %v5536 = vrot.slane %v5531, %v5535
    %v5538 = vpack.i.b16 %v4342, %v4342
    %v5540 = vlaneseq
    %v5541 = vshrl.u32 %v5540, 7
    %v5542 = vsub.s32 0, %v5541
    %v5543 = vrot.slane %v5538, %v5542
    %v5545 = vpack.i.b16 %v4346, %v4346
    %v5547 = vlaneseq
    %v5548 = vshrl.u32 %v5547, 7
    %v5549 = vsub.s32 0, %v5548
    %v5550 = vrot.slane %v5545, %v5549
    %v5552 = vpack.i.b16 %v4350, %v4350
    %v5554 = vlaneseq
    %v5555 = vshrl.u32 %v5554, 7
    %v5556 = vsub.s32 0, %v5555
    %v5557 = vrot.slane %v5552, %v5556
    %v5559 = vpack.i.b16 %v4354, %v4354
    %v5561 = vlaneseq
    %v5562 = vshrl.u32 %v5561, 7
    %v5563 = vsub.s32 0, %v5562
    %v5564 = vrot.slane %v5559, %v5563
    %v5566 = vpack.i.b16 %v4358, %v4358
    %v5568 = vlaneseq
    %v5569 = vshrl.u32 %v5568, 7
    %v5570 = vsub.s32 0, %v5569
    %v5571 = vrot.slane %v5566, %v5570
    %v5573 = vpack.i.b16 %v4362, %v4362
    %v5575 = vlaneseq
    %v5576 = vshrl.u32 %v5575, 7
    %v5577 = vsub.s32 0, %v5576
    %v5578 = vrot.slane %v5573, %v5577
    %v5580 = vpack.i.b16 %v4366, %v4366
    %v5582 = vlaneseq
    %v5583 = vshrl.u32 %v5582, 7
    %v5584 = vsub.s32 0, %v5583
    %v5585 = vrot.slane %v5580, %v5584
    %v5587 = vpack.i.b16 %v4370, %v4370
    %v5589 = vlaneseq
    %v5590 = vshrl.u32 %v5589, 7
    %v5591 = vsub.s32 0, %v5590
    %v5592 = vrot.slane %v5587, %v5591
    %v5594 = vpack.i.b16 %v4374, %v4374
    %v5596 = vlaneseq
    %v5597 = vshrl.u32 %v5596, 7
    %v5598 = vsub.s32 0, %v5597
    %v5599 = vrot.slane %v5594, %v5598
    %v5601 = vpack.i.b16 %v4378, %v4378
    %v5603 = vlaneseq
    %v5604 = vshrl.u32 %v5603, 7
    %v5605 = vsub.s32 0, %v5604
    %v5606 = vrot.slane %v5601, %v5605
    %v5608 = vpack.i.b16 %v4382, %v4382
    %v5610 = vlaneseq
    %v5611 = vshrl.u32 %v5610, 7
    %v5612 = vsub.s32 0, %v5611
    %v5613 = vrot.slane %v5608, %v5612
    %v5615 = vpack.i.b16 %v4386, %v4386
    %v5617 = vlaneseq
    %v5618 = vshrl.u32 %v5617, 7
    %v5619 = vsub.s32 0, %v5618
    %v5620 = vrot.slane %v5615, %v5619
    %v5622 = vpack.i.b16 %v4390, %v4390
    %v5624 = vlaneseq
    %v5625 = vshrl.u32 %v5624, 7
    %v5626 = vsub.s32 0, %v5625
    %v5627 = vrot.slane %v5622, %v5626
    %v5629 = vpack.i.b16 %v4394, %v4394
    %v5631 = vlaneseq
    %v5632 = vshrl.u32 %v5631, 7
    %v5633 = vsub.s32 0, %v5632
    %v5634 = vrot.slane %v5629, %v5633
    %v5636 = vpack.i.b16 %v4398, %v4398
    %v5638 = vlaneseq
    %v5639 = vshrl.u32 %v5638, 7
    %v5640 = vsub.s32 0, %v5639
    %v5641 = vrot.slane %v5636, %v5640
    %v5643 = vpack.i.b16 %v4402, %v4402
    %v5645 = vlaneseq
    %v5646 = vshrl.u32 %v5645, 7
    %v5647 = vsub.s32 0, %v5646
    %v5648 = vrot.slane %v5643, %v5647
    %v5650 = vpack.i.b16 %v4406, %v4406
    %v5652 = vlaneseq
    %v5653 = vshrl.u32 %v5652, 7
    %v5654 = vsub.s32 0, %v5653
    %v5655 = vrot.slane %v5650, %v5654
    %v5657 = vpack.i.b16 %v4410, %v4410
    %v5659 = vlaneseq
    %v5660 = vshrl.u32 %v5659, 7
    %v5661 = vsub.s32 0, %v5660
    %v5662 = vrot.slane %v5657, %v5661
    %v5664 = vpack.i.b16 %v4414, %v4414
    %v5666 = vlaneseq
    %v5667 = vshrl.u32 %v5666, 7
    %v5668 = vsub.s32 0, %v5667
    %v5669 = vrot.slane %v5664, %v5668
    %v5671 = vpack.i.b16 %v4418, %v4418
    %v5673 = vlaneseq
    %v5674 = vshrl.u32 %v5673, 7
    %v5675 = vsub.s32 0, %v5674
    %v5676 = vrot.slane %v5671, %v5675
    %v5678 = vpack.i.b16 %v4422, %v4422
    %v5680 = vlaneseq
    %v5681 = vshrl.u32 %v5680, 7
    %v5682 = vsub.s32 0, %v5681
    %v5683 = vrot.slane %v5678, %v5682
    %v5685 = vpack.i.b16 %v4426, %v4426
    %v5687 = vlaneseq
    %v5688 = vshrl.u32 %v5687, 7
    %v5689 = vsub.s32 0, %v5688
    %v5690 = vrot.slane %v5685, %v5689
    %v5692 = vpack.i.b16 %v4430, %v4430
    %v5694 = vlaneseq
    %v5695 = vshrl.u32 %v5694, 7
    %v5696 = vsub.s32 0, %v5695
    %v5697 = vrot.slane %v5692, %v5696
    %v5699 = vpack.i.b16 %v4434, %v4434
    %v5701 = vlaneseq
    %v5702 = vshrl.u32 %v5701, 7
    %v5703 = vsub.s32 0, %v5702
    %v5704 = vrot.slane %v5699, %v5703
    %v5706 = vpack.i.b16 %v4438, %v4438
    %v5708 = vlaneseq
    %v5709 = vshrl.u32 %v5708, 7
    %v5710 = vsub.s32 0, %v5709
    %v5711 = vrot.slane %v5706, %v5710
    %v5713 = vpack.i.b16 %v4442, %v4442
    %v5715 = vlaneseq
    %v5716 = vshrl.u32 %v5715, 7
    %v5717 = vsub.s32 0, %v5716
    %v5718 = vrot.slane %v5713, %v5717
    %v5720 = vpack.i.b16 %v4446, %v4446
    %v5722 = vlaneseq
    %v5723 = vshrl.u32 %v5722, 7
    %v5724 = vsub.s32 0, %v5723
    %v5725 = vrot.slane %v5720, %v5724
    %v5727 = vpack.i.b16 %v4450, %v4450
    %v5729 = vlaneseq
    %v5730 = vshrl.u32 %v5729, 7
    %v5731 = vsub.s32 0, %v5730
    %v5732 = vrot.slane %v5727, %v5731
    %v5734 = vpack.i.b16 %v4454, %v4454
    %v5736 = vlaneseq
    %v5737 = vshrl.u32 %v5736, 7
    %v5738 = vsub.s32 0, %v5737
    %v5739 = vrot.slane %v5734, %v5738
    %v5741 = vpack.i.b16 %v4458, %v4458
    %v5743 = vlaneseq
    %v5744 = vshrl.u32 %v5743, 7
    %v5745 = vsub.s32 0, %v5744
    %v5746 = vrot.slane %v5741, %v5745
    %v5748 = vpack.i.b16 %v4462, %v4462
    %v5750 = vlaneseq
    %v5751 = vshrl.u32 %v5750, 7
    %v5752 = vsub.s32 0, %v5751
    %v5753 = vrot.slane %v5748, %v5752
    %v5755 = vpack.i.b16 %v4466, %v4466
    %v5757 = vlaneseq
    %v5758 = vshrl.u32 %v5757, 7
    %v5759 = vsub.s32 0, %v5758
    %v5760 = vrot.slane %v5755, %v5759
    %v5762 = vpack.i.b16 %v4470, %v4470
    %v5764 = vlaneseq
    %v5765 = vshrl.u32 %v5764, 7
    %v5766 = vsub.s32 0, %v5765
    %v5767 = vrot.slane %v5762, %v5766
    %v5769 = vpack.i.b16 %v4474, %v4474
    %v5771 = vlaneseq
    %v5772 = vshrl.u32 %v5771, 7
    %v5773 = vsub.s32 0, %v5772
    %v5774 = vrot.slane %v5769, %v5773
    %v5776 = vpack.i.b16 %v4478, %v4478
    %v5778 = vlaneseq
    %v5779 = vshrl.u32 %v5778, 7
    %v5780 = vsub.s32 0, %v5779
    %v5781 = vrot.slane %v5776, %v5780
    %v5783 = vpack.i.b16 %v4482, %v4482
    %v5785 = vlaneseq
    %v5786 = vshrl.u32 %v5785, 7
    %v5787 = vsub.s32 0, %v5786
    %v5788 = vrot.slane %v5783, %v5787
    %v5790 = vpack.i.b16 %v4486, %v4486
    %v5792 = vlaneseq
    %v5793 = vshrl.u32 %v5792, 7
    %v5794 = vsub.s32 0, %v5793
    %v5795 = vrot.slane %v5790, %v5794
    %v5797 = vpack.i.b16 %v4490, %v4490
    %v5799 = vlaneseq
    %v5800 = vshrl.u32 %v5799, 7
    %v5801 = vsub.s32 0, %v5800
    %v5802 = vrot.slane %v5797, %v5801
    %v5804 = vpack.i.b16 %v4494, %v4494
    %v5806 = vlaneseq
    %v5807 = vshrl.u32 %v5806, 7
    %v5808 = vsub.s32 0, %v5807
    %v5809 = vrot.slane %v5804, %v5808
    %v5811 = vpack.i.b16 %v4498, %v4498
    %v5813 = vlaneseq
    %v5814 = vshrl.u32 %v5813, 7
    %v5815 = vsub.s32 0, %v5814
    %v5816 = vrot.slane %v5811, %v5815
    %v5818 = vpack.i.b16 %v4502, %v4502
    %v5820 = vlaneseq
    %v5821 = vshrl.u32 %v5820, 7
    %v5822 = vsub.s32 0, %v5821
    %v5823 = vrot.slane %v5818, %v5822
    %v5825 = vpack.i.b16 %v4506, %v4506
    %v5827 = vlaneseq
    %v5828 = vshrl.u32 %v5827, 7
    %v5829 = vsub.s32 0, %v5828
    %v5830 = vrot.slane %v5825, %v5829
    %v5832 = vpack.i.b16 %v4510, %v4510
    %v5834 = vlaneseq
    %v5835 = vshrl.u32 %v5834, 7
    %v5836 = vsub.s32 0, %v5835
    %v5837 = vrot.slane %v5832, %v5836
    %v5839 = vpack.i.b16 %v4514, %v4514
    %v5841 = vlaneseq
    %v5842 = vshrl.u32 %v5841, 7
    %v5843 = vsub.s32 0, %v5842
    %v5844 = vrot.slane %v5839, %v5843
    %v5846 = vpack.i.b16 %v4518, %v4518
    %v5848 = vlaneseq
    %v5849 = vshrl.u32 %v5848, 7
    %v5850 = vsub.s32 0, %v5849
    %v5851 = vrot.slane %v5846, %v5850
    %v5853 = vpack.i.b16 %v4522, %v4522
    %v5855 = vlaneseq
    %v5856 = vshrl.u32 %v5855, 7
    %v5857 = vsub.s32 0, %v5856
    %v5858 = vrot.slane %v5853, %v5857
    %v5860 = vpack.i.b16 %v4526, %v4526
    %v5862 = vlaneseq
    %v5863 = vshrl.u32 %v5862, 7
    %v5864 = vsub.s32 0, %v5863
    %v5865 = vrot.slane %v5860, %v5864
    %v5867 = vpack.i.b16 %v4530, %v4530
    %v5869 = vlaneseq
    %v5870 = vshrl.u32 %v5869, 7
    %v5871 = vsub.s32 0, %v5870
    %v5872 = vrot.slane %v5867, %v5871
    %v5874 = vpack.i.b16 %v4534, %v4534
    %v5876 = vlaneseq
    %v5877 = vshrl.u32 %v5876, 7
    %v5878 = vsub.s32 0, %v5877
    %v5879 = vrot.slane %v5874, %v5878
    %v5881 = vpack.i.b16 %v4538, %v4538
    %v5883 = vlaneseq
    %v5884 = vshrl.u32 %v5883, 7
    %v5885 = vsub.s32 0, %v5884
    %v5886 = vrot.slane %v5881, %v5885
    %v5888 = vpack.i.b16 %v4542, %v4542
    %v5890 = vlaneseq
    %v5891 = vshrl.u32 %v5890, 7
    %v5892 = vsub.s32 0, %v5891
    %v5893 = vrot.slane %v5888, %v5892
    %v5895 = vpack.i.b16 %v4546, %v4546
    %v5897 = vlaneseq
    %v5898 = vshrl.u32 %v5897, 7
    %v5899 = vsub.s32 0, %v5898
    %v5900 = vrot.slane %v5895, %v5899
    %v5902 = vpack.i.b16 %v4550, %v4550
    %v5904 = vlaneseq
    %v5905 = vshrl.u32 %v5904, 7
    %v5906 = vsub.s32 0, %v5905
    %v5907 = vrot.slane %v5902, %v5906
    %v5909 = vpack.i.b16 %v4554, %v4554
    %v5911 = vlaneseq
    %v5912 = vshrl.u32 %v5911, 7
    %v5913 = vsub.s32 0, %v5912
    %v5914 = vrot.slane %v5909, %v5913
    %v5916 = vpack.i.b16 %v4558, %v4558
    %v5918 = vlaneseq
    %v5919 = vshrl.u32 %v5918, 7
    %v5920 = vsub.s32 0, %v5919
    %v5921 = vrot.slane %v5916, %v5920
    %v5923 = vpack.i.b16 %v4562, %v4562
    %v5925 = vlaneseq
    %v5926 = vshrl.u32 %v5925, 7
    %v5927 = vsub.s32 0, %v5926
    %v5928 = vrot.slane %v5923, %v5927
    %v5930 = vpack.i.b16 %v4566, %v4566
    %v5932 = vlaneseq
    %v5933 = vshrl.u32 %v5932, 7
    %v5934 = vsub.s32 0, %v5933
    %v5935 = vrot.slane %v5930, %v5934
    %v5937 = vpack.i.b16 %v4570, %v4570
    %v5939 = vlaneseq
    %v5940 = vshrl.u32 %v5939, 7
    %v5941 = vsub.s32 0, %v5940
    %v5942 = vrot.slane %v5937, %v5941
    %v5944 = vpack.i.b16 %v4574, %v4574
    %v5946 = vlaneseq
    %v5947 = vshrl.u32 %v5946, 7
    %v5948 = vsub.s32 0, %v5947
    %v5949 = vrot.slane %v5944, %v5948
    %v5951 = vpack.i.b16 %v4578, %v4578
    %v5953 = vlaneseq
    %v5954 = vshrl.u32 %v5953, 7
    %v5955 = vsub.s32 0, %v5954
    %v5956 = vrot.slane %v5951, %v5955
    %v5958 = vpack.i.b16 %v4582, %v4582
    %v5960 = vlaneseq
    %v5961 = vshrl.u32 %v5960, 7
    %v5962 = vsub.s32 0, %v5961
    %v5963 = vrot.slane %v5958, %v5962
    %v5965 = vpack.i.b16 %v4586, %v4586
    %v5967 = vlaneseq
    %v5968 = vshrl.u32 %v5967, 7
    %v5969 = vsub.s32 0, %v5968
    %v5970 = vrot.slane %v5965, %v5969
    %v5972 = vpack.i.b16 %v4590, %v4590
    %v5974 = vlaneseq
    %v5975 = vshrl.u32 %v5974, 7
    %v5976 = vsub.s32 0, %v5975
    %v5977 = vrot.slane %v5972, %v5976
    %v5979 = vpack.i.b16 %v4594, %v4594
    %v5981 = vlaneseq
    %v5982 = vshrl.u32 %v5981, 7
    %v5983 = vsub.s32 0, %v5982
    %v5984 = vrot.slane %v5979, %v5983
    %v5986 = vpack.i.b16 %v4598, %v4598
    %v5988 = vlaneseq
    %v5989 = vshrl.u32 %v5988, 7
    %v5990 = vsub.s32 0, %v5989
    %v5991 = vrot.slane %v5986, %v5990
    %v5993 = vpack.i.b16 %v4602, %v4602
    %v5995 = vlaneseq
    %v5996 = vshrl.u32 %v5995, 7
    %v5997 = vsub.s32 0, %v5996
    %v5998 = vrot.slane %v5993, %v5997
    %v6000 = vpack.i.b16 %v4606, %v4606
    %v6002 = vlaneseq
    %v6003 = vshrl.u32 %v6002, 7
    %v6004 = vsub.s32 0, %v6003
    %v6005 = vrot.slane %v6000, %v6004
    %v6007 = vpack.i.b16 %v4610, %v4610
    %v6009 = vlaneseq
    %v6010 = vshrl.u32 %v6009, 7
    %v6011 = vsub.s32 0, %v6010
    %v6012 = vrot.slane %v6007, %v6011
    %v6014 = vpack.i.b16 %v4614, %v4614
    %v6016 = vlaneseq
    %v6017 = vshrl.u32 %v6016, 7
    %v6018 = vsub.s32 0, %v6017
    %v6019 = vrot.slane %v6014, %v6018
    %v6021 = vpack.i.b16 %v4618, %v4618
    %v6023 = vlaneseq
    %v6024 = vshrl.u32 %v6023, 7
    %v6025 = vsub.s32 0, %v6024
    %v6026 = vrot.slane %v6021, %v6025
    %v6028 = vpack.i.b16 %v4622, %v4622
    %v6030 = vlaneseq
    %v6031 = vshrl.u32 %v6030, 7
    %v6032 = vsub.s32 0, %v6031
    %v6033 = vrot.slane %v6028, %v6032
    %v6035 = vpack.i.b16 %v4626, %v4626
    %v6037 = vlaneseq
    %v6038 = vshrl.u32 %v6037, 7
    %v6039 = vsub.s32 0, %v6038
    %v6040 = vrot.slane %v6035, %v6039
    %v6042 = vpack.i.b16 %v4630, %v4630
    %v6044 = vlaneseq
    %v6045 = vshrl.u32 %v6044, 7
    %v6046 = vsub.s32 0, %v6045
    %v6047 = vrot.slane %v6042, %v6046
    %v6049 = vpack.i.b16 %v4634, %v4634
    %v6051 = vlaneseq
    %v6052 = vshrl.u32 %v6051, 7
    %v6053 = vsub.s32 0, %v6052
    %v6054 = vrot.slane %v6049, %v6053
    %v6056 = vpack.i.b16 %v4638, %v4638
    %v6058 = vlaneseq
    %v6059 = vshrl.u32 %v6058, 7
    %v6060 = vsub.s32 0, %v6059
    %v6061 = vrot.slane %v6056, %v6060
    %v6063 = vpack.i.b16 %v4642, %v4642
    %v6065 = vlaneseq
    %v6066 = vshrl.u32 %v6065, 7
    %v6067 = vsub.s32 0, %v6066
    %v6068 = vrot.slane %v6063, %v6067
    %v6070 = vpack.i.b16 %v4646, %v4646
    %v6072 = vlaneseq
    %v6073 = vshrl.u32 %v6072, 7
    %v6074 = vsub.s32 0, %v6073
    %v6075 = vrot.slane %v6070, %v6074
    %v6077 = vpack.i.b16 %v4650, %v4650
    %v6079 = vlaneseq
    %v6080 = vshrl.u32 %v6079, 7
    %v6081 = vsub.s32 0, %v6080
    %v6082 = vrot.slane %v6077, %v6081
    %v6084 = vpack.i.b16 %v4654, %v4654
    %v6086 = vlaneseq
    %v6087 = vshrl.u32 %v6086, 7
    %v6088 = vsub.s32 0, %v6087
    %v6089 = vrot.slane %v6084, %v6088
    %v6091 = vpack.i.b16 %v4658, %v4658
    %v6093 = vlaneseq
    %v6094 = vshrl.u32 %v6093, 7
    %v6095 = vsub.s32 0, %v6094
    %v6096 = vrot.slane %v6091, %v6095
    %v6098 = vpack.i.b16 %v4662, %v4662
    %v6100 = vlaneseq
    %v6101 = vshrl.u32 %v6100, 7
    %v6102 = vsub.s32 0, %v6101
    %v6103 = vrot.slane %v6098, %v6102
    %v6105 = vpack.i.b16 %v4666, %v4666
    %v6107 = vlaneseq
    %v6108 = vshrl.u32 %v6107, 7
    %v6109 = vsub.s32 0, %v6108
    %v6110 = vrot.slane %v6105, %v6109
    %v6112 = vpack.i.b16 %v4670, %v4670
    %v6114 = vlaneseq
    %v6115 = vshrl.u32 %v6114, 7
    %v6116 = vsub.s32 0, %v6115
    %v6117 = vrot.slane %v6112, %v6116
    %v6119 = vpack.i.b16 %v4674, %v4674
    %v6121 = vlaneseq
    %v6122 = vshrl.u32 %v6121, 7
    %v6123 = vsub.s32 0, %v6122
    %v6124 = vrot.slane %v6119, %v6123
    %v6126 = vpack.i.b16 %v4678, %v4678
    %v6128 = vlaneseq
    %v6129 = vshrl.u32 %v6128, 7
    %v6130 = vsub.s32 0, %v6129
    %v6131 = vrot.slane %v6126, %v6130
    %v6133 = vpack.i.b16 %v4682, %v4682
    %v6135 = vlaneseq
    %v6136 = vshrl.u32 %v6135, 7
    %v6137 = vsub.s32 0, %v6136
    %v6138 = vrot.slane %v6133, %v6137
    %v6140 = vpack.i.b16 %v4686, %v4686
    %v6142 = vlaneseq
    %v6143 = vshrl.u32 %v6142, 7
    %v6144 = vsub.s32 0, %v6143
    %v6145 = vrot.slane %v6140, %v6144
    %v6147 = vpack.i.b16 %v4690, %v4690
    %v6149 = vlaneseq
    %v6150 = vshrl.u32 %v6149, 7
    %v6151 = vsub.s32 0, %v6150
    %v6152 = vrot.slane %v6147, %v6151
    %v6154 = vpack.i.b16 %v4694, %v4694
    %v6156 = vlaneseq
    %v6157 = vshrl.u32 %v6156, 7
    %v6158 = vsub.s32 0, %v6157
    %v6159 = vrot.slane %v6154, %v6158
    %v6161 = vpack.i.b16 %v4698, %v4698
    %v6163 = vlaneseq
    %v6164 = vshrl.u32 %v6163, 7
    %v6165 = vsub.s32 0, %v6164
    %v6166 = vrot.slane %v6161, %v6165
    %v6168 = vpack.i.b16 %v4702, %v4702
    %v6170 = vlaneseq
    %v6171 = vshrl.u32 %v6170, 7
    %v6172 = vsub.s32 0, %v6171
    %v6173 = vrot.slane %v6168, %v6172
    %v6175 = vpack.i.b16 %v4706, %v4706
    %v6177 = vlaneseq
    %v6178 = vshrl.u32 %v6177, 7
    %v6179 = vsub.s32 0, %v6178
    %v6180 = vrot.slane %v6175, %v6179
    %v6182 = vpack.i.b16 %v4710, %v4710
    %v6184 = vlaneseq
    %v6185 = vshrl.u32 %v6184, 7
    %v6186 = vsub.s32 0, %v6185
    %v6187 = vrot.slane %v6182, %v6186
    %v6189 = vpack.i.b16 %v4714, %v4714
    %v6191 = vlaneseq
    %v6192 = vshrl.u32 %v6191, 7
    %v6193 = vsub.s32 0, %v6192
    %v6194 = vrot.slane %v6189, %v6193
    %v6196 = vpack.i.b16 %v4718, %v4718
    %v6198 = vlaneseq
    %v6199 = vshrl.u32 %v6198, 7
    %v6200 = vsub.s32 0, %v6199
    %v6201 = vrot.slane %v6196, %v6200
    %v6203 = vpack.i.b16 %v4722, %v4722
    %v6205 = vlaneseq
    %v6206 = vshrl.u32 %v6205, 7
    %v6207 = vsub.s32 0, %v6206
    %v6208 = vrot.slane %v6203, %v6207
    %v6210 = vpack.i.b16 %v4726, %v4726
    %v6212 = vlaneseq
    %v6213 = vshrl.u32 %v6212, 7
    %v6214 = vsub.s32 0, %v6213
    %v6215 = vrot.slane %v6210, %v6214
    %v6217 = vpack.i.b16 %v4730, %v4730
    %v6219 = vlaneseq
    %v6220 = vshrl.u32 %v6219, 7
    %v6221 = vsub.s32 0, %v6220
    %v6222 = vrot.slane %v6217, %v6221
    %v6224 = vpack.i.b16 %v4734, %v4734
    %v6226 = vlaneseq
    %v6227 = vshrl.u32 %v6226, 7
    %v6228 = vsub.s32 0, %v6227
    %v6229 = vrot.slane %v6224, %v6228
    %v6231 = vpack.i.b16 %v4738, %v4738
    %v6233 = vlaneseq
    %v6234 = vshrl.u32 %v6233, 7
    %v6235 = vsub.s32 0, %v6234
    %v6236 = vrot.slane %v6231, %v6235
    %v6238 = vpack.i.b16 %v4742, %v4742
    %v6240 = vlaneseq
    %v6241 = vshrl.u32 %v6240, 7
    %v6242 = vsub.s32 0, %v6241
    %v6243 = vrot.slane %v6238, %v6242
    %v6245 = vpack.i.b16 %v4746, %v4746
    %v6247 = vlaneseq
    %v6248 = vshrl.u32 %v6247, 7
    %v6249 = vsub.s32 0, %v6248
    %v6250 = vrot.slane %v6245, %v6249
    %v6252 = vpack.i.b16 %v4750, %v4750
    %v6254 = vlaneseq
    %v6255 = vshrl.u32 %v6254, 7
    %v6256 = vsub.s32 0, %v6255
    %v6257 = vrot.slane %v6252, %v6256
    %v6259 = vpack.i.b16 %v4754, %v4754
    %v6261 = vlaneseq
    %v6262 = vshrl.u32 %v6261, 7
    %v6263 = vsub.s32 0, %v6262
    %v6264 = vrot.slane %v6259, %v6263
    %v6266 = vpack.i.b16 %v4758, %v4758
    %v6268 = vlaneseq
    %v6269 = vshrl.u32 %v6268, 7
    %v6270 = vsub.s32 0, %v6269
    %v6271 = vrot.slane %v6266, %v6270
    %v6273 = vpack.i.b16 %v4762, %v4762
    %v6275 = vlaneseq
    %v6276 = vshrl.u32 %v6275, 7
    %v6277 = vsub.s32 0, %v6276
    %v6278 = vrot.slane %v6273, %v6277
    %v6280 = vpack.i.b16 %v4766, %v4766
    %v6282 = vlaneseq
    %v6283 = vshrl.u32 %v6282, 7
    %v6284 = vsub.s32 0, %v6283
    %v6285 = vrot.slane %v6280, %v6284
    %v6287 = vpack.i.b16 %v4770, %v4770
    %v6289 = vlaneseq
    %v6290 = vshrl.u32 %v6289, 7
    %v6291 = vsub.s32 0, %v6290
    %v6292 = vrot.slane %v6287, %v6291
    %v6294 = vpack.i.b16 %v4774, %v4774
    %v6296 = vlaneseq
    %v6297 = vshrl.u32 %v6296, 7
    %v6298 = vsub.s32 0, %v6297
    %v6299 = vrot.slane %v6294, %v6298
    %v6301 = vpack.i.b16 %v4778, %v4778
    %v6303 = vlaneseq
    %v6304 = vshrl.u32 %v6303, 7
    %v6305 = vsub.s32 0, %v6304
    %v6306 = vrot.slane %v6301, %v6305
    %v6308 = vpack.i.b16 %v4782, %v4782
    %v6310 = vlaneseq
    %v6311 = vshrl.u32 %v6310, 7
    %v6312 = vsub.s32 0, %v6311
    %v6313 = vrot.slane %v6308, %v6312
    %v6315 = vpack.i.b16 %v4786, %v4786
    %v6317 = vlaneseq
    %v6318 = vshrl.u32 %v6317, 7
    %v6319 = vsub.s32 0, %v6318
    %v6320 = vrot.slane %v6315, %v6319
    %v6322 = vpack.i.b16 %v4790, %v4790
    %v6324 = vlaneseq
    %v6325 = vshrl.u32 %v6324, 7
    %v6326 = vsub.s32 0, %v6325
    %v6327 = vrot.slane %v6322, %v6326
    %v6329 = vpack.i.b16 %v4794, %v4794
    %v6331 = vlaneseq
    %v6332 = vshrl.u32 %v6331, 7
    %v6333 = vsub.s32 0, %v6332
    %v6334 = vrot.slane %v6329, %v6333
    %v6336 = vpack.i.b16 %v4798, %v4798
    %v6338 = vlaneseq
    %v6339 = vshrl.u32 %v6338, 7
    %v6340 = vsub.s32 0, %v6339
    %v6341 = vrot.slane %v6336, %v6340
    %v6343 = vpack.i.b16 %v4802, %v4802
    %v6345 = vlaneseq
    %v6346 = vshrl.u32 %v6345, 7
    %v6347 = vsub.s32 0, %v6346
    %v6348 = vrot.slane %v6343, %v6347
    %v6350 = vpack.i.b16 %v4806, %v4806
    %v6352 = vlaneseq
    %v6353 = vshrl.u32 %v6352, 7
    %v6354 = vsub.s32 0, %v6353
    %v6355 = vrot.slane %v6350, %v6354
    %v6357 = vpack.i.b16 %v4810, %v4810
    %v6359 = vlaneseq
    %v6360 = vshrl.u32 %v6359, 7
    %v6361 = vsub.s32 0, %v6360
    %v6362 = vrot.slane %v6357, %v6361
    %v6364 = vpack.i.b16 %v4814, %v4814
    %v6366 = vlaneseq
    %v6367 = vshrl.u32 %v6366, 7
    %v6368 = vsub.s32 0, %v6367
    %v6369 = vrot.slane %v6364, %v6368
    %v6371 = vpack.i.b16 %v4818, %v4818
    %v6373 = vlaneseq
    %v6374 = vshrl.u32 %v6373, 7
    %v6375 = vsub.s32 0, %v6374
    %v6376 = vrot.slane %v6371, %v6375
    %v6378 = vpack.i.b16 %v4822, %v4822
    %v6380 = vlaneseq
    %v6381 = vshrl.u32 %v6380, 7
    %v6382 = vsub.s32 0, %v6381
    %v6383 = vrot.slane %v6378, %v6382
    %v6385 = vpack.i.b16 %v4826, %v4826
    %v6387 = vlaneseq
    %v6388 = vshrl.u32 %v6387, 7
    %v6389 = vsub.s32 0, %v6388
    %v6390 = vrot.slane %v6385, %v6389
    %v6392 = vpack.i.b16 %v4830, %v4830
    %v6394 = vlaneseq
    %v6395 = vshrl.u32 %v6394, 7
    %v6396 = vsub.s32 0, %v6395
    %v6397 = vrot.slane %v6392, %v6396
    %v6399 = vpack.i.b16 %v4834, %v4834
    %v6401 = vlaneseq
    %v6402 = vshrl.u32 %v6401, 7
    %v6403 = vsub.s32 0, %v6402
    %v6404 = vrot.slane %v6399, %v6403
    %v6406 = vpack.i.b16 %v4838, %v4838
    %v6408 = vlaneseq
    %v6409 = vshrl.u32 %v6408, 7
    %v6410 = vsub.s32 0, %v6409
    %v6411 = vrot.slane %v6406, %v6410
    %v6413 = vpack.i.b16 %v4842, %v4842
    %v6415 = vlaneseq
    %v6416 = vshrl.u32 %v6415, 7
    %v6417 = vsub.s32 0, %v6416
    %v6418 = vrot.slane %v6413, %v6417
    %v6420 = vpack.i.b16 %v4846, %v4846
    %v6422 = vlaneseq
    %v6423 = vshrl.u32 %v6422, 7
    %v6424 = vsub.s32 0, %v6423
    %v6425 = vrot.slane %v6420, %v6424
    %v6427 = vpack.i.b16 %v4850, %v4850
    %v6429 = vlaneseq
    %v6430 = vshrl.u32 %v6429, 7
    %v6431 = vsub.s32 0, %v6430
    %v6432 = vrot.slane %v6427, %v6431
    %v6434 = vpack.i.b16 %v4854, %v4854
    %v6436 = vlaneseq
    %v6437 = vshrl.u32 %v6436, 7
    %v6438 = vsub.s32 0, %v6437
    %v6439 = vrot.slane %v6434, %v6438
    %v6441 = vpack.i.b16 %v4858, %v4858
    %v6443 = vlaneseq
    %v6444 = vshrl.u32 %v6443, 7
    %v6445 = vsub.s32 0, %v6444
    %v6446 = vrot.slane %v6441, %v6445
    %v6448 = vpack.i.b16 %v4862, %v4862
    %v6450 = vlaneseq
    %v6451 = vshrl.u32 %v6450, 7
    %v6452 = vsub.s32 0, %v6451
    %v6453 = vrot.slane %v6448, %v6452
    %v6455 = vpack.i.b16 %v4866, %v4866
    %v6457 = vlaneseq
    %v6458 = vshrl.u32 %v6457, 7
    %v6459 = vsub.s32 0, %v6458
    %v6460 = vrot.slane %v6455, %v6459
    %v6462 = vpack.i.b16 %v4870, %v4870
    %v6464 = vlaneseq
    %v6465 = vshrl.u32 %v6464, 7
    %v6466 = vsub.s32 0, %v6465
    %v6467 = vrot.slane %v6462, %v6466
    %v6469 = vpack.i.b16 %v4874, %v4874
    %v6471 = vlaneseq
    %v6472 = vshrl.u32 %v6471, 7
    %v6473 = vsub.s32 0, %v6472
    %v6474 = vrot.slane %v6469, %v6473
    %v6476 = vpack.i.b16 %v4878, %v4878
    %v6478 = vlaneseq
    %v6479 = vshrl.u32 %v6478, 7
    %v6480 = vsub.s32 0, %v6479
    %v6481 = vrot.slane %v6476, %v6480
    %v6483 = vpack.i.b16 %v4882, %v4882
    %v6485 = vlaneseq
    %v6486 = vshrl.u32 %v6485, 7
    %v6487 = vsub.s32 0, %v6486
    %v6488 = vrot.slane %v6483, %v6487
    %v6490 = vpack.i.b16 %v4886, %v4886
    %v6492 = vlaneseq
    %v6493 = vshrl.u32 %v6492, 7
    %v6494 = vsub.s32 0, %v6493
    %v6495 = vrot.slane %v6490, %v6494
    %v6497 = vpack.i.b16 %v4890, %v4890
    %v6499 = vlaneseq
    %v6500 = vshrl.u32 %v6499, 7
    %v6501 = vsub.s32 0, %v6500
    %v6502 = vrot.slane %v6497, %v6501
    %v6504 = vpack.i.b16 %v4894, %v4894
    %v6506 = vlaneseq
    %v6507 = vshrl.u32 %v6506, 7
    %v6508 = vsub.s32 0, %v6507
    %v6509 = vrot.slane %v6504, %v6508
    %v6511 = vpack.i.b16 %v4898, %v4898
    %v6513 = vlaneseq
    %v6514 = vshrl.u32 %v6513, 7
    %v6515 = vsub.s32 0, %v6514
    %v6516 = vrot.slane %v6511, %v6515
    %v6518 = vpack.i.b16 %v4902, %v4902
    %v6520 = vlaneseq
    %v6521 = vshrl.u32 %v6520, 7
    %v6522 = vsub.s32 0, %v6521
    %v6523 = vrot.slane %v6518, %v6522
    %v6525 = vpack.i.b16 %v4906, %v4906
    %v6527 = vlaneseq
    %v6528 = vshrl.u32 %v6527, 7
    %v6529 = vsub.s32 0, %v6528
    %v6530 = vrot.slane %v6525, %v6529
    %v6532 = vpack.i.b16 %v4910, %v4910
    %v6534 = vlaneseq
    %v6535 = vshrl.u32 %v6534, 7
    %v6536 = vsub.s32 0, %v6535
    %v6537 = vrot.slane %v6532, %v6536
    %v6539 = vpack.i.b16 %v4914, %v4914
    %v6541 = vlaneseq
    %v6542 = vshrl.u32 %v6541, 7
    %v6543 = vsub.s32 0, %v6542
    %v6544 = vrot.slane %v6539, %v6543
    %v6546 = vpack.i.b16 %v4918, %v4918
    %v6548 = vlaneseq
    %v6549 = vshrl.u32 %v6548, 7
    %v6550 = vsub.s32 0, %v6549
    %v6551 = vrot.slane %v6546, %v6550
    %v6553 = vpack.i.b16 %v4922, %v4922
    %v6555 = vlaneseq
    %v6556 = vshrl.u32 %v6555, 7
    %v6557 = vsub.s32 0, %v6556
    %v6558 = vrot.slane %v6553, %v6557
    %v6560 = vpack.i.b16 %v4926, %v4926
    %v6562 = vlaneseq
    %v6563 = vshrl.u32 %v6562, 7
    %v6564 = vsub.s32 0, %v6563
    %v6565 = vrot.slane %v6560, %v6564
    %v6567 = vpack.i.b16 %v4930, %v4930
    %v6569 = vlaneseq
    %v6570 = vshrl.u32 %v6569, 7
    %v6571 = vsub.s32 0, %v6570
    %v6572 = vrot.slane %v6567, %v6571
    %v6574 = vpack.i.b16 %v4934, %v4934
    %v6576 = vlaneseq
    %v6577 = vshrl.u32 %v6576, 7
    %v6578 = vsub.s32 0, %v6577
    %v6579 = vrot.slane %v6574, %v6578
    %v6581 = vpack.i.b16 %v4938, %v4938
    %v6583 = vlaneseq
    %v6584 = vshrl.u32 %v6583, 7
    %v6585 = vsub.s32 0, %v6584
    %v6586 = vrot.slane %v6581, %v6585
    %v6588 = vpack.i.b16 %v4942, %v4942
    %v6590 = vlaneseq
    %v6591 = vshrl.u32 %v6590, 7
    %v6592 = vsub.s32 0, %v6591
    %v6593 = vrot.slane %v6588, %v6592
    %v6595 = vpack.i.b16 %v4946, %v4946
    %v6597 = vlaneseq
    %v6598 = vshrl.u32 %v6597, 7
    %v6599 = vsub.s32 0, %v6598
    %v6600 = vrot.slane %v6595, %v6599
    %v6602 = vpack.i.b16 %v4950, %v4950
    %v6604 = vlaneseq
    %v6605 = vshrl.u32 %v6604, 7
    %v6606 = vsub.s32 0, %v6605
    %v6607 = vrot.slane %v6602, %v6606
    %v6609 = vpack.i.b16 %v4954, %v4954
    %v6611 = vlaneseq
    %v6612 = vshrl.u32 %v6611, 7
    %v6613 = vsub.s32 0, %v6612
    %v6614 = vrot.slane %v6609, %v6613
    %v6616 = vpack.i.b16 %v4958, %v4958
    %v6618 = vlaneseq
    %v6619 = vshrl.u32 %v6618, 7
    %v6620 = vsub.s32 0, %v6619
    %v6621 = vrot.slane %v6616, %v6620
    %v6623 = vpack.i.b16 %v4962, %v4962
    %v6625 = vlaneseq
    %v6626 = vshrl.u32 %v6625, 7
    %v6627 = vsub.s32 0, %v6626
    %v6628 = vrot.slane %v6623, %v6627
    %v6630 = vpack.i.b16 %v4966, %v4966
    %v6632 = vlaneseq
    %v6633 = vshrl.u32 %v6632, 7
    %v6634 = vsub.s32 0, %v6633
    %v6635 = vrot.slane %v6630, %v6634
    %v6637 = vpack.i.b16 %v4970, %v4970
    %v6639 = vlaneseq
    %v6640 = vshrl.u32 %v6639, 7
    %v6641 = vsub.s32 0, %v6640
    %v6642 = vrot.slane %v6637, %v6641
    %v6644 = vpack.i.b16 %v4974, %v4974
    %v6646 = vlaneseq
    %v6647 = vshrl.u32 %v6646, 7
    %v6648 = vsub.s32 0, %v6647
    %v6649 = vrot.slane %v6644, %v6648
    %v6651 = vpack.i.b16 %v4978, %v4978
    %v6653 = vlaneseq
    %v6654 = vshrl.u32 %v6653, 7
    %v6655 = vsub.s32 0, %v6654
    %v6656 = vrot.slane %v6651, %v6655
    %v6658 = vpack.i.b16 %v4982, %v4982
    %v6660 = vlaneseq
    %v6661 = vshrl.u32 %v6660, 7
    %v6662 = vsub.s32 0, %v6661
    %v6663 = vrot.slane %v6658, %v6662
    %v6665 = vpack.i.b16 %v4986, %v4986
    %v6667 = vlaneseq
    %v6668 = vshrl.u32 %v6667, 7
    %v6669 = vsub.s32 0, %v6668
    %v6670 = vrot.slane %v6665, %v6669
    %v6672 = vpack.i.b16 %v4990, %v4990
    %v6674 = vlaneseq
    %v6675 = vshrl.u32 %v6674, 7
    %v6676 = vsub.s32 0, %v6675
    %v6677 = vrot.slane %v6672, %v6676
    %v6679 = vpack.i.b16 %v4994, %v4994
    %v6681 = vlaneseq
    %v6682 = vshrl.u32 %v6681, 7
    %v6683 = vsub.s32 0, %v6682
    %v6684 = vrot.slane %v6679, %v6683
    %v6686 = vpack.i.b16 %v4998, %v4998
    %v6688 = vlaneseq
    %v6689 = vshrl.u32 %v6688, 7
    %v6690 = vsub.s32 0, %v6689
    %v6691 = vrot.slane %v6686, %v6690
    %v6693 = vpack.i.b16 %v5002, %v5002
    %v6695 = vlaneseq
    %v6696 = vshrl.u32 %v6695, 7
    %v6697 = vsub.s32 0, %v6696
    %v6698 = vrot.slane %v6693, %v6697
    %v6700 = vpack.i.b16 %v5006, %v5006
    %v6702 = vlaneseq
    %v6703 = vshrl.u32 %v6702, 7
    %v6704 = vsub.s32 0, %v6703
    %v6705 = vrot.slane %v6700, %v6704
    %v6707 = vpack.i.b16 %v5010, %v5010
    %v6709 = vlaneseq
    %v6710 = vshrl.u32 %v6709, 7
    %v6711 = vsub.s32 0, %v6710
    %v6712 = vrot.slane %v6707, %v6711
    %v6714 = vpack.i.b16 %v5014, %v5014
    %v6716 = vlaneseq
    %v6717 = vshrl.u32 %v6716, 7
    %v6718 = vsub.s32 0, %v6717
    %v6719 = vrot.slane %v6714, %v6718
    %v6721 = vpack.i.b16 %v5018, %v5018
    %v6723 = vlaneseq
    %v6724 = vshrl.u32 %v6723, 7
    %v6725 = vsub.s32 0, %v6724
    %v6726 = vrot.slane %v6721, %v6725
    %v6728 = vpack.i.b16 %v5022, %v5022
    %v6730 = vlaneseq
    %v6731 = vshrl.u32 %v6730, 7
    %v6732 = vsub.s32 0, %v6731
    %v6733 = vrot.slane %v6728, %v6732
    %v6735 = vpack.i.b16 %v5026, %v5026
    %v6737 = vlaneseq
    %v6738 = vshrl.u32 %v6737, 7
    %v6739 = vsub.s32 0, %v6738
    %v6740 = vrot.slane %v6735, %v6739
    %v6742 = vpack.i.b16 %v5030, %v5030
    %v6744 = vlaneseq
    %v6745 = vshrl.u32 %v6744, 7
    %v6746 = vsub.s32 0, %v6745
    %v6747 = vrot.slane %v6742, %v6746
    %v6749 = vpack.i.b16 %v5034, %v5034
    %v6751 = vlaneseq
    %v6752 = vshrl.u32 %v6751, 7
    %v6753 = vsub.s32 0, %v6752
    %v6754 = vrot.slane %v6749, %v6753
    %v6756 = vpack.i.b16 %v5038, %v5038
    %v6758 = vlaneseq
    %v6759 = vshrl.u32 %v6758, 7
    %v6760 = vsub.s32 0, %v6759
    %v6761 = vrot.slane %v6756, %v6760
    %v6763 = vpack.i.b16 %v5042, %v5042
    %v6765 = vlaneseq
    %v6766 = vshrl.u32 %v6765, 7
    %v6767 = vsub.s32 0, %v6766
    %v6768 = vrot.slane %v6763, %v6767
    %v6770 = vpack.i.b16 %v5046, %v5046
    %v6772 = vlaneseq
    %v6773 = vshrl.u32 %v6772, 7
    %v6774 = vsub.s32 0, %v6773
    %v6775 = vrot.slane %v6770, %v6774
    %v6777 = vpack.i.b16 %v5050, %v5050
    %v6779 = vlaneseq
    %v6780 = vshrl.u32 %v6779, 7
    %v6781 = vsub.s32 0, %v6780
    %v6782 = vrot.slane %v6777, %v6781
    %v6784 = vpack.i.b16 %v5054, %v5054
    %v6786 = vlaneseq
    %v6787 = vshrl.u32 %v6786, 7
    %v6788 = vsub.s32 0, %v6787
    %v6789 = vrot.slane %v6784, %v6788
    %v6791 = vpack.i.b16 %v5058, %v5058
    %v6793 = vlaneseq
    %v6794 = vshrl.u32 %v6793, 7
    %v6795 = vsub.s32 0, %v6794
    %v6796 = vrot.slane %v6791, %v6795
    %v6798 = vpack.i.b16 %v5062, %v5062
    %v6800 = vlaneseq
    %v6801 = vshrl.u32 %v6800, 7
    %v6802 = vsub.s32 0, %v6801
    %v6803 = vrot.slane %v6798, %v6802
    %v6805 = vpack.i.b16 %v5066, %v5066
    %v6807 = vlaneseq
    %v6808 = vshrl.u32 %v6807, 7
    %v6809 = vsub.s32 0, %v6808
    %v6810 = vrot.slane %v6805, %v6809
    %v6812 = vpack.i.b16 %v5070, %v5070
    %v6814 = vlaneseq
    %v6815 = vshrl.u32 %v6814, 7
    %v6816 = vsub.s32 0, %v6815
    %v6817 = vrot.slane %v6812, %v6816
    %v6819 = vpack.i.b16 %v5074, %v5074
    %v6821 = vlaneseq
    %v6822 = vshrl.u32 %v6821, 7
    %v6823 = vsub.s32 0, %v6822
    %v6824 = vrot.slane %v6819, %v6823
    %v6826 = vpack.i.b16 %v5078, %v5078
    %v6828 = vlaneseq
    %v6829 = vshrl.u32 %v6828, 7
    %v6830 = vsub.s32 0, %v6829
    %v6831 = vrot.slane %v6826, %v6830
    %v6833 = vpack.i.b16 %v5082, %v5082
    %v6835 = vlaneseq
    %v6836 = vshrl.u32 %v6835, 7
    %v6837 = vsub.s32 0, %v6836
    %v6838 = vrot.slane %v6833, %v6837
    %v6840 = vpack.i.b16 %v5086, %v5086
    %v6842 = vlaneseq
    %v6843 = vshrl.u32 %v6842, 7
    %v6844 = vsub.s32 0, %v6843
    %v6845 = vrot.slane %v6840, %v6844
    %v6847 = vpack.i.b16 %v5090, %v5090
    %v6849 = vlaneseq
    %v6850 = vshrl.u32 %v6849, 7
    %v6851 = vsub.s32 0, %v6850
    %v6852 = vrot.slane %v6847, %v6851
    %v6854 = vpack.i.b16 %v5094, %v5094
    %v6856 = vlaneseq
    %v6857 = vshrl.u32 %v6856, 7
    %v6858 = vsub.s32 0, %v6857
    %v6859 = vrot.slane %v6854, %v6858
    %v6861 = vpack.i.b16 %v5098, %v5098
    %v6863 = vlaneseq
    %v6864 = vshrl.u32 %v6863, 7
    %v6865 = vsub.s32 0, %v6864
    %v6866 = vrot.slane %v6861, %v6865
    %v6868 = vpack.i.b16 %v5102, %v5102
    %v6870 = vlaneseq
    %v6871 = vshrl.u32 %v6870, 7
    %v6872 = vsub.s32 0, %v6871
    %v6873 = vrot.slane %v6868, %v6872
    %v6875 = vpack.i.b16 %v5106, %v5106
    %v6877 = vlaneseq
    %v6878 = vshrl.u32 %v6877, 7
    %v6879 = vsub.s32 0, %v6878
    %v6880 = vrot.slane %v6875, %v6879
    %v6882 = vpack.i.b16 %v5110, %v5110
    %v6884 = vlaneseq
    %v6885 = vshrl.u32 %v6884, 7
    %v6886 = vsub.s32 0, %v6885
    %v6887 = vrot.slane %v6882, %v6886
    %v6889 = vpack.i.b16 %v5114, %v5114
    %v6891 = vlaneseq
    %v6892 = vshrl.u32 %v6891, 7
    %v6893 = vsub.s32 0, %v6892
    %v6894 = vrot.slane %v6889, %v6893
    %v6896 = vpack.i.b16 %v5118, %v5118
    %v6898 = vlaneseq
    %v6899 = vshrl.u32 %v6898, 7
    %v6900 = vsub.s32 0, %v6899
    %v6901 = vrot.slane %v6896, %v6900
    %v6903 = vpack.i.b16 %v5122, %v5122
    %v6905 = vlaneseq
    %v6906 = vshrl.u32 %v6905, 7
    %v6907 = vsub.s32 0, %v6906
    %v6908 = vrot.slane %v6903, %v6907
    %v6910 = vpack.i.b16 %v5126, %v5126
    %v6912 = vlaneseq
    %v6913 = vshrl.u32 %v6912, 7
    %v6914 = vsub.s32 0, %v6913
    %v6915 = vrot.slane %v6910, %v6914
    %v6917 = vpack.i.b16 %v5130, %v5130
    %v6919 = vlaneseq
    %v6920 = vshrl.u32 %v6919, 7
    %v6921 = vsub.s32 0, %v6920
    %v6922 = vrot.slane %v6917, %v6921
    %v6923 = vmul.bf16 %v916, %v5137
    %v6924 = vmul.bf16 %v926, %v5144
    %v6925 = vmul.bf16 %v933, %v5151
    %v6926 = vmul.bf16 %v940, %v5158
    %v6927 = vmul.bf16 %v947, %v5165
    %v6928 = vmul.bf16 %v954, %v5172
    %v6929 = vmul.bf16 %v961, %v5179
    %v6930 = vmul.bf16 %v968, %v5186
    %v6931 = vmul.bf16 %v975, %v5193
    %v6932 = vmul.bf16 %v982, %v5200
    %v6933 = vmul.bf16 %v989, %v5207
    %v6934 = vmul.bf16 %v996, %v5214
    %v6935 = vmul.bf16 %v1003, %v5221
    %v6936 = vmul.bf16 %v1010, %v5228
    %v6937 = vmul.bf16 %v1017, %v5235
    %v6938 = vmul.bf16 %v1024, %v5242
    %v6939 = vmul.bf16 %v1034, %v5249
    %v6940 = vmul.bf16 %v1044, %v5256
    %v6941 = vmul.bf16 %v1051, %v5263
    %v6942 = vmul.bf16 %v1058, %v5270
    %v6943 = vmul.bf16 %v1065, %v5277
    %v6944 = vmul.bf16 %v1072, %v5284
    %v6945 = vmul.bf16 %v1079, %v5291
    %v6946 = vmul.bf16 %v1086, %v5298
    %v6947 = vmul.bf16 %v1093, %v5305
    %v6948 = vmul.bf16 %v1100, %v5312
    %v6949 = vmul.bf16 %v1107, %v5319
    %v6950 = vmul.bf16 %v1114, %v5326
    %v6951 = vmul.bf16 %v1121, %v5333
    %v6952 = vmul.bf16 %v1128, %v5340
    %v6953 = vmul.bf16 %v1135, %v5347
    %v6954 = vmul.bf16 %v1142, %v5354
    %v6955 = vmul.bf16 %v1152, %v5361
    %v6956 = vmul.bf16 %v1162, %v5368
    %v6957 = vmul.bf16 %v1169, %v5375
    %v6958 = vmul.bf16 %v1176, %v5382
    %v6959 = vmul.bf16 %v1183, %v5389
    %v6960 = vmul.bf16 %v1190, %v5396
    %v6961 = vmul.bf16 %v1197, %v5403
    %v6962 = vmul.bf16 %v1204, %v5410
    %v6963 = vmul.bf16 %v1211, %v5417
    %v6964 = vmul.bf16 %v1218, %v5424
    %v6965 = vmul.bf16 %v1225, %v5431
    %v6966 = vmul.bf16 %v1232, %v5438
    %v6967 = vmul.bf16 %v1239, %v5445
    %v6968 = vmul.bf16 %v1246, %v5452
    %v6969 = vmul.bf16 %v1253, %v5459
    %v6970 = vmul.bf16 %v1260, %v5466
    %v6971 = vmul.bf16 %v1270, %v5473
    %v6972 = vmul.bf16 %v1280, %v5480
    %v6973 = vmul.bf16 %v1287, %v5487
    %v6974 = vmul.bf16 %v1294, %v5494
    %v6975 = vmul.bf16 %v1301, %v5501
    %v6976 = vmul.bf16 %v1308, %v5508
    %v6977 = vmul.bf16 %v1315, %v5515
    %v6978 = vmul.bf16 %v1322, %v5522
    %v6979 = vmul.bf16 %v1329, %v5529
    %v6980 = vmul.bf16 %v1336, %v5536
    %v6981 = vmul.bf16 %v1343, %v5543
    %v6982 = vmul.bf16 %v1350, %v5550
    %v6983 = vmul.bf16 %v1357, %v5557
    %v6984 = vmul.bf16 %v1364, %v5564
    %v6985 = vmul.bf16 %v1371, %v5571
    %v6986 = vmul.bf16 %v1378, %v5578
    %v6987 = vmul.bf16 %v1388, %v5585
    %v6988 = vmul.bf16 %v1398, %v5592
    %v6989 = vmul.bf16 %v1405, %v5599
    %v6990 = vmul.bf16 %v1412, %v5606
    %v6991 = vmul.bf16 %v1419, %v5613
    %v6992 = vmul.bf16 %v1426, %v5620
    %v6993 = vmul.bf16 %v1433, %v5627
    %v6994 = vmul.bf16 %v1440, %v5634
    %v6995 = vmul.bf16 %v1447, %v5641
    %v6996 = vmul.bf16 %v1454, %v5648
    %v6997 = vmul.bf16 %v1461, %v5655
    %v6998 = vmul.bf16 %v1468, %v5662
    %v6999 = vmul.bf16 %v1475, %v5669
    %v7000 = vmul.bf16 %v1482, %v5676
    %v7001 = vmul.bf16 %v1489, %v5683
    %v7002 = vmul.bf16 %v1496, %v5690
    %v7003 = vmul.bf16 %v1506, %v5697
    %v7004 = vmul.bf16 %v1516, %v5704
    %v7005 = vmul.bf16 %v1523, %v5711
    %v7006 = vmul.bf16 %v1530, %v5718
    %v7007 = vmul.bf16 %v1537, %v5725
    %v7008 = vmul.bf16 %v1544, %v5732
    %v7009 = vmul.bf16 %v1551, %v5739
    %v7010 = vmul.bf16 %v1558, %v5746
    %v7011 = vmul.bf16 %v1565, %v5753
    %v7012 = vmul.bf16 %v1572, %v5760
    %v7013 = vmul.bf16 %v1579, %v5767
    %v7014 = vmul.bf16 %v1586, %v5774
    %v7015 = vmul.bf16 %v1593, %v5781
    %v7016 = vmul.bf16 %v1600, %v5788
    %v7017 = vmul.bf16 %v1607, %v5795
    %v7018 = vmul.bf16 %v1614, %v5802
    %v7019 = vmul.bf16 %v1624, %v5809
    %v7020 = vmul.bf16 %v1634, %v5816
    %v7021 = vmul.bf16 %v1641, %v5823
    %v7022 = vmul.bf16 %v1648, %v5830
    %v7023 = vmul.bf16 %v1655, %v5837
    %v7024 = vmul.bf16 %v1662, %v5844
    %v7025 = vmul.bf16 %v1669, %v5851
    %v7026 = vmul.bf16 %v1676, %v5858
    %v7027 = vmul.bf16 %v1683, %v5865
    %v7028 = vmul.bf16 %v1690, %v5872
    %v7029 = vmul.bf16 %v1697, %v5879
    %v7030 = vmul.bf16 %v1704, %v5886
    %v7031 = vmul.bf16 %v1711, %v5893
    %v7032 = vmul.bf16 %v1718, %v5900
    %v7033 = vmul.bf16 %v1725, %v5907
    %v7034 = vmul.bf16 %v1732, %v5914
    %v7035 = vmul.bf16 %v1742, %v5921
    %v7036 = vmul.bf16 %v1752, %v5928
    %v7037 = vmul.bf16 %v1759, %v5935
    %v7038 = vmul.bf16 %v1766, %v5942
    %v7039 = vmul.bf16 %v1773, %v5949
    %v7040 = vmul.bf16 %v1780, %v5956
    %v7041 = vmul.bf16 %v1787, %v5963
    %v7042 = vmul.bf16 %v1794, %v5970
    %v7043 = vmul.bf16 %v1801, %v5977
    %v7044 = vmul.bf16 %v1808, %v5984
    %v7045 = vmul.bf16 %v1815, %v5991
    %v7046 = vmul.bf16 %v1822, %v5998
    %v7047 = vmul.bf16 %v1829, %v6005
    %v7048 = vmul.bf16 %v1836, %v6012
    %v7049 = vmul.bf16 %v1843, %v6019
    %v7050 = vmul.bf16 %v1850, %v6026
    %v7051 = vmul.bf16 %v1860, %v6033
    %v7052 = vmul.bf16 %v1870, %v6040
    %v7053 = vmul.bf16 %v1877, %v6047
    %v7054 = vmul.bf16 %v1884, %v6054
    %v7055 = vmul.bf16 %v1891, %v6061
    %v7056 = vmul.bf16 %v1898, %v6068
    %v7057 = vmul.bf16 %v1905, %v6075
    %v7058 = vmul.bf16 %v1912, %v6082
    %v7059 = vmul.bf16 %v1919, %v6089
    %v7060 = vmul.bf16 %v1926, %v6096
    %v7061 = vmul.bf16 %v1933, %v6103
    %v7062 = vmul.bf16 %v1940, %v6110
    %v7063 = vmul.bf16 %v1947, %v6117
    %v7064 = vmul.bf16 %v1954, %v6124
    %v7065 = vmul.bf16 %v1961, %v6131
    %v7066 = vmul.bf16 %v1968, %v6138
    %v7067 = vmul.bf16 %v1978, %v6145
    %v7068 = vmul.bf16 %v1988, %v6152
    %v7069 = vmul.bf16 %v1995, %v6159
    %v7070 = vmul.bf16 %v2002, %v6166
    %v7071 = vmul.bf16 %v2009, %v6173
    %v7072 = vmul.bf16 %v2016, %v6180
    %v7073 = vmul.bf16 %v2023, %v6187
    %v7074 = vmul.bf16 %v2030, %v6194
    %v7075 = vmul.bf16 %v2037, %v6201
    %v7076 = vmul.bf16 %v2044, %v6208
    %v7077 = vmul.bf16 %v2051, %v6215
    %v7078 = vmul.bf16 %v2058, %v6222
    %v7079 = vmul.bf16 %v2065, %v6229
    %v7080 = vmul.bf16 %v2072, %v6236
    %v7081 = vmul.bf16 %v2079, %v6243
    %v7082 = vmul.bf16 %v2086, %v6250
    %v7083 = vmul.bf16 %v2096, %v6257
    %v7084 = vmul.bf16 %v2106, %v6264
    %v7085 = vmul.bf16 %v2113, %v6271
    %v7086 = vmul.bf16 %v2120, %v6278
    %v7087 = vmul.bf16 %v2127, %v6285
    %v7088 = vmul.bf16 %v2134, %v6292
    %v7089 = vmul.bf16 %v2141, %v6299
    %v7090 = vmul.bf16 %v2148, %v6306
    %v7091 = vmul.bf16 %v2155, %v6313
    %v7092 = vmul.bf16 %v2162, %v6320
    %v7093 = vmul.bf16 %v2169, %v6327
    %v7094 = vmul.bf16 %v2176, %v6334
    %v7095 = vmul.bf16 %v2183, %v6341
    %v7096 = vmul.bf16 %v2190, %v6348
    %v7097 = vmul.bf16 %v2197, %v6355
    %v7098 = vmul.bf16 %v2204, %v6362
    %v7099 = vmul.bf16 %v2214, %v6369
    %v7100 = vmul.bf16 %v2224, %v6376
    %v7101 = vmul.bf16 %v2231, %v6383
    %v7102 = vmul.bf16 %v2238, %v6390
    %v7103 = vmul.bf16 %v2245, %v6397
    %v7104 = vmul.bf16 %v2252, %v6404
    %v7105 = vmul.bf16 %v2259, %v6411
    %v7106 = vmul.bf16 %v2266, %v6418
    %v7107 = vmul.bf16 %v2273, %v6425
    %v7108 = vmul.bf16 %v2280, %v6432
    %v7109 = vmul.bf16 %v2287, %v6439
    %v7110 = vmul.bf16 %v2294, %v6446
    %v7111 = vmul.bf16 %v2301, %v6453
    %v7112 = vmul.bf16 %v2308, %v6460
    %v7113 = vmul.bf16 %v2315, %v6467
    %v7114 = vmul.bf16 %v2322, %v6474
    %v7115 = vmul.bf16 %v2332, %v6481
    %v7116 = vmul.bf16 %v2342, %v6488
    %v7117 = vmul.bf16 %v2349, %v6495
    %v7118 = vmul.bf16 %v2356, %v6502
    %v7119 = vmul.bf16 %v2363, %v6509
    %v7120 = vmul.bf16 %v2370, %v6516
    %v7121 = vmul.bf16 %v2377, %v6523
    %v7122 = vmul.bf16 %v2384, %v6530
    %v7123 = vmul.bf16 %v2391, %v6537
    %v7124 = vmul.bf16 %v2398, %v6544
    %v7125 = vmul.bf16 %v2405, %v6551
    %v7126 = vmul.bf16 %v2412, %v6558
    %v7127 = vmul.bf16 %v2419, %v6565
    %v7128 = vmul.bf16 %v2426, %v6572
    %v7129 = vmul.bf16 %v2433, %v6579
    %v7130 = vmul.bf16 %v2440, %v6586
    %v7131 = vmul.bf16 %v2450, %v6593
    %v7132 = vmul.bf16 %v2460, %v6600
    %v7133 = vmul.bf16 %v2467, %v6607
    %v7134 = vmul.bf16 %v2474, %v6614
    %v7135 = vmul.bf16 %v2481, %v6621
    %v7136 = vmul.bf16 %v2488, %v6628
    %v7137 = vmul.bf16 %v2495, %v6635
    %v7138 = vmul.bf16 %v2502, %v6642
    %v7139 = vmul.bf16 %v2509, %v6649
    %v7140 = vmul.bf16 %v2516, %v6656
    %v7141 = vmul.bf16 %v2523, %v6663
    %v7142 = vmul.bf16 %v2530, %v6670
    %v7143 = vmul.bf16 %v2537, %v6677
    %v7144 = vmul.bf16 %v2544, %v6684
    %v7145 = vmul.bf16 %v2551, %v6691
    %v7146 = vmul.bf16 %v2558, %v6698
    %v7147 = vmul.bf16 %v2568, %v6705
    %v7148 = vmul.bf16 %v2578, %v6712
    %v7149 = vmul.bf16 %v2585, %v6719
    %v7150 = vmul.bf16 %v2592, %v6726
    %v7151 = vmul.bf16 %v2599, %v6733
    %v7152 = vmul.bf16 %v2606, %v6740
    %v7153 = vmul.bf16 %v2613, %v6747
    %v7154 = vmul.bf16 %v2620, %v6754
    %v7155 = vmul.bf16 %v2627, %v6761
    %v7156 = vmul.bf16 %v2634, %v6768
    %v7157 = vmul.bf16 %v2641, %v6775
    %v7158 = vmul.bf16 %v2648, %v6782
    %v7159 = vmul.bf16 %v2655, %v6789
    %v7160 = vmul.bf16 %v2662, %v6796
    %v7161 = vmul.bf16 %v2669, %v6803
    %v7162 = vmul.bf16 %v2676, %v6810
    %v7163 = vmul.bf16 %v2686, %v6817
    %v7164 = vmul.bf16 %v2696, %v6824
    %v7165 = vmul.bf16 %v2703, %v6831
    %v7166 = vmul.bf16 %v2710, %v6838
    %v7167 = vmul.bf16 %v2717, %v6845
    %v7168 = vmul.bf16 %v2724, %v6852
    %v7169 = vmul.bf16 %v2731, %v6859
    %v7170 = vmul.bf16 %v2738, %v6866
    %v7171 = vmul.bf16 %v2745, %v6873
    %v7172 = vmul.bf16 %v2752, %v6880
    %v7173 = vmul.bf16 %v2759, %v6887
    %v7174 = vmul.bf16 %v2766, %v6894
    %v7175 = vmul.bf16 %v2773, %v6901
    %v7176 = vmul.bf16 %v2780, %v6908
    %v7177 = vmul.bf16 %v2787, %v6915
    %v7178 = vmul.bf16 %v2794, %v6922
    %v7179 = vcombine.low %v6923, %v6927
    %v7181 = vunpack.c.l.s4 1983009808
    %v7182 = vunpack.c.0.s8 %v7181
    %v7183 = vlaneseq
    %v7184 = vshrl.u32 %v7183, 7
    %v7185 = vsub.s32 %v7182, %v7184
    %v7186 = vrot.slane %v7179, %v7185
    %v7187 = vcombine.low %v6925, %v6929
    %v7189 = vunpack.c.l.s4 1983009808
    %v7190 = vunpack.c.0.s8 %v7189
    %v7191 = vlaneseq
    %v7192 = vshrl.u32 %v7191, 7
    %v7193 = vsub.s32 %v7190, %v7192
    %v7194 = vrot.slane %v7187, %v7193
    %v7195 = vcombine.low %v6931, %v6935
    %v7197 = vunpack.c.l.s4 1983009808
    %v7198 = vunpack.c.0.s8 %v7197
    %v7199 = vlaneseq
    %v7200 = vshrl.u32 %v7199, 7
    %v7201 = vsub.s32 %v7198, %v7200
    %v7202 = vrot.slane %v7195, %v7201
    %v7203 = vcombine.low %v6933, %v6937
    %v7205 = vunpack.c.l.s4 1983009808
    %v7206 = vunpack.c.0.s8 %v7205
    %v7207 = vlaneseq
    %v7208 = vshrl.u32 %v7207, 7
    %v7209 = vsub.s32 %v7206, %v7208
    %v7210 = vrot.slane %v7203, %v7209
    %v7211 = vcombine.low %v7186, %v7194
    %v7212 = vcombine.high %v7186, %v7194
    %v7214 = vunpack.c.l.s4 1934713408
    %v7215 = vunpack.c.0.s8 %v7214
    %v7216 = vlaneseq
    %v7217 = vshrl.u32 %v7216, 7
    %v7218 = vsub.s32 %v7215, %v7217
    %v7219 = vrot.slane %v7211, %v7218
    %v7221 = vunpack.c.l.s4 1934713408
    %v7222 = vunpack.c.0.s8 %v7221
    %v7223 = vlaneseq
    %v7224 = vshrl.u32 %v7223, 7
    %v7225 = vsub.s32 %v7222, %v7224
    %v7226 = vrot.slane %v7212, %v7225
    %v7227 = vcombine.low %v7202, %v7210
    %v7228 = vcombine.high %v7202, %v7210
    %v7230 = vunpack.c.l.s4 1934713408
    %v7231 = vunpack.c.0.s8 %v7230
    %v7232 = vlaneseq
    %v7233 = vshrl.u32 %v7232, 7
    %v7234 = vsub.s32 %v7231, %v7233
    %v7235 = vrot.slane %v7227, %v7234
    %v7237 = vunpack.c.l.s4 1934713408
    %v7238 = vunpack.c.0.s8 %v7237
    %v7239 = vlaneseq
    %v7240 = vshrl.u32 %v7239, 7
    %v7241 = vsub.s32 %v7238, %v7240
    %v7242 = vrot.slane %v7228, %v7241
    %v7243 = vcombine.low %v7219, %v7235
    %v7244 = vcombine.high %v7219, %v7235
    %v7245 = vcombine.low %v7226, %v7242
    %v7246 = vcombine.high %v7226, %v7242
    %v7247 = vcombine.low %v6924, %v6928
    %v7249 = vunpack.c.l.s4 1983009808
    %v7250 = vunpack.c.0.s8 %v7249
    %v7251 = vlaneseq
    %v7252 = vshrl.u32 %v7251, 7
    %v7253 = vsub.s32 %v7250, %v7252
    %v7254 = vrot.slane %v7247, %v7253
    %v7255 = vcombine.low %v6926, %v6930
    %v7257 = vunpack.c.l.s4 1983009808
    %v7258 = vunpack.c.0.s8 %v7257
    %v7259 = vlaneseq
    %v7260 = vshrl.u32 %v7259, 7
    %v7261 = vsub.s32 %v7258, %v7260
    %v7262 = vrot.slane %v7255, %v7261
    %v7263 = vcombine.low %v6932, %v6936
    %v7265 = vunpack.c.l.s4 1983009808
    %v7266 = vunpack.c.0.s8 %v7265
    %v7267 = vlaneseq
    %v7268 = vshrl.u32 %v7267, 7
    %v7269 = vsub.s32 %v7266, %v7268
    %v7270 = vrot.slane %v7263, %v7269
    %v7271 = vcombine.low %v6934, %v6938
    %v7273 = vunpack.c.l.s4 1983009808
    %v7274 = vunpack.c.0.s8 %v7273
    %v7275 = vlaneseq
    %v7276 = vshrl.u32 %v7275, 7
    %v7277 = vsub.s32 %v7274, %v7276
    %v7278 = vrot.slane %v7271, %v7277
    %v7279 = vcombine.low %v7254, %v7262
    %v7280 = vcombine.high %v7254, %v7262
    %v7282 = vunpack.c.l.s4 1934713408
    %v7283 = vunpack.c.0.s8 %v7282
    %v7284 = vlaneseq
    %v7285 = vshrl.u32 %v7284, 7
    %v7286 = vsub.s32 %v7283, %v7285
    %v7287 = vrot.slane %v7279, %v7286
    %v7289 = vunpack.c.l.s4 1934713408
    %v7290 = vunpack.c.0.s8 %v7289
    %v7291 = vlaneseq
    %v7292 = vshrl.u32 %v7291, 7
    %v7293 = vsub.s32 %v7290, %v7292
    %v7294 = vrot.slane %v7280, %v7293
    %v7295 = vcombine.low %v7270, %v7278
    %v7296 = vcombine.high %v7270, %v7278
    %v7298 = vunpack.c.l.s4 1934713408
    %v7299 = vunpack.c.0.s8 %v7298
    %v7300 = vlaneseq
    %v7301 = vshrl.u32 %v7300, 7
    %v7302 = vsub.s32 %v7299, %v7301
    %v7303 = vrot.slane %v7295, %v7302
    %v7305 = vunpack.c.l.s4 1934713408
    %v7306 = vunpack.c.0.s8 %v7305
    %v7307 = vlaneseq
    %v7308 = vshrl.u32 %v7307, 7
    %v7309 = vsub.s32 %v7306, %v7308
    %v7310 = vrot.slane %v7296, %v7309
    %v7311 = vcombine.low %v7287, %v7303
    %v7312 = vcombine.high %v7287, %v7303
    %v7313 = vcombine.low %v7294, %v7310
    %v7314 = vcombine.high %v7294, %v7310
    %v7315 = vcombine.low %v6939, %v6943
    %v7317 = vunpack.c.l.s4 1983009808
    %v7318 = vunpack.c.0.s8 %v7317
    %v7319 = vlaneseq
    %v7320 = vshrl.u32 %v7319, 7
    %v7321 = vsub.s32 %v7318, %v7320
    %v7322 = vrot.slane %v7315, %v7321
    %v7323 = vcombine.low %v6941, %v6945
    %v7325 = vunpack.c.l.s4 1983009808
    %v7326 = vunpack.c.0.s8 %v7325
    %v7327 = vlaneseq
    %v7328 = vshrl.u32 %v7327, 7
    %v7329 = vsub.s32 %v7326, %v7328
    %v7330 = vrot.slane %v7323, %v7329
    %v7331 = vcombine.low %v6947, %v6951
    %v7333 = vunpack.c.l.s4 1983009808
    %v7334 = vunpack.c.0.s8 %v7333
    %v7335 = vlaneseq
    %v7336 = vshrl.u32 %v7335, 7
    %v7337 = vsub.s32 %v7334, %v7336
    %v7338 = vrot.slane %v7331, %v7337
    %v7339 = vcombine.low %v6949, %v6953
    %v7341 = vunpack.c.l.s4 1983009808
    %v7342 = vunpack.c.0.s8 %v7341
    %v7343 = vlaneseq
    %v7344 = vshrl.u32 %v7343, 7
    %v7345 = vsub.s32 %v7342, %v7344
    %v7346 = vrot.slane %v7339, %v7345
    %v7347 = vcombine.low %v7322, %v7330
    %v7348 = vcombine.high %v7322, %v7330
    %v7350 = vunpack.c.l.s4 1934713408
    %v7351 = vunpack.c.0.s8 %v7350
    %v7352 = vlaneseq
    %v7353 = vshrl.u32 %v7352, 7
    %v7354 = vsub.s32 %v7351, %v7353
    %v7355 = vrot.slane %v7347, %v7354
    %v7357 = vunpack.c.l.s4 1934713408
    %v7358 = vunpack.c.0.s8 %v7357
    %v7359 = vlaneseq
    %v7360 = vshrl.u32 %v7359, 7
    %v7361 = vsub.s32 %v7358, %v7360
    %v7362 = vrot.slane %v7348, %v7361
    %v7363 = vcombine.low %v7338, %v7346
    %v7364 = vcombine.high %v7338, %v7346
    %v7366 = vunpack.c.l.s4 1934713408
    %v7367 = vunpack.c.0.s8 %v7366
    %v7368 = vlaneseq
    %v7369 = vshrl.u32 %v7368, 7
    %v7370 = vsub.s32 %v7367, %v7369
    %v7371 = vrot.slane %v7363, %v7370
    %v7373 = vunpack.c.l.s4 1934713408
    %v7374 = vunpack.c.0.s8 %v7373
    %v7375 = vlaneseq
    %v7376 = vshrl.u32 %v7375, 7
    %v7377 = vsub.s32 %v7374, %v7376
    %v7378 = vrot.slane %v7364, %v7377
    %v7379 = vcombine.low %v7355, %v7371
    %v7380 = vcombine.high %v7355, %v7371
    %v7381 = vcombine.low %v7362, %v7378
    %v7382 = vcombine.high %v7362, %v7378
    %v7383 = vcombine.low %v6940, %v6944
    %v7385 = vunpack.c.l.s4 1983009808
    %v7386 = vunpack.c.0.s8 %v7385
    %v7387 = vlaneseq
    %v7388 = vshrl.u32 %v7387, 7
    %v7389 = vsub.s32 %v7386, %v7388
    %v7390 = vrot.slane %v7383, %v7389
    %v7391 = vcombine.low %v6942, %v6946
    %v7393 = vunpack.c.l.s4 1983009808
    %v7394 = vunpack.c.0.s8 %v7393
    %v7395 = vlaneseq
    %v7396 = vshrl.u32 %v7395, 7
    %v7397 = vsub.s32 %v7394, %v7396
    %v7398 = vrot.slane %v7391, %v7397
    %v7399 = vcombine.low %v6948, %v6952
    %v7401 = vunpack.c.l.s4 1983009808
    %v7402 = vunpack.c.0.s8 %v7401
    %v7403 = vlaneseq
    %v7404 = vshrl.u32 %v7403, 7
    %v7405 = vsub.s32 %v7402, %v7404
    %v7406 = vrot.slane %v7399, %v7405
    %v7407 = vcombine.low %v6950, %v6954
    %v7409 = vunpack.c.l.s4 1983009808
    %v7410 = vunpack.c.0.s8 %v7409
    %v7411 = vlaneseq
    %v7412 = vshrl.u32 %v7411, 7
    %v7413 = vsub.s32 %v7410, %v7412
    %v7414 = vrot.slane %v7407, %v7413
    %v7415 = vcombine.low %v7390, %v7398
    %v7416 = vcombine.high %v7390, %v7398
    %v7418 = vunpack.c.l.s4 1934713408
    %v7419 = vunpack.c.0.s8 %v7418
    %v7420 = vlaneseq
    %v7421 = vshrl.u32 %v7420, 7
    %v7422 = vsub.s32 %v7419, %v7421
    %v7423 = vrot.slane %v7415, %v7422
    %v7425 = vunpack.c.l.s4 1934713408
    %v7426 = vunpack.c.0.s8 %v7425
    %v7427 = vlaneseq
    %v7428 = vshrl.u32 %v7427, 7
    %v7429 = vsub.s32 %v7426, %v7428
    %v7430 = vrot.slane %v7416, %v7429
    %v7431 = vcombine.low %v7406, %v7414
    %v7432 = vcombine.high %v7406, %v7414
    %v7434 = vunpack.c.l.s4 1934713408
    %v7435 = vunpack.c.0.s8 %v7434
    %v7436 = vlaneseq
    %v7437 = vshrl.u32 %v7436, 7
    %v7438 = vsub.s32 %v7435, %v7437
    %v7439 = vrot.slane %v7431, %v7438
    %v7441 = vunpack.c.l.s4 1934713408
    %v7442 = vunpack.c.0.s8 %v7441
    %v7443 = vlaneseq
    %v7444 = vshrl.u32 %v7443, 7
    %v7445 = vsub.s32 %v7442, %v7444
    %v7446 = vrot.slane %v7432, %v7445
    %v7447 = vcombine.low %v7423, %v7439
    %v7448 = vcombine.high %v7423, %v7439
    %v7449 = vcombine.low %v7430, %v7446
    %v7450 = vcombine.high %v7430, %v7446
    %v7451 = vcombine.low %v6955, %v6959
    %v7453 = vunpack.c.l.s4 1983009808
    %v7454 = vunpack.c.0.s8 %v7453
    %v7455 = vlaneseq
    %v7456 = vshrl.u32 %v7455, 7
    %v7457 = vsub.s32 %v7454, %v7456
    %v7458 = vrot.slane %v7451, %v7457
    %v7459 = vcombine.low %v6957, %v6961
    %v7461 = vunpack.c.l.s4 1983009808
    %v7462 = vunpack.c.0.s8 %v7461
    %v7463 = vlaneseq
    %v7464 = vshrl.u32 %v7463, 7
    %v7465 = vsub.s32 %v7462, %v7464
    %v7466 = vrot.slane %v7459, %v7465
    %v7467 = vcombine.low %v6963, %v6967
    %v7469 = vunpack.c.l.s4 1983009808
    %v7470 = vunpack.c.0.s8 %v7469
    %v7471 = vlaneseq
    %v7472 = vshrl.u32 %v7471, 7
    %v7473 = vsub.s32 %v7470, %v7472
    %v7474 = vrot.slane %v7467, %v7473
    %v7475 = vcombine.low %v6965, %v6969
    %v7477 = vunpack.c.l.s4 1983009808
    %v7478 = vunpack.c.0.s8 %v7477
    %v7479 = vlaneseq
    %v7480 = vshrl.u32 %v7479, 7
    %v7481 = vsub.s32 %v7478, %v7480
    %v7482 = vrot.slane %v7475, %v7481
    %v7483 = vcombine.low %v7458, %v7466
    %v7484 = vcombine.high %v7458, %v7466
    %v7486 = vunpack.c.l.s4 1934713408
    %v7487 = vunpack.c.0.s8 %v7486
    %v7488 = vlaneseq
    %v7489 = vshrl.u32 %v7488, 7
    %v7490 = vsub.s32 %v7487, %v7489
    %v7491 = vrot.slane %v7483, %v7490
    %v7493 = vunpack.c.l.s4 1934713408
    %v7494 = vunpack.c.0.s8 %v7493
    %v7495 = vlaneseq
    %v7496 = vshrl.u32 %v7495, 7
    %v7497 = vsub.s32 %v7494, %v7496
    %v7498 = vrot.slane %v7484, %v7497
    %v7499 = vcombine.low %v7474, %v7482
    %v7500 = vcombine.high %v7474, %v7482
    %v7502 = vunpack.c.l.s4 1934713408
    %v7503 = vunpack.c.0.s8 %v7502
    %v7504 = vlaneseq
    %v7505 = vshrl.u32 %v7504, 7
    %v7506 = vsub.s32 %v7503, %v7505
    %v7507 = vrot.slane %v7499, %v7506
    %v7509 = vunpack.c.l.s4 1934713408
    %v7510 = vunpack.c.0.s8 %v7509
    %v7511 = vlaneseq
    %v7512 = vshrl.u32 %v7511, 7
    %v7513 = vsub.s32 %v7510, %v7512
    %v7514 = vrot.slane %v7500, %v7513
    %v7515 = vcombine.low %v7491, %v7507
    %v7516 = vcombine.high %v7491, %v7507
    %v7517 = vcombine.low %v7498, %v7514
    %v7518 = vcombine.high %v7498, %v7514
    %v7519 = vcombine.low %v6956, %v6960
    %v7521 = vunpack.c.l.s4 1983009808
    %v7522 = vunpack.c.0.s8 %v7521
    %v7523 = vlaneseq
    %v7524 = vshrl.u32 %v7523, 7
    %v7525 = vsub.s32 %v7522, %v7524
    %v7526 = vrot.slane %v7519, %v7525
    %v7527 = vcombine.low %v6958, %v6962
    %v7529 = vunpack.c.l.s4 1983009808
    %v7530 = vunpack.c.0.s8 %v7529
    %v7531 = vlaneseq
    %v7532 = vshrl.u32 %v7531, 7
    %v7533 = vsub.s32 %v7530, %v7532
    %v7534 = vrot.slane %v7527, %v7533
    %v7535 = vcombine.low %v6964, %v6968
    %v7537 = vunpack.c.l.s4 1983009808
    %v7538 = vunpack.c.0.s8 %v7537
    %v7539 = vlaneseq
    %v7540 = vshrl.u32 %v7539, 7
    %v7541 = vsub.s32 %v7538, %v7540
    %v7542 = vrot.slane %v7535, %v7541
    %v7543 = vcombine.low %v6966, %v6970
    %v7545 = vunpack.c.l.s4 1983009808
    %v7546 = vunpack.c.0.s8 %v7545
    %v7547 = vlaneseq
    %v7548 = vshrl.u32 %v7547, 7
    %v7549 = vsub.s32 %v7546, %v7548
    %v7550 = vrot.slane %v7543, %v7549
    %v7551 = vcombine.low %v7526, %v7534
    %v7552 = vcombine.high %v7526, %v7534
    %v7554 = vunpack.c.l.s4 1934713408
    %v7555 = vunpack.c.0.s8 %v7554
    %v7556 = vlaneseq
    %v7557 = vshrl.u32 %v7556, 7
    %v7558 = vsub.s32 %v7555, %v7557
    %v7559 = vrot.slane %v7551, %v7558
    %v7561 = vunpack.c.l.s4 1934713408
    %v7562 = vunpack.c.0.s8 %v7561
    %v7563 = vlaneseq
    %v7564 = vshrl.u32 %v7563, 7
    %v7565 = vsub.s32 %v7562, %v7564
    %v7566 = vrot.slane %v7552, %v7565
    %v7567 = vcombine.low %v7542, %v7550
    %v7568 = vcombine.high %v7542, %v7550
    %v7570 = vunpack.c.l.s4 1934713408
    %v7571 = vunpack.c.0.s8 %v7570
    %v7572 = vlaneseq
    %v7573 = vshrl.u32 %v7572, 7
    %v7574 = vsub.s32 %v7571, %v7573
    %v7575 = vrot.slane %v7567, %v7574
    %v7577 = vunpack.c.l.s4 1934713408
    %v7578 = vunpack.c.0.s8 %v7577
    %v7579 = vlaneseq
    %v7580 = vshrl.u32 %v7579, 7
    %v7581 = vsub.s32 %v7578, %v7580
    %v7582 = vrot.slane %v7568, %v7581
    %v7583 = vcombine.low %v7559, %v7575
    %v7584 = vcombine.high %v7559, %v7575
    %v7585 = vcombine.low %v7566, %v7582
    %v7586 = vcombine.high %v7566, %v7582
    %v7587 = vcombine.low %v6971, %v6975
    %v7589 = vunpack.c.l.s4 1983009808
    %v7590 = vunpack.c.0.s8 %v7589
    %v7591 = vlaneseq
    %v7592 = vshrl.u32 %v7591, 7
    %v7593 = vsub.s32 %v7590, %v7592
    %v7594 = vrot.slane %v7587, %v7593
    %v7595 = vcombine.low %v6973, %v6977
    %v7597 = vunpack.c.l.s4 1983009808
    %v7598 = vunpack.c.0.s8 %v7597
    %v7599 = vlaneseq
    %v7600 = vshrl.u32 %v7599, 7
    %v7601 = vsub.s32 %v7598, %v7600
    %v7602 = vrot.slane %v7595, %v7601
    %v7603 = vcombine.low %v6979, %v6983
    %v7605 = vunpack.c.l.s4 1983009808
    %v7606 = vunpack.c.0.s8 %v7605
    %v7607 = vlaneseq
    %v7608 = vshrl.u32 %v7607, 7
    %v7609 = vsub.s32 %v7606, %v7608
    %v7610 = vrot.slane %v7603, %v7609
    %v7611 = vcombine.low %v6981, %v6985
    %v7613 = vunpack.c.l.s4 1983009808
    %v7614 = vunpack.c.0.s8 %v7613
    %v7615 = vlaneseq
    %v7616 = vshrl.u32 %v7615, 7
    %v7617 = vsub.s32 %v7614, %v7616
    %v7618 = vrot.slane %v7611, %v7617
    %v7619 = vcombine.low %v7594, %v7602
    %v7620 = vcombine.high %v7594, %v7602
    %v7622 = vunpack.c.l.s4 1934713408
    %v7623 = vunpack.c.0.s8 %v7622
    %v7624 = vlaneseq
    %v7625 = vshrl.u32 %v7624, 7
    %v7626 = vsub.s32 %v7623, %v7625
    %v7627 = vrot.slane %v7619, %v7626
    %v7629 = vunpack.c.l.s4 1934713408
    %v7630 = vunpack.c.0.s8 %v7629
    %v7631 = vlaneseq
    %v7632 = vshrl.u32 %v7631, 7
    %v7633 = vsub.s32 %v7630, %v7632
    %v7634 = vrot.slane %v7620, %v7633
    %v7635 = vcombine.low %v7610, %v7618
    %v7636 = vcombine.high %v7610, %v7618
    %v7638 = vunpack.c.l.s4 1934713408
    %v7639 = vunpack.c.0.s8 %v7638
    %v7640 = vlaneseq
    %v7641 = vshrl.u32 %v7640, 7
    %v7642 = vsub.s32 %v7639, %v7641
    %v7643 = vrot.slane %v7635, %v7642
    %v7645 = vunpack.c.l.s4 1934713408
    %v7646 = vunpack.c.0.s8 %v7645
    %v7647 = vlaneseq
    %v7648 = vshrl.u32 %v7647, 7
    %v7649 = vsub.s32 %v7646, %v7648
    %v7650 = vrot.slane %v7636, %v7649
    %v7651 = vcombine.low %v7627, %v7643
    %v7652 = vcombine.high %v7627, %v7643
    %v7653 = vcombine.low %v7634, %v7650
    %v7654 = vcombine.high %v7634, %v7650
    %v7655 = vcombine.low %v6972, %v6976
    %v7657 = vunpack.c.l.s4 1983009808
    %v7658 = vunpack.c.0.s8 %v7657
    %v7659 = vlaneseq
    %v7660 = vshrl.u32 %v7659, 7
    %v7661 = vsub.s32 %v7658, %v7660
    %v7662 = vrot.slane %v7655, %v7661
    %v7663 = vcombine.low %v6974, %v6978
    %v7665 = vunpack.c.l.s4 1983009808
    %v7666 = vunpack.c.0.s8 %v7665
    %v7667 = vlaneseq
    %v7668 = vshrl.u32 %v7667, 7
    %v7669 = vsub.s32 %v7666, %v7668
    %v7670 = vrot.slane %v7663, %v7669
    %v7671 = vcombine.low %v6980, %v6984
    %v7673 = vunpack.c.l.s4 1983009808
    %v7674 = vunpack.c.0.s8 %v7673
    %v7675 = vlaneseq
    %v7676 = vshrl.u32 %v7675, 7
    %v7677 = vsub.s32 %v7674, %v7676
    %v7678 = vrot.slane %v7671, %v7677
    %v7679 = vcombine.low %v6982, %v6986
    %v7681 = vunpack.c.l.s4 1983009808
    %v7682 = vunpack.c.0.s8 %v7681
    %v7683 = vlaneseq
    %v7684 = vshrl.u32 %v7683, 7
    %v7685 = vsub.s32 %v7682, %v7684
    %v7686 = vrot.slane %v7679, %v7685
    %v7687 = vcombine.low %v7662, %v7670
    %v7688 = vcombine.high %v7662, %v7670
    %v7690 = vunpack.c.l.s4 1934713408
    %v7691 = vunpack.c.0.s8 %v7690
    %v7692 = vlaneseq
    %v7693 = vshrl.u32 %v7692, 7
    %v7694 = vsub.s32 %v7691, %v7693
    %v7695 = vrot.slane %v7687, %v7694
    %v7697 = vunpack.c.l.s4 1934713408
    %v7698 = vunpack.c.0.s8 %v7697
    %v7699 = vlaneseq
    %v7700 = vshrl.u32 %v7699, 7
    %v7701 = vsub.s32 %v7698, %v7700
    %v7702 = vrot.slane %v7688, %v7701
    %v7703 = vcombine.low %v7678, %v7686
    %v7704 = vcombine.high %v7678, %v7686
    %v7706 = vunpack.c.l.s4 1934713408
    %v7707 = vunpack.c.0.s8 %v7706
    %v7708 = vlaneseq
    %v7709 = vshrl.u32 %v7708, 7
    %v7710 = vsub.s32 %v7707, %v7709
    %v7711 = vrot.slane %v7703, %v7710
    %v7713 = vunpack.c.l.s4 1934713408
    %v7714 = vunpack.c.0.s8 %v7713
    %v7715 = vlaneseq
    %v7716 = vshrl.u32 %v7715, 7
    %v7717 = vsub.s32 %v7714, %v7716
    %v7718 = vrot.slane %v7704, %v7717
    %v7719 = vcombine.low %v7695, %v7711
    %v7720 = vcombine.high %v7695, %v7711
    %v7721 = vcombine.low %v7702, %v7718
    %v7722 = vcombine.high %v7702, %v7718
    %v7723 = vcombine.low %v6987, %v6991
    %v7725 = vunpack.c.l.s4 1983009808
    %v7726 = vunpack.c.0.s8 %v7725
    %v7727 = vlaneseq
    %v7728 = vshrl.u32 %v7727, 7
    %v7729 = vsub.s32 %v7726, %v7728
    %v7730 = vrot.slane %v7723, %v7729
    %v7731 = vcombine.low %v6989, %v6993
    %v7733 = vunpack.c.l.s4 1983009808
    %v7734 = vunpack.c.0.s8 %v7733
    %v7735 = vlaneseq
    %v7736 = vshrl.u32 %v7735, 7
    %v7737 = vsub.s32 %v7734, %v7736
    %v7738 = vrot.slane %v7731, %v7737
    %v7739 = vcombine.low %v6995, %v6999
    %v7741 = vunpack.c.l.s4 1983009808
    %v7742 = vunpack.c.0.s8 %v7741
    %v7743 = vlaneseq
    %v7744 = vshrl.u32 %v7743, 7
    %v7745 = vsub.s32 %v7742, %v7744
    %v7746 = vrot.slane %v7739, %v7745
    %v7747 = vcombine.low %v6997, %v7001
    %v7749 = vunpack.c.l.s4 1983009808
    %v7750 = vunpack.c.0.s8 %v7749
    %v7751 = vlaneseq
    %v7752 = vshrl.u32 %v7751, 7
    %v7753 = vsub.s32 %v7750, %v7752
    %v7754 = vrot.slane %v7747, %v7753
    %v7755 = vcombine.low %v7730, %v7738
    %v7756 = vcombine.high %v7730, %v7738
    %v7758 = vunpack.c.l.s4 1934713408
    %v7759 = vunpack.c.0.s8 %v7758
    %v7760 = vlaneseq
    %v7761 = vshrl.u32 %v7760, 7
    %v7762 = vsub.s32 %v7759, %v7761
    %v7763 = vrot.slane %v7755, %v7762
    %v7765 = vunpack.c.l.s4 1934713408
    %v7766 = vunpack.c.0.s8 %v7765
    %v7767 = vlaneseq
    %v7768 = vshrl.u32 %v7767, 7
    %v7769 = vsub.s32 %v7766, %v7768
    %v7770 = vrot.slane %v7756, %v7769
    %v7771 = vcombine.low %v7746, %v7754
    %v7772 = vcombine.high %v7746, %v7754
    %v7774 = vunpack.c.l.s4 1934713408
    %v7775 = vunpack.c.0.s8 %v7774
    %v7776 = vlaneseq
    %v7777 = vshrl.u32 %v7776, 7
    %v7778 = vsub.s32 %v7775, %v7777
    %v7779 = vrot.slane %v7771, %v7778
    %v7781 = vunpack.c.l.s4 1934713408
    %v7782 = vunpack.c.0.s8 %v7781
    %v7783 = vlaneseq
    %v7784 = vshrl.u32 %v7783, 7
    %v7785 = vsub.s32 %v7782, %v7784
    %v7786 = vrot.slane %v7772, %v7785
    %v7787 = vcombine.low %v7763, %v7779
    %v7788 = vcombine.high %v7763, %v7779
    %v7789 = vcombine.low %v7770, %v7786
    %v7790 = vcombine.high %v7770, %v7786
    %v7791 = vcombine.low %v6988, %v6992
    %v7793 = vunpack.c.l.s4 1983009808
    %v7794 = vunpack.c.0.s8 %v7793
    %v7795 = vlaneseq
    %v7796 = vshrl.u32 %v7795, 7
    %v7797 = vsub.s32 %v7794, %v7796
    %v7798 = vrot.slane %v7791, %v7797
    %v7799 = vcombine.low %v6990, %v6994
    %v7801 = vunpack.c.l.s4 1983009808
    %v7802 = vunpack.c.0.s8 %v7801
    %v7803 = vlaneseq
    %v7804 = vshrl.u32 %v7803, 7
    %v7805 = vsub.s32 %v7802, %v7804
    %v7806 = vrot.slane %v7799, %v7805
    %v7807 = vcombine.low %v6996, %v7000
    %v7809 = vunpack.c.l.s4 1983009808
    %v7810 = vunpack.c.0.s8 %v7809
    %v7811 = vlaneseq
    %v7812 = vshrl.u32 %v7811, 7
    %v7813 = vsub.s32 %v7810, %v7812
    %v7814 = vrot.slane %v7807, %v7813
    %v7815 = vcombine.low %v6998, %v7002
    %v7817 = vunpack.c.l.s4 1983009808
    %v7818 = vunpack.c.0.s8 %v7817
    %v7819 = vlaneseq
    %v7820 = vshrl.u32 %v7819, 7
    %v7821 = vsub.s32 %v7818, %v7820
    %v7822 = vrot.slane %v7815, %v7821
    %v7823 = vcombine.low %v7798, %v7806
    %v7824 = vcombine.high %v7798, %v7806
    %v7826 = vunpack.c.l.s4 1934713408
    %v7827 = vunpack.c.0.s8 %v7826
    %v7828 = vlaneseq
    %v7829 = vshrl.u32 %v7828, 7
    %v7830 = vsub.s32 %v7827, %v7829
    %v7831 = vrot.slane %v7823, %v7830
    %v7833 = vunpack.c.l.s4 1934713408
    %v7834 = vunpack.c.0.s8 %v7833
    %v7835 = vlaneseq
    %v7836 = vshrl.u32 %v7835, 7
    %v7837 = vsub.s32 %v7834, %v7836
    %v7838 = vrot.slane %v7824, %v7837
    %v7839 = vcombine.low %v7814, %v7822
    %v7840 = vcombine.high %v7814, %v7822
    %v7842 = vunpack.c.l.s4 1934713408
    %v7843 = vunpack.c.0.s8 %v7842
    %v7844 = vlaneseq
    %v7845 = vshrl.u32 %v7844, 7
    %v7846 = vsub.s32 %v7843, %v7845
    %v7847 = vrot.slane %v7839, %v7846
    %v7849 = vunpack.c.l.s4 1934713408
    %v7850 = vunpack.c.0.s8 %v7849
    %v7851 = vlaneseq
    %v7852 = vshrl.u32 %v7851, 7
    %v7853 = vsub.s32 %v7850, %v7852
    %v7854 = vrot.slane %v7840, %v7853
    %v7855 = vcombine.low %v7831, %v7847
    %v7856 = vcombine.high %v7831, %v7847
    %v7857 = vcombine.low %v7838, %v7854
    %v7858 = vcombine.high %v7838, %v7854
    %v7859 = vcombine.low %v7003, %v7007
    %v7861 = vunpack.c.l.s4 1983009808
    %v7862 = vunpack.c.0.s8 %v7861
    %v7863 = vlaneseq
    %v7864 = vshrl.u32 %v7863, 7
    %v7865 = vsub.s32 %v7862, %v7864
    %v7866 = vrot.slane %v7859, %v7865
    %v7867 = vcombine.low %v7005, %v7009
    %v7869 = vunpack.c.l.s4 1983009808
    %v7870 = vunpack.c.0.s8 %v7869
    %v7871 = vlaneseq
    %v7872 = vshrl.u32 %v7871, 7
    %v7873 = vsub.s32 %v7870, %v7872
    %v7874 = vrot.slane %v7867, %v7873
    %v7875 = vcombine.low %v7011, %v7015
    %v7877 = vunpack.c.l.s4 1983009808
    %v7878 = vunpack.c.0.s8 %v7877
    %v7879 = vlaneseq
    %v7880 = vshrl.u32 %v7879, 7
    %v7881 = vsub.s32 %v7878, %v7880
    %v7882 = vrot.slane %v7875, %v7881
    %v7883 = vcombine.low %v7013, %v7017
    %v7885 = vunpack.c.l.s4 1983009808
    %v7886 = vunpack.c.0.s8 %v7885
    %v7887 = vlaneseq
    %v7888 = vshrl.u32 %v7887, 7
    %v7889 = vsub.s32 %v7886, %v7888
    %v7890 = vrot.slane %v7883, %v7889
    %v7891 = vcombine.low %v7866, %v7874
    %v7892 = vcombine.high %v7866, %v7874
    %v7894 = vunpack.c.l.s4 1934713408
    %v7895 = vunpack.c.0.s8 %v7894
    %v7896 = vlaneseq
    %v7897 = vshrl.u32 %v7896, 7
    %v7898 = vsub.s32 %v7895, %v7897
    %v7899 = vrot.slane %v7891, %v7898
    %v7901 = vunpack.c.l.s4 1934713408
    %v7902 = vunpack.c.0.s8 %v7901
    %v7903 = vlaneseq
    %v7904 = vshrl.u32 %v7903, 7
    %v7905 = vsub.s32 %v7902, %v7904
    %v7906 = vrot.slane %v7892, %v7905
    %v7907 = vcombine.low %v7882, %v7890
    %v7908 = vcombine.high %v7882, %v7890
    %v7910 = vunpack.c.l.s4 1934713408
    %v7911 = vunpack.c.0.s8 %v7910
    %v7912 = vlaneseq
    %v7913 = vshrl.u32 %v7912, 7
    %v7914 = vsub.s32 %v7911, %v7913
    %v7915 = vrot.slane %v7907, %v7914
    %v7917 = vunpack.c.l.s4 1934713408
    %v7918 = vunpack.c.0.s8 %v7917
    %v7919 = vlaneseq
    %v7920 = vshrl.u32 %v7919, 7
    %v7921 = vsub.s32 %v7918, %v7920
    %v7922 = vrot.slane %v7908, %v7921
    %v7923 = vcombine.low %v7899, %v7915
    %v7924 = vcombine.high %v7899, %v7915
    %v7925 = vcombine.low %v7906, %v7922
    %v7926 = vcombine.high %v7906, %v7922
    %v7927 = vcombine.low %v7004, %v7008
    %v7929 = vunpack.c.l.s4 1983009808
    %v7930 = vunpack.c.0.s8 %v7929
    %v7931 = vlaneseq
    %v7932 = vshrl.u32 %v7931, 7
    %v7933 = vsub.s32 %v7930, %v7932
    %v7934 = vrot.slane %v7927, %v7933
    %v7935 = vcombine.low %v7006, %v7010
    %v7937 = vunpack.c.l.s4 1983009808
    %v7938 = vunpack.c.0.s8 %v7937
    %v7939 = vlaneseq
    %v7940 = vshrl.u32 %v7939, 7
    %v7941 = vsub.s32 %v7938, %v7940
    %v7942 = vrot.slane %v7935, %v7941
    %v7943 = vcombine.low %v7012, %v7016
    %v7945 = vunpack.c.l.s4 1983009808
    %v7946 = vunpack.c.0.s8 %v7945
    %v7947 = vlaneseq
    %v7948 = vshrl.u32 %v7947, 7
    %v7949 = vsub.s32 %v7946, %v7948
    %v7950 = vrot.slane %v7943, %v7949
    %v7951 = vcombine.low %v7014, %v7018
    %v7953 = vunpack.c.l.s4 1983009808
    %v7954 = vunpack.c.0.s8 %v7953
    %v7955 = vlaneseq
    %v7956 = vshrl.u32 %v7955, 7
    %v7957 = vsub.s32 %v7954, %v7956
    %v7958 = vrot.slane %v7951, %v7957
    %v7959 = vcombine.low %v7934, %v7942
    %v7960 = vcombine.high %v7934, %v7942
    %v7962 = vunpack.c.l.s4 1934713408
    %v7963 = vunpack.c.0.s8 %v7962
    %v7964 = vlaneseq
    %v7965 = vshrl.u32 %v7964, 7
    %v7966 = vsub.s32 %v7963, %v7965
    %v7967 = vrot.slane %v7959, %v7966
    %v7969 = vunpack.c.l.s4 1934713408
    %v7970 = vunpack.c.0.s8 %v7969
    %v7971 = vlaneseq
    %v7972 = vshrl.u32 %v7971, 7
    %v7973 = vsub.s32 %v7970, %v7972
    %v7974 = vrot.slane %v7960, %v7973
    %v7975 = vcombine.low %v7950, %v7958
    %v7976 = vcombine.high %v7950, %v7958
    %v7978 = vunpack.c.l.s4 1934713408
    %v7979 = vunpack.c.0.s8 %v7978
    %v7980 = vlaneseq
    %v7981 = vshrl.u32 %v7980, 7
    %v7982 = vsub.s32 %v7979, %v7981
    %v7983 = vrot.slane %v7975, %v7982
    %v7985 = vunpack.c.l.s4 1934713408
    %v7986 = vunpack.c.0.s8 %v7985
    %v7987 = vlaneseq
    %v7988 = vshrl.u32 %v7987, 7
    %v7989 = vsub.s32 %v7986, %v7988
    %v7990 = vrot.slane %v7976, %v7989
    %v7991 = vcombine.low %v7967, %v7983
    %v7992 = vcombine.high %v7967, %v7983
    %v7993 = vcombine.low %v7974, %v7990
    %v7994 = vcombine.high %v7974, %v7990
    %v7995 = vcombine.low %v7019, %v7023
    %v7997 = vunpack.c.l.s4 1983009808
    %v7998 = vunpack.c.0.s8 %v7997
    %v7999 = vlaneseq
    %v8000 = vshrl.u32 %v7999, 7
    %v8001 = vsub.s32 %v7998, %v8000
    %v8002 = vrot.slane %v7995, %v8001
    %v8003 = vcombine.low %v7021, %v7025
    %v8005 = vunpack.c.l.s4 1983009808
    %v8006 = vunpack.c.0.s8 %v8005
    %v8007 = vlaneseq
    %v8008 = vshrl.u32 %v8007, 7
    %v8009 = vsub.s32 %v8006, %v8008
    %v8010 = vrot.slane %v8003, %v8009
    %v8011 = vcombine.low %v7027, %v7031
    %v8013 = vunpack.c.l.s4 1983009808
    %v8014 = vunpack.c.0.s8 %v8013
    %v8015 = vlaneseq
    %v8016 = vshrl.u32 %v8015, 7
    %v8017 = vsub.s32 %v8014, %v8016
    %v8018 = vrot.slane %v8011, %v8017
    %v8019 = vcombine.low %v7029, %v7033
    %v8021 = vunpack.c.l.s4 1983009808
    %v8022 = vunpack.c.0.s8 %v8021
    %v8023 = vlaneseq
    %v8024 = vshrl.u32 %v8023, 7
    %v8025 = vsub.s32 %v8022, %v8024
    %v8026 = vrot.slane %v8019, %v8025
    %v8027 = vcombine.low %v8002, %v8010
    %v8028 = vcombine.high %v8002, %v8010
    %v8030 = vunpack.c.l.s4 1934713408
    %v8031 = vunpack.c.0.s8 %v8030
    %v8032 = vlaneseq
    %v8033 = vshrl.u32 %v8032, 7
    %v8034 = vsub.s32 %v8031, %v8033
    %v8035 = vrot.slane %v8027, %v8034
    %v8037 = vunpack.c.l.s4 1934713408
    %v8038 = vunpack.c.0.s8 %v8037
    %v8039 = vlaneseq
    %v8040 = vshrl.u32 %v8039, 7
    %v8041 = vsub.s32 %v8038, %v8040
    %v8042 = vrot.slane %v8028, %v8041
    %v8043 = vcombine.low %v8018, %v8026
    %v8044 = vcombine.high %v8018, %v8026
    %v8046 = vunpack.c.l.s4 1934713408
    %v8047 = vunpack.c.0.s8 %v8046
    %v8048 = vlaneseq
    %v8049 = vshrl.u32 %v8048, 7
    %v8050 = vsub.s32 %v8047, %v8049
    %v8051 = vrot.slane %v8043, %v8050
    %v8053 = vunpack.c.l.s4 1934713408
    %v8054 = vunpack.c.0.s8 %v8053
    %v8055 = vlaneseq
    %v8056 = vshrl.u32 %v8055, 7
    %v8057 = vsub.s32 %v8054, %v8056
    %v8058 = vrot.slane %v8044, %v8057
    %v8059 = vcombine.low %v8035, %v8051
    %v8060 = vcombine.high %v8035, %v8051
    %v8061 = vcombine.low %v8042, %v8058
    %v8062 = vcombine.high %v8042, %v8058
    %v8063 = vcombine.low %v7020, %v7024
    %v8065 = vunpack.c.l.s4 1983009808
    %v8066 = vunpack.c.0.s8 %v8065
    %v8067 = vlaneseq
    %v8068 = vshrl.u32 %v8067, 7
    %v8069 = vsub.s32 %v8066, %v8068
    %v8070 = vrot.slane %v8063, %v8069
    %v8071 = vcombine.low %v7022, %v7026
    %v8073 = vunpack.c.l.s4 1983009808
    %v8074 = vunpack.c.0.s8 %v8073
    %v8075 = vlaneseq
    %v8076 = vshrl.u32 %v8075, 7
    %v8077 = vsub.s32 %v8074, %v8076
    %v8078 = vrot.slane %v8071, %v8077
    %v8079 = vcombine.low %v7028, %v7032
    %v8081 = vunpack.c.l.s4 1983009808
    %v8082 = vunpack.c.0.s8 %v8081
    %v8083 = vlaneseq
    %v8084 = vshrl.u32 %v8083, 7
    %v8085 = vsub.s32 %v8082, %v8084
    %v8086 = vrot.slane %v8079, %v8085
    %v8087 = vcombine.low %v7030, %v7034
    %v8089 = vunpack.c.l.s4 1983009808
    %v8090 = vunpack.c.0.s8 %v8089
    %v8091 = vlaneseq
    %v8092 = vshrl.u32 %v8091, 7
    %v8093 = vsub.s32 %v8090, %v8092
    %v8094 = vrot.slane %v8087, %v8093
    %v8095 = vcombine.low %v8070, %v8078
    %v8096 = vcombine.high %v8070, %v8078
    %v8098 = vunpack.c.l.s4 1934713408
    %v8099 = vunpack.c.0.s8 %v8098
    %v8100 = vlaneseq
    %v8101 = vshrl.u32 %v8100, 7
    %v8102 = vsub.s32 %v8099, %v8101
    %v8103 = vrot.slane %v8095, %v8102
    %v8105 = vunpack.c.l.s4 1934713408
    %v8106 = vunpack.c.0.s8 %v8105
    %v8107 = vlaneseq
    %v8108 = vshrl.u32 %v8107, 7
    %v8109 = vsub.s32 %v8106, %v8108
    %v8110 = vrot.slane %v8096, %v8109
    %v8111 = vcombine.low %v8086, %v8094
    %v8112 = vcombine.high %v8086, %v8094
    %v8114 = vunpack.c.l.s4 1934713408
    %v8115 = vunpack.c.0.s8 %v8114
    %v8116 = vlaneseq
    %v8117 = vshrl.u32 %v8116, 7
    %v8118 = vsub.s32 %v8115, %v8117
    %v8119 = vrot.slane %v8111, %v8118
    %v8121 = vunpack.c.l.s4 1934713408
    %v8122 = vunpack.c.0.s8 %v8121
    %v8123 = vlaneseq
    %v8124 = vshrl.u32 %v8123, 7
    %v8125 = vsub.s32 %v8122, %v8124
    %v8126 = vrot.slane %v8112, %v8125
    %v8127 = vcombine.low %v8103, %v8119
    %v8128 = vcombine.high %v8103, %v8119
    %v8129 = vcombine.low %v8110, %v8126
    %v8130 = vcombine.high %v8110, %v8126
    %v8131 = vcombine.low %v7035, %v7039
    %v8133 = vunpack.c.l.s4 1983009808
    %v8134 = vunpack.c.0.s8 %v8133
    %v8135 = vlaneseq
    %v8136 = vshrl.u32 %v8135, 7
    %v8137 = vsub.s32 %v8134, %v8136
    %v8138 = vrot.slane %v8131, %v8137
    %v8139 = vcombine.low %v7037, %v7041
    %v8141 = vunpack.c.l.s4 1983009808
    %v8142 = vunpack.c.0.s8 %v8141
    %v8143 = vlaneseq
    %v8144 = vshrl.u32 %v8143, 7
    %v8145 = vsub.s32 %v8142, %v8144
    %v8146 = vrot.slane %v8139, %v8145
    %v8147 = vcombine.low %v7043, %v7047
    %v8149 = vunpack.c.l.s4 1983009808
    %v8150 = vunpack.c.0.s8 %v8149
    %v8151 = vlaneseq
    %v8152 = vshrl.u32 %v8151, 7
    %v8153 = vsub.s32 %v8150, %v8152
    %v8154 = vrot.slane %v8147, %v8153
    %v8155 = vcombine.low %v7045, %v7049
    %v8157 = vunpack.c.l.s4 1983009808
    %v8158 = vunpack.c.0.s8 %v8157
    %v8159 = vlaneseq
    %v8160 = vshrl.u32 %v8159, 7
    %v8161 = vsub.s32 %v8158, %v8160
    %v8162 = vrot.slane %v8155, %v8161
    %v8163 = vcombine.low %v8138, %v8146
    %v8164 = vcombine.high %v8138, %v8146
    %v8166 = vunpack.c.l.s4 1934713408
    %v8167 = vunpack.c.0.s8 %v8166
    %v8168 = vlaneseq
    %v8169 = vshrl.u32 %v8168, 7
    %v8170 = vsub.s32 %v8167, %v8169
    %v8171 = vrot.slane %v8163, %v8170
    %v8173 = vunpack.c.l.s4 1934713408
    %v8174 = vunpack.c.0.s8 %v8173
    %v8175 = vlaneseq
    %v8176 = vshrl.u32 %v8175, 7
    %v8177 = vsub.s32 %v8174, %v8176
    %v8178 = vrot.slane %v8164, %v8177
    %v8179 = vcombine.low %v8154, %v8162
    %v8180 = vcombine.high %v8154, %v8162
    %v8182 = vunpack.c.l.s4 1934713408
    %v8183 = vunpack.c.0.s8 %v8182
    %v8184 = vlaneseq
    %v8185 = vshrl.u32 %v8184, 7
    %v8186 = vsub.s32 %v8183, %v8185
    %v8187 = vrot.slane %v8179, %v8186
    %v8189 = vunpack.c.l.s4 1934713408
    %v8190 = vunpack.c.0.s8 %v8189
    %v8191 = vlaneseq
    %v8192 = vshrl.u32 %v8191, 7
    %v8193 = vsub.s32 %v8190, %v8192
    %v8194 = vrot.slane %v8180, %v8193
    %v8195 = vcombine.low %v8171, %v8187
    %v8196 = vcombine.high %v8171, %v8187
    %v8197 = vcombine.low %v8178, %v8194
    %v8198 = vcombine.high %v8178, %v8194
    %v8199 = vcombine.low %v7036, %v7040
    %v8201 = vunpack.c.l.s4 1983009808
    %v8202 = vunpack.c.0.s8 %v8201
    %v8203 = vlaneseq
    %v8204 = vshrl.u32 %v8203, 7
    %v8205 = vsub.s32 %v8202, %v8204
    %v8206 = vrot.slane %v8199, %v8205
    %v8207 = vcombine.low %v7038, %v7042
    %v8209 = vunpack.c.l.s4 1983009808
    %v8210 = vunpack.c.0.s8 %v8209
    %v8211 = vlaneseq
    %v8212 = vshrl.u32 %v8211, 7
    %v8213 = vsub.s32 %v8210, %v8212
    %v8214 = vrot.slane %v8207, %v8213
    %v8215 = vcombine.low %v7044, %v7048
    %v8217 = vunpack.c.l.s4 1983009808
    %v8218 = vunpack.c.0.s8 %v8217
    %v8219 = vlaneseq
    %v8220 = vshrl.u32 %v8219, 7
    %v8221 = vsub.s32 %v8218, %v8220
    %v8222 = vrot.slane %v8215, %v8221
    %v8223 = vcombine.low %v7046, %v7050
    %v8225 = vunpack.c.l.s4 1983009808
    %v8226 = vunpack.c.0.s8 %v8225
    %v8227 = vlaneseq
    %v8228 = vshrl.u32 %v8227, 7
    %v8229 = vsub.s32 %v8226, %v8228
    %v8230 = vrot.slane %v8223, %v8229
    %v8231 = vcombine.low %v8206, %v8214
    %v8232 = vcombine.high %v8206, %v8214
    %v8234 = vunpack.c.l.s4 1934713408
    %v8235 = vunpack.c.0.s8 %v8234
    %v8236 = vlaneseq
    %v8237 = vshrl.u32 %v8236, 7
    %v8238 = vsub.s32 %v8235, %v8237
    %v8239 = vrot.slane %v8231, %v8238
    %v8241 = vunpack.c.l.s4 1934713408
    %v8242 = vunpack.c.0.s8 %v8241
    %v8243 = vlaneseq
    %v8244 = vshrl.u32 %v8243, 7
    %v8245 = vsub.s32 %v8242, %v8244
    %v8246 = vrot.slane %v8232, %v8245
    %v8247 = vcombine.low %v8222, %v8230
    %v8248 = vcombine.high %v8222, %v8230
    %v8250 = vunpack.c.l.s4 1934713408
    %v8251 = vunpack.c.0.s8 %v8250
    %v8252 = vlaneseq
    %v8253 = vshrl.u32 %v8252, 7
    %v8254 = vsub.s32 %v8251, %v8253
    %v8255 = vrot.slane %v8247, %v8254
    %v8257 = vunpack.c.l.s4 1934713408
    %v8258 = vunpack.c.0.s8 %v8257
    %v8259 = vlaneseq
    %v8260 = vshrl.u32 %v8259, 7
    %v8261 = vsub.s32 %v8258, %v8260
    %v8262 = vrot.slane %v8248, %v8261
    %v8263 = vcombine.low %v8239, %v8255
    %v8264 = vcombine.high %v8239, %v8255
    %v8265 = vcombine.low %v8246, %v8262
    %v8266 = vcombine.high %v8246, %v8262
    %v8267 = vcombine.low %v7051, %v7055
    %v8269 = vunpack.c.l.s4 1983009808
    %v8270 = vunpack.c.0.s8 %v8269
    %v8271 = vlaneseq
    %v8272 = vshrl.u32 %v8271, 7
    %v8273 = vsub.s32 %v8270, %v8272
    %v8274 = vrot.slane %v8267, %v8273
    %v8275 = vcombine.low %v7053, %v7057
    %v8277 = vunpack.c.l.s4 1983009808
    %v8278 = vunpack.c.0.s8 %v8277
    %v8279 = vlaneseq
    %v8280 = vshrl.u32 %v8279, 7
    %v8281 = vsub.s32 %v8278, %v8280
    %v8282 = vrot.slane %v8275, %v8281
    %v8283 = vcombine.low %v7059, %v7063
    %v8285 = vunpack.c.l.s4 1983009808
    %v8286 = vunpack.c.0.s8 %v8285
    %v8287 = vlaneseq
    %v8288 = vshrl.u32 %v8287, 7
    %v8289 = vsub.s32 %v8286, %v8288
    %v8290 = vrot.slane %v8283, %v8289
    %v8291 = vcombine.low %v7061, %v7065
    %v8293 = vunpack.c.l.s4 1983009808
    %v8294 = vunpack.c.0.s8 %v8293
    %v8295 = vlaneseq
    %v8296 = vshrl.u32 %v8295, 7
    %v8297 = vsub.s32 %v8294, %v8296
    %v8298 = vrot.slane %v8291, %v8297
    %v8299 = vcombine.low %v8274, %v8282
    %v8300 = vcombine.high %v8274, %v8282
    %v8302 = vunpack.c.l.s4 1934713408
    %v8303 = vunpack.c.0.s8 %v8302
    %v8304 = vlaneseq
    %v8305 = vshrl.u32 %v8304, 7
    %v8306 = vsub.s32 %v8303, %v8305
    %v8307 = vrot.slane %v8299, %v8306
    %v8309 = vunpack.c.l.s4 1934713408
    %v8310 = vunpack.c.0.s8 %v8309
    %v8311 = vlaneseq
    %v8312 = vshrl.u32 %v8311, 7
    %v8313 = vsub.s32 %v8310, %v8312
    %v8314 = vrot.slane %v8300, %v8313
    %v8315 = vcombine.low %v8290, %v8298
    %v8316 = vcombine.high %v8290, %v8298
    %v8318 = vunpack.c.l.s4 1934713408
    %v8319 = vunpack.c.0.s8 %v8318
    %v8320 = vlaneseq
    %v8321 = vshrl.u32 %v8320, 7
    %v8322 = vsub.s32 %v8319, %v8321
    %v8323 = vrot.slane %v8315, %v8322
    %v8325 = vunpack.c.l.s4 1934713408
    %v8326 = vunpack.c.0.s8 %v8325
    %v8327 = vlaneseq
    %v8328 = vshrl.u32 %v8327, 7
    %v8329 = vsub.s32 %v8326, %v8328
    %v8330 = vrot.slane %v8316, %v8329
    %v8331 = vcombine.low %v8307, %v8323
    %v8332 = vcombine.high %v8307, %v8323
    %v8333 = vcombine.low %v8314, %v8330
    %v8334 = vcombine.high %v8314, %v8330
    %v8335 = vcombine.low %v7052, %v7056
    %v8337 = vunpack.c.l.s4 1983009808
    %v8338 = vunpack.c.0.s8 %v8337
    %v8339 = vlaneseq
    %v8340 = vshrl.u32 %v8339, 7
    %v8341 = vsub.s32 %v8338, %v8340
    %v8342 = vrot.slane %v8335, %v8341
    %v8343 = vcombine.low %v7054, %v7058
    %v8345 = vunpack.c.l.s4 1983009808
    %v8346 = vunpack.c.0.s8 %v8345
    %v8347 = vlaneseq
    %v8348 = vshrl.u32 %v8347, 7
    %v8349 = vsub.s32 %v8346, %v8348
    %v8350 = vrot.slane %v8343, %v8349
    %v8351 = vcombine.low %v7060, %v7064
    %v8353 = vunpack.c.l.s4 1983009808
    %v8354 = vunpack.c.0.s8 %v8353
    %v8355 = vlaneseq
    %v8356 = vshrl.u32 %v8355, 7
    %v8357 = vsub.s32 %v8354, %v8356
    %v8358 = vrot.slane %v8351, %v8357
    %v8359 = vcombine.low %v7062, %v7066
    %v8361 = vunpack.c.l.s4 1983009808
    %v8362 = vunpack.c.0.s8 %v8361
    %v8363 = vlaneseq
    %v8364 = vshrl.u32 %v8363, 7
    %v8365 = vsub.s32 %v8362, %v8364
    %v8366 = vrot.slane %v8359, %v8365
    %v8367 = vcombine.low %v8342, %v8350
    %v8368 = vcombine.high %v8342, %v8350
    %v8370 = vunpack.c.l.s4 1934713408
    %v8371 = vunpack.c.0.s8 %v8370
    %v8372 = vlaneseq
    %v8373 = vshrl.u32 %v8372, 7
    %v8374 = vsub.s32 %v8371, %v8373
    %v8375 = vrot.slane %v8367, %v8374
    %v8377 = vunpack.c.l.s4 1934713408
    %v8378 = vunpack.c.0.s8 %v8377
    %v8379 = vlaneseq
    %v8380 = vshrl.u32 %v8379, 7
    %v8381 = vsub.s32 %v8378, %v8380
    %v8382 = vrot.slane %v8368, %v8381
    %v8383 = vcombine.low %v8358, %v8366
    %v8384 = vcombine.high %v8358, %v8366
    %v8386 = vunpack.c.l.s4 1934713408
    %v8387 = vunpack.c.0.s8 %v8386
    %v8388 = vlaneseq
    %v8389 = vshrl.u32 %v8388, 7
    %v8390 = vsub.s32 %v8387, %v8389
    %v8391 = vrot.slane %v8383, %v8390
    %v8393 = vunpack.c.l.s4 1934713408
    %v8394 = vunpack.c.0.s8 %v8393
    %v8395 = vlaneseq
    %v8396 = vshrl.u32 %v8395, 7
    %v8397 = vsub.s32 %v8394, %v8396
    %v8398 = vrot.slane %v8384, %v8397
    %v8399 = vcombine.low %v8375, %v8391
    %v8400 = vcombine.high %v8375, %v8391
    %v8401 = vcombine.low %v8382, %v8398
    %v8402 = vcombine.high %v8382, %v8398
    %v8403 = vcombine.low %v7067, %v7071
    %v8405 = vunpack.c.l.s4 1983009808
    %v8406 = vunpack.c.0.s8 %v8405
    %v8407 = vlaneseq
    %v8408 = vshrl.u32 %v8407, 7
    %v8409 = vsub.s32 %v8406, %v8408
    %v8410 = vrot.slane %v8403, %v8409
    %v8411 = vcombine.low %v7069, %v7073
    %v8413 = vunpack.c.l.s4 1983009808
    %v8414 = vunpack.c.0.s8 %v8413
    %v8415 = vlaneseq
    %v8416 = vshrl.u32 %v8415, 7
    %v8417 = vsub.s32 %v8414, %v8416
    %v8418 = vrot.slane %v8411, %v8417
    %v8419 = vcombine.low %v7075, %v7079
    %v8421 = vunpack.c.l.s4 1983009808
    %v8422 = vunpack.c.0.s8 %v8421
    %v8423 = vlaneseq
    %v8424 = vshrl.u32 %v8423, 7
    %v8425 = vsub.s32 %v8422, %v8424
    %v8426 = vrot.slane %v8419, %v8425
    %v8427 = vcombine.low %v7077, %v7081
    %v8429 = vunpack.c.l.s4 1983009808
    %v8430 = vunpack.c.0.s8 %v8429
    %v8431 = vlaneseq
    %v8432 = vshrl.u32 %v8431, 7
    %v8433 = vsub.s32 %v8430, %v8432
    %v8434 = vrot.slane %v8427, %v8433
    %v8435 = vcombine.low %v8410, %v8418
    %v8436 = vcombine.high %v8410, %v8418
    %v8438 = vunpack.c.l.s4 1934713408
    %v8439 = vunpack.c.0.s8 %v8438
    %v8440 = vlaneseq
    %v8441 = vshrl.u32 %v8440, 7
    %v8442 = vsub.s32 %v8439, %v8441
    %v8443 = vrot.slane %v8435, %v8442
    %v8445 = vunpack.c.l.s4 1934713408
    %v8446 = vunpack.c.0.s8 %v8445
    %v8447 = vlaneseq
    %v8448 = vshrl.u32 %v8447, 7
    %v8449 = vsub.s32 %v8446, %v8448
    %v8450 = vrot.slane %v8436, %v8449
    %v8451 = vcombine.low %v8426, %v8434
    %v8452 = vcombine.high %v8426, %v8434
    %v8454 = vunpack.c.l.s4 1934713408
    %v8455 = vunpack.c.0.s8 %v8454
    %v8456 = vlaneseq
    %v8457 = vshrl.u32 %v8456, 7
    %v8458 = vsub.s32 %v8455, %v8457
    %v8459 = vrot.slane %v8451, %v8458
    %v8461 = vunpack.c.l.s4 1934713408
    %v8462 = vunpack.c.0.s8 %v8461
    %v8463 = vlaneseq
    %v8464 = vshrl.u32 %v8463, 7
    %v8465 = vsub.s32 %v8462, %v8464
    %v8466 = vrot.slane %v8452, %v8465
    %v8467 = vcombine.low %v8443, %v8459
    %v8468 = vcombine.high %v8443, %v8459
    %v8469 = vcombine.low %v8450, %v8466
    %v8470 = vcombine.high %v8450, %v8466
    %v8471 = vcombine.low %v7068, %v7072
    %v8473 = vunpack.c.l.s4 1983009808
    %v8474 = vunpack.c.0.s8 %v8473
    %v8475 = vlaneseq
    %v8476 = vshrl.u32 %v8475, 7
    %v8477 = vsub.s32 %v8474, %v8476
    %v8478 = vrot.slane %v8471, %v8477
    %v8479 = vcombine.low %v7070, %v7074
    %v8481 = vunpack.c.l.s4 1983009808
    %v8482 = vunpack.c.0.s8 %v8481
    %v8483 = vlaneseq
    %v8484 = vshrl.u32 %v8483, 7
    %v8485 = vsub.s32 %v8482, %v8484
    %v8486 = vrot.slane %v8479, %v8485
    %v8487 = vcombine.low %v7076, %v7080
    %v8489 = vunpack.c.l.s4 1983009808
    %v8490 = vunpack.c.0.s8 %v8489
    %v8491 = vlaneseq
    %v8492 = vshrl.u32 %v8491, 7
    %v8493 = vsub.s32 %v8490, %v8492
    %v8494 = vrot.slane %v8487, %v8493
    %v8495 = vcombine.low %v7078, %v7082
    %v8497 = vunpack.c.l.s4 1983009808
    %v8498 = vunpack.c.0.s8 %v8497
    %v8499 = vlaneseq
    %v8500 = vshrl.u32 %v8499, 7
    %v8501 = vsub.s32 %v8498, %v8500
    %v8502 = vrot.slane %v8495, %v8501
    %v8503 = vcombine.low %v8478, %v8486
    %v8504 = vcombine.high %v8478, %v8486
    %v8506 = vunpack.c.l.s4 1934713408
    %v8507 = vunpack.c.0.s8 %v8506
    %v8508 = vlaneseq
    %v8509 = vshrl.u32 %v8508, 7
    %v8510 = vsub.s32 %v8507, %v8509
    %v8511 = vrot.slane %v8503, %v8510
    %v8513 = vunpack.c.l.s4 1934713408
    %v8514 = vunpack.c.0.s8 %v8513
    %v8515 = vlaneseq
    %v8516 = vshrl.u32 %v8515, 7
    %v8517 = vsub.s32 %v8514, %v8516
    %v8518 = vrot.slane %v8504, %v8517
    %v8519 = vcombine.low %v8494, %v8502
    %v8520 = vcombine.high %v8494, %v8502
    %v8522 = vunpack.c.l.s4 1934713408
    %v8523 = vunpack.c.0.s8 %v8522
    %v8524 = vlaneseq
    %v8525 = vshrl.u32 %v8524, 7
    %v8526 = vsub.s32 %v8523, %v8525
    %v8527 = vrot.slane %v8519, %v8526
    %v8529 = vunpack.c.l.s4 1934713408
    %v8530 = vunpack.c.0.s8 %v8529
    %v8531 = vlaneseq
    %v8532 = vshrl.u32 %v8531, 7
    %v8533 = vsub.s32 %v8530, %v8532
    %v8534 = vrot.slane %v8520, %v8533
    %v8535 = vcombine.low %v8511, %v8527
    %v8536 = vcombine.high %v8511, %v8527
    %v8537 = vcombine.low %v8518, %v8534
    %v8538 = vcombine.high %v8518, %v8534
    %v8539 = vcombine.low %v7083, %v7087
    %v8541 = vunpack.c.l.s4 1983009808
    %v8542 = vunpack.c.0.s8 %v8541
    %v8543 = vlaneseq
    %v8544 = vshrl.u32 %v8543, 7
    %v8545 = vsub.s32 %v8542, %v8544
    %v8546 = vrot.slane %v8539, %v8545
    %v8547 = vcombine.low %v7085, %v7089
    %v8549 = vunpack.c.l.s4 1983009808
    %v8550 = vunpack.c.0.s8 %v8549
    %v8551 = vlaneseq
    %v8552 = vshrl.u32 %v8551, 7
    %v8553 = vsub.s32 %v8550, %v8552
    %v8554 = vrot.slane %v8547, %v8553
    %v8555 = vcombine.low %v7091, %v7095
    %v8557 = vunpack.c.l.s4 1983009808
    %v8558 = vunpack.c.0.s8 %v8557
    %v8559 = vlaneseq
    %v8560 = vshrl.u32 %v8559, 7
    %v8561 = vsub.s32 %v8558, %v8560
    %v8562 = vrot.slane %v8555, %v8561
    %v8563 = vcombine.low %v7093, %v7097
    %v8565 = vunpack.c.l.s4 1983009808
    %v8566 = vunpack.c.0.s8 %v8565
    %v8567 = vlaneseq
    %v8568 = vshrl.u32 %v8567, 7
    %v8569 = vsub.s32 %v8566, %v8568
    %v8570 = vrot.slane %v8563, %v8569
    %v8571 = vcombine.low %v8546, %v8554
    %v8572 = vcombine.high %v8546, %v8554
    %v8574 = vunpack.c.l.s4 1934713408
    %v8575 = vunpack.c.0.s8 %v8574
    %v8576 = vlaneseq
    %v8577 = vshrl.u32 %v8576, 7
    %v8578 = vsub.s32 %v8575, %v8577
    %v8579 = vrot.slane %v8571, %v8578
    %v8581 = vunpack.c.l.s4 1934713408
    %v8582 = vunpack.c.0.s8 %v8581
    %v8583 = vlaneseq
    %v8584 = vshrl.u32 %v8583, 7
    %v8585 = vsub.s32 %v8582, %v8584
    %v8586 = vrot.slane %v8572, %v8585
    %v8587 = vcombine.low %v8562, %v8570
    %v8588 = vcombine.high %v8562, %v8570
    %v8590 = vunpack.c.l.s4 1934713408
    %v8591 = vunpack.c.0.s8 %v8590
    %v8592 = vlaneseq
    %v8593 = vshrl.u32 %v8592, 7
    %v8594 = vsub.s32 %v8591, %v8593
    %v8595 = vrot.slane %v8587, %v8594
    %v8597 = vunpack.c.l.s4 1934713408
    %v8598 = vunpack.c.0.s8 %v8597
    %v8599 = vlaneseq
    %v8600 = vshrl.u32 %v8599, 7
    %v8601 = vsub.s32 %v8598, %v8600
    %v8602 = vrot.slane %v8588, %v8601
    %v8603 = vcombine.low %v8579, %v8595
    %v8604 = vcombine.high %v8579, %v8595
    %v8605 = vcombine.low %v8586, %v8602
    %v8606 = vcombine.high %v8586, %v8602
    %v8607 = vcombine.low %v7084, %v7088
    %v8609 = vunpack.c.l.s4 1983009808
    %v8610 = vunpack.c.0.s8 %v8609
    %v8611 = vlaneseq
    %v8612 = vshrl.u32 %v8611, 7
    %v8613 = vsub.s32 %v8610, %v8612
    %v8614 = vrot.slane %v8607, %v8613
    %v8615 = vcombine.low %v7086, %v7090
    %v8617 = vunpack.c.l.s4 1983009808
    %v8618 = vunpack.c.0.s8 %v8617
    %v8619 = vlaneseq
    %v8620 = vshrl.u32 %v8619, 7
    %v8621 = vsub.s32 %v8618, %v8620
    %v8622 = vrot.slane %v8615, %v8621
    %v8623 = vcombine.low %v7092, %v7096
    %v8625 = vunpack.c.l.s4 1983009808
    %v8626 = vunpack.c.0.s8 %v8625
    %v8627 = vlaneseq
    %v8628 = vshrl.u32 %v8627, 7
    %v8629 = vsub.s32 %v8626, %v8628
    %v8630 = vrot.slane %v8623, %v8629
    %v8631 = vcombine.low %v7094, %v7098
    %v8633 = vunpack.c.l.s4 1983009808
    %v8634 = vunpack.c.0.s8 %v8633
    %v8635 = vlaneseq
    %v8636 = vshrl.u32 %v8635, 7
    %v8637 = vsub.s32 %v8634, %v8636
    %v8638 = vrot.slane %v8631, %v8637
    %v8639 = vcombine.low %v8614, %v8622
    %v8640 = vcombine.high %v8614, %v8622
    %v8642 = vunpack.c.l.s4 1934713408
    %v8643 = vunpack.c.0.s8 %v8642
    %v8644 = vlaneseq
    %v8645 = vshrl.u32 %v8644, 7
    %v8646 = vsub.s32 %v8643, %v8645
    %v8647 = vrot.slane %v8639, %v8646
    %v8649 = vunpack.c.l.s4 1934713408
    %v8650 = vunpack.c.0.s8 %v8649
    %v8651 = vlaneseq
    %v8652 = vshrl.u32 %v8651, 7
    %v8653 = vsub.s32 %v8650, %v8652
    %v8654 = vrot.slane %v8640, %v8653
    %v8655 = vcombine.low %v8630, %v8638
    %v8656 = vcombine.high %v8630, %v8638
    %v8658 = vunpack.c.l.s4 1934713408
    %v8659 = vunpack.c.0.s8 %v8658
    %v8660 = vlaneseq
    %v8661 = vshrl.u32 %v8660, 7
    %v8662 = vsub.s32 %v8659, %v8661
    %v8663 = vrot.slane %v8655, %v8662
    %v8665 = vunpack.c.l.s4 1934713408
    %v8666 = vunpack.c.0.s8 %v8665
    %v8667 = vlaneseq
    %v8668 = vshrl.u32 %v8667, 7
    %v8669 = vsub.s32 %v8666, %v8668
    %v8670 = vrot.slane %v8656, %v8669
    %v8671 = vcombine.low %v8647, %v8663
    %v8672 = vcombine.high %v8647, %v8663
    %v8673 = vcombine.low %v8654, %v8670
    %v8674 = vcombine.high %v8654, %v8670
    %v8675 = vcombine.low %v7099, %v7103
    %v8677 = vunpack.c.l.s4 1983009808
    %v8678 = vunpack.c.0.s8 %v8677
    %v8679 = vlaneseq
    %v8680 = vshrl.u32 %v8679, 7
    %v8681 = vsub.s32 %v8678, %v8680
    %v8682 = vrot.slane %v8675, %v8681
    %v8683 = vcombine.low %v7101, %v7105
    %v8685 = vunpack.c.l.s4 1983009808
    %v8686 = vunpack.c.0.s8 %v8685
    %v8687 = vlaneseq
    %v8688 = vshrl.u32 %v8687, 7
    %v8689 = vsub.s32 %v8686, %v8688
    %v8690 = vrot.slane %v8683, %v8689
    %v8691 = vcombine.low %v7107, %v7111
    %v8693 = vunpack.c.l.s4 1983009808
    %v8694 = vunpack.c.0.s8 %v8693
    %v8695 = vlaneseq
    %v8696 = vshrl.u32 %v8695, 7
    %v8697 = vsub.s32 %v8694, %v8696
    %v8698 = vrot.slane %v8691, %v8697
    %v8699 = vcombine.low %v7109, %v7113
    %v8701 = vunpack.c.l.s4 1983009808
    %v8702 = vunpack.c.0.s8 %v8701
    %v8703 = vlaneseq
    %v8704 = vshrl.u32 %v8703, 7
    %v8705 = vsub.s32 %v8702, %v8704
    %v8706 = vrot.slane %v8699, %v8705
    %v8707 = vcombine.low %v8682, %v8690
    %v8708 = vcombine.high %v8682, %v8690
    %v8710 = vunpack.c.l.s4 1934713408
    %v8711 = vunpack.c.0.s8 %v8710
    %v8712 = vlaneseq
    %v8713 = vshrl.u32 %v8712, 7
    %v8714 = vsub.s32 %v8711, %v8713
    %v8715 = vrot.slane %v8707, %v8714
    %v8717 = vunpack.c.l.s4 1934713408
    %v8718 = vunpack.c.0.s8 %v8717
    %v8719 = vlaneseq
    %v8720 = vshrl.u32 %v8719, 7
    %v8721 = vsub.s32 %v8718, %v8720
    %v8722 = vrot.slane %v8708, %v8721
    %v8723 = vcombine.low %v8698, %v8706
    %v8724 = vcombine.high %v8698, %v8706
    %v8726 = vunpack.c.l.s4 1934713408
    %v8727 = vunpack.c.0.s8 %v8726
    %v8728 = vlaneseq
    %v8729 = vshrl.u32 %v8728, 7
    %v8730 = vsub.s32 %v8727, %v8729
    %v8731 = vrot.slane %v8723, %v8730
    %v8733 = vunpack.c.l.s4 1934713408
    %v8734 = vunpack.c.0.s8 %v8733
    %v8735 = vlaneseq
    %v8736 = vshrl.u32 %v8735, 7
    %v8737 = vsub.s32 %v8734, %v8736
    %v8738 = vrot.slane %v8724, %v8737
    %v8739 = vcombine.low %v8715, %v8731
    %v8740 = vcombine.high %v8715, %v8731
    %v8741 = vcombine.low %v8722, %v8738
    %v8742 = vcombine.high %v8722, %v8738
    %v8743 = vcombine.low %v7100, %v7104
    %v8745 = vunpack.c.l.s4 1983009808
    %v8746 = vunpack.c.0.s8 %v8745
    %v8747 = vlaneseq
    %v8748 = vshrl.u32 %v8747, 7
    %v8749 = vsub.s32 %v8746, %v8748
    %v8750 = vrot.slane %v8743, %v8749
    %v8751 = vcombine.low %v7102, %v7106
    %v8753 = vunpack.c.l.s4 1983009808
    %v8754 = vunpack.c.0.s8 %v8753
    %v8755 = vlaneseq
    %v8756 = vshrl.u32 %v8755, 7
    %v8757 = vsub.s32 %v8754, %v8756
    %v8758 = vrot.slane %v8751, %v8757
    %v8759 = vcombine.low %v7108, %v7112
    %v8761 = vunpack.c.l.s4 1983009808
    %v8762 = vunpack.c.0.s8 %v8761
    %v8763 = vlaneseq
    %v8764 = vshrl.u32 %v8763, 7
    %v8765 = vsub.s32 %v8762, %v8764
    %v8766 = vrot.slane %v8759, %v8765
    %v8767 = vcombine.low %v7110, %v7114
    %v8769 = vunpack.c.l.s4 1983009808
    %v8770 = vunpack.c.0.s8 %v8769
    %v8771 = vlaneseq
    %v8772 = vshrl.u32 %v8771, 7
    %v8773 = vsub.s32 %v8770, %v8772
    %v8774 = vrot.slane %v8767, %v8773
    %v8775 = vcombine.low %v8750, %v8758
    %v8776 = vcombine.high %v8750, %v8758
    %v8778 = vunpack.c.l.s4 1934713408
    %v8779 = vunpack.c.0.s8 %v8778
    %v8780 = vlaneseq
    %v8781 = vshrl.u32 %v8780, 7
    %v8782 = vsub.s32 %v8779, %v8781
    %v8783 = vrot.slane %v8775, %v8782
    %v8785 = vunpack.c.l.s4 1934713408
    %v8786 = vunpack.c.0.s8 %v8785
    %v8787 = vlaneseq
    %v8788 = vshrl.u32 %v8787, 7
    %v8789 = vsub.s32 %v8786, %v8788
    %v8790 = vrot.slane %v8776, %v8789
    %v8791 = vcombine.low %v8766, %v8774
    %v8792 = vcombine.high %v8766, %v8774
    %v8794 = vunpack.c.l.s4 1934713408
    %v8795 = vunpack.c.0.s8 %v8794
    %v8796 = vlaneseq
    %v8797 = vshrl.u32 %v8796, 7
    %v8798 = vsub.s32 %v8795, %v8797
    %v8799 = vrot.slane %v8791, %v8798
    %v8801 = vunpack.c.l.s4 1934713408
    %v8802 = vunpack.c.0.s8 %v8801
    %v8803 = vlaneseq
    %v8804 = vshrl.u32 %v8803, 7
    %v8805 = vsub.s32 %v8802, %v8804
    %v8806 = vrot.slane %v8792, %v8805
    %v8807 = vcombine.low %v8783, %v8799
    %v8808 = vcombine.high %v8783, %v8799
    %v8809 = vcombine.low %v8790, %v8806
    %v8810 = vcombine.high %v8790, %v8806
    %v8811 = vcombine.low %v7115, %v7119
    %v8813 = vunpack.c.l.s4 1983009808
    %v8814 = vunpack.c.0.s8 %v8813
    %v8815 = vlaneseq
    %v8816 = vshrl.u32 %v8815, 7
    %v8817 = vsub.s32 %v8814, %v8816
    %v8818 = vrot.slane %v8811, %v8817
    %v8819 = vcombine.low %v7117, %v7121
    %v8821 = vunpack.c.l.s4 1983009808
    %v8822 = vunpack.c.0.s8 %v8821
    %v8823 = vlaneseq
    %v8824 = vshrl.u32 %v8823, 7
    %v8825 = vsub.s32 %v8822, %v8824
    %v8826 = vrot.slane %v8819, %v8825
    %v8827 = vcombine.low %v7123, %v7127
    %v8829 = vunpack.c.l.s4 1983009808
    %v8830 = vunpack.c.0.s8 %v8829
    %v8831 = vlaneseq
    %v8832 = vshrl.u32 %v8831, 7
    %v8833 = vsub.s32 %v8830, %v8832
    %v8834 = vrot.slane %v8827, %v8833
    %v8835 = vcombine.low %v7125, %v7129
    %v8837 = vunpack.c.l.s4 1983009808
    %v8838 = vunpack.c.0.s8 %v8837
    %v8839 = vlaneseq
    %v8840 = vshrl.u32 %v8839, 7
    %v8841 = vsub.s32 %v8838, %v8840
    %v8842 = vrot.slane %v8835, %v8841
    %v8843 = vcombine.low %v8818, %v8826
    %v8844 = vcombine.high %v8818, %v8826
    %v8846 = vunpack.c.l.s4 1934713408
    %v8847 = vunpack.c.0.s8 %v8846
    %v8848 = vlaneseq
    %v8849 = vshrl.u32 %v8848, 7
    %v8850 = vsub.s32 %v8847, %v8849
    %v8851 = vrot.slane %v8843, %v8850
    %v8853 = vunpack.c.l.s4 1934713408
    %v8854 = vunpack.c.0.s8 %v8853
    %v8855 = vlaneseq
    %v8856 = vshrl.u32 %v8855, 7
    %v8857 = vsub.s32 %v8854, %v8856
    %v8858 = vrot.slane %v8844, %v8857
    %v8859 = vcombine.low %v8834, %v8842
    %v8860 = vcombine.high %v8834, %v8842
    %v8862 = vunpack.c.l.s4 1934713408
    %v8863 = vunpack.c.0.s8 %v8862
    %v8864 = vlaneseq
    %v8865 = vshrl.u32 %v8864, 7
    %v8866 = vsub.s32 %v8863, %v8865
    %v8867 = vrot.slane %v8859, %v8866
    %v8869 = vunpack.c.l.s4 1934713408
    %v8870 = vunpack.c.0.s8 %v8869
    %v8871 = vlaneseq
    %v8872 = vshrl.u32 %v8871, 7
    %v8873 = vsub.s32 %v8870, %v8872
    %v8874 = vrot.slane %v8860, %v8873
    %v8875 = vcombine.low %v8851, %v8867
    %v8876 = vcombine.high %v8851, %v8867
    %v8877 = vcombine.low %v8858, %v8874
    %v8878 = vcombine.high %v8858, %v8874
    %v8879 = vcombine.low %v7116, %v7120
    %v8881 = vunpack.c.l.s4 1983009808
    %v8882 = vunpack.c.0.s8 %v8881
    %v8883 = vlaneseq
    %v8884 = vshrl.u32 %v8883, 7
    %v8885 = vsub.s32 %v8882, %v8884
    %v8886 = vrot.slane %v8879, %v8885
    %v8887 = vcombine.low %v7118, %v7122
    %v8889 = vunpack.c.l.s4 1983009808
    %v8890 = vunpack.c.0.s8 %v8889
    %v8891 = vlaneseq
    %v8892 = vshrl.u32 %v8891, 7
    %v8893 = vsub.s32 %v8890, %v8892
    %v8894 = vrot.slane %v8887, %v8893
    %v8895 = vcombine.low %v7124, %v7128
    %v8897 = vunpack.c.l.s4 1983009808
    %v8898 = vunpack.c.0.s8 %v8897
    %v8899 = vlaneseq
    %v8900 = vshrl.u32 %v8899, 7
    %v8901 = vsub.s32 %v8898, %v8900
    %v8902 = vrot.slane %v8895, %v8901
    %v8903 = vcombine.low %v7126, %v7130
    %v8905 = vunpack.c.l.s4 1983009808
    %v8906 = vunpack.c.0.s8 %v8905
    %v8907 = vlaneseq
    %v8908 = vshrl.u32 %v8907, 7
    %v8909 = vsub.s32 %v8906, %v8908
    %v8910 = vrot.slane %v8903, %v8909
    %v8911 = vcombine.low %v8886, %v8894
    %v8912 = vcombine.high %v8886, %v8894
    %v8914 = vunpack.c.l.s4 1934713408
    %v8915 = vunpack.c.0.s8 %v8914
    %v8916 = vlaneseq
    %v8917 = vshrl.u32 %v8916, 7
    %v8918 = vsub.s32 %v8915, %v8917
    %v8919 = vrot.slane %v8911, %v8918
    %v8921 = vunpack.c.l.s4 1934713408
    %v8922 = vunpack.c.0.s8 %v8921
    %v8923 = vlaneseq
    %v8924 = vshrl.u32 %v8923, 7
    %v8925 = vsub.s32 %v8922, %v8924
    %v8926 = vrot.slane %v8912, %v8925
    %v8927 = vcombine.low %v8902, %v8910
    %v8928 = vcombine.high %v8902, %v8910
    %v8930 = vunpack.c.l.s4 1934713408
    %v8931 = vunpack.c.0.s8 %v8930
    %v8932 = vlaneseq
    %v8933 = vshrl.u32 %v8932, 7
    %v8934 = vsub.s32 %v8931, %v8933
    %v8935 = vrot.slane %v8927, %v8934
    %v8937 = vunpack.c.l.s4 1934713408
    %v8938 = vunpack.c.0.s8 %v8937
    %v8939 = vlaneseq
    %v8940 = vshrl.u32 %v8939, 7
    %v8941 = vsub.s32 %v8938, %v8940
    %v8942 = vrot.slane %v8928, %v8941
    %v8943 = vcombine.low %v8919, %v8935
    %v8944 = vcombine.high %v8919, %v8935
    %v8945 = vcombine.low %v8926, %v8942
    %v8946 = vcombine.high %v8926, %v8942
    %v8947 = vcombine.low %v7131, %v7135
    %v8949 = vunpack.c.l.s4 1983009808
    %v8950 = vunpack.c.0.s8 %v8949
    %v8951 = vlaneseq
    %v8952 = vshrl.u32 %v8951, 7
    %v8953 = vsub.s32 %v8950, %v8952
    %v8954 = vrot.slane %v8947, %v8953
    %v8955 = vcombine.low %v7133, %v7137
    %v8957 = vunpack.c.l.s4 1983009808
    %v8958 = vunpack.c.0.s8 %v8957
    %v8959 = vlaneseq
    %v8960 = vshrl.u32 %v8959, 7
    %v8961 = vsub.s32 %v8958, %v8960
    %v8962 = vrot.slane %v8955, %v8961
    %v8963 = vcombine.low %v7139, %v7143
    %v8965 = vunpack.c.l.s4 1983009808
    %v8966 = vunpack.c.0.s8 %v8965
    %v8967 = vlaneseq
    %v8968 = vshrl.u32 %v8967, 7
    %v8969 = vsub.s32 %v8966, %v8968
    %v8970 = vrot.slane %v8963, %v8969
    %v8971 = vcombine.low %v7141, %v7145
    %v8973 = vunpack.c.l.s4 1983009808
    %v8974 = vunpack.c.0.s8 %v8973
    %v8975 = vlaneseq
    %v8976 = vshrl.u32 %v8975, 7
    %v8977 = vsub.s32 %v8974, %v8976
    %v8978 = vrot.slane %v8971, %v8977
    %v8979 = vcombine.low %v8954, %v8962
    %v8980 = vcombine.high %v8954, %v8962
    %v8982 = vunpack.c.l.s4 1934713408
    %v8983 = vunpack.c.0.s8 %v8982
    %v8984 = vlaneseq
    %v8985 = vshrl.u32 %v8984, 7
    %v8986 = vsub.s32 %v8983, %v8985
    %v8987 = vrot.slane %v8979, %v8986
    %v8989 = vunpack.c.l.s4 1934713408
    %v8990 = vunpack.c.0.s8 %v8989
    %v8991 = vlaneseq
    %v8992 = vshrl.u32 %v8991, 7
    %v8993 = vsub.s32 %v8990, %v8992
    %v8994 = vrot.slane %v8980, %v8993
    %v8995 = vcombine.low %v8970, %v8978
    %v8996 = vcombine.high %v8970, %v8978
    %v8998 = vunpack.c.l.s4 1934713408
    %v8999 = vunpack.c.0.s8 %v8998
    %v9000 = vlaneseq
    %v9001 = vshrl.u32 %v9000, 7
    %v9002 = vsub.s32 %v8999, %v9001
    %v9003 = vrot.slane %v8995, %v9002
    %v9005 = vunpack.c.l.s4 1934713408
    %v9006 = vunpack.c.0.s8 %v9005
    %v9007 = vlaneseq
    %v9008 = vshrl.u32 %v9007, 7
    %v9009 = vsub.s32 %v9006, %v9008
    %v9010 = vrot.slane %v8996, %v9009
    %v9011 = vcombine.low %v8987, %v9003
    %v9012 = vcombine.high %v8987, %v9003
    %v9013 = vcombine.low %v8994, %v9010
    %v9014 = vcombine.high %v8994, %v9010
    %v9015 = vcombine.low %v7132, %v7136
    %v9017 = vunpack.c.l.s4 1983009808
    %v9018 = vunpack.c.0.s8 %v9017
    %v9019 = vlaneseq
    %v9020 = vshrl.u32 %v9019, 7
    %v9021 = vsub.s32 %v9018, %v9020
    %v9022 = vrot.slane %v9015, %v9021
    %v9023 = vcombine.low %v7134, %v7138
    %v9025 = vunpack.c.l.s4 1983009808
    %v9026 = vunpack.c.0.s8 %v9025
    %v9027 = vlaneseq
    %v9028 = vshrl.u32 %v9027, 7
    %v9029 = vsub.s32 %v9026, %v9028
    %v9030 = vrot.slane %v9023, %v9029
    %v9031 = vcombine.low %v7140, %v7144
    %v9033 = vunpack.c.l.s4 1983009808
    %v9034 = vunpack.c.0.s8 %v9033
    %v9035 = vlaneseq
    %v9036 = vshrl.u32 %v9035, 7
    %v9037 = vsub.s32 %v9034, %v9036
    %v9038 = vrot.slane %v9031, %v9037
    %v9039 = vcombine.low %v7142, %v7146
    %v9041 = vunpack.c.l.s4 1983009808
    %v9042 = vunpack.c.0.s8 %v9041
    %v9043 = vlaneseq
    %v9044 = vshrl.u32 %v9043, 7
    %v9045 = vsub.s32 %v9042, %v9044
    %v9046 = vrot.slane %v9039, %v9045
    %v9047 = vcombine.low %v9022, %v9030
    %v9048 = vcombine.high %v9022, %v9030
    %v9050 = vunpack.c.l.s4 1934713408
    %v9051 = vunpack.c.0.s8 %v9050
    %v9052 = vlaneseq
    %v9053 = vshrl.u32 %v9052, 7
    %v9054 = vsub.s32 %v9051, %v9053
    %v9055 = vrot.slane %v9047, %v9054
    %v9057 = vunpack.c.l.s4 1934713408
    %v9058 = vunpack.c.0.s8 %v9057
    %v9059 = vlaneseq
    %v9060 = vshrl.u32 %v9059, 7
    %v9061 = vsub.s32 %v9058, %v9060
    %v9062 = vrot.slane %v9048, %v9061
    %v9063 = vcombine.low %v9038, %v9046
    %v9064 = vcombine.high %v9038, %v9046
    %v9066 = vunpack.c.l.s4 1934713408
    %v9067 = vunpack.c.0.s8 %v9066
    %v9068 = vlaneseq
    %v9069 = vshrl.u32 %v9068, 7
    %v9070 = vsub.s32 %v9067, %v9069
    %v9071 = vrot.slane %v9063, %v9070
    %v9073 = vunpack.c.l.s4 1934713408
    %v9074 = vunpack.c.0.s8 %v9073
    %v9075 = vlaneseq
    %v9076 = vshrl.u32 %v9075, 7
    %v9077 = vsub.s32 %v9074, %v9076
    %v9078 = vrot.slane %v9064, %v9077
    %v9079 = vcombine.low %v9055, %v9071
    %v9080 = vcombine.high %v9055, %v9071
    %v9081 = vcombine.low %v9062, %v9078
    %v9082 = vcombine.high %v9062, %v9078
    %v9083 = vcombine.low %v7147, %v7151
    %v9085 = vunpack.c.l.s4 1983009808
    %v9086 = vunpack.c.0.s8 %v9085
    %v9087 = vlaneseq
    %v9088 = vshrl.u32 %v9087, 7
    %v9089 = vsub.s32 %v9086, %v9088
    %v9090 = vrot.slane %v9083, %v9089
    %v9091 = vcombine.low %v7149, %v7153
    %v9093 = vunpack.c.l.s4 1983009808
    %v9094 = vunpack.c.0.s8 %v9093
    %v9095 = vlaneseq
    %v9096 = vshrl.u32 %v9095, 7
    %v9097 = vsub.s32 %v9094, %v9096
    %v9098 = vrot.slane %v9091, %v9097
    %v9099 = vcombine.low %v7155, %v7159
    %v9101 = vunpack.c.l.s4 1983009808
    %v9102 = vunpack.c.0.s8 %v9101
    %v9103 = vlaneseq
    %v9104 = vshrl.u32 %v9103, 7
    %v9105 = vsub.s32 %v9102, %v9104
    %v9106 = vrot.slane %v9099, %v9105
    %v9107 = vcombine.low %v7157, %v7161
    %v9109 = vunpack.c.l.s4 1983009808
    %v9110 = vunpack.c.0.s8 %v9109
    %v9111 = vlaneseq
    %v9112 = vshrl.u32 %v9111, 7
    %v9113 = vsub.s32 %v9110, %v9112
    %v9114 = vrot.slane %v9107, %v9113
    %v9115 = vcombine.low %v9090, %v9098
    %v9116 = vcombine.high %v9090, %v9098
    %v9118 = vunpack.c.l.s4 1934713408
    %v9119 = vunpack.c.0.s8 %v9118
    %v9120 = vlaneseq
    %v9121 = vshrl.u32 %v9120, 7
    %v9122 = vsub.s32 %v9119, %v9121
    %v9123 = vrot.slane %v9115, %v9122
    %v9125 = vunpack.c.l.s4 1934713408
    %v9126 = vunpack.c.0.s8 %v9125
    %v9127 = vlaneseq
    %v9128 = vshrl.u32 %v9127, 7
    %v9129 = vsub.s32 %v9126, %v9128
    %v9130 = vrot.slane %v9116, %v9129
    %v9131 = vcombine.low %v9106, %v9114
    %v9132 = vcombine.high %v9106, %v9114
    %v9134 = vunpack.c.l.s4 1934713408
    %v9135 = vunpack.c.0.s8 %v9134
    %v9136 = vlaneseq
    %v9137 = vshrl.u32 %v9136, 7
    %v9138 = vsub.s32 %v9135, %v9137
    %v9139 = vrot.slane %v9131, %v9138
    %v9141 = vunpack.c.l.s4 1934713408
    %v9142 = vunpack.c.0.s8 %v9141
    %v9143 = vlaneseq
    %v9144 = vshrl.u32 %v9143, 7
    %v9145 = vsub.s32 %v9142, %v9144
    %v9146 = vrot.slane %v9132, %v9145
    %v9147 = vcombine.low %v9123, %v9139
    %v9148 = vcombine.high %v9123, %v9139
    %v9149 = vcombine.low %v9130, %v9146
    %v9150 = vcombine.high %v9130, %v9146
    %v9151 = vcombine.low %v7148, %v7152
    %v9153 = vunpack.c.l.s4 1983009808
    %v9154 = vunpack.c.0.s8 %v9153
    %v9155 = vlaneseq
    %v9156 = vshrl.u32 %v9155, 7
    %v9157 = vsub.s32 %v9154, %v9156
    %v9158 = vrot.slane %v9151, %v9157
    %v9159 = vcombine.low %v7150, %v7154
    %v9161 = vunpack.c.l.s4 1983009808
    %v9162 = vunpack.c.0.s8 %v9161
    %v9163 = vlaneseq
    %v9164 = vshrl.u32 %v9163, 7
    %v9165 = vsub.s32 %v9162, %v9164
    %v9166 = vrot.slane %v9159, %v9165
    %v9167 = vcombine.low %v7156, %v7160
    %v9169 = vunpack.c.l.s4 1983009808
    %v9170 = vunpack.c.0.s8 %v9169
    %v9171 = vlaneseq
    %v9172 = vshrl.u32 %v9171, 7
    %v9173 = vsub.s32 %v9170, %v9172
    %v9174 = vrot.slane %v9167, %v9173
    %v9175 = vcombine.low %v7158, %v7162
    %v9177 = vunpack.c.l.s4 1983009808
    %v9178 = vunpack.c.0.s8 %v9177
    %v9179 = vlaneseq
    %v9180 = vshrl.u32 %v9179, 7
    %v9181 = vsub.s32 %v9178, %v9180
    %v9182 = vrot.slane %v9175, %v9181
    %v9183 = vcombine.low %v9158, %v9166
    %v9184 = vcombine.high %v9158, %v9166
    %v9186 = vunpack.c.l.s4 1934713408
    %v9187 = vunpack.c.0.s8 %v9186
    %v9188 = vlaneseq
    %v9189 = vshrl.u32 %v9188, 7
    %v9190 = vsub.s32 %v9187, %v9189
    %v9191 = vrot.slane %v9183, %v9190
    %v9193 = vunpack.c.l.s4 1934713408
    %v9194 = vunpack.c.0.s8 %v9193
    %v9195 = vlaneseq
    %v9196 = vshrl.u32 %v9195, 7
    %v9197 = vsub.s32 %v9194, %v9196
    %v9198 = vrot.slane %v9184, %v9197
    %v9199 = vcombine.low %v9174, %v9182
    %v9200 = vcombine.high %v9174, %v9182
    %v9202 = vunpack.c.l.s4 1934713408
    %v9203 = vunpack.c.0.s8 %v9202
    %v9204 = vlaneseq
    %v9205 = vshrl.u32 %v9204, 7
    %v9206 = vsub.s32 %v9203, %v9205
    %v9207 = vrot.slane %v9199, %v9206
    %v9209 = vunpack.c.l.s4 1934713408
    %v9210 = vunpack.c.0.s8 %v9209
    %v9211 = vlaneseq
    %v9212 = vshrl.u32 %v9211, 7
    %v9213 = vsub.s32 %v9210, %v9212
    %v9214 = vrot.slane %v9200, %v9213
    %v9215 = vcombine.low %v9191, %v9207
    %v9216 = vcombine.high %v9191, %v9207
    %v9217 = vcombine.low %v9198, %v9214
    %v9218 = vcombine.high %v9198, %v9214
    %v9219 = vcombine.low %v7163, %v7167
    %v9221 = vunpack.c.l.s4 1983009808
    %v9222 = vunpack.c.0.s8 %v9221
    %v9223 = vlaneseq
    %v9224 = vshrl.u32 %v9223, 7
    %v9225 = vsub.s32 %v9222, %v9224
    %v9226 = vrot.slane %v9219, %v9225
    %v9227 = vcombine.low %v7165, %v7169
    %v9229 = vunpack.c.l.s4 1983009808
    %v9230 = vunpack.c.0.s8 %v9229
    %v9231 = vlaneseq
    %v9232 = vshrl.u32 %v9231, 7
    %v9233 = vsub.s32 %v9230, %v9232
    %v9234 = vrot.slane %v9227, %v9233
    %v9235 = vcombine.low %v7171, %v7175
    %v9237 = vunpack.c.l.s4 1983009808
    %v9238 = vunpack.c.0.s8 %v9237
    %v9239 = vlaneseq
    %v9240 = vshrl.u32 %v9239, 7
    %v9241 = vsub.s32 %v9238, %v9240
    %v9242 = vrot.slane %v9235, %v9241
    %v9243 = vcombine.low %v7173, %v7177
    %v9245 = vunpack.c.l.s4 1983009808
    %v9246 = vunpack.c.0.s8 %v9245
    %v9247 = vlaneseq
    %v9248 = vshrl.u32 %v9247, 7
    %v9249 = vsub.s32 %v9246, %v9248
    %v9250 = vrot.slane %v9243, %v9249
    %v9251 = vcombine.low %v9226, %v9234
    %v9252 = vcombine.high %v9226, %v9234
    %v9254 = vunpack.c.l.s4 1934713408
    %v9255 = vunpack.c.0.s8 %v9254
    %v9256 = vlaneseq
    %v9257 = vshrl.u32 %v9256, 7
    %v9258 = vsub.s32 %v9255, %v9257
    %v9259 = vrot.slane %v9251, %v9258
    %v9261 = vunpack.c.l.s4 1934713408
    %v9262 = vunpack.c.0.s8 %v9261
    %v9263 = vlaneseq
    %v9264 = vshrl.u32 %v9263, 7
    %v9265 = vsub.s32 %v9262, %v9264
    %v9266 = vrot.slane %v9252, %v9265
    %v9267 = vcombine.low %v9242, %v9250
    %v9268 = vcombine.high %v9242, %v9250
    %v9270 = vunpack.c.l.s4 1934713408
    %v9271 = vunpack.c.0.s8 %v9270
    %v9272 = vlaneseq
    %v9273 = vshrl.u32 %v9272, 7
    %v9274 = vsub.s32 %v9271, %v9273
    %v9275 = vrot.slane %v9267, %v9274
    %v9277 = vunpack.c.l.s4 1934713408
    %v9278 = vunpack.c.0.s8 %v9277
    %v9279 = vlaneseq
    %v9280 = vshrl.u32 %v9279, 7
    %v9281 = vsub.s32 %v9278, %v9280
    %v9282 = vrot.slane %v9268, %v9281
    %v9283 = vcombine.low %v9259, %v9275
    %v9284 = vcombine.high %v9259, %v9275
    %v9285 = vcombine.low %v9266, %v9282
    %v9286 = vcombine.high %v9266, %v9282
    %v9287 = vcombine.low %v7164, %v7168
    %v9289 = vunpack.c.l.s4 1983009808
    %v9290 = vunpack.c.0.s8 %v9289
    %v9291 = vlaneseq
    %v9292 = vshrl.u32 %v9291, 7
    %v9293 = vsub.s32 %v9290, %v9292
    %v9294 = vrot.slane %v9287, %v9293
    %v9295 = vcombine.low %v7166, %v7170
    %v9297 = vunpack.c.l.s4 1983009808
    %v9298 = vunpack.c.0.s8 %v9297
    %v9299 = vlaneseq
    %v9300 = vshrl.u32 %v9299, 7
    %v9301 = vsub.s32 %v9298, %v9300
    %v9302 = vrot.slane %v9295, %v9301
    %v9303 = vcombine.low %v7172, %v7176
    %v9305 = vunpack.c.l.s4 1983009808
    %v9306 = vunpack.c.0.s8 %v9305
    %v9307 = vlaneseq
    %v9308 = vshrl.u32 %v9307, 7
    %v9309 = vsub.s32 %v9306, %v9308
    %v9310 = vrot.slane %v9303, %v9309
    %v9311 = vcombine.low %v7174, %v7178
    %v9313 = vunpack.c.l.s4 1983009808
    %v9314 = vunpack.c.0.s8 %v9313
    %v9315 = vlaneseq
    %v9316 = vshrl.u32 %v9315, 7
    %v9317 = vsub.s32 %v9314, %v9316
    %v9318 = vrot.slane %v9311, %v9317
    %v9319 = vcombine.low %v9294, %v9302
    %v9320 = vcombine.high %v9294, %v9302
    %v9322 = vunpack.c.l.s4 1934713408
    %v9323 = vunpack.c.0.s8 %v9322
    %v9324 = vlaneseq
    %v9325 = vshrl.u32 %v9324, 7
    %v9326 = vsub.s32 %v9323, %v9325
    %v9327 = vrot.slane %v9319, %v9326
    %v9329 = vunpack.c.l.s4 1934713408
    %v9330 = vunpack.c.0.s8 %v9329
    %v9331 = vlaneseq
    %v9332 = vshrl.u32 %v9331, 7
    %v9333 = vsub.s32 %v9330, %v9332
    %v9334 = vrot.slane %v9320, %v9333
    %v9335 = vcombine.low %v9310, %v9318
    %v9336 = vcombine.high %v9310, %v9318
    %v9338 = vunpack.c.l.s4 1934713408
    %v9339 = vunpack.c.0.s8 %v9338
    %v9340 = vlaneseq
    %v9341 = vshrl.u32 %v9340, 7
    %v9342 = vsub.s32 %v9339, %v9341
    %v9343 = vrot.slane %v9335, %v9342
    %v9345 = vunpack.c.l.s4 1934713408
    %v9346 = vunpack.c.0.s8 %v9345
    %v9347 = vlaneseq
    %v9348 = vshrl.u32 %v9347, 7
    %v9349 = vsub.s32 %v9346, %v9348
    %v9350 = vrot.slane %v9336, %v9349
    %v9351 = vcombine.low %v9327, %v9343
    %v9352 = vcombine.high %v9327, %v9343
    %v9353 = vcombine.low %v9334, %v9350
    %v9354 = vcombine.high %v9334, %v9350
    %v9357 = vpack.i.b16 %v7311, %v7243
    %v9359 = vshrl.u32 %v7243, 16
    %v9360 = vshrl.u32 %v7311, 16
    %v9361 = vpack.i.b16 %v9360, %v9359
    %v9365 = vpack.i.b16 %v7312, %v7244
    %v9367 = vshrl.u32 %v7244, 16
    %v9368 = vshrl.u32 %v7312, 16
    %v9369 = vpack.i.b16 %v9368, %v9367
    %v9373 = vpack.i.b16 %v7313, %v7245
    %v9375 = vshrl.u32 %v7245, 16
    %v9376 = vshrl.u32 %v7313, 16
    %v9377 = vpack.i.b16 %v9376, %v9375
    %v9381 = vpack.i.b16 %v7314, %v7246
    %v9383 = vshrl.u32 %v7246, 16
    %v9384 = vshrl.u32 %v7314, 16
    %v9385 = vpack.i.b16 %v9384, %v9383
    %v9389 = vpack.i.b16 %v7447, %v7379
    %v9391 = vshrl.u32 %v7379, 16
    %v9392 = vshrl.u32 %v7447, 16
    %v9393 = vpack.i.b16 %v9392, %v9391
    %v9397 = vpack.i.b16 %v7448, %v7380
    %v9399 = vshrl.u32 %v7380, 16
    %v9400 = vshrl.u32 %v7448, 16
    %v9401 = vpack.i.b16 %v9400, %v9399
    %v9405 = vpack.i.b16 %v7449, %v7381
    %v9407 = vshrl.u32 %v7381, 16
    %v9408 = vshrl.u32 %v7449, 16
    %v9409 = vpack.i.b16 %v9408, %v9407
    %v9413 = vpack.i.b16 %v7450, %v7382
    %v9415 = vshrl.u32 %v7382, 16
    %v9416 = vshrl.u32 %v7450, 16
    %v9417 = vpack.i.b16 %v9416, %v9415
    %v9421 = vpack.i.b16 %v7583, %v7515
    %v9423 = vshrl.u32 %v7515, 16
    %v9424 = vshrl.u32 %v7583, 16
    %v9425 = vpack.i.b16 %v9424, %v9423
    %v9429 = vpack.i.b16 %v7584, %v7516
    %v9431 = vshrl.u32 %v7516, 16
    %v9432 = vshrl.u32 %v7584, 16
    %v9433 = vpack.i.b16 %v9432, %v9431
    %v9437 = vpack.i.b16 %v7585, %v7517
    %v9439 = vshrl.u32 %v7517, 16
    %v9440 = vshrl.u32 %v7585, 16
    %v9441 = vpack.i.b16 %v9440, %v9439
    %v9445 = vpack.i.b16 %v7586, %v7518
    %v9447 = vshrl.u32 %v7518, 16
    %v9448 = vshrl.u32 %v7586, 16
    %v9449 = vpack.i.b16 %v9448, %v9447
    %v9453 = vpack.i.b16 %v7719, %v7651
    %v9455 = vshrl.u32 %v7651, 16
    %v9456 = vshrl.u32 %v7719, 16
    %v9457 = vpack.i.b16 %v9456, %v9455
    %v9461 = vpack.i.b16 %v7720, %v7652
    %v9463 = vshrl.u32 %v7652, 16
    %v9464 = vshrl.u32 %v7720, 16
    %v9465 = vpack.i.b16 %v9464, %v9463
    %v9469 = vpack.i.b16 %v7721, %v7653
    %v9471 = vshrl.u32 %v7653, 16
    %v9472 = vshrl.u32 %v7721, 16
    %v9473 = vpack.i.b16 %v9472, %v9471
    %v9477 = vpack.i.b16 %v7722, %v7654
    %v9479 = vshrl.u32 %v7654, 16
    %v9480 = vshrl.u32 %v7722, 16
    %v9481 = vpack.i.b16 %v9480, %v9479
    %v9485 = vpack.i.b16 %v7855, %v7787
    %v9487 = vshrl.u32 %v7787, 16
    %v9488 = vshrl.u32 %v7855, 16
    %v9489 = vpack.i.b16 %v9488, %v9487
    %v9493 = vpack.i.b16 %v7856, %v7788
    %v9495 = vshrl.u32 %v7788, 16
    %v9496 = vshrl.u32 %v7856, 16
    %v9497 = vpack.i.b16 %v9496, %v9495
    %v9501 = vpack.i.b16 %v7857, %v7789
    %v9503 = vshrl.u32 %v7789, 16
    %v9504 = vshrl.u32 %v7857, 16
    %v9505 = vpack.i.b16 %v9504, %v9503
    %v9509 = vpack.i.b16 %v7858, %v7790
    %v9511 = vshrl.u32 %v7790, 16
    %v9512 = vshrl.u32 %v7858, 16
    %v9513 = vpack.i.b16 %v9512, %v9511
    %v9517 = vpack.i.b16 %v7991, %v7923
    %v9519 = vshrl.u32 %v7923, 16
    %v9520 = vshrl.u32 %v7991, 16
    %v9521 = vpack.i.b16 %v9520, %v9519
    %v9525 = vpack.i.b16 %v7992, %v7924
    %v9527 = vshrl.u32 %v7924, 16
    %v9528 = vshrl.u32 %v7992, 16
    %v9529 = vpack.i.b16 %v9528, %v9527
    %v9533 = vpack.i.b16 %v7993, %v7925
    %v9535 = vshrl.u32 %v7925, 16
    %v9536 = vshrl.u32 %v7993, 16
    %v9537 = vpack.i.b16 %v9536, %v9535
    %v9541 = vpack.i.b16 %v7994, %v7926
    %v9543 = vshrl.u32 %v7926, 16
    %v9544 = vshrl.u32 %v7994, 16
    %v9545 = vpack.i.b16 %v9544, %v9543
    %v9549 = vpack.i.b16 %v8127, %v8059
    %v9551 = vshrl.u32 %v8059, 16
    %v9552 = vshrl.u32 %v8127, 16
    %v9553 = vpack.i.b16 %v9552, %v9551
    %v9557 = vpack.i.b16 %v8128, %v8060
    %v9559 = vshrl.u32 %v8060, 16
    %v9560 = vshrl.u32 %v8128, 16
    %v9561 = vpack.i.b16 %v9560, %v9559
    %v9565 = vpack.i.b16 %v8129, %v8061
    %v9567 = vshrl.u32 %v8061, 16
    %v9568 = vshrl.u32 %v8129, 16
    %v9569 = vpack.i.b16 %v9568, %v9567
    %v9573 = vpack.i.b16 %v8130, %v8062
    %v9575 = vshrl.u32 %v8062, 16
    %v9576 = vshrl.u32 %v8130, 16
    %v9577 = vpack.i.b16 %v9576, %v9575
    %v9581 = vpack.i.b16 %v8263, %v8195
    %v9583 = vshrl.u32 %v8195, 16
    %v9584 = vshrl.u32 %v8263, 16
    %v9585 = vpack.i.b16 %v9584, %v9583
    %v9589 = vpack.i.b16 %v8264, %v8196
    %v9591 = vshrl.u32 %v8196, 16
    %v9592 = vshrl.u32 %v8264, 16
    %v9593 = vpack.i.b16 %v9592, %v9591
    %v9597 = vpack.i.b16 %v8265, %v8197
    %v9599 = vshrl.u32 %v8197, 16
    %v9600 = vshrl.u32 %v8265, 16
    %v9601 = vpack.i.b16 %v9600, %v9599
    %v9605 = vpack.i.b16 %v8266, %v8198
    %v9607 = vshrl.u32 %v8198, 16
    %v9608 = vshrl.u32 %v8266, 16
    %v9609 = vpack.i.b16 %v9608, %v9607
    %v9613 = vpack.i.b16 %v8399, %v8331
    %v9615 = vshrl.u32 %v8331, 16
    %v9616 = vshrl.u32 %v8399, 16
    %v9617 = vpack.i.b16 %v9616, %v9615
    %v9621 = vpack.i.b16 %v8400, %v8332
    %v9623 = vshrl.u32 %v8332, 16
    %v9624 = vshrl.u32 %v8400, 16
    %v9625 = vpack.i.b16 %v9624, %v9623
    %v9629 = vpack.i.b16 %v8401, %v8333
    %v9631 = vshrl.u32 %v8333, 16
    %v9632 = vshrl.u32 %v8401, 16
    %v9633 = vpack.i.b16 %v9632, %v9631
    %v9637 = vpack.i.b16 %v8402, %v8334
    %v9639 = vshrl.u32 %v8334, 16
    %v9640 = vshrl.u32 %v8402, 16
    %v9641 = vpack.i.b16 %v9640, %v9639
    %v9645 = vpack.i.b16 %v8535, %v8467
    %v9647 = vshrl.u32 %v8467, 16
    %v9648 = vshrl.u32 %v8535, 16
    %v9649 = vpack.i.b16 %v9648, %v9647
    %v9653 = vpack.i.b16 %v8536, %v8468
    %v9655 = vshrl.u32 %v8468, 16
    %v9656 = vshrl.u32 %v8536, 16
    %v9657 = vpack.i.b16 %v9656, %v9655
    %v9661 = vpack.i.b16 %v8537, %v8469
    %v9663 = vshrl.u32 %v8469, 16
    %v9664 = vshrl.u32 %v8537, 16
    %v9665 = vpack.i.b16 %v9664, %v9663
    %v9669 = vpack.i.b16 %v8538, %v8470
    %v9671 = vshrl.u32 %v8470, 16
    %v9672 = vshrl.u32 %v8538, 16
    %v9673 = vpack.i.b16 %v9672, %v9671
    %v9677 = vpack.i.b16 %v8671, %v8603
    %v9679 = vshrl.u32 %v8603, 16
    %v9680 = vshrl.u32 %v8671, 16
    %v9681 = vpack.i.b16 %v9680, %v9679
    %v9685 = vpack.i.b16 %v8672, %v8604
    %v9687 = vshrl.u32 %v8604, 16
    %v9688 = vshrl.u32 %v8672, 16
    %v9689 = vpack.i.b16 %v9688, %v9687
    %v9693 = vpack.i.b16 %v8673, %v8605
    %v9695 = vshrl.u32 %v8605, 16
    %v9696 = vshrl.u32 %v8673, 16
    %v9697 = vpack.i.b16 %v9696, %v9695
    %v9701 = vpack.i.b16 %v8674, %v8606
    %v9703 = vshrl.u32 %v8606, 16
    %v9704 = vshrl.u32 %v8674, 16
    %v9705 = vpack.i.b16 %v9704, %v9703
    %v9709 = vpack.i.b16 %v8807, %v8739
    %v9711 = vshrl.u32 %v8739, 16
    %v9712 = vshrl.u32 %v8807, 16
    %v9713 = vpack.i.b16 %v9712, %v9711
    %v9717 = vpack.i.b16 %v8808, %v8740
    %v9719 = vshrl.u32 %v8740, 16
    %v9720 = vshrl.u32 %v8808, 16
    %v9721 = vpack.i.b16 %v9720, %v9719
    %v9725 = vpack.i.b16 %v8809, %v8741
    %v9727 = vshrl.u32 %v8741, 16
    %v9728 = vshrl.u32 %v8809, 16
    %v9729 = vpack.i.b16 %v9728, %v9727
    %v9733 = vpack.i.b16 %v8810, %v8742
    %v9735 = vshrl.u32 %v8742, 16
    %v9736 = vshrl.u32 %v8810, 16
    %v9737 = vpack.i.b16 %v9736, %v9735
    %v9741 = vpack.i.b16 %v8943, %v8875
    %v9743 = vshrl.u32 %v8875, 16
    %v9744 = vshrl.u32 %v8943, 16
    %v9745 = vpack.i.b16 %v9744, %v9743
    %v9749 = vpack.i.b16 %v8944, %v8876
    %v9751 = vshrl.u32 %v8876, 16
    %v9752 = vshrl.u32 %v8944, 16
    %v9753 = vpack.i.b16 %v9752, %v9751
    %v9757 = vpack.i.b16 %v8945, %v8877
    %v9759 = vshrl.u32 %v8877, 16
    %v9760 = vshrl.u32 %v8945, 16
    %v9761 = vpack.i.b16 %v9760, %v9759
    %v9765 = vpack.i.b16 %v8946, %v8878
    %v9767 = vshrl.u32 %v8878, 16
    %v9768 = vshrl.u32 %v8946, 16
    %v9769 = vpack.i.b16 %v9768, %v9767
    %v9773 = vpack.i.b16 %v9079, %v9011
    %v9775 = vshrl.u32 %v9011, 16
    %v9776 = vshrl.u32 %v9079, 16
    %v9777 = vpack.i.b16 %v9776, %v9775
    %v9781 = vpack.i.b16 %v9080, %v9012
    %v9783 = vshrl.u32 %v9012, 16
    %v9784 = vshrl.u32 %v9080, 16
    %v9785 = vpack.i.b16 %v9784, %v9783
    %v9789 = vpack.i.b16 %v9081, %v9013
    %v9791 = vshrl.u32 %v9013, 16
    %v9792 = vshrl.u32 %v9081, 16
    %v9793 = vpack.i.b16 %v9792, %v9791
    %v9797 = vpack.i.b16 %v9082, %v9014
    %v9799 = vshrl.u32 %v9014, 16
    %v9800 = vshrl.u32 %v9082, 16
    %v9801 = vpack.i.b16 %v9800, %v9799
    %v9805 = vpack.i.b16 %v9215, %v9147
    %v9807 = vshrl.u32 %v9147, 16
    %v9808 = vshrl.u32 %v9215, 16
    %v9809 = vpack.i.b16 %v9808, %v9807
    %v9813 = vpack.i.b16 %v9216, %v9148
    %v9815 = vshrl.u32 %v9148, 16
    %v9816 = vshrl.u32 %v9216, 16
    %v9817 = vpack.i.b16 %v9816, %v9815
    %v9821 = vpack.i.b16 %v9217, %v9149
    %v9823 = vshrl.u32 %v9149, 16
    %v9824 = vshrl.u32 %v9217, 16
    %v9825 = vpack.i.b16 %v9824, %v9823
    %v9829 = vpack.i.b16 %v9218, %v9150
    %v9831 = vshrl.u32 %v9150, 16
    %v9832 = vshrl.u32 %v9218, 16
    %v9833 = vpack.i.b16 %v9832, %v9831
    %v9837 = vpack.i.b16 %v9351, %v9283
    %v9839 = vshrl.u32 %v9283, 16
    %v9840 = vshrl.u32 %v9351, 16
    %v9841 = vpack.i.b16 %v9840, %v9839
    %v9845 = vpack.i.b16 %v9352, %v9284
    %v9847 = vshrl.u32 %v9284, 16
    %v9848 = vshrl.u32 %v9352, 16
    %v9849 = vpack.i.b16 %v9848, %v9847
    %v9853 = vpack.i.b16 %v9353, %v9285
    %v9855 = vshrl.u32 %v9285, 16
    %v9856 = vshrl.u32 %v9353, 16
    %v9857 = vpack.i.b16 %v9856, %v9855
    %v9861 = vpack.i.b16 %v9354, %v9286
    %v9863 = vshrl.u32 %v9286, 16
    %v9864 = vshrl.u32 %v9354, 16
    %v9865 = vpack.i.b16 %v9864, %v9863
    %v9867 = vld [vmem:[#allocation2] sm:$0xf]
    %v9868 = vld [vmem:[#allocation2 + $0x4] sm:$0xf]
    %v9869 = vld [vmem:[#allocation2 + $0x8] sm:$0xf]
    %v9870 = vld [vmem:[#allocation2 + $0xc] sm:$0xf]
    %v9871 = vld [vmem:[#allocation2 + $0x10] sm:$0xf]
    %v9872 = vld [vmem:[#allocation2 + $0x14] sm:$0xf]
    %v9873 = vld [vmem:[#allocation2 + $0x18] sm:$0xf]
    %v9874 = vld [vmem:[#allocation2 + $0x1c] sm:$0xf]
    %v9875 = vld [vmem:[#allocation2 + $0x20] sm:$0xf]
    %v9876 = vld [vmem:[#allocation2 + $0x24] sm:$0xf]
    %v9877 = vld [vmem:[#allocation2 + $0x28] sm:$0xf]
    %v9878 = vld [vmem:[#allocation2 + $0x2c] sm:$0xf]
    %v9879 = vld [vmem:[#allocation2 + $0x30] sm:$0xf]
    %v9880 = vld [vmem:[#allocation2 + $0x34] sm:$0xf]
    %v9881 = vld [vmem:[#allocation2 + $0x38] sm:$0xf]
    %v9882 = vld [vmem:[#allocation2 + $0x3c] sm:$0xf]
    %v9883 = vld [vmem:[#allocation2 + $0x40] sm:$0xf]
    %v9884 = vld [vmem:[#allocation2 + $0x44] sm:$0xf]
    %v9885 = vld [vmem:[#allocation2 + $0x48] sm:$0xf]
    %v9886 = vld [vmem:[#allocation2 + $0x4c] sm:$0xf]
    %v9887 = vld [vmem:[#allocation2 + $0x50] sm:$0xf]
    %v9888 = vld [vmem:[#allocation2 + $0x54] sm:$0xf]
    %v9889 = vld [vmem:[#allocation2 + $0x58] sm:$0xf]
    %v9890 = vld [vmem:[#allocation2 + $0x5c] sm:$0xf]
    %v9891 = vld [vmem:[#allocation2 + $0x60] sm:$0xf]
    %v9892 = vld [vmem:[#allocation2 + $0x64] sm:$0xf]
    %v9893 = vld [vmem:[#allocation2 + $0x68] sm:$0xf]
    %v9894 = vld [vmem:[#allocation2 + $0x6c] sm:$0xf]
    %v9895 = vld [vmem:[#allocation2 + $0x70] sm:$0xf]
    %v9896 = vld [vmem:[#allocation2 + $0x74] sm:$0xf]
    %v9897 = vld [vmem:[#allocation2 + $0x78] sm:$0xf]
    %v9898 = vld [vmem:[#allocation2 + $0x7c] sm:$0xf]
    %v9899 = vld [vmem:[#allocation2 + $0x80] sm:$0xf]
    %v9900 = vld [vmem:[#allocation2 + $0x84] sm:$0xf]
    %v9901 = vld [vmem:[#allocation2 + $0x88] sm:$0xf]
    %v9902 = vld [vmem:[#allocation2 + $0x8c] sm:$0xf]
    %v9903 = vld [vmem:[#allocation2 + $0x90] sm:$0xf]
    %v9904 = vld [vmem:[#allocation2 + $0x94] sm:$0xf]
    %v9905 = vld [vmem:[#allocation2 + $0x98] sm:$0xf]
    %v9906 = vld [vmem:[#allocation2 + $0x9c] sm:$0xf]
    %v9907 = vld [vmem:[#allocation2 + $0xa0] sm:$0xf]
    %v9908 = vld [vmem:[#allocation2 + $0xa4] sm:$0xf]
    %v9909 = vld [vmem:[#allocation2 + $0xa8] sm:$0xf]
    %v9910 = vld [vmem:[#allocation2 + $0xac] sm:$0xf]
    %v9911 = vld [vmem:[#allocation2 + $0xb0] sm:$0xf]
    %v9912 = vld [vmem:[#allocation2 + $0xb4] sm:$0xf]
    %v9913 = vld [vmem:[#allocation2 + $0xb8] sm:$0xf]
    %v9914 = vld [vmem:[#allocation2 + $0xbc] sm:$0xf]
    %v9915 = vld [vmem:[#allocation2 + $0xc0] sm:$0xf]
    %v9916 = vld [vmem:[#allocation2 + $0xc4] sm:$0xf]
    %v9917 = vld [vmem:[#allocation2 + $0xc8] sm:$0xf]
    %v9918 = vld [vmem:[#allocation2 + $0xcc] sm:$0xf]
    %v9919 = vld [vmem:[#allocation2 + $0xd0] sm:$0xf]
    %v9920 = vld [vmem:[#allocation2 + $0xd4] sm:$0xf]
    %v9921 = vld [vmem:[#allocation2 + $0xd8] sm:$0xf]
    %v9922 = vld [vmem:[#allocation2 + $0xdc] sm:$0xf]
    %v9923 = vld [vmem:[#allocation2 + $0xe0] sm:$0xf]
    %v9924 = vld [vmem:[#allocation2 + $0xe4] sm:$0xf]
    %v9925 = vld [vmem:[#allocation2 + $0xe8] sm:$0xf]
    %v9926 = vld [vmem:[#allocation2 + $0xec] sm:$0xf]
    %v9927 = vld [vmem:[#allocation2 + $0xf0] sm:$0xf]
    %v9928 = vld [vmem:[#allocation2 + $0xf4] sm:$0xf]
    %v9929 = vld [vmem:[#allocation2 + $0xf8] sm:$0xf]
    %v9930 = vld [vmem:[#allocation2 + $0xfc] sm:$0xf]
    %v9931 = vld [vmem:[#allocation2 + $0x100] sm:$0xf]
    %v9932 = vld [vmem:[#allocation2 + $0x104] sm:$0xf]
    %v9933 = vld [vmem:[#allocation2 + $0x108] sm:$0xf]
    %v9934 = vld [vmem:[#allocation2 + $0x10c] sm:$0xf]
    %v9935 = vld [vmem:[#allocation2 + $0x110] sm:$0xf]
    %v9936 = vld [vmem:[#allocation2 + $0x114] sm:$0xf]
    %v9937 = vld [vmem:[#allocation2 + $0x118] sm:$0xf]
    %v9938 = vld [vmem:[#allocation2 + $0x11c] sm:$0xf]
    %v9939 = vld [vmem:[#allocation2 + $0x120] sm:$0xf]
    %v9940 = vld [vmem:[#allocation2 + $0x124] sm:$0xf]
    %v9941 = vld [vmem:[#allocation2 + $0x128] sm:$0xf]
    %v9942 = vld [vmem:[#allocation2 + $0x12c] sm:$0xf]
    %v9943 = vld [vmem:[#allocation2 + $0x130] sm:$0xf]
    %v9944 = vld [vmem:[#allocation2 + $0x134] sm:$0xf]
    %v9945 = vld [vmem:[#allocation2 + $0x138] sm:$0xf]
    %v9946 = vld [vmem:[#allocation2 + $0x13c] sm:$0xf]
    %v9947 = vld [vmem:[#allocation2 + $0x140] sm:$0xf]
    %v9948 = vld [vmem:[#allocation2 + $0x144] sm:$0xf]
    %v9949 = vld [vmem:[#allocation2 + $0x148] sm:$0xf]
    %v9950 = vld [vmem:[#allocation2 + $0x14c] sm:$0xf]
    %v9951 = vld [vmem:[#allocation2 + $0x150] sm:$0xf]
    %v9952 = vld [vmem:[#allocation2 + $0x154] sm:$0xf]
    %v9953 = vld [vmem:[#allocation2 + $0x158] sm:$0xf]
    %v9954 = vld [vmem:[#allocation2 + $0x15c] sm:$0xf]
    %v9955 = vld [vmem:[#allocation2 + $0x160] sm:$0xf]
    %v9956 = vld [vmem:[#allocation2 + $0x164] sm:$0xf]
    %v9957 = vld [vmem:[#allocation2 + $0x168] sm:$0xf]
    %v9958 = vld [vmem:[#allocation2 + $0x16c] sm:$0xf]
    %v9959 = vld [vmem:[#allocation2 + $0x170] sm:$0xf]
    %v9960 = vld [vmem:[#allocation2 + $0x174] sm:$0xf]
    %v9961 = vld [vmem:[#allocation2 + $0x178] sm:$0xf]
    %v9962 = vld [vmem:[#allocation2 + $0x17c] sm:$0xf]
    %v9963 = vld [vmem:[#allocation2 + $0x180] sm:$0xf]
    %v9964 = vld [vmem:[#allocation2 + $0x184] sm:$0xf]
    %v9965 = vld [vmem:[#allocation2 + $0x188] sm:$0xf]
    %v9966 = vld [vmem:[#allocation2 + $0x18c] sm:$0xf]
    %v9967 = vld [vmem:[#allocation2 + $0x190] sm:$0xf]
    %v9968 = vld [vmem:[#allocation2 + $0x194] sm:$0xf]
    %v9969 = vld [vmem:[#allocation2 + $0x198] sm:$0xf]
    %v9970 = vld [vmem:[#allocation2 + $0x19c] sm:$0xf]
    %v9971 = vld [vmem:[#allocation2 + $0x1a0] sm:$0xf]
    %v9972 = vld [vmem:[#allocation2 + $0x1a4] sm:$0xf]
    %v9973 = vld [vmem:[#allocation2 + $0x1a8] sm:$0xf]
    %v9974 = vld [vmem:[#allocation2 + $0x1ac] sm:$0xf]
    %v9975 = vld [vmem:[#allocation2 + $0x1b0] sm:$0xf]
    %v9976 = vld [vmem:[#allocation2 + $0x1b4] sm:$0xf]
    %v9977 = vld [vmem:[#allocation2 + $0x1b8] sm:$0xf]
    %v9978 = vld [vmem:[#allocation2 + $0x1bc] sm:$0xf]
    %v9979 = vld [vmem:[#allocation2 + $0x1c0] sm:$0xf]
    %v9980 = vld [vmem:[#allocation2 + $0x1c4] sm:$0xf]
    %v9981 = vld [vmem:[#allocation2 + $0x1c8] sm:$0xf]
    %v9982 = vld [vmem:[#allocation2 + $0x1cc] sm:$0xf]
    %v9983 = vld [vmem:[#allocation2 + $0x1d0] sm:$0xf]
    %v9984 = vld [vmem:[#allocation2 + $0x1d4] sm:$0xf]
    %v9985 = vld [vmem:[#allocation2 + $0x1d8] sm:$0xf]
    %v9986 = vld [vmem:[#allocation2 + $0x1dc] sm:$0xf]
    %v9987 = vld [vmem:[#allocation2 + $0x1e0] sm:$0xf]
    %v9988 = vld [vmem:[#allocation2 + $0x1e4] sm:$0xf]
    %v9989 = vld [vmem:[#allocation2 + $0x1e8] sm:$0xf]
    %v9990 = vld [vmem:[#allocation2 + $0x1ec] sm:$0xf]
    %v9991 = vld [vmem:[#allocation2 + $0x1f0] sm:$0xf]
    %v9992 = vld [vmem:[#allocation2 + $0x1f4] sm:$0xf]
    %v9993 = vld [vmem:[#allocation2 + $0x1f8] sm:$0xf]
    %v9994 = vld [vmem:[#allocation2 + $0x1fc] sm:$0xf]
    %v10123 = vunpack.c.l.b16 %v9867
    %v10124 = vunpack.c.l.b16 %v9868
    %v10125 = vunpack.c.l.b16 %v9869
    %v10126 = vunpack.c.l.b16 %v9870
    %v10127 = vunpack.c.l.b16 %v9871
    %v10128 = vunpack.c.l.b16 %v9872
    %v10129 = vunpack.c.l.b16 %v9873
    %v10130 = vunpack.c.l.b16 %v9874
    %v10131 = vunpack.c.l.b16 %v9875
    %v10132 = vunpack.c.l.b16 %v9876
    %v10133 = vunpack.c.l.b16 %v9877
    %v10134 = vunpack.c.l.b16 %v9878
    %v10135 = vunpack.c.l.b16 %v9879
    %v10136 = vunpack.c.l.b16 %v9880
    %v10137 = vunpack.c.l.b16 %v9881
    %v10138 = vunpack.c.l.b16 %v9882
    %v10139 = vunpack.c.l.b16 %v9883
    %v10140 = vunpack.c.l.b16 %v9884
    %v10141 = vunpack.c.l.b16 %v9885
    %v10142 = vunpack.c.l.b16 %v9886
    %v10143 = vunpack.c.l.b16 %v9887
    %v10144 = vunpack.c.l.b16 %v9888
    %v10145 = vunpack.c.l.b16 %v9889
    %v10146 = vunpack.c.l.b16 %v9890
    %v10147 = vunpack.c.l.b16 %v9891
    %v10148 = vunpack.c.l.b16 %v9892
    %v10149 = vunpack.c.l.b16 %v9893
    %v10150 = vunpack.c.l.b16 %v9894
    %v10151 = vunpack.c.l.b16 %v9895
    %v10152 = vunpack.c.l.b16 %v9896
    %v10153 = vunpack.c.l.b16 %v9897
    %v10154 = vunpack.c.l.b16 %v9898
    %v10155 = vunpack.c.l.b16 %v9899
    %v10156 = vunpack.c.l.b16 %v9900
    %v10157 = vunpack.c.l.b16 %v9901
    %v10158 = vunpack.c.l.b16 %v9902
    %v10159 = vunpack.c.l.b16 %v9903
    %v10160 = vunpack.c.l.b16 %v9904
    %v10161 = vunpack.c.l.b16 %v9905
    %v10162 = vunpack.c.l.b16 %v9906
    %v10163 = vunpack.c.l.b16 %v9907
    %v10164 = vunpack.c.l.b16 %v9908
    %v10165 = vunpack.c.l.b16 %v9909
    %v10166 = vunpack.c.l.b16 %v9910
    %v10167 = vunpack.c.l.b16 %v9911
    %v10168 = vunpack.c.l.b16 %v9912
    %v10169 = vunpack.c.l.b16 %v9913
    %v10170 = vunpack.c.l.b16 %v9914
    %v10171 = vunpack.c.l.b16 %v9915
    %v10172 = vunpack.c.l.b16 %v9916
    %v10173 = vunpack.c.l.b16 %v9917
    %v10174 = vunpack.c.l.b16 %v9918
    %v10175 = vunpack.c.l.b16 %v9919
    %v10176 = vunpack.c.l.b16 %v9920
    %v10177 = vunpack.c.l.b16 %v9921
    %v10178 = vunpack.c.l.b16 %v9922
    %v10179 = vunpack.c.l.b16 %v9923
    %v10180 = vunpack.c.l.b16 %v9924
    %v10181 = vunpack.c.l.b16 %v9925
    %v10182 = vunpack.c.l.b16 %v9926
    %v10183 = vunpack.c.l.b16 %v9927
    %v10184 = vunpack.c.l.b16 %v9928
    %v10185 = vunpack.c.l.b16 %v9929
    %v10186 = vunpack.c.l.b16 %v9930
    %v10187 = vunpack.c.l.b16 %v9931
    %v10188 = vunpack.c.l.b16 %v9932
    %v10189 = vunpack.c.l.b16 %v9933
    %v10190 = vunpack.c.l.b16 %v9934
    %v10191 = vunpack.c.l.b16 %v9935
    %v10192 = vunpack.c.l.b16 %v9936
    %v10193 = vunpack.c.l.b16 %v9937
    %v10194 = vunpack.c.l.b16 %v9938
    %v10195 = vunpack.c.l.b16 %v9939
    %v10196 = vunpack.c.l.b16 %v9940
    %v10197 = vunpack.c.l.b16 %v9941
    %v10198 = vunpack.c.l.b16 %v9942
    %v10199 = vunpack.c.l.b16 %v9943
    %v10200 = vunpack.c.l.b16 %v9944
    %v10201 = vunpack.c.l.b16 %v9945
    %v10202 = vunpack.c.l.b16 %v9946
    %v10203 = vunpack.c.l.b16 %v9947
    %v10204 = vunpack.c.l.b16 %v9948
    %v10205 = vunpack.c.l.b16 %v9949
    %v10206 = vunpack.c.l.b16 %v9950
    %v10207 = vunpack.c.l.b16 %v9951
    %v10208 = vunpack.c.l.b16 %v9952
    %v10209 = vunpack.c.l.b16 %v9953
    %v10210 = vunpack.c.l.b16 %v9954
    %v10211 = vunpack.c.l.b16 %v9955
    %v10212 = vunpack.c.l.b16 %v9956
    %v10213 = vunpack.c.l.b16 %v9957
    %v10214 = vunpack.c.l.b16 %v9958
    %v10215 = vunpack.c.l.b16 %v9959
    %v10216 = vunpack.c.l.b16 %v9960
    %v10217 = vunpack.c.l.b16 %v9961
    %v10218 = vunpack.c.l.b16 %v9962
    %v10219 = vunpack.c.l.b16 %v9963
    %v10220 = vunpack.c.l.b16 %v9964
    %v10221 = vunpack.c.l.b16 %v9965
    %v10222 = vunpack.c.l.b16 %v9966
    %v10223 = vunpack.c.l.b16 %v9967
    %v10224 = vunpack.c.l.b16 %v9968
    %v10225 = vunpack.c.l.b16 %v9969
    %v10226 = vunpack.c.l.b16 %v9970
    %v10227 = vunpack.c.l.b16 %v9971
    %v10228 = vunpack.c.l.b16 %v9972
    %v10229 = vunpack.c.l.b16 %v9973
    %v10230 = vunpack.c.l.b16 %v9974
    %v10231 = vunpack.c.l.b16 %v9975
    %v10232 = vunpack.c.l.b16 %v9976
    %v10233 = vunpack.c.l.b16 %v9977
    %v10234 = vunpack.c.l.b16 %v9978
    %v10235 = vunpack.c.l.b16 %v9979
    %v10236 = vunpack.c.l.b16 %v9980
    %v10237 = vunpack.c.l.b16 %v9981
    %v10238 = vunpack.c.l.b16 %v9982
    %v10239 = vunpack.c.l.b16 %v9983
    %v10240 = vunpack.c.l.b16 %v9984
    %v10241 = vunpack.c.l.b16 %v9985
    %v10242 = vunpack.c.l.b16 %v9986
    %v10243 = vunpack.c.l.b16 %v9987
    %v10244 = vunpack.c.l.b16 %v9988
    %v10245 = vunpack.c.l.b16 %v9989
    %v10246 = vunpack.c.l.b16 %v9990
    %v10247 = vunpack.c.l.b16 %v9991
    %v10248 = vunpack.c.l.b16 %v9992
    %v10249 = vunpack.c.l.b16 %v9993
    %v10250 = vunpack.c.l.b16 %v9994
    %v10251 = vpack.c.b16 %v10124, %v10123
    %v10252 = vpack.c.b16 %v10126, %v10125
    %v10253 = vpack.c.b16 %v10128, %v10127
    %v10254 = vpack.c.b16 %v10130, %v10129
    %v10255 = vpack.c.b16 %v10132, %v10131
    %v10256 = vpack.c.b16 %v10134, %v10133
    %v10257 = vpack.c.b16 %v10136, %v10135
    %v10258 = vpack.c.b16 %v10138, %v10137
    %v10259 = vpack.c.b16 %v10140, %v10139
    %v10260 = vpack.c.b16 %v10142, %v10141
    %v10261 = vpack.c.b16 %v10144, %v10143
    %v10262 = vpack.c.b16 %v10146, %v10145
    %v10263 = vpack.c.b16 %v10148, %v10147
    %v10264 = vpack.c.b16 %v10150, %v10149
    %v10265 = vpack.c.b16 %v10152, %v10151
    %v10266 = vpack.c.b16 %v10154, %v10153
    %v10267 = vpack.c.b16 %v10156, %v10155
    %v10268 = vpack.c.b16 %v10158, %v10157
    %v10269 = vpack.c.b16 %v10160, %v10159
    %v10270 = vpack.c.b16 %v10162, %v10161
    %v10271 = vpack.c.b16 %v10164, %v10163
    %v10272 = vpack.c.b16 %v10166, %v10165
    %v10273 = vpack.c.b16 %v10168, %v10167
    %v10274 = vpack.c.b16 %v10170, %v10169
    %v10275 = vpack.c.b16 %v10172, %v10171
    %v10276 = vpack.c.b16 %v10174, %v10173
    %v10277 = vpack.c.b16 %v10176, %v10175
    %v10278 = vpack.c.b16 %v10178, %v10177
    %v10279 = vpack.c.b16 %v10180, %v10179
    %v10280 = vpack.c.b16 %v10182, %v10181
    %v10281 = vpack.c.b16 %v10184, %v10183
    %v10282 = vpack.c.b16 %v10186, %v10185
    %v10283 = vpack.c.b16 %v10188, %v10187
    %v10284 = vpack.c.b16 %v10190, %v10189
    %v10285 = vpack.c.b16 %v10192, %v10191
    %v10286 = vpack.c.b16 %v10194, %v10193
    %v10287 = vpack.c.b16 %v10196, %v10195
    %v10288 = vpack.c.b16 %v10198, %v10197
    %v10289 = vpack.c.b16 %v10200, %v10199
    %v10290 = vpack.c.b16 %v10202, %v10201
    %v10291 = vpack.c.b16 %v10204, %v10203
    %v10292 = vpack.c.b16 %v10206, %v10205
    %v10293 = vpack.c.b16 %v10208, %v10207
    %v10294 = vpack.c.b16 %v10210, %v10209
    %v10295 = vpack.c.b16 %v10212, %v10211
    %v10296 = vpack.c.b16 %v10214, %v10213
    %v10297 = vpack.c.b16 %v10216, %v10215
    %v10298 = vpack.c.b16 %v10218, %v10217
    %v10299 = vpack.c.b16 %v10220, %v10219
    %v10300 = vpack.c.b16 %v10222, %v10221
    %v10301 = vpack.c.b16 %v10224, %v10223
    %v10302 = vpack.c.b16 %v10226, %v10225
    %v10303 = vpack.c.b16 %v10228, %v10227
    %v10304 = vpack.c.b16 %v10230, %v10229
    %v10305 = vpack.c.b16 %v10232, %v10231
    %v10306 = vpack.c.b16 %v10234, %v10233
    %v10307 = vpack.c.b16 %v10236, %v10235
    %v10308 = vpack.c.b16 %v10238, %v10237
    %v10309 = vpack.c.b16 %v10240, %v10239
    %v10310 = vpack.c.b16 %v10242, %v10241
    %v10311 = vpack.c.b16 %v10244, %v10243
    %v10312 = vpack.c.b16 %v10246, %v10245
    %v10313 = vpack.c.b16 %v10248, %v10247
    %v10314 = vpack.c.b16 %v10250, %v10249
    %10379 = vmatprep.subr.bf16.mxu0 0
    %10380 = vmatpush1.bf16.msra.mxu0 %v10251
    %10381 = vmatprep.subr.bf16.mxu0 0
    %10382 = vmatpush1.bf16.msra.mxu0 %v10252
    %10383 = vmatprep.subr.bf16.mxu0 0
    %10384 = vmatpush1.bf16.msra.mxu0 %v10253
    %10385 = vmatprep.subr.bf16.mxu0 0
    %10386 = vmatpush1.bf16.msra.mxu0 %v10254
    %10387 = vmatprep.subr.bf16.mxu0 0
    %10388 = vmatpush1.bf16.msra.mxu0 %v10255
    %10389 = vmatprep.subr.bf16.mxu0 0
    %10390 = vmatpush1.bf16.msra.mxu0 %v10256
    %10391 = vmatprep.subr.bf16.mxu0 0
    %10392 = vmatpush1.bf16.msra.mxu0 %v10257
    %10393 = vmatprep.subr.bf16.mxu0 0
    %10394 = vmatpush1.bf16.msra.mxu0 %v10258
    %10395 = vmatprep.subr.bf16.mxu0 0
    %10396 = vmatpush1.bf16.msra.mxu0 %v10259
    %10397 = vmatprep.subr.bf16.mxu0 0
    %10398 = vmatpush1.bf16.msra.mxu0 %v10260
    %10399 = vmatprep.subr.bf16.mxu0 0
    %10400 = vmatpush1.bf16.msra.mxu0 %v10261
    %10401 = vmatprep.subr.bf16.mxu0 0
    %10402 = vmatpush1.bf16.msra.mxu0 %v10262
    %10403 = vmatprep.subr.bf16.mxu0 0
    %10404 = vmatpush1.bf16.msra.mxu0 %v10263
    %10405 = vmatprep.subr.bf16.mxu0 0
    %10406 = vmatpush1.bf16.msra.mxu0 %v10264
    %10407 = vmatprep.subr.bf16.mxu0 0
    %10408 = vmatpush1.bf16.msra.mxu0 %v10265
    %10409 = vmatprep.subr.bf16.mxu0 0
    %10410 = vmatpush1.bf16.msra.mxu0 %v10266
    %10411 = vmatprep.mubr.bf16.mxu0 %v9361
    %10412 = vmatmul.mubr.bf16.gmra.mrb[0].mxu0 %v9357
    %v10413 = vpop.f32.mrb[0].mxu0
    %v10414 = vadd.f32 0.0, %v10413
    %v10415 = vpop.f32.mrb[0].mxu0
    %v10416 = vpop.f32.mrb[0].mxu0
    %v10417 = vadd.f32 0.0, %v10416
    %v10418 = vpop.f32.mrb[0].mxu0
    %10419 = vmatprep.mubr.bf16.mxu0 %v9393
    %10420 = vmatmul.mubr.bf16.gmra.mrb[0].mxu0 %v9389
    %v10421 = vpop.f32.mrb[0].mxu0
    %v10422 = vadd.f32 0.0, %v10421
    %v10423 = vpop.f32.mrb[0].mxu0
    %v10424 = vpop.f32.mrb[0].mxu0
    %v10425 = vadd.f32 0.0, %v10424
    %v10426 = vpop.f32.mrb[0].mxu0
    %10427 = vmatprep.mubr.bf16.mxu0 %v9425
    %10428 = vmatmul.mubr.bf16.gmra.mrb[0].mxu0 %v9421
    %v10429 = vpop.f32.mrb[0].mxu0
    %v10430 = vadd.f32 0.0, %v10429
    %v10431 = vpop.f32.mrb[0].mxu0
    %v10432 = vpop.f32.mrb[0].mxu0
    %v10433 = vadd.f32 0.0, %v10432
    %v10434 = vpop.f32.mrb[0].mxu0
    %10435 = vmatprep.mubr.bf16.mxu0 %v9457
    %10436 = vmatmul.mubr.bf16.gmra.mrb[0].mxu0 %v9453
    %v10437 = vpop.f32.mrb[0].mxu0
    %v10438 = vadd.f32 0.0, %v10437
    %v10439 = vpop.f32.mrb[0].mxu0
    %v10440 = vpop.f32.mrb[0].mxu0
    %v10441 = vadd.f32 0.0, %v10440
    %v10442 = vpop.f32.mrb[0].mxu0
    %10443 = vmatprep.mubr.bf16.mxu0 %v9489
    %10444 = vmatmul.mubr.bf16.gmra.mrb[0].mxu0 %v9485
    %v10445 = vpop.f32.mrb[0].mxu0
    %v10446 = vadd.f32 0.0, %v10445
    %v10447 = vpop.f32.mrb[0].mxu0
    %v10448 = vpop.f32.mrb[0].mxu0
    %v10449 = vadd.f32 0.0, %v10448
    %v10450 = vpop.f32.mrb[0].mxu0
    %10451 = vmatprep.mubr.bf16.mxu0 %v9521
    %10452 = vmatmul.mubr.bf16.gmra.mrb[0].mxu0 %v9517
    %v10453 = vpop.f32.mrb[0].mxu0
    %v10454 = vadd.f32 0.0, %v10453
    %v10455 = vpop.f32.mrb[0].mxu0
    %v10456 = vpop.f32.mrb[0].mxu0
    %v10457 = vadd.f32 0.0, %v10456
    %v10458 = vpop.f32.mrb[0].mxu0
    %10459 = vmatprep.mubr.bf16.mxu0 %v9553
    %10460 = vmatmul.mubr.bf16.gmra.mrb[0].mxu0 %v9549
    %v10461 = vpop.f32.mrb[0].mxu0
    %v10462 = vadd.f32 0.0, %v10461
    %v10463 = vpop.f32.mrb[0].mxu0
    %v10464 = vpop.f32.mrb[0].mxu0
    %v10465 = vadd.f32 0.0, %v10464
    %v10466 = vpop.f32.mrb[0].mxu0
    %10467 = vmatprep.mubr.bf16.mxu0 %v9585
    %10468 = vmatmul.mubr.bf16.gmra.mrb[0].mxu0 %v9581
    %v10469 = vpop.f32.mrb[0].mxu0
    %v10470 = vadd.f32 0.0, %v10469
    %v10471 = vpop.f32.mrb[0].mxu0
    %v10472 = vpop.f32.mrb[0].mxu0
    %v10473 = vadd.f32 0.0, %v10472
    %v10474 = vpop.f32.mrb[0].mxu0
    %10475 = vmatprep.mubr.bf16.mxu0 %v9617
    %10476 = vmatmul.mubr.bf16.gmra.mrb[0].mxu0 %v9613
    %v10477 = vpop.f32.mrb[0].mxu0
    %v10478 = vadd.f32 0.0, %v10477
    %v10479 = vpop.f32.mrb[0].mxu0
    %v10480 = vpop.f32.mrb[0].mxu0
    %v10481 = vadd.f32 0.0, %v10480
    %v10482 = vpop.f32.mrb[0].mxu0
    %10483 = vmatprep.mubr.bf16.mxu0 %v9649
    %10484 = vmatmul.mubr.bf16.gmra.mrb[0].mxu0 %v9645
    %v10485 = vpop.f32.mrb[0].mxu0
    %v10486 = vadd.f32 0.0, %v10485
    %v10487 = vpop.f32.mrb[0].mxu0
    %v10488 = vpop.f32.mrb[0].mxu0
    %v10489 = vadd.f32 0.0, %v10488
    %v10490 = vpop.f32.mrb[0].mxu0
    %10491 = vmatprep.mubr.bf16.mxu0 %v9681
    %10492 = vmatmul.mubr.bf16.gmra.mrb[0].mxu0 %v9677
    %v10493 = vpop.f32.mrb[0].mxu0
    %v10494 = vadd.f32 0.0, %v10493
    %v10495 = vpop.f32.mrb[0].mxu0
    %v10496 = vpop.f32.mrb[0].mxu0
    %v10497 = vadd.f32 0.0, %v10496
    %v10498 = vpop.f32.mrb[0].mxu0
    %10499 = vmatprep.mubr.bf16.mxu0 %v9713
    %10500 = vmatmul.mubr.bf16.gmra.mrb[0].mxu0 %v9709
    %v10501 = vpop.f32.mrb[0].mxu0
    %v10502 = vadd.f32 0.0, %v10501
    %v10503 = vpop.f32.mrb[0].mxu0
    %v10504 = vpop.f32.mrb[0].mxu0
    %v10505 = vadd.f32 0.0, %v10504
    %v10506 = vpop.f32.mrb[0].mxu0
    %10507 = vmatprep.mubr.bf16.mxu0 %v9745
    %10508 = vmatmul.mubr.bf16.gmra.mrb[0].mxu0 %v9741
    %v10509 = vpop.f32.mrb[0].mxu0
    %v10510 = vadd.f32 0.0, %v10509
    %v10511 = vpop.f32.mrb[0].mxu0
    %v10512 = vpop.f32.mrb[0].mxu0
    %v10513 = vadd.f32 0.0, %v10512
    %v10514 = vpop.f32.mrb[0].mxu0
    %10515 = vmatprep.mubr.bf16.mxu0 %v9777
    %10516 = vmatmul.mubr.bf16.gmra.mrb[0].mxu0 %v9773
    %v10517 = vpop.f32.mrb[0].mxu0
    %v10518 = vadd.f32 0.0, %v10517
    %v10519 = vpop.f32.mrb[0].mxu0
    %v10520 = vpop.f32.mrb[0].mxu0
    %v10521 = vadd.f32 0.0, %v10520
    %v10522 = vpop.f32.mrb[0].mxu0
    %10523 = vmatprep.mubr.bf16.mxu0 %v9809
    %10524 = vmatmul.mubr.bf16.gmra.mrb[0].mxu0 %v9805
    %v10525 = vpop.f32.mrb[0].mxu0
    %v10526 = vadd.f32 0.0, %v10525
    %v10527 = vpop.f32.mrb[0].mxu0
    %v10528 = vpop.f32.mrb[0].mxu0
    %v10529 = vadd.f32 0.0, %v10528
    %v10530 = vpop.f32.mrb[0].mxu0
    %10531 = vmatprep.mubr.bf16.mxu0 %v9841
    %10532 = vmatmul.mubr.bf16.gmra.mrb[0].mxu0 %v9837
    %v10533 = vpop.f32.mrb[0].mxu0
    %v10534 = vadd.f32 0.0, %v10533
    %v10535 = vpop.f32.mrb[0].mxu0
    %v10536 = vpop.f32.mrb[0].mxu0
    %v10537 = vadd.f32 0.0, %v10536
    %v10538 = vpop.f32.mrb[0].mxu0
    %10539 = vdwg.mxu0
    %10540 = vmatprep.subr.bf16.mxu0 0
    %10541 = vmatpush1.bf16.msra.mxu0 %v10267
    %10542 = vmatprep.subr.bf16.mxu0 0
    %10543 = vmatpush1.bf16.msra.mxu0 %v10268
    %10544 = vmatprep.subr.bf16.mxu0 0
    %10545 = vmatpush1.bf16.msra.mxu0 %v10269
    %10546 = vmatprep.subr.bf16.mxu0 0
    %10547 = vmatpush1.bf16.msra.mxu0 %v10270
    %10548 = vmatprep.subr.bf16.mxu0 0
    %10549 = vmatpush1.bf16.msra.mxu0 %v10271
    %10550 = vmatprep.subr.bf16.mxu0 0
    %10551 = vmatpush1.bf16.msra.mxu0 %v10272
    %10552 = vmatprep.subr.bf16.mxu0 0
    %10553 = vmatpush1.bf16.msra.mxu0 %v10273
    %10554 = vmatprep.subr.bf16.mxu0 0
    %10555 = vmatpush1.bf16.msra.mxu0 %v10274
    %10556 = vmatprep.subr.bf16.mxu0 0
    %10557 = vmatpush1.bf16.msra.mxu0 %v10275
    %10558 = vmatprep.subr.bf16.mxu0 0
    %10559 = vmatpush1.bf16.msra.mxu0 %v10276
    %10560 = vmatprep.subr.bf16.mxu0 0
    %10561 = vmatpush1.bf16.msra.mxu0 %v10277
    %10562 = vmatprep.subr.bf16.mxu0 0
    %10563 = vmatpush1.bf16.msra.mxu0 %v10278
    %10564 = vmatprep.subr.bf16.mxu0 0
    %10565 = vmatpush1.bf16.msra.mxu0 %v10279
    %10566 = vmatprep.subr.bf16.mxu0 0
    %10567 = vmatpush1.bf16.msra.mxu0 %v10280
    %10568 = vmatprep.subr.bf16.mxu0 0
    %10569 = vmatpush1.bf16.msra.mxu0 %v10281
    %10570 = vmatprep.subr.bf16.mxu0 0
    %10571 = vmatpush1.bf16.msra.mxu0 %v10282
    %10572 = vmatprep.mubr.bf16.mxu0 %v9369
    %10573 = vmatmul.mubr.bf16.gmra.mrb[0].mxu0 %v9365
    %v10574 = vpop.f32.mrb[0].mxu0
    %v10575 = vadd.f32 %v10414, %v10574
    %v10576 = vpop.f32.mrb[0].mxu0
    %v10577 = vpop.f32.mrb[0].mxu0
    %v10578 = vadd.f32 %v10417, %v10577
    %v10579 = vpop.f32.mrb[0].mxu0
    %10580 = vmatprep.mubr.bf16.mxu0 %v9401
    %10581 = vmatmul.mubr.bf16.gmra.mrb[0].mxu0 %v9397
    %v10582 = vpop.f32.mrb[0].mxu0
    %v10583 = vadd.f32 %v10422, %v10582
    %v10584 = vpop.f32.mrb[0].mxu0
    %v10585 = vpop.f32.mrb[0].mxu0
    %v10586 = vadd.f32 %v10425, %v10585
    %v10587 = vpop.f32.mrb[0].mxu0
    %10588 = vmatprep.mubr.bf16.mxu0 %v9433
    %10589 = vmatmul.mubr.bf16.gmra.mrb[0].mxu0 %v9429
    %v10590 = vpop.f32.mrb[0].mxu0
    %v10591 = vadd.f32 %v10430, %v10590
    %v10592 = vpop.f32.mrb[0].mxu0
    %v10593 = vpop.f32.mrb[0].mxu0
    %v10594 = vadd.f32 %v10433, %v10593
    %v10595 = vpop.f32.mrb[0].mxu0
    %10596 = vmatprep.mubr.bf16.mxu0 %v9465
    %10597 = vmatmul.mubr.bf16.gmra.mrb[0].mxu0 %v9461
    %v10598 = vpop.f32.mrb[0].mxu0
    %v10599 = vadd.f32 %v10438, %v10598
    %v10600 = vpop.f32.mrb[0].mxu0
    %v10601 = vpop.f32.mrb[0].mxu0
    %v10602 = vadd.f32 %v10441, %v10601
    %v10603 = vpop.f32.mrb[0].mxu0
    %10604 = vmatprep.mubr.bf16.mxu0 %v9497
    %10605 = vmatmul.mubr.bf16.gmra.mrb[0].mxu0 %v9493
    %v10606 = vpop.f32.mrb[0].mxu0
    %v10607 = vadd.f32 %v10446, %v10606
    %v10608 = vpop.f32.mrb[0].mxu0
    %v10609 = vpop.f32.mrb[0].mxu0
    %v10610 = vadd.f32 %v10449, %v10609
    %v10611 = vpop.f32.mrb[0].mxu0
    %10612 = vmatprep.mubr.bf16.mxu0 %v9529
    %10613 = vmatmul.mubr.bf16.gmra.mrb[0].mxu0 %v9525
    %v10614 = vpop.f32.mrb[0].mxu0
    %v10615 = vadd.f32 %v10454, %v10614
    %v10616 = vpop.f32.mrb[0].mxu0
    %v10617 = vpop.f32.mrb[0].mxu0
    %v10618 = vadd.f32 %v10457, %v10617
    %v10619 = vpop.f32.mrb[0].mxu0
    %10620 = vmatprep.mubr.bf16.mxu0 %v9561
    %10621 = vmatmul.mubr.bf16.gmra.mrb[0].mxu0 %v9557
    %v10622 = vpop.f32.mrb[0].mxu0
    %v10623 = vadd.f32 %v10462, %v10622
    %v10624 = vpop.f32.mrb[0].mxu0
    %v10625 = vpop.f32.mrb[0].mxu0
    %v10626 = vadd.f32 %v10465, %v10625
    %v10627 = vpop.f32.mrb[0].mxu0
    %10628 = vmatprep.mubr.bf16.mxu0 %v9593
    %10629 = vmatmul.mubr.bf16.gmra.mrb[0].mxu0 %v9589
    %v10630 = vpop.f32.mrb[0].mxu0
    %v10631 = vadd.f32 %v10470, %v10630
    %v10632 = vpop.f32.mrb[0].mxu0
    %v10633 = vpop.f32.mrb[0].mxu0
    %v10634 = vadd.f32 %v10473, %v10633
    %v10635 = vpop.f32.mrb[0].mxu0
    %10636 = vmatprep.mubr.bf16.mxu0 %v9625
    %10637 = vmatmul.mubr.bf16.gmra.mrb[0].mxu0 %v9621
    %v10638 = vpop.f32.mrb[0].mxu0
    %v10639 = vadd.f32 %v10478, %v10638
    %v10640 = vpop.f32.mrb[0].mxu0
    %v10641 = vpop.f32.mrb[0].mxu0
    %v10642 = vadd.f32 %v10481, %v10641
    %v10643 = vpop.f32.mrb[0].mxu0
    %10644 = vmatprep.mubr.bf16.mxu0 %v9657
    %10645 = vmatmul.mubr.bf16.gmra.mrb[0].mxu0 %v9653
    %v10646 = vpop.f32.mrb[0].mxu0
    %v10647 = vadd.f32 %v10486, %v10646
    %v10648 = vpop.f32.mrb[0].mxu0
    %v10649 = vpop.f32.mrb[0].mxu0
    %v10650 = vadd.f32 %v10489, %v10649
    %v10651 = vpop.f32.mrb[0].mxu0
    %10652 = vmatprep.mubr.bf16.mxu0 %v9689
    %10653 = vmatmul.mubr.bf16.gmra.mrb[0].mxu0 %v9685
    %v10654 = vpop.f32.mrb[0].mxu0
    %v10655 = vadd.f32 %v10494, %v10654
    %v10656 = vpop.f32.mrb[0].mxu0
    %v10657 = vpop.f32.mrb[0].mxu0
    %v10658 = vadd.f32 %v10497, %v10657
    %v10659 = vpop.f32.mrb[0].mxu0
    %10660 = vmatprep.mubr.bf16.mxu0 %v9721
    %10661 = vmatmul.mubr.bf16.gmra.mrb[0].mxu0 %v9717
    %v10662 = vpop.f32.mrb[0].mxu0
    %v10663 = vadd.f32 %v10502, %v10662
    %v10664 = vpop.f32.mrb[0].mxu0
    %v10665 = vpop.f32.mrb[0].mxu0
    %v10666 = vadd.f32 %v10505, %v10665
    %v10667 = vpop.f32.mrb[0].mxu0
    %10668 = vmatprep.mubr.bf16.mxu0 %v9753
    %10669 = vmatmul.mubr.bf16.gmra.mrb[0].mxu0 %v9749
    %v10670 = vpop.f32.mrb[0].mxu0
    %v10671 = vadd.f32 %v10510, %v10670
    %v10672 = vpop.f32.mrb[0].mxu0
    %v10673 = vpop.f32.mrb[0].mxu0
    %v10674 = vadd.f32 %v10513, %v10673
    %v10675 = vpop.f32.mrb[0].mxu0
    %10676 = vmatprep.mubr.bf16.mxu0 %v9785
    %10677 = vmatmul.mubr.bf16.gmra.mrb[0].mxu0 %v9781
    %v10678 = vpop.f32.mrb[0].mxu0
    %v10679 = vadd.f32 %v10518, %v10678
    %v10680 = vpop.f32.mrb[0].mxu0
    %v10681 = vpop.f32.mrb[0].mxu0
    %v10682 = vadd.f32 %v10521, %v10681
    %v10683 = vpop.f32.mrb[0].mxu0
    %10684 = vmatprep.mubr.bf16.mxu0 %v9817
    %10685 = vmatmul.mubr.bf16.gmra.mrb[0].mxu0 %v9813
    %v10686 = vpop.f32.mrb[0].mxu0
    %v10687 = vadd.f32 %v10526, %v10686
    %v10688 = vpop.f32.mrb[0].mxu0
    %v10689 = vpop.f32.mrb[0].mxu0
    %v10690 = vadd.f32 %v10529, %v10689
    %v10691 = vpop.f32.mrb[0].mxu0
    %10692 = vmatprep.mubr.bf16.mxu0 %v9849
    %10693 = vmatmul.mubr.bf16.gmra.mrb[0].mxu0 %v9845
    %v10694 = vpop.f32.mrb[0].mxu0
    %v10695 = vadd.f32 %v10534, %v10694
    %v10696 = vpop.f32.mrb[0].mxu0
    %v10697 = vpop.f32.mrb[0].mxu0
    %v10698 = vadd.f32 %v10537, %v10697
    %v10699 = vpop.f32.mrb[0].mxu0
    %10700 = vdwg.mxu0
    %10701 = vmatprep.subr.bf16.mxu0 0
    %10702 = vmatpush1.bf16.msra.mxu0 %v10283
    %10703 = vmatprep.subr.bf16.mxu0 0
    %10704 = vmatpush1.bf16.msra.mxu0 %v10284
    %10705 = vmatprep.subr.bf16.mxu0 0
    %10706 = vmatpush1.bf16.msra.mxu0 %v10285
    %10707 = vmatprep.subr.bf16.mxu0 0
    %10708 = vmatpush1.bf16.msra.mxu0 %v10286
    %10709 = vmatprep.subr.bf16.mxu0 0
    %10710 = vmatpush1.bf16.msra.mxu0 %v10287
    %10711 = vmatprep.subr.bf16.mxu0 0
    %10712 = vmatpush1.bf16.msra.mxu0 %v10288
    %10713 = vmatprep.subr.bf16.mxu0 0
    %10714 = vmatpush1.bf16.msra.mxu0 %v10289
    %10715 = vmatprep.subr.bf16.mxu0 0
    %10716 = vmatpush1.bf16.msra.mxu0 %v10290
    %10717 = vmatprep.subr.bf16.mxu0 0
    %10718 = vmatpush1.bf16.msra.mxu0 %v10291
    %10719 = vmatprep.subr.bf16.mxu0 0
    %10720 = vmatpush1.bf16.msra.mxu0 %v10292
    %10721 = vmatprep.subr.bf16.mxu0 0
    %10722 = vmatpush1.bf16.msra.mxu0 %v10293
    %10723 = vmatprep.subr.bf16.mxu0 0
    %10724 = vmatpush1.bf16.msra.mxu0 %v10294
    %10725 = vmatprep.subr.bf16.mxu0 0
    %10726 = vmatpush1.bf16.msra.mxu0 %v10295
    %10727 = vmatprep.subr.bf16.mxu0 0
    %10728 = vmatpush1.bf16.msra.mxu0 %v10296
    %10729 = vmatprep.subr.bf16.mxu0 0
    %10730 = vmatpush1.bf16.msra.mxu0 %v10297
    %10731 = vmatprep.subr.bf16.mxu0 0
    %10732 = vmatpush1.bf16.msra.mxu0 %v10298
    %10733 = vmatprep.mubr.bf16.mxu0 %v9377
    %10734 = vmatmul.mubr.bf16.gmra.mrb[0].mxu0 %v9373
    %v10735 = vpop.f32.mrb[0].mxu0
    %v10736 = vadd.f32 %v10575, %v10735
    %v10737 = vpop.f32.mrb[0].mxu0
    %v10738 = vpop.f32.mrb[0].mxu0
    %v10739 = vadd.f32 %v10578, %v10738
    %v10740 = vpop.f32.mrb[0].mxu0
    %10741 = vmatprep.mubr.bf16.mxu0 %v9409
    %10742 = vmatmul.mubr.bf16.gmra.mrb[0].mxu0 %v9405
    %v10743 = vpop.f32.mrb[0].mxu0
    %v10744 = vadd.f32 %v10583, %v10743
    %v10745 = vpop.f32.mrb[0].mxu0
    %v10746 = vpop.f32.mrb[0].mxu0
    %v10747 = vadd.f32 %v10586, %v10746
    %v10748 = vpop.f32.mrb[0].mxu0
    %10749 = vmatprep.mubr.bf16.mxu0 %v9441
    %10750 = vmatmul.mubr.bf16.gmra.mrb[0].mxu0 %v9437
    %v10751 = vpop.f32.mrb[0].mxu0
    %v10752 = vadd.f32 %v10591, %v10751
    %v10753 = vpop.f32.mrb[0].mxu0
    %v10754 = vpop.f32.mrb[0].mxu0
    %v10755 = vadd.f32 %v10594, %v10754
    %v10756 = vpop.f32.mrb[0].mxu0
    %10757 = vmatprep.mubr.bf16.mxu0 %v9473
    %10758 = vmatmul.mubr.bf16.gmra.mrb[0].mxu0 %v9469
    %v10759 = vpop.f32.mrb[0].mxu0
    %v10760 = vadd.f32 %v10599, %v10759
    %v10761 = vpop.f32.mrb[0].mxu0
    %v10762 = vpop.f32.mrb[0].mxu0
    %v10763 = vadd.f32 %v10602, %v10762
    %v10764 = vpop.f32.mrb[0].mxu0
    %10765 = vmatprep.mubr.bf16.mxu0 %v9505
    %10766 = vmatmul.mubr.bf16.gmra.mrb[0].mxu0 %v9501
    %v10767 = vpop.f32.mrb[0].mxu0
    %v10768 = vadd.f32 %v10607, %v10767
    %v10769 = vpop.f32.mrb[0].mxu0
    %v10770 = vpop.f32.mrb[0].mxu0
    %v10771 = vadd.f32 %v10610, %v10770
    %v10772 = vpop.f32.mrb[0].mxu0
    %10773 = vmatprep.mubr.bf16.mxu0 %v9537
    %10774 = vmatmul.mubr.bf16.gmra.mrb[0].mxu0 %v9533
    %v10775 = vpop.f32.mrb[0].mxu0
    %v10776 = vadd.f32 %v10615, %v10775
    %v10777 = vpop.f32.mrb[0].mxu0
    %v10778 = vpop.f32.mrb[0].mxu0
    %v10779 = vadd.f32 %v10618, %v10778
    %v10780 = vpop.f32.mrb[0].mxu0
    %10781 = vmatprep.mubr.bf16.mxu0 %v9569
    %10782 = vmatmul.mubr.bf16.gmra.mrb[0].mxu0 %v9565
    %v10783 = vpop.f32.mrb[0].mxu0
    %v10784 = vadd.f32 %v10623, %v10783
    %v10785 = vpop.f32.mrb[0].mxu0
    %v10786 = vpop.f32.mrb[0].mxu0
    %v10787 = vadd.f32 %v10626, %v10786
    %v10788 = vpop.f32.mrb[0].mxu0
    %10789 = vmatprep.mubr.bf16.mxu0 %v9601
    %10790 = vmatmul.mubr.bf16.gmra.mrb[0].mxu0 %v9597
    %v10791 = vpop.f32.mrb[0].mxu0
    %v10792 = vadd.f32 %v10631, %v10791
    %v10793 = vpop.f32.mrb[0].mxu0
    %v10794 = vpop.f32.mrb[0].mxu0
    %v10795 = vadd.f32 %v10634, %v10794
    %v10796 = vpop.f32.mrb[0].mxu0
    %10797 = vmatprep.mubr.bf16.mxu0 %v9633
    %10798 = vmatmul.mubr.bf16.gmra.mrb[0].mxu0 %v9629
    %v10799 = vpop.f32.mrb[0].mxu0
    %v10800 = vadd.f32 %v10639, %v10799
    %v10801 = vpop.f32.mrb[0].mxu0
    %v10802 = vpop.f32.mrb[0].mxu0
    %v10803 = vadd.f32 %v10642, %v10802
    %v10804 = vpop.f32.mrb[0].mxu0
    %10805 = vmatprep.mubr.bf16.mxu0 %v9665
    %10806 = vmatmul.mubr.bf16.gmra.mrb[0].mxu0 %v9661
    %v10807 = vpop.f32.mrb[0].mxu0
    %v10808 = vadd.f32 %v10647, %v10807
    %v10809 = vpop.f32.mrb[0].mxu0
    %v10810 = vpop.f32.mrb[0].mxu0
    %v10811 = vadd.f32 %v10650, %v10810
    %v10812 = vpop.f32.mrb[0].mxu0
    %10813 = vmatprep.mubr.bf16.mxu0 %v9697
    %10814 = vmatmul.mubr.bf16.gmra.mrb[0].mxu0 %v9693
    %v10815 = vpop.f32.mrb[0].mxu0
    %v10816 = vadd.f32 %v10655, %v10815
    %v10817 = vpop.f32.mrb[0].mxu0
    %v10818 = vpop.f32.mrb[0].mxu0
    %v10819 = vadd.f32 %v10658, %v10818
    %v10820 = vpop.f32.mrb[0].mxu0
    %10821 = vmatprep.mubr.bf16.mxu0 %v9729
    %10822 = vmatmul.mubr.bf16.gmra.mrb[0].mxu0 %v9725
    %v10823 = vpop.f32.mrb[0].mxu0
    %v10824 = vadd.f32 %v10663, %v10823
    %v10825 = vpop.f32.mrb[0].mxu0
    %v10826 = vpop.f32.mrb[0].mxu0
    %v10827 = vadd.f32 %v10666, %v10826
    %v10828 = vpop.f32.mrb[0].mxu0
    %10829 = vmatprep.mubr.bf16.mxu0 %v9761
    %10830 = vmatmul.mubr.bf16.gmra.mrb[0].mxu0 %v9757
    %v10831 = vpop.f32.mrb[0].mxu0
    %v10832 = vadd.f32 %v10671, %v10831
    %v10833 = vpop.f32.mrb[0].mxu0
    %v10834 = vpop.f32.mrb[0].mxu0
    %v10835 = vadd.f32 %v10674, %v10834
    %v10836 = vpop.f32.mrb[0].mxu0
    %10837 = vmatprep.mubr.bf16.mxu0 %v9793
    %10838 = vmatmul.mubr.bf16.gmra.mrb[0].mxu0 %v9789
    %v10839 = vpop.f32.mrb[0].mxu0
    %v10840 = vadd.f32 %v10679, %v10839
    %v10841 = vpop.f32.mrb[0].mxu0
    %v10842 = vpop.f32.mrb[0].mxu0
    %v10843 = vadd.f32 %v10682, %v10842
    %v10844 = vpop.f32.mrb[0].mxu0
    %10845 = vmatprep.mubr.bf16.mxu0 %v9825
    %10846 = vmatmul.mubr.bf16.gmra.mrb[0].mxu0 %v9821
    %v10847 = vpop.f32.mrb[0].mxu0
    %v10848 = vadd.f32 %v10687, %v10847
    %v10849 = vpop.f32.mrb[0].mxu0
    %v10850 = vpop.f32.mrb[0].mxu0
    %v10851 = vadd.f32 %v10690, %v10850
    %v10852 = vpop.f32.mrb[0].mxu0
    %10853 = vmatprep.mubr.bf16.mxu0 %v9857
    %10854 = vmatmul.mubr.bf16.gmra.mrb[0].mxu0 %v9853
    %v10855 = vpop.f32.mrb[0].mxu0
    %v10856 = vadd.f32 %v10695, %v10855
    %v10857 = vpop.f32.mrb[0].mxu0
    %v10858 = vpop.f32.mrb[0].mxu0
    %v10859 = vadd.f32 %v10698, %v10858
    %v10860 = vpop.f32.mrb[0].mxu0
    %10861 = vdwg.mxu0
    %10862 = vmatprep.subr.bf16.mxu0 0
    %10863 = vmatpush1.bf16.msra.mxu0 %v10299
    %10864 = vmatprep.subr.bf16.mxu0 0
    %10865 = vmatpush1.bf16.msra.mxu0 %v10300
    %10866 = vmatprep.subr.bf16.mxu0 0
    %10867 = vmatpush1.bf16.msra.mxu0 %v10301
    %10868 = vmatprep.subr.bf16.mxu0 0
    %10869 = vmatpush1.bf16.msra.mxu0 %v10302
    %10870 = vmatprep.subr.bf16.mxu0 0
    %10871 = vmatpush1.bf16.msra.mxu0 %v10303
    %10872 = vmatprep.subr.bf16.mxu0 0
    %10873 = vmatpush1.bf16.msra.mxu0 %v10304
    %10874 = vmatprep.subr.bf16.mxu0 0
    %10875 = vmatpush1.bf16.msra.mxu0 %v10305
    %10876 = vmatprep.subr.bf16.mxu0 0
    %10877 = vmatpush1.bf16.msra.mxu0 %v10306
    %10878 = vmatprep.subr.bf16.mxu0 0
    %10879 = vmatpush1.bf16.msra.mxu0 %v10307
    %10880 = vmatprep.subr.bf16.mxu0 0
    %10881 = vmatpush1.bf16.msra.mxu0 %v10308
    %10882 = vmatprep.subr.bf16.mxu0 0
    %10883 = vmatpush1.bf16.msra.mxu0 %v10309
    %10884 = vmatprep.subr.bf16.mxu0 0
    %10885 = vmatpush1.bf16.msra.mxu0 %v10310
    %10886 = vmatprep.subr.bf16.mxu0 0
    %10887 = vmatpush1.bf16.msra.mxu0 %v10311
    %10888 = vmatprep.subr.bf16.mxu0 0
    %10889 = vmatpush1.bf16.msra.mxu0 %v10312
    %10890 = vmatprep.subr.bf16.mxu0 0
    %10891 = vmatpush1.bf16.msra.mxu0 %v10313
    %10892 = vmatprep.subr.bf16.mxu0 0
    %10893 = vmatpush1.bf16.msra.mxu0 %v10314
    %10894 = vmatprep.mubr.bf16.mxu0 %v9385
    %10895 = vmatmul.mubr.bf16.gmra.mrb[0].mxu0 %v9381
    %v10896 = vpop.f32.mrb[0].mxu0
    %v10897 = vadd.f32 %v10736, %v10896
    %v10898 = vpop.f32.mrb[0].mxu0
    %v10899 = vpop.f32.mrb[0].mxu0
    %v10900 = vadd.f32 %v10739, %v10899
    %v10901 = vpop.f32.mrb[0].mxu0
    %10902 = vmatprep.mubr.bf16.mxu0 %v9417
    %10903 = vmatmul.mubr.bf16.gmra.mrb[0].mxu0 %v9413
    %v10904 = vpop.f32.mrb[0].mxu0
    %v10905 = vadd.f32 %v10744, %v10904
    %v10906 = vpop.f32.mrb[0].mxu0
    %v10907 = vpop.f32.mrb[0].mxu0
    %v10908 = vadd.f32 %v10747, %v10907
    %v10909 = vpop.f32.mrb[0].mxu0
    %10910 = vmatprep.mubr.bf16.mxu0 %v9449
    %10911 = vmatmul.mubr.bf16.gmra.mrb[0].mxu0 %v9445
    %v10912 = vpop.f32.mrb[0].mxu0
    %v10913 = vadd.f32 %v10752, %v10912
    %v10914 = vpop.f32.mrb[0].mxu0
    %v10915 = vpop.f32.mrb[0].mxu0
    %v10916 = vadd.f32 %v10755, %v10915
    %v10917 = vpop.f32.mrb[0].mxu0
    %10918 = vmatprep.mubr.bf16.mxu0 %v9481
    %10919 = vmatmul.mubr.bf16.gmra.mrb[0].mxu0 %v9477
    %v10920 = vpop.f32.mrb[0].mxu0
    %v10921 = vadd.f32 %v10760, %v10920
    %v10922 = vpop.f32.mrb[0].mxu0
    %v10923 = vpop.f32.mrb[0].mxu0
    %v10924 = vadd.f32 %v10763, %v10923
    %v10925 = vpop.f32.mrb[0].mxu0
    %10926 = vmatprep.mubr.bf16.mxu0 %v9513
    %10927 = vmatmul.mubr.bf16.gmra.mrb[0].mxu0 %v9509
    %v10928 = vpop.f32.mrb[0].mxu0
    %v10929 = vadd.f32 %v10768, %v10928
    %v10930 = vpop.f32.mrb[0].mxu0
    %v10931 = vpop.f32.mrb[0].mxu0
    %v10932 = vadd.f32 %v10771, %v10931
    %v10933 = vpop.f32.mrb[0].mxu0
    %10934 = vmatprep.mubr.bf16.mxu0 %v9545
    %10935 = vmatmul.mubr.bf16.gmra.mrb[0].mxu0 %v9541
    %v10936 = vpop.f32.mrb[0].mxu0
    %v10937 = vadd.f32 %v10776, %v10936
    %v10938 = vpop.f32.mrb[0].mxu0
    %v10939 = vpop.f32.mrb[0].mxu0
    %v10940 = vadd.f32 %v10779, %v10939
    %v10941 = vpop.f32.mrb[0].mxu0
    %10942 = vmatprep.mubr.bf16.mxu0 %v9577
    %10943 = vmatmul.mubr.bf16.gmra.mrb[0].mxu0 %v9573
    %v10944 = vpop.f32.mrb[0].mxu0
    %v10945 = vadd.f32 %v10784, %v10944
    %v10946 = vpop.f32.mrb[0].mxu0
    %v10947 = vpop.f32.mrb[0].mxu0
    %v10948 = vadd.f32 %v10787, %v10947
    %v10949 = vpop.f32.mrb[0].mxu0
    %10950 = vmatprep.mubr.bf16.mxu0 %v9609
    %10951 = vmatmul.mubr.bf16.gmra.mrb[0].mxu0 %v9605
    %v10952 = vpop.f32.mrb[0].mxu0
    %v10953 = vadd.f32 %v10792, %v10952
    %v10954 = vpop.f32.mrb[0].mxu0
    %v10955 = vpop.f32.mrb[0].mxu0
    %v10956 = vadd.f32 %v10795, %v10955
    %v10957 = vpop.f32.mrb[0].mxu0
    %10958 = vmatprep.mubr.bf16.mxu0 %v9641
    %10959 = vmatmul.mubr.bf16.gmra.mrb[0].mxu0 %v9637
    %v10960 = vpop.f32.mrb[0].mxu0
    %v10961 = vadd.f32 %v10800, %v10960
    %v10962 = vpop.f32.mrb[0].mxu0
    %v10963 = vpop.f32.mrb[0].mxu0
    %v10964 = vadd.f32 %v10803, %v10963
    %v10965 = vpop.f32.mrb[0].mxu0
    %10966 = vmatprep.mubr.bf16.mxu0 %v9673
    %10967 = vmatmul.mubr.bf16.gmra.mrb[0].mxu0 %v9669
    %v10968 = vpop.f32.mrb[0].mxu0
    %v10969 = vadd.f32 %v10808, %v10968
    %v10970 = vpop.f32.mrb[0].mxu0
    %v10971 = vpop.f32.mrb[0].mxu0
    %v10972 = vadd.f32 %v10811, %v10971
    %v10973 = vpop.f32.mrb[0].mxu0
    %10974 = vmatprep.mubr.bf16.mxu0 %v9705
    %10975 = vmatmul.mubr.bf16.gmra.mrb[0].mxu0 %v9701
    %v10976 = vpop.f32.mrb[0].mxu0
    %v10977 = vadd.f32 %v10816, %v10976
    %v10978 = vpop.f32.mrb[0].mxu0
    %v10979 = vpop.f32.mrb[0].mxu0
    %v10980 = vadd.f32 %v10819, %v10979
    %v10981 = vpop.f32.mrb[0].mxu0
    %10982 = vmatprep.mubr.bf16.mxu0 %v9737
    %10983 = vmatmul.mubr.bf16.gmra.mrb[0].mxu0 %v9733
    %v10984 = vpop.f32.mrb[0].mxu0
    %v10985 = vadd.f32 %v10824, %v10984
    %v10986 = vpop.f32.mrb[0].mxu0
    %v10987 = vpop.f32.mrb[0].mxu0
    %v10988 = vadd.f32 %v10827, %v10987
    %v10989 = vpop.f32.mrb[0].mxu0
    %10990 = vmatprep.mubr.bf16.mxu0 %v9769
    %10991 = vmatmul.mubr.bf16.gmra.mrb[0].mxu0 %v9765
    %v10992 = vpop.f32.mrb[0].mxu0
    %v10993 = vadd.f32 %v10832, %v10992
    %v10994 = vpop.f32.mrb[0].mxu0
    %v10995 = vpop.f32.mrb[0].mxu0
    %v10996 = vadd.f32 %v10835, %v10995
    %v10997 = vpop.f32.mrb[0].mxu0
    %10998 = vmatprep.mubr.bf16.mxu0 %v9801
    %10999 = vmatmul.mubr.bf16.gmra.mrb[0].mxu0 %v9797
    %v11000 = vpop.f32.mrb[0].mxu0
    %v11001 = vadd.f32 %v10840, %v11000
    %v11002 = vpop.f32.mrb[0].mxu0
    %v11003 = vpop.f32.mrb[0].mxu0
    %v11004 = vadd.f32 %v10843, %v11003
    %v11005 = vpop.f32.mrb[0].mxu0
    %11006 = vmatprep.mubr.bf16.mxu0 %v9833
    %11007 = vmatmul.mubr.bf16.gmra.mrb[0].mxu0 %v9829
    %v11008 = vpop.f32.mrb[0].mxu0
    %v11009 = vadd.f32 %v10848, %v11008
    %v11010 = vpop.f32.mrb[0].mxu0
    %v11011 = vpop.f32.mrb[0].mxu0
    %v11012 = vadd.f32 %v10851, %v11011
    %v11013 = vpop.f32.mrb[0].mxu0
    %11014 = vmatprep.mubr.bf16.mxu0 %v9865
    %11015 = vmatmul.mubr.bf16.gmra.mrb[0].mxu0 %v9861
    %v11016 = vpop.f32.mrb[0].mxu0
    %v11017 = vadd.f32 %v10856, %v11016
    %v11018 = vpop.f32.mrb[0].mxu0
    %v11019 = vpop.f32.mrb[0].mxu0
    %v11020 = vadd.f32 %v10859, %v11019
    %v11021 = vpop.f32.mrb[0].mxu0
    %11022 = vdwg.mxu0
    %v11023 = vld [vmem:[%s2] sm:$0x3]
    %v11024 = vlaneseq
    %v11025 = vshrl.u32 %v11024, 7
    %v11026 = vadd.s32 %v11025, 8
    %v11027 = vlaneseq
    %v11028 = vshrl.u32 %v11027, 7
    %v11029 = vsub.s32 0, %v11028
    %v11030 = vrot.slane %v11023, %v11029
    %v11031 = vlaneseq
    %v11032 = vshrl.u32 %v11031, 7
    %v11033 = vsub.s32 1, %v11032
    %v11034 = vrot.slane %v11023, %v11033
    %vm11035 = vcmp.eq.s32.totalorder %v11025, %v11030
    %vm11036 = vcmp.eq.s32.totalorder %v11025, %v11034
    %vm11037 = vcmp.eq.s32.totalorder %v11026, %v11030
    %vm11038 = vcmp.eq.s32.totalorder %v11026, %v11034
    %v11039 = vsel %vm11035, 1, 0
    %v11040 = vsel %vm11036, 1, 0
    %v11041 = vsel %vm11037, 1, 0
    %v11042 = vsel %vm11038, 1, 0
    %v11043 = vcvt.s32.f32 %v11039
    %v11044 = vcvt.s32.f32 %v11040
    %v11045 = vcvt.s32.f32 %v11041
    %v11046 = vcvt.s32.f32 %v11042
    %v11047 = vpack.c.bf16 %v11045, %v11043
    %v11048 = vpack.c.bf16 %v11046, %v11044
    %v11049 = vld [vmem:[#allocation5] sm:$0xff]
    %v11050 = vld [vmem:[#allocation5 + $0x8] sm:$0xff]
    %v11051 = vpack.c.bf16 %v10900, %v10897
    %v11052 = vpack.c.bf16 %v10908, %v10905
    %v11053 = vpack.c.bf16 %v10916, %v10913
    %v11054 = vpack.c.bf16 %v10924, %v10921
    %v11055 = vpack.c.bf16 %v10932, %v10929
    %v11056 = vpack.c.bf16 %v10940, %v10937
    %v11057 = vpack.c.bf16 %v10948, %v10945
    %v11058 = vpack.c.bf16 %v10956, %v10953
    %v11059 = vpack.c.bf16 %v10964, %v10961
    %v11060 = vpack.c.bf16 %v10972, %v10969
    %v11061 = vpack.c.bf16 %v10980, %v10977
    %v11062 = vpack.c.bf16 %v10988, %v10985
    %v11063 = vpack.c.bf16 %v10996, %v10993
    %v11064 = vpack.c.bf16 %v11004, %v11001
    %v11065 = vpack.c.bf16 %v11012, %v11009
    %v11066 = vpack.c.bf16 %v11020, %v11017
    %11067 = vmatprep.subr.bf16.mxu0 0
    %11068 = vmatpush1.bf16.msra.mxu0 %v11051
    %11069 = vmatprep.subr.bf16.mxu0 0
    %11070 = vmatpush1.bf16.msra.mxu0 %v11052
    %11071 = vmatprep.subr.bf16.mxu0 0
    %11072 = vmatpush1.bf16.msra.mxu0 %v11053
    %11073 = vmatprep.subr.bf16.mxu0 0
    %11074 = vmatpush1.bf16.msra.mxu0 %v11054
    %11075 = vmatprep.subr.bf16.mxu0 0
    %11076 = vmatpush1.bf16.msra.mxu0 %v11055
    %11077 = vmatprep.subr.bf16.mxu0 0
    %11078 = vmatpush1.bf16.msra.mxu0 %v11056
    %11079 = vmatprep.subr.bf16.mxu0 0
    %11080 = vmatpush1.bf16.msra.mxu0 %v11057
    %11081 = vmatprep.subr.bf16.mxu0 0
    %11082 = vmatpush1.bf16.msra.mxu0 %v11058
    %11083 = vmatprep.subr.bf16.mxu0 0
    %11084 = vmatpush1.bf16.msra.mxu0 %v11059
    %11085 = vmatprep.subr.bf16.mxu0 0
    %11086 = vmatpush1.bf16.msra.mxu0 %v11060
    %11087 = vmatprep.subr.bf16.mxu0 0
    %11088 = vmatpush1.bf16.msra.mxu0 %v11061
    %11089 = vmatprep.subr.bf16.mxu0 0
    %11090 = vmatpush1.bf16.msra.mxu0 %v11062
    %11091 = vmatprep.subr.bf16.mxu0 0
    %11092 = vmatpush1.bf16.msra.mxu0 %v11063
    %11093 = vmatprep.subr.bf16.mxu0 0
    %11094 = vmatpush1.bf16.msra.mxu0 %v11064
    %11095 = vmatprep.subr.bf16.mxu0 0
    %11096 = vmatpush1.bf16.msra.mxu0 %v11065
    %11097 = vmatprep.subr.bf16.mxu0 0
    %11098 = vmatpush1.bf16.msra.mxu0 %v11066
    %11099 = vmatprep.mubr.bf16.mxu0 %v11048
    %11100 = vmatmul.mubr.bf16.gmra.mrb[0].mxu0 %v11047
    %v11101 = vpop.f32.mrb[0].mxu0
    %v11102 = vadd.f32 0.0, %v11101
    %v11103 = vpop.f32.mrb[0].mxu0
    %v11104 = vpop.f32.mrb[0].mxu0
    %v11105 = vadd.f32 0.0, %v11104
    %v11106 = vpop.f32.mrb[0].mxu0
    %11107 = vdwg.mxu0
    %v11108 = vadd.f32 %v11049, %v11102
    %v11109 = vadd.f32 %v11050, %v11105
    %11110 = vst [vmem:[#allocation5] sm:$0xff] %v11108
    %11111 = vst [vmem:[#allocation5 + $0x8] sm:$0xff] %v11109
    // Predicated region
    $region46: #{tpu_custom_call.1} parent=1 // pred_check
      %p11112 = pneg %p48
    $region47: #{tpu_custom_call.1} parent=1 // pred_check_branch
      %11114 = sbr.rel (%p11112) target = $region49
    $region48: #{tpu_custom_call.1} parent=1 // pred_region
      %v11115 = vld [vmem:[%s7] sm:$0xf]
      %v11117 = vsel %vm174, %v438, 0
      %v11120 = vsel %vm223, %v11115, 0
      %11122 = vmatprep.subr.bf16.mxu0 0
      %11123 = vmatpush1.bf16.msra.mxu0 %v11120
      %11124 = vmatprep.subr.bf16.mxu0 0
      %11125 = vmatpush1.bf16.msra.mxu0 0
      %11126 = vmatprep.subr.bf16.mxu0 0
      %11127 = vmatpush1.bf16.msra.mxu0 0
      %11128 = vmatprep.subr.bf16.mxu0 0
      %11129 = vmatpush1.bf16.msra.mxu0 0
      %11130 = vmatprep.subr.bf16.mxu0 0
      %11131 = vmatpush1.bf16.msra.mxu0 0
      %11132 = vmatprep.subr.bf16.mxu0 0
      %11133 = vmatpush1.bf16.msra.mxu0 0
      %11134 = vmatprep.subr.bf16.mxu0 0
      %11135 = vmatpush1.bf16.msra.mxu0 0
      %11136 = vmatprep.subr.bf16.mxu0 0
      %11137 = vmatpush1.bf16.msra.mxu0 0
      %11138 = vmatprep.subr.bf16.mxu0 0
      %11139 = vmatpush1.bf16.msra.mxu0 0
      %11140 = vmatprep.subr.bf16.mxu0 0
      %11141 = vmatpush1.bf16.msra.mxu0 0
      %11142 = vmatprep.subr.bf16.mxu0 0
      %11143 = vmatpush1.bf16.msra.mxu0 0
      %11144 = vmatprep.subr.bf16.mxu0 0
      %11145 = vmatpush1.bf16.msra.mxu0 0
      %11146 = vmatprep.subr.bf16.mxu0 0
      %11147 = vmatpush1.bf16.msra.mxu0 0
      %11148 = vmatprep.subr.bf16.mxu0 0
      %11149 = vmatpush1.bf16.msra.mxu0 0
      %11150 = vmatprep.subr.bf16.mxu0 0
      %11151 = vmatpush1.bf16.msra.mxu0 0
      %11152 = vmatprep.subr.bf16.mxu0 0
      %11153 = vmatpush1.bf16.msra.mxu0 0
      %11154 = vmatprep.mubr.bf16.mxu0 0
      %11155 = vmatmul.mubr.bf16.gmra.mrb[0].mxu0 %v11117
      %v11156 = vpop.f32.mrb[0].mxu0
      %v11157 = vadd.f32 0.0, %v11156
      %v11158 = vpop.f32.mrb[0].mxu0
      %v11159 = vpop.f32.mrb[0].mxu0
      %v11160 = vadd.f32 0.0, %v11159
      %v11161 = vpop.f32.mrb[0].mxu0
      %11162 = vdwg.mxu0
      %v11163 = vld [vmem:[#allocation5] sm:$0xff]
      %v11164 = vld [vmem:[#allocation5 + $0x8] sm:$0xff]
      %v11165 = vadd.f32 %v11163, %v11157
      %v11166 = vadd.f32 %v11164, %v11160
      %v11167 = vld [vmem:[%s8] sm:$0x1]
      %v11169 = vlaneseq
      %v11170 = vshrl.u32 %v11169, 7
      %v11171 = vsub.s32 0, %v11170
      %v11172 = vrot.slane %v11167, %v11171
      %v11174 = vadd.f32 %v11165, %v11172
      %v11175 = vadd.f32 %v11166, %v11172
      %v11176 = vmax.f32 %v11174, 0.0
      %v11177 = vmax.f32 %v11175, 0.0
      %11178 = vst [vmem:[#allocation5] sm:$0xff] %v11176
      %11179 = vst [vmem:[#allocation5 + $0x8] sm:$0xff] %v11177
    $region49: #{tpu_custom_call.1} parent=1 // pred_fallthru
      _
    // Predicated region
    $region50: #{tpu_custom_call.1} parent=1 // pred_check
      _
    $region51: #{tpu_custom_call.1} parent=1 // pred_check_branch
      %11181 = sbr.rel (0) target = $region53
    $region52: #{tpu_custom_call.1} parent=1 // pred_region
      %s11183 = ssub.s32 256, 256
      %11184 = vsyncadd [#allocation4], %s11183
      %s11185 = sshll.u32 [#allocation5], 4
      %s11186 = int_to_ptr.vmem [resolvable:$true] %s11185
      %11191 = dma.vmem_to_hbm [thread:$0]  %s11186, 256, %s9, [#allocation4], 128, 128, 8
    $region53: #{tpu_custom_call.1} parent=1 // pred_fallthru
      _
    // Predicated region
    $region54: #{tpu_custom_call.1} parent=1 // pred_check
      _
    $region55: #{tpu_custom_call.1} parent=1 // pred_check_branch
      %11193 = sbr.rel (0) target = $region57
    $region56: #{tpu_custom_call.1} parent=1 // pred_region
      %11194 = dma.done [#allocation4], 256
    $region57: #{tpu_custom_call.1} parent=1 // pred_fallthru
      _
    %11195 = vsyncpa [#allocation3], 1
    %11196 = vsyncpa [#allocation4], 1

</llo_original>
